<compile_context>
chip_gen: v7x
topology: tpu7x:2x2x1
jax: 0.10.0
libtpu: 0.0.40
codegen_flags: <defaults>
</compile_context>

<pallas_src>
import numpy as np
import jax
import jax.numpy as jnp
from jax.experimental import pallas as pl
from jax.experimental.pallas import tpu as pltpu


# ----------------------------------------------------------------------------
# Constant 0/1 gather matrices (built once on the host, applied on the MXU).
# ----------------------------------------------------------------------------
def _phase_selectors(wp):
    """(2, wp, wp//2) matrices selecting even / odd columns (exact gathers)."""
    wq = wp // 2
    s = np.zeros((2, wp, wq), np.float32)
    cols = np.arange(wq)
    s[0, 2 * cols, cols] = 1.0
    s[1, 2 * cols + 1, cols] = 1.0
    return jnp.asarray(s)


def _maxpool_selectors(h, w):
    """(4, h*w, (h//2)*(w//2)) gather matrices for a 2x2 / stride-2 max pool on
    a channels-major, row-major-flattened (C, h*w) feature map."""
    ho, wo = h // 2, w // 2
    s = np.zeros((4, h * w, ho * wo), np.float32)
    for dh in range(2):
        for dw in range(2):
            for a in range(ho):
                for b in range(wo):
                    s[dh * 2 + dw, (2 * a + dh) * w + (2 * b + dw), a * wo + b] = 1.0
    return jnp.asarray(s)


# ----------------------------------------------------------------------------
# In-kernel helpers
# ----------------------------------------------------------------------------
def _conv3x3_s2_relu(xp_ref, sel_ref, w_ref, b_ref, out_ref, patch_ref,
                     *, cin, h_in, w_in):
    """3x3 / stride-2 / pad-1 conv + bias + ReLU on a pre-padded VMEM input.

    xp_ref    (cin, h_in+2, w_in+2) f32   zero-padded input (already filled)
    sel_ref   (2, w_in+2, (w_in+2)//2) f32  even/odd column 0/1 selectors
    w_ref     (cout, 9*cin) bf16          weights, columns ordered (kh, kw, ci)
    b_ref     (cout, 1) f32
    out_ref   (cout, (h_in//2)*(w_in//2)) f32  lane-dense row-major output
    patch_ref (9*cin, w_in//2) f32        per-output-row im2col patch scratch
    """
    wq = (w_in + 2) // 2
    h_o, w_o = h_in // 2, w_in // 2

    xp = xp_ref[...]                                       # (cin, hp, wp) f32
    dn = (((2,), (0,)), ((), ()))
    # Exact stride-2 column decimation (even / odd phases) as 0/1 selection
    # matmuls -> avoids any strided lane access.
    x_even = jax.lax.dot_general(xp, sel_ref[0], dn,
                                 preferred_element_type=jnp.float32)  # (cin, hp, wq)
    x_odd = jax.lax.dot_general(xp, sel_ref[1], dn,
                                preferred_element_type=jnp.float32)

    w = w_ref[...]                                         # (cout, 9*cin) bf16
    b = b_ref[...]                                         # (cout, 1) f32
    for r in range(h_o):
        # Assemble the (9*cin, w_o) im2col patch for output row r; rows ordered
        # (kh, kw, ci) to match the wrapper's weight flattening.
        for kh in range(3):
            row_e = x_even[:, 2 * r + kh, :]               # (cin, wq)
            row_o = x_odd[:, 2 * r + kh, :]
            base = 3 * cin * kh
            patch_ref[base:base + cin, :] = row_e[:, 0:w_o]                  # kw = 0
            patch_ref[base + cin:base + 2 * cin, :] = row_o[:, 0:w_o]        # kw = 1
            patch_ref[base + 2 * cin:base + 3 * cin, :] = row_e[:, 1:w_o + 1]  # kw = 2
        # Single K = 9*cin GEMM for the whole output row (bf16 in, f32 acc).
        acc = jnp.dot(w, patch_ref[...].astype(jnp.bfloat16),
                      preferred_element_type=jnp.float32)                    # (cout, w_o)
        out_ref[:, r * w_o:(r + 1) * w_o] = jnp.maximum(acc + b, 0.0)
    # TODO(synk): at real image sizes, tile the output rows across an extra
    # "parallel" grid axis (with a 2-row halo in the input BlockSpec) instead of
    # unrolling them here, keeping double-buffered blocks under ~24 MiB for
    # v7x's 64 MiB VMEM (32 MiB scoped default).


def _stem_block_kernel(x_ref, sel1_ref, sel2_ref, pool_ref,
                       w1_ref, b1_ref, w2a_ref, b2a_ref, w2b_ref, b2b_ref,
                       w3a_ref, w3b_ref, b3_ref,
                       o_ref,
                       xp1_ref, y_ref, xp2_ref, br2_ref, patch1_ref, patch2_ref):
    _, cin, h, w = x_ref.shape
    c_half = w2a_ref.shape[0]
    h_mid, w_mid = h // 2, w // 2

    # ---- stem1: 3x3 / stride 2 / pad 1, cin -> c1, ReLU ---------------------
    xp1_ref[...] = jnp.zeros_like(xp1_ref)                 # halo padding in VMEM
    xp1_ref[:, 1:h + 1, 1:w + 1] = x_ref[0].astype(jnp.float32)
    _conv3x3_s2_relu(xp1_ref, sel1_ref, w1_ref, b1_ref, y_ref, patch1_ref,
                     cin=cin, h_in=h, w_in=w)
    y = y_ref[...]                                         # (c1, h_mid*w_mid) f32

    # ---- stem_pool: 2x2 / stride 2 max pool (exact gathers + elementwise max)
    branch1 = None
    for k in range(4):
        g = jnp.dot(y, pool_ref[k], preferred_element_type=jnp.float32)
        branch1 = g if branch1 is None else jnp.maximum(branch1, g)

    # ---- stem2a: 1x1 conv c1 -> c1/2, ReLU (lane-dense GEMM) ----------------
    z = jnp.dot(w2a_ref[...], y.astype(jnp.bfloat16),
                preferred_element_type=jnp.float32) + b2a_ref[...]
    z = jnp.maximum(z, 0.0)                                # (c1/2, h_mid*w_mid) f32

    # ---- stem2b: 3x3 / stride 2 / pad 1, c1/2 -> c1, ReLU -------------------
    xp2_ref[...] = jnp.zeros_like(xp2_ref)
    for r in range(h_mid):
        xp2_ref[:, r + 1, 1:w_mid + 1] = z[:, r * w_mid:(r + 1) * w_mid]
    _conv3x3_s2_relu(xp2_ref, sel2_ref, w2b_ref, b2b_ref, br2_ref, patch2_ref,
                     cin=c_half, h_in=h_mid, w_in=w_mid)

    # ---- concat (channels) + stem3: 1x1 conv 2*c1 -> c1, ReLU ---------------
    # torch.cat([branch1, branch2], 1) followed by a 1x1 conv == split weight.
    out = jnp.dot(w3a_ref[...], branch1.astype(jnp.bfloat16),
                  preferred_element_type=jnp.float32)
    out = out + jnp.dot(w3b_ref[...], br2_ref[...].astype(jnp.bfloat16),
                        preferred_element_type=jnp.float32)
    out = jnp.maximum(out + b3_ref[...], 0.0)              # (c1, h_out*w_out) f32
    o_ref[0] = out.astype(o_ref.dtype)


# ----------------------------------------------------------------------------
# Wrapper: NCHW -> NCHW, single pallas_call for the whole stem block.
# ----------------------------------------------------------------------------
def stem_block_forward(x, params):
    w1, b1 = params["stem1"]
    w2a, b2a = params["stem2a"]
    w2b, b2b = params["stem2b"]
    w3, b3 = params["stem3"]

    n, cin, h, w = x.shape
    c1 = w1.shape[0]
    c_half = w2a.shape[0]
    assert h % 4 == 0 and w % 4 == 0, "stem kernel assumes spatial dims % 4 == 0"
    h_mid, w_mid = h // 2, w // 2
    h_out, w_out = h_mid // 2, w_mid // 2

    # Tiny weight-only layout prep (no activation transposes / pads).
    w1m = jnp.transpose(w1, (0, 2, 3, 1)).reshape(c1, 9 * cin).astype(jnp.bfloat16)
    w2am = w2a.reshape(c_half, c1).astype(jnp.bfloat16)
    w2bm = jnp.transpose(w2b, (0, 2, 3, 1)).reshape(c1, 9 * c_half).astype(jnp.bfloat16)
    w3m = w3.reshape(c1, 2 * c1)
    w3am = w3m[:, :c1].astype(jnp.bfloat16)       # acts on branch1 (max-pool)
    w3bm = w3m[:, c1:].astype(jnp.bfloat16)       # acts on branch2 (stem2b)
    b1c = b1.reshape(c1, 1).astype(jnp.float32)
    b2ac = b2a.reshape(c_half, 1).astype(jnp.float32)
    b2bc = b2b.reshape(c1, 1).astype(jnp.float32)
    b3c = b3.reshape(c1, 1).astype(jnp.float32)

    # Constant 0/1 gather matrices (exact selections, applied on the MXU).
    sel1 = _phase_selectors(w + 2)
    sel2 = _phase_selectors(w_mid + 2)
    pools = _maxpool_selectors(h_mid, w_mid)

    out2 = pl.pallas_call(
        _stem_block_kernel,
        out_shape=jax.ShapeDtypeStruct((n, c1, h_out * w_out), jnp.float32),
        grid=(n,),
        in_specs=[
            pl.BlockSpec((1, cin, h, w), lambda i: (i, 0, 0, 0)),
            pl.BlockSpec(sel1.shape, lambda i: (0, 0, 0)),
            pl.BlockSpec(sel2.shape, lambda i: (0, 0, 0)),
            pl.BlockSpec(pools.shape, lambda i: (0, 0, 0)),
            pl.BlockSpec(w1m.shape, lambda i: (0, 0)),
            pl.BlockSpec(b1c.shape, lambda i: (0, 0)),
            pl.BlockSpec(w2am.shape, lambda i: (0, 0)),
            pl.BlockSpec(b2ac.shape, lambda i: (0, 0)),
            pl.BlockSpec(w2bm.shape, lambda i: (0, 0)),
            pl.BlockSpec(b2bc.shape, lambda i: (0, 0)),
            pl.BlockSpec(w3am.shape, lambda i: (0, 0)),
            pl.BlockSpec(w3bm.shape, lambda i: (0, 0)),
            pl.BlockSpec(b3c.shape, lambda i: (0, 0)),
        ],
        out_specs=pl.BlockSpec((1, c1, h_out * w_out), lambda i: (i, 0, 0)),
        scratch_shapes=[
            pltpu.VMEM((cin, h + 2, w + 2), jnp.float32),          # padded stem1 input
            pltpu.VMEM((c1, h_mid * w_mid), jnp.float32),          # stem1 output (C, H*W)
            pltpu.VMEM((c_half, h_mid + 2, w_mid + 2), jnp.float32),  # padded stem2b input
            pltpu.VMEM((c1, h_out * w_out), jnp.float32),          # stem2b output (C, H*W)
            pltpu.VMEM((9 * cin, w_mid), jnp.float32),             # stem1 im2col row patch
            pltpu.VMEM((9 * c_half, w_out), jnp.float32),          # stem2b im2col row patch
        ],
        compiler_params=pltpu.CompilerParams(
            dimension_semantics=("parallel",)),    # batch split across v7x's 2 TCs
    )(x, sel1, sel2, pools, w1m, b1c, w2am, b2ac, w2bm, b2bc, w3am, w3bm, b3c)

    # Free metadata reshape of a contiguous channels-major buffer -> NCHW.
    return out2.reshape(n, c1, h_out, w_out)


# ----------------------------------------------------------------------------
# Pure-JAX reference (mirrors the PyTorch module exactly, in f32).
# ----------------------------------------------------------------------------
def _reference(x, params):
    def conv_relu(v, wgt, bias, stride, pad):
        y = jax.lax.conv_general_dilated(
            v, wgt, window_strides=(stride, stride),
            padding=((pad, pad), (pad, pad)),
            dimension_numbers=("NCHW", "OIHW", "NCHW"))
        return jnp.maximum(y + bias[None, :, None, None], 0.0)

    w1, b1 = params["stem1"]
    w2a, b2a = params["stem2a"]
    w2b, b2b = params["stem2b"]
    w3, b3 = params["stem3"]
    y = conv_relu(x, w1, b1, 2, 1)
    branch1 = jax.lax.reduce_window(y, -jnp.inf, jax.lax.max,
                                    (1, 1, 2, 2), (1, 1, 2, 2), "VALID")
    branch2 = conv_relu(conv_relu(y, w2a, b2a, 1, 0), w2b, b2b, 2, 1)
    cat = jnp.concatenate([branch1, branch2], axis=1)
    return conv_relu(cat, w3, b3, 1, 0)


if __name__ == "__main__":
    # _stem_block(num_input_ch=3, num_init_features=32) at a small 16x16 input.
    n, cin, h, w = 2, 3, 16, 16
    c1 = 32

    key = jax.random.PRNGKey(0)
    ks = jax.random.split(key, 9)
    x = jax.random.normal(ks[0], (n, cin, h, w), dtype=jnp.float32)
    params = {
        "stem1": (0.1 * jax.random.normal(ks[1], (c1, cin, 3, 3), jnp.float32),
                  0.1 * jax.random.normal(ks[2], (c1,), jnp.float32)),
        "stem2a": (0.1 * jax.random.normal(ks[3], (c1 // 2, c1, 1, 1), jnp.float32),
                   0.1 * jax.random.normal(ks[4], (c1 // 2,), jnp.float32)),
        "stem2b": (0.1 * jax.random.normal(ks[5], (c1, c1 // 2, 3, 3), jnp.float32),
                   0.1 * jax.random.normal(ks[6], (c1,), jnp.float32)),
        "stem3": (0.1 * jax.random.normal(ks[7], (c1, 2 * c1, 1, 1), jnp.float32),
                  0.1 * jax.random.normal(ks[8], (c1,), jnp.float32)),
    }

    out = stem_block_forward(x, params)
    out = jax.block_until_ready(out)

    ref = _reference(x, params)
    assert out.shape == (n, c1, h // 4, w // 4), out.shape
    # bf16 MXU operands with f32 accumulation -> compare with a loose tolerance.
    assert jnp.allclose(out, ref, atol=3e-2, rtol=3e-2), \
        float(jnp.max(jnp.abs(out - ref)))

    print("KERNEL_OK")
</pallas_src>

<mosaic_0001>
module attributes {stable_mosaic.version = 11 : i64} {
  func.func @_stem_block_kernel(%arg0: i32, %arg1: memref<1x3x16x16xf32, #tpu.memory_space<vmem>>, %arg2: memref<2x18x9xf32, #tpu.memory_space<vmem>>, %arg3: memref<2x10x5xf32, #tpu.memory_space<vmem>>, %arg4: memref<4x64x16xf32, #tpu.memory_space<vmem>>, %arg5: memref<32x27xbf16, #tpu.memory_space<vmem>>, %arg6: memref<32x1xf32, #tpu.memory_space<vmem>>, %arg7: memref<16x32xbf16, #tpu.memory_space<vmem>>, %arg8: memref<16x1xf32, #tpu.memory_space<vmem>>, %arg9: memref<32x144xbf16, #tpu.memory_space<vmem>>, %arg10: memref<32x1xf32, #tpu.memory_space<vmem>>, %arg11: memref<32x32xbf16, #tpu.memory_space<vmem>>, %arg12: memref<32x32xbf16, #tpu.memory_space<vmem>>, %arg13: memref<32x1xf32, #tpu.memory_space<vmem>>, %arg14: memref<1x32x16xf32, #tpu.memory_space<vmem>>, %arg15: memref<3x18x18xf32, #tpu.memory_space<vmem>>, %arg16: memref<32x64xf32, #tpu.memory_space<vmem>>, %arg17: memref<16x10x10xf32, #tpu.memory_space<vmem>>, %arg18: memref<32x16xf32, #tpu.memory_space<vmem>>, %arg19: memref<27x8xf32, #tpu.memory_space<vmem>>, %arg20: memref<144x4xf32, #tpu.memory_space<vmem>>) attributes {dimension_semantics = [#tpu.dimension_semantics<parallel>], iteration_bounds = array<i64: 2>, scalar_prefetch = 0 : i64, scratch_operands = 6 : i64, tpu.core_type = #tpu.core_type<tc>, window_params = [{transform_indices = @transform_0, window_bounds = array<i64: 1, 3, 16, 16>}, {pipeline_mode = #tpu.pipeline_mode<synchronous>, transform_indices = @transform_1, window_bounds = array<i64: 2, 18, 9>}, {pipeline_mode = #tpu.pipeline_mode<synchronous>, transform_indices = @transform_2, window_bounds = array<i64: 2, 10, 5>}, {pipeline_mode = #tpu.pipeline_mode<synchronous>, transform_indices = @transform_3, window_bounds = array<i64: 4, 64, 16>}, {pipeline_mode = #tpu.pipeline_mode<synchronous>, transform_indices = @transform_4, window_bounds = array<i64: 32, 27>}, {pipeline_mode = #tpu.pipeline_mode<synchronous>, transform_indices = @transform_5, window_bounds = array<i64: 32, 1>}, {pipeline_mode = #tpu.pipeline_mode<synchronous>, transform_indices = @transform_6, window_bounds = array<i64: 16, 32>}, {pipeline_mode = #tpu.pipeline_mode<synchronous>, transform_indices = @transform_7, window_bounds = array<i64: 16, 1>}, {pipeline_mode = #tpu.pipeline_mode<synchronous>, transform_indices = @transform_8, window_bounds = array<i64: 32, 144>}, {pipeline_mode = #tpu.pipeline_mode<synchronous>, transform_indices = @transform_9, window_bounds = array<i64: 32, 1>}, {pipeline_mode = #tpu.pipeline_mode<synchronous>, transform_indices = @transform_10, window_bounds = array<i64: 32, 32>}, {pipeline_mode = #tpu.pipeline_mode<synchronous>, transform_indices = @transform_11, window_bounds = array<i64: 32, 32>}, {pipeline_mode = #tpu.pipeline_mode<synchronous>, transform_indices = @transform_12, window_bounds = array<i64: 32, 1>}, {transform_indices = @transform_13, window_bounds = array<i64: 1, 32, 16>}]} {
    %cst = arith.constant 0.000000e+00 : f32
    %0 = vector.broadcast %cst : f32 to vector<3x18x18xf32>
    %c0 = arith.constant 0 : index
    %c0_0 = arith.constant 0 : index
    %c0_1 = arith.constant 0 : index
    %1 = vector.load %arg15[%c0, %c0_0, %c0_1] : memref<3x18x18xf32, #tpu.memory_space<vmem>>, vector<3x18x18xf32>
    tpu.vector_store %arg15[%c0, %c0_0, %c0_1], %0 {strides = array<i32>} : memref<3x18x18xf32, #tpu.memory_space<vmem>>, vector<3x18x18xf32>,
    %c0_2 = arith.constant 0 : index
    %c0_3 = arith.constant 0 : index
    %c0_4 = arith.constant 0 : index
    %c0_5 = arith.constant 0 : index
    %2 = vector.load %arg1[%c0_2, %c0_3, %c0_4, %c0_5] : memref<1x3x16x16xf32, #tpu.memory_space<vmem>>, vector<1x3x16x16xf32>
    %3 = vector.shape_cast %2 : vector<1x3x16x16xf32> to vector<3x16x16xf32>
    %c0_6 = arith.constant 0 : index
    %c1 = arith.constant 1 : index
    %c1_7 = arith.constant 1 : index
    %4 = vector.load %arg15[%c0_6, %c1, %c1_7] : memref<3x18x18xf32, #tpu.memory_space<vmem>>, vector<3x16x16xf32>
    tpu.vector_store %arg15[%c0_6, %c1, %c1_7], %3 {strides = array<i32>} : memref<3x18x18xf32, #tpu.memory_space<vmem>>, vector<3x16x16xf32>,
    %c0_8 = arith.constant 0 : index
    %c0_9 = arith.constant 0 : index
    %c0_10 = arith.constant 0 : index
    %5 = vector.load %arg15[%c0_8, %c0_9, %c0_10] : memref<3x18x18xf32, #tpu.memory_space<vmem>>, vector<3x18x18xf32>
    %c0_11 = arith.constant 0 : index
    %c0_12 = arith.constant 0 : index
    %c0_13 = arith.constant 0 : index
    %6 = vector.load %arg2[%c0_11, %c0_12, %c0_13] : memref<2x18x9xf32, #tpu.memory_space<vmem>>, vector<1x18x9xf32>
    %7 = vector.shape_cast %6 : vector<1x18x9xf32> to vector<18x9xf32>
    %cst_14 = arith.constant dense<0.000000e+00> : vector<3x18x9xf32>
    %8 = tpu.matmul %5, %7, %cst_14 {dimension_numbers = #tpu.dot_dimension_numbers<[2], [0], [0, 1], [1], [0, 0, 0, 1, 1, 1], [], []>} : vector<3x18x18xf32>, vector<18x9xf32>, vector<3x18x9xf32> -> vector<3x18x9xf32>
    %c1_15 = arith.constant 1 : index
    %c0_16 = arith.constant 0 : index
    %c0_17 = arith.constant 0 : index
    %9 = vector.load %arg2[%c1_15, %c0_16, %c0_17] : memref<2x18x9xf32, #tpu.memory_space<vmem>>, vector<1x18x9xf32>
    %10 = vector.shape_cast %9 : vector<1x18x9xf32> to vector<18x9xf32>
    %cst_18 = arith.constant dense<0.000000e+00> : vector<3x18x9xf32>
    %11 = tpu.matmul %5, %10, %cst_18 {dimension_numbers = #tpu.dot_dimension_numbers<[2], [0], [0, 1], [1], [0, 0, 0, 1, 1, 1], [], []>} : vector<3x18x18xf32>, vector<18x9xf32>, vector<3x18x9xf32> -> vector<3x18x9xf32>
    %c0_19 = arith.constant 0 : index
    %c0_20 = arith.constant 0 : index
    %12 = vector.load %arg5[%c0_19, %c0_20] : memref<32x27xbf16, #tpu.memory_space<vmem>>, vector<32x27xbf16>
    %c0_21 = arith.constant 0 : index
    %c0_22 = arith.constant 0 : index
    %13 = vector.load %arg6[%c0_21, %c0_22] : memref<32x1xf32, #tpu.memory_space<vmem>>, vector<32x1xf32>
    %14 = vector.extract_strided_slice %8 {offsets = [0, 0, 0], sizes = [3, 1, 9], strides = [1, 1, 1]} : vector<3x18x9xf32> to vector<3x1x9xf32>
    %15 = vector.shape_cast %14 : vector<3x1x9xf32> to vector<3x9xf32>
    %16 = vector.extract_strided_slice %11 {offsets = [0, 0, 0], sizes = [3, 1, 9], strides = [1, 1, 1]} : vector<3x18x9xf32> to vector<3x1x9xf32>
    %17 = vector.shape_cast %16 : vector<3x1x9xf32> to vector<3x9xf32>
    %18 = vector.extract_strided_slice %15 {offsets = [0, 0], sizes = [3, 8], strides = [1, 1]} : vector<3x9xf32> to vector<3x8xf32>
    %c0_23 = arith.constant 0 : index
    %c0_24 = arith.constant 0 : index
    %19 = vector.load %arg19[%c0_23, %c0_24] : memref<27x8xf32, #tpu.memory_space<vmem>>, vector<3x8xf32>
    tpu.vector_store %arg19[%c0_23, %c0_24], %18 {strides = array<i32>} : memref<27x8xf32, #tpu.memory_space<vmem>>, vector<3x8xf32>,
    %20 = vector.extract_strided_slice %17 {offsets = [0, 0], sizes = [3, 8], strides = [1, 1]} : vector<3x9xf32> to vector<3x8xf32>
    %c3 = arith.constant 3 : index
    %c0_25 = arith.constant 0 : index
    %21 = vector.load %arg19[%c3, %c0_25] : memref<27x8xf32, #tpu.memory_space<vmem>>, vector<3x8xf32>
    tpu.vector_store %arg19[%c3, %c0_25], %20 {strides = array<i32>} : memref<27x8xf32, #tpu.memory_space<vmem>>, vector<3x8xf32>,
    %22 = vector.extract_strided_slice %15 {offsets = [0, 1], sizes = [3, 8], strides = [1, 1]} : vector<3x9xf32> to vector<3x8xf32>
    %c6 = arith.constant 6 : index
    %c0_26 = arith.constant 0 : index
    %23 = vector.load %arg19[%c6, %c0_26] : memref<27x8xf32, #tpu.memory_space<vmem>>, vector<3x8xf32>
    tpu.vector_store %arg19[%c6, %c0_26], %22 {strides = array<i32>} : memref<27x8xf32, #tpu.memory_space<vmem>>, vector<3x8xf32>,
    %24 = vector.extract_strided_slice %8 {offsets = [0, 1, 0], sizes = [3, 1, 9], strides = [1, 1, 1]} : vector<3x18x9xf32> to vector<3x1x9xf32>
    %25 = vector.shape_cast %24 : vector<3x1x9xf32> to vector<3x9xf32>
    %26 = vector.extract_strided_slice %11 {offsets = [0, 1, 0], sizes = [3, 1, 9], strides = [1, 1, 1]} : vector<3x18x9xf32> to vector<3x1x9xf32>
    %27 = vector.shape_cast %26 : vector<3x1x9xf32> to vector<3x9xf32>
    %28 = vector.extract_strided_slice %25 {offsets = [0, 0], sizes = [3, 8], strides = [1, 1]} : vector<3x9xf32> to vector<3x8xf32>
    %c9 = arith.constant 9 : index
    %c0_27 = arith.constant 0 : index
    %29 = vector.load %arg19[%c9, %c0_27] : memref<27x8xf32, #tpu.memory_space<vmem>>, vector<3x8xf32>
    tpu.vector_store %arg19[%c9, %c0_27], %28 {strides = array<i32>} : memref<27x8xf32, #tpu.memory_space<vmem>>, vector<3x8xf32>,
    %30 = vector.extract_strided_slice %27 {offsets = [0, 0], sizes = [3, 8], strides = [1, 1]} : vector<3x9xf32> to vector<3x8xf32>
    %c12 = arith.constant 12 : index
    %c0_28 = arith.constant 0 : index
    %31 = vector.load %arg19[%c12, %c0_28] : memref<27x8xf32, #tpu.memory_space<vmem>>, vector<3x8xf32>
    tpu.vector_store %arg19[%c12, %c0_28], %30 {strides = array<i32>} : memref<27x8xf32, #tpu.memory_space<vmem>>, vector<3x8xf32>,
    %32 = vector.extract_strided_slice %25 {offsets = [0, 1], sizes = [3, 8], strides = [1, 1]} : vector<3x9xf32> to vector<3x8xf32>
    %c15 = arith.constant 15 : index
    %c0_29 = arith.constant 0 : index
    %33 = vector.load %arg19[%c15, %c0_29] : memref<27x8xf32, #tpu.memory_space<vmem>>, vector<3x8xf32>
    tpu.vector_store %arg19[%c15, %c0_29], %32 {strides = array<i32>} : memref<27x8xf32, #tpu.memory_space<vmem>>, vector<3x8xf32>,
    %34 = vector.extract_strided_slice %8 {offsets = [0, 2, 0], sizes = [3, 1, 9], strides = [1, 1, 1]} : vector<3x18x9xf32> to vector<3x1x9xf32>
    %35 = vector.shape_cast %34 : vector<3x1x9xf32> to vector<3x9xf32>
    %36 = vector.extract_strided_slice %11 {offsets = [0, 2, 0], sizes = [3, 1, 9], strides = [1, 1, 1]} : vector<3x18x9xf32> to vector<3x1x9xf32>
    %37 = vector.shape_cast %36 : vector<3x1x9xf32> to vector<3x9xf32>
    %38 = vector.extract_strided_slice %35 {offsets = [0, 0], sizes = [3, 8], strides = [1, 1]} : vector<3x9xf32> to vector<3x8xf32>
    %c18 = arith.constant 18 : index
    %c0_30 = arith.constant 0 : index
    %39 = vector.load %arg19[%c18, %c0_30] : memref<27x8xf32, #tpu.memory_space<vmem>>, vector<3x8xf32>
    tpu.vector_store %arg19[%c18, %c0_30], %38 {strides = array<i32>} : memref<27x8xf32, #tpu.memory_space<vmem>>, vector<3x8xf32>,
    %40 = vector.extract_strided_slice %37 {offsets = [0, 0], sizes = [3, 8], strides = [1, 1]} : vector<3x9xf32> to vector<3x8xf32>
    %c21 = arith.constant 21 : index
    %c0_31 = arith.constant 0 : index
    %41 = vector.load %arg19[%c21, %c0_31] : memref<27x8xf32, #tpu.memory_space<vmem>>, vector<3x8xf32>
    tpu.vector_store %arg19[%c21, %c0_31], %40 {strides = array<i32>} : memref<27x8xf32, #tpu.memory_space<vmem>>, vector<3x8xf32>,
    %42 = vector.extract_strided_slice %35 {offsets = [0, 1], sizes = [3, 8], strides = [1, 1]} : vector<3x9xf32> to vector<3x8xf32>
    %c24 = arith.constant 24 : index
    %c0_32 = arith.constant 0 : index
    %43 = vector.load %arg19[%c24, %c0_32] : memref<27x8xf32, #tpu.memory_space<vmem>>, vector<3x8xf32>
    tpu.vector_store %arg19[%c24, %c0_32], %42 {strides = array<i32>} : memref<27x8xf32, #tpu.memory_space<vmem>>, vector<3x8xf32>,
    %c0_33 = arith.constant 0 : index
    %c0_34 = arith.constant 0 : index
    %44 = vector.load %arg19[%c0_33, %c0_34] : memref<27x8xf32, #tpu.memory_space<vmem>>, vector<27x8xf32>
    %45 = arith.truncf %44 : vector<27x8xf32> to vector<27x8xbf16>
    %cst_35 = arith.constant dense<0.000000e+00> : vector<32x8xf32>
    %46 = tpu.matmul %12, %45, %cst_35 {dimension_numbers = #tpu.dot_dimension_numbers<[1], [0], [0], [1], [0, 0, 1, 1], [], []>} : vector<32x27xbf16>, vector<27x8xbf16>, vector<32x8xf32> -> vector<32x8xf32>
    %47 = vector.broadcast %13 : vector<32x1xf32> to vector<32x8xf32>
    %48 = arith.addf %46, %47 : vector<32x8xf32>
    %cst_36 = arith.constant 0.000000e+00 : f32
    %49 = vector.broadcast %cst_36 : f32 to vector<32x8xf32>
    %50 = arith.maximumf %48, %49 : vector<32x8xf32>
    %c0_37 = arith.constant 0 : index
    %c0_38 = arith.constant 0 : index
    %51 = vector.load %arg16[%c0_37, %c0_38] : memref<32x64xf32, #tpu.memory_space<vmem>>, vector<32x8xf32>
    tpu.vector_store %arg16[%c0_37, %c0_38], %50 {strides = array<i32>} : memref<32x64xf32, #tpu.memory_space<vmem>>, vector<32x8xf32>,
    %52 = vector.extract_strided_slice %8 {offsets = [0, 2, 0], sizes = [3, 1, 9], strides = [1, 1, 1]} : vector<3x18x9xf32> to vector<3x1x9xf32>
    %53 = vector.shape_cast %52 : vector<3x1x9xf32> to vector<3x9xf32>
    %54 = vector.extract_strided_slice %11 {offsets = [0, 2, 0], sizes = [3, 1, 9], strides = [1, 1, 1]} : vector<3x18x9xf32> to vector<3x1x9xf32>
    %55 = vector.shape_cast %54 : vector<3x1x9xf32> to vector<3x9xf32>
    %56 = vector.extract_strided_slice %53 {offsets = [0, 0], sizes = [3, 8], strides = [1, 1]} : vector<3x9xf32> to vector<3x8xf32>
    %c0_39 = arith.constant 0 : index
    %c0_40 = arith.constant 0 : index
    %57 = vector.load %arg19[%c0_39, %c0_40] : memref<27x8xf32, #tpu.memory_space<vmem>>, vector<3x8xf32>
    tpu.vector_store %arg19[%c0_39, %c0_40], %56 {strides = array<i32>} : memref<27x8xf32, #tpu.memory_space<vmem>>, vector<3x8xf32>,
    %58 = vector.extract_strided_slice %55 {offsets = [0, 0], sizes = [3, 8], strides = [1, 1]} : vector<3x9xf32> to vector<3x8xf32>
    %c3_41 = arith.constant 3 : index
    %c0_42 = arith.constant 0 : index
    %59 = vector.load %arg19[%c3_41, %c0_42] : memref<27x8xf32, #tpu.memory_space<vmem>>, vector<3x8xf32>
    tpu.vector_store %arg19[%c3_41, %c0_42], %58 {strides = array<i32>} : memref<27x8xf32, #tpu.memory_space<vmem>>, vector<3x8xf32>,
    %60 = vector.extract_strided_slice %53 {offsets = [0, 1], sizes = [3, 8], strides = [1, 1]} : vector<3x9xf32> to vector<3x8xf32>
    %c6_43 = arith.constant 6 : index
    %c0_44 = arith.constant 0 : index
    %61 = vector.load %arg19[%c6_43, %c0_44] : memref<27x8xf32, #tpu.memory_space<vmem>>, vector<3x8xf32>
    tpu.vector_store %arg19[%c6_43, %c0_44], %60 {strides = array<i32>} : memref<27x8xf32, #tpu.memory_space<vmem>>, vector<3x8xf32>,
    %62 = vector.extract_strided_slice %8 {offsets = [0, 3, 0], sizes = [3, 1, 9], strides = [1, 1, 1]} : vector<3x18x9xf32> to vector<3x1x9xf32>
    %63 = vector.shape_cast %62 : vector<3x1x9xf32> to vector<3x9xf32>
    %64 = vector.extract_strided_slice %11 {offsets = [0, 3, 0], sizes = [3, 1, 9], strides = [1, 1, 1]} : vector<3x18x9xf32> to vector<3x1x9xf32>
    %65 = vector.shape_cast %64 : vector<3x1x9xf32> to vector<3x9xf32>
    %66 = vector.extract_strided_slice %63 {offsets = [0, 0], sizes = [3, 8], strides = [1, 1]} : vector<3x9xf32> to vector<3x8xf32>
    %c9_45 = arith.constant 9 : index
    %c0_46 = arith.constant 0 : index
    %67 = vector.load %arg19[%c9_45, %c0_46] : memref<27x8xf32, #tpu.memory_space<vmem>>, vector<3x8xf32>
    tpu.vector_store %arg19[%c9_45, %c0_46], %66 {strides = array<i32>} : memref<27x8xf32, #tpu.memory_space<vmem>>, vector<3x8xf32>,
    %68 = vector.extract_strided_slice %65 {offsets = [0, 0], sizes = [3, 8], strides = [1, 1]} : vector<3x9xf32> to vector<3x8xf32>
    %c12_47 = arith.constant 12 : index
    %c0_48 = arith.constant 0 : index
    %69 = vector.load %arg19[%c12_47, %c0_48] : memref<27x8xf32, #tpu.memory_space<vmem>>, vector<3x8xf32>
    tpu.vector_store %arg19[%c12_47, %c0_48], %68 {strides = array<i32>} : memref<27x8xf32, #tpu.memory_space<vmem>>, vector<3x8xf32>,
    %70 = vector.extract_strided_slice %63 {offsets = [0, 1], sizes = [3, 8], strides = [1, 1]} : vector<3x9xf32> to vector<3x8xf32>
    %c15_49 = arith.constant 15 : index
    %c0_50 = arith.constant 0 : index
    %71 = vector.load %arg19[%c15_49, %c0_50] : memref<27x8xf32, #tpu.memory_space<vmem>>, vector<3x8xf32>
    tpu.vector_store %arg19[%c15_49, %c0_50], %70 {strides = array<i32>} : memref<27x8xf32, #tpu.memory_space<vmem>>, vector<3x8xf32>,
    %72 = vector.extract_strided_slice %8 {offsets = [0, 4, 0], sizes = [3, 1, 9], strides = [1, 1, 1]} : vector<3x18x9xf32> to vector<3x1x9xf32>
    %73 = vector.shape_cast %72 : vector<3x1x9xf32> to vector<3x9xf32>
    %74 = vector.extract_strided_slice %11 {offsets = [0, 4, 0], sizes = [3, 1, 9], strides = [1, 1, 1]} : vector<3x18x9xf32> to vector<3x1x9xf32>
    %75 = vector.shape_cast %74 : vector<3x1x9xf32> to vector<3x9xf32>
    %76 = vector.extract_strided_slice %73 {offsets = [0, 0], sizes = [3, 8], strides = [1, 1]} : vector<3x9xf32> to vector<3x8xf32>
    %c18_51 = arith.constant 18 : index
    %c0_52 = arith.constant 0 : index
    %77 = vector.load %arg19[%c18_51, %c0_52] : memref<27x8xf32, #tpu.memory_space<vmem>>, vector<3x8xf32>
    tpu.vector_store %arg19[%c18_51, %c0_52], %76 {strides = array<i32>} : memref<27x8xf32, #tpu.memory_space<vmem>>, vector<3x8xf32>,
    %78 = vector.extract_strided_slice %75 {offsets = [0, 0], sizes = [3, 8], strides = [1, 1]} : vector<3x9xf32> to vector<3x8xf32>
    %c21_53 = arith.constant 21 : index
    %c0_54 = arith.constant 0 : index
    %79 = vector.load %arg19[%c21_53, %c0_54] : memref<27x8xf32, #tpu.memory_space<vmem>>, vector<3x8xf32>
    tpu.vector_store %arg19[%c21_53, %c0_54], %78 {strides = array<i32>} : memref<27x8xf32, #tpu.memory_space<vmem>>, vector<3x8xf32>,
    %80 = vector.extract_strided_slice %73 {offsets = [0, 1], sizes = [3, 8], strides = [1, 1]} : vector<3x9xf32> to vector<3x8xf32>
    %c24_55 = arith.constant 24 : index
    %c0_56 = arith.constant 0 : index
    %81 = vector.load %arg19[%c24_55, %c0_56] : memref<27x8xf32, #tpu.memory_space<vmem>>, vector<3x8xf32>
    tpu.vector_store %arg19[%c24_55, %c0_56], %80 {strides = array<i32>} : memref<27x8xf32, #tpu.memory_space<vmem>>, vector<3x8xf32>,
    %c0_57 = arith.constant 0 : index
    %c0_58 = arith.constant 0 : index
    %82 = vector.load %arg19[%c0_57, %c0_58] : memref<27x8xf32, #tpu.memory_space<vmem>>, vector<27x8xf32>
    %83 = arith.truncf %82 : vector<27x8xf32> to vector<27x8xbf16>
    %cst_59 = arith.constant dense<0.000000e+00> : vector<32x8xf32>
    %84 = tpu.matmul %12, %83, %cst_59 {dimension_numbers = #tpu.dot_dimension_numbers<[1], [0], [0], [1], [0, 0, 1, 1], [], []>} : vector<32x27xbf16>, vector<27x8xbf16>, vector<32x8xf32> -> vector<32x8xf32>
    %85 = vector.broadcast %13 : vector<32x1xf32> to vector<32x8xf32>
    %86 = arith.addf %84, %85 : vector<32x8xf32>
    %cst_60 = arith.constant 0.000000e+00 : f32
    %87 = vector.broadcast %cst_60 : f32 to vector<32x8xf32>
    %88 = arith.maximumf %86, %87 : vector<32x8xf32>
    %c0_61 = arith.constant 0 : index
    %c8 = arith.constant 8 : index
    %89 = vector.load %arg16[%c0_61, %c8] : memref<32x64xf32, #tpu.memory_space<vmem>>, vector<32x8xf32>
    tpu.vector_store %arg16[%c0_61, %c8], %88 {strides = array<i32>} : memref<32x64xf32, #tpu.memory_space<vmem>>, vector<32x8xf32>,
    %90 = vector.extract_strided_slice %8 {offsets = [0, 4, 0], sizes = [3, 1, 9], strides = [1, 1, 1]} : vector<3x18x9xf32> to vector<3x1x9xf32>
    %91 = vector.shape_cast %90 : vector<3x1x9xf32> to vector<3x9xf32>
    %92 = vector.extract_strided_slice %11 {offsets = [0, 4, 0], sizes = [3, 1, 9], strides = [1, 1, 1]} : vector<3x18x9xf32> to vector<3x1x9xf32>
    %93 = vector.shape_cast %92 : vector<3x1x9xf32> to vector<3x9xf32>
    %94 = vector.extract_strided_slice %91 {offsets = [0, 0], sizes = [3, 8], strides = [1, 1]} : vector<3x9xf32> to vector<3x8xf32>
    %c0_62 = arith.constant 0 : index
    %c0_63 = arith.constant 0 : index
    %95 = vector.load %arg19[%c0_62, %c0_63] : memref<27x8xf32, #tpu.memory_space<vmem>>, vector<3x8xf32>
    tpu.vector_store %arg19[%c0_62, %c0_63], %94 {strides = array<i32>} : memref<27x8xf32, #tpu.memory_space<vmem>>, vector<3x8xf32>,
    %96 = vector.extract_strided_slice %93 {offsets = [0, 0], sizes = [3, 8], strides = [1, 1]} : vector<3x9xf32> to vector<3x8xf32>
    %c3_64 = arith.constant 3 : index
    %c0_65 = arith.constant 0 : index
    %97 = vector.load %arg19[%c3_64, %c0_65] : memref<27x8xf32, #tpu.memory_space<vmem>>, vector<3x8xf32>
    tpu.vector_store %arg19[%c3_64, %c0_65], %96 {strides = array<i32>} : memref<27x8xf32, #tpu.memory_space<vmem>>, vector<3x8xf32>,
    %98 = vector.extract_strided_slice %91 {offsets = [0, 1], sizes = [3, 8], strides = [1, 1]} : vector<3x9xf32> to vector<3x8xf32>
    %c6_66 = arith.constant 6 : index
    %c0_67 = arith.constant 0 : index
    %99 = vector.load %arg19[%c6_66, %c0_67] : memref<27x8xf32, #tpu.memory_space<vmem>>, vector<3x8xf32>
    tpu.vector_store %arg19[%c6_66, %c0_67], %98 {strides = array<i32>} : memref<27x8xf32, #tpu.memory_space<vmem>>, vector<3x8xf32>,
    %100 = vector.extract_strided_slice %8 {offsets = [0, 5, 0], sizes = [3, 1, 9], strides = [1, 1, 1]} : vector<3x18x9xf32> to vector<3x1x9xf32>
    %101 = vector.shape_cast %100 : vector<3x1x9xf32> to vector<3x9xf32>
    %102 = vector.extract_strided_slice %11 {offsets = [0, 5, 0], sizes = [3, 1, 9], strides = [1, 1, 1]} : vector<3x18x9xf32> to vector<3x1x9xf32>
    %103 = vector.shape_cast %102 : vector<3x1x9xf32> to vector<3x9xf32>
    %104 = vector.extract_strided_slice %101 {offsets = [0, 0], sizes = [3, 8], strides = [1, 1]} : vector<3x9xf32> to vector<3x8xf32>
    %c9_68 = arith.constant 9 : index
    %c0_69 = arith.constant 0 : index
    %105 = vector.load %arg19[%c9_68, %c0_69] : memref<27x8xf32, #tpu.memory_space<vmem>>, vector<3x8xf32>
    tpu.vector_store %arg19[%c9_68, %c0_69], %104 {strides = array<i32>} : memref<27x8xf32, #tpu.memory_space<vmem>>, vector<3x8xf32>,
    %106 = vector.extract_strided_slice %103 {offsets = [0, 0], sizes = [3, 8], strides = [1, 1]} : vector<3x9xf32> to vector<3x8xf32>
    %c12_70 = arith.constant 12 : index
    %c0_71 = arith.constant 0 : index
    %107 = vector.load %arg19[%c12_70, %c0_71] : memref<27x8xf32, #tpu.memory_space<vmem>>, vector<3x8xf32>
    tpu.vector_store %arg19[%c12_70, %c0_71], %106 {strides = array<i32>} : memref<27x8xf32, #tpu.memory_space<vmem>>, vector<3x8xf32>,
    %108 = vector.extract_strided_slice %101 {offsets = [0, 1], sizes = [3, 8], strides = [1, 1]} : vector<3x9xf32> to vector<3x8xf32>
    %c15_72 = arith.constant 15 : index
    %c0_73 = arith.constant 0 : index
    %109 = vector.load %arg19[%c15_72, %c0_73] : memref<27x8xf32, #tpu.memory_space<vmem>>, vector<3x8xf32>
    tpu.vector_store %arg19[%c15_72, %c0_73], %108 {strides = array<i32>} : memref<27x8xf32, #tpu.memory_space<vmem>>, vector<3x8xf32>,
    %110 = vector.extract_strided_slice %8 {offsets = [0, 6, 0], sizes = [3, 1, 9], strides = [1, 1, 1]} : vector<3x18x9xf32> to vector<3x1x9xf32>
    %111 = vector.shape_cast %110 : vector<3x1x9xf32> to vector<3x9xf32>
    %112 = vector.extract_strided_slice %11 {offsets = [0, 6, 0], sizes = [3, 1, 9], strides = [1, 1, 1]} : vector<3x18x9xf32> to vector<3x1x9xf32>
    %113 = vector.shape_cast %112 : vector<3x1x9xf32> to vector<3x9xf32>
    %114 = vector.extract_strided_slice %111 {offsets = [0, 0], sizes = [3, 8], strides = [1, 1]} : vector<3x9xf32> to vector<3x8xf32>
    %c18_74 = arith.constant 18 : index
    %c0_75 = arith.constant 0 : index
    %115 = vector.load %arg19[%c18_74, %c0_75] : memref<27x8xf32, #tpu.memory_space<vmem>>, vector<3x8xf32>
    tpu.vector_store %arg19[%c18_74, %c0_75], %114 {strides = array<i32>} : memref<27x8xf32, #tpu.memory_space<vmem>>, vector<3x8xf32>,
    %116 = vector.extract_strided_slice %113 {offsets = [0, 0], sizes = [3, 8], strides = [1, 1]} : vector<3x9xf32> to vector<3x8xf32>
    %c21_76 = arith.constant 21 : index
    %c0_77 = arith.constant 0 : index
    %117 = vector.load %arg19[%c21_76, %c0_77] : memref<27x8xf32, #tpu.memory_space<vmem>>, vector<3x8xf32>
    tpu.vector_store %arg19[%c21_76, %c0_77], %116 {strides = array<i32>} : memref<27x8xf32, #tpu.memory_space<vmem>>, vector<3x8xf32>,
    %118 = vector.extract_strided_slice %111 {offsets = [0, 1], sizes = [3, 8], strides = [1, 1]} : vector<3x9xf32> to vector<3x8xf32>
    %c24_78 = arith.constant 24 : index
    %c0_79 = arith.constant 0 : index
    %119 = vector.load %arg19[%c24_78, %c0_79] : memref<27x8xf32, #tpu.memory_space<vmem>>, vector<3x8xf32>
    tpu.vector_store %arg19[%c24_78, %c0_79], %118 {strides = array<i32>} : memref<27x8xf32, #tpu.memory_space<vmem>>, vector<3x8xf32>,
    %c0_80 = arith.constant 0 : index
    %c0_81 = arith.constant 0 : index
    %120 = vector.load %arg19[%c0_80, %c0_81] : memref<27x8xf32, #tpu.memory_space<vmem>>, vector<27x8xf32>
    %121 = arith.truncf %120 : vector<27x8xf32> to vector<27x8xbf16>
    %cst_82 = arith.constant dense<0.000000e+00> : vector<32x8xf32>
    %122 = tpu.matmul %12, %121, %cst_82 {dimension_numbers = #tpu.dot_dimension_numbers<[1], [0], [0], [1], [0, 0, 1, 1], [], []>} : vector<32x27xbf16>, vector<27x8xbf16>, vector<32x8xf32> -> vector<32x8xf32>
    %123 = vector.broadcast %13 : vector<32x1xf32> to vector<32x8xf32>
    %124 = arith.addf %122, %123 : vector<32x8xf32>
    %cst_83 = arith.constant 0.000000e+00 : f32
    %125 = vector.broadcast %cst_83 : f32 to vector<32x8xf32>
    %126 = arith.maximumf %124, %125 : vector<32x8xf32>
    %c0_84 = arith.constant 0 : index
    %c16 = arith.constant 16 : index
    %127 = vector.load %arg16[%c0_84, %c16] : memref<32x64xf32, #tpu.memory_space<vmem>>, vector<32x8xf32>
    tpu.vector_store %arg16[%c0_84, %c16], %126 {strides = array<i32>} : memref<32x64xf32, #tpu.memory_space<vmem>>, vector<32x8xf32>,
    %128 = vector.extract_strided_slice %8 {offsets = [0, 6, 0], sizes = [3, 1, 9], strides = [1, 1, 1]} : vector<3x18x9xf32> to vector<3x1x9xf32>
    %129 = vector.shape_cast %128 : vector<3x1x9xf32> to vector<3x9xf32>
    %130 = vector.extract_strided_slice %11 {offsets = [0, 6, 0], sizes = [3, 1, 9], strides = [1, 1, 1]} : vector<3x18x9xf32> to vector<3x1x9xf32>
    %131 = vector.shape_cast %130 : vector<3x1x9xf32> to vector<3x9xf32>
    %132 = vector.extract_strided_slice %129 {offsets = [0, 0], sizes = [3, 8], strides = [1, 1]} : vector<3x9xf32> to vector<3x8xf32>
    %c0_85 = arith.constant 0 : index
    %c0_86 = arith.constant 0 : index
    %133 = vector.load %arg19[%c0_85, %c0_86] : memref<27x8xf32, #tpu.memory_space<vmem>>, vector<3x8xf32>
    tpu.vector_store %arg19[%c0_85, %c0_86], %132 {strides = array<i32>} : memref<27x8xf32, #tpu.memory_space<vmem>>, vector<3x8xf32>,
    %134 = vector.extract_strided_slice %131 {offsets = [0, 0], sizes = [3, 8], strides = [1, 1]} : vector<3x9xf32> to vector<3x8xf32>
    %c3_87 = arith.constant 3 : index
    %c0_88 = arith.constant 0 : index
    %135 = vector.load %arg19[%c3_87, %c0_88] : memref<27x8xf32, #tpu.memory_space<vmem>>, vector<3x8xf32>
    tpu.vector_store %arg19[%c3_87, %c0_88], %134 {strides = array<i32>} : memref<27x8xf32, #tpu.memory_space<vmem>>, vector<3x8xf32>,
    %136 = vector.extract_strided_slice %129 {offsets = [0, 1], sizes = [3, 8], strides = [1, 1]} : vector<3x9xf32> to vector<3x8xf32>
    %c6_89 = arith.constant 6 : index
    %c0_90 = arith.constant 0 : index
    %137 = vector.load %arg19[%c6_89, %c0_90] : memref<27x8xf32, #tpu.memory_space<vmem>>, vector<3x8xf32>
    tpu.vector_store %arg19[%c6_89, %c0_90], %136 {strides = array<i32>} : memref<27x8xf32, #tpu.memory_space<vmem>>, vector<3x8xf32>,
    %138 = vector.extract_strided_slice %8 {offsets = [0, 7, 0], sizes = [3, 1, 9], strides = [1, 1, 1]} : vector<3x18x9xf32> to vector<3x1x9xf32>
    %139 = vector.shape_cast %138 : vector<3x1x9xf32> to vector<3x9xf32>
    %140 = vector.extract_strided_slice %11 {offsets = [0, 7, 0], sizes = [3, 1, 9], strides = [1, 1, 1]} : vector<3x18x9xf32> to vector<3x1x9xf32>
    %141 = vector.shape_cast %140 : vector<3x1x9xf32> to vector<3x9xf32>
    %142 = vector.extract_strided_slice %139 {offsets = [0, 0], sizes = [3, 8], strides = [1, 1]} : vector<3x9xf32> to vector<3x8xf32>
    %c9_91 = arith.constant 9 : index
    %c0_92 = arith.constant 0 : index
    %143 = vector.load %arg19[%c9_91, %c0_92] : memref<27x8xf32, #tpu.memory_space<vmem>>, vector<3x8xf32>
    tpu.vector_store %arg19[%c9_91, %c0_92], %142 {strides = array<i32>} : memref<27x8xf32, #tpu.memory_space<vmem>>, vector<3x8xf32>,
    %144 = vector.extract_strided_slice %141 {offsets = [0, 0], sizes = [3, 8], strides = [1, 1]} : vector<3x9xf32> to vector<3x8xf32>
    %c12_93 = arith.constant 12 : index
    %c0_94 = arith.constant 0 : index
    %145 = vector.load %arg19[%c12_93, %c0_94] : memref<27x8xf32, #tpu.memory_space<vmem>>, vector<3x8xf32>
    tpu.vector_store %arg19[%c12_93, %c0_94], %144 {strides = array<i32>} : memref<27x8xf32, #tpu.memory_space<vmem>>, vector<3x8xf32>,
    %146 = vector.extract_strided_slice %139 {offsets = [0, 1], sizes = [3, 8], strides = [1, 1]} : vector<3x9xf32> to vector<3x8xf32>
    %c15_95 = arith.constant 15 : index
    %c0_96 = arith.constant 0 : index
    %147 = vector.load %arg19[%c15_95, %c0_96] : memref<27x8xf32, #tpu.memory_space<vmem>>, vector<3x8xf32>
    tpu.vector_store %arg19[%c15_95, %c0_96], %146 {strides = array<i32>} : memref<27x8xf32, #tpu.memory_space<vmem>>, vector<3x8xf32>,
    %148 = vector.extract_strided_slice %8 {offsets = [0, 8, 0], sizes = [3, 1, 9], strides = [1, 1, 1]} : vector<3x18x9xf32> to vector<3x1x9xf32>
    %149 = vector.shape_cast %148 : vector<3x1x9xf32> to vector<3x9xf32>
    %150 = vector.extract_strided_slice %11 {offsets = [0, 8, 0], sizes = [3, 1, 9], strides = [1, 1, 1]} : vector<3x18x9xf32> to vector<3x1x9xf32>
    %151 = vector.shape_cast %150 : vector<3x1x9xf32> to vector<3x9xf32>
    %152 = vector.extract_strided_slice %149 {offsets = [0, 0], sizes = [3, 8], strides = [1, 1]} : vector<3x9xf32> to vector<3x8xf32>
    %c18_97 = arith.constant 18 : index
    %c0_98 = arith.constant 0 : index
    %153 = vector.load %arg19[%c18_97, %c0_98] : memref<27x8xf32, #tpu.memory_space<vmem>>, vector<3x8xf32>
    tpu.vector_store %arg19[%c18_97, %c0_98], %152 {strides = array<i32>} : memref<27x8xf32, #tpu.memory_space<vmem>>, vector<3x8xf32>,
    %154 = vector.extract_strided_slice %151 {offsets = [0, 0], sizes = [3, 8], strides = [1, 1]} : vector<3x9xf32> to vector<3x8xf32>
    %c21_99 = arith.constant 21 : index
    %c0_100 = arith.constant 0 : index
    %155 = vector.load %arg19[%c21_99, %c0_100] : memref<27x8xf32, #tpu.memory_space<vmem>>, vector<3x8xf32>
    tpu.vector_store %arg19[%c21_99, %c0_100], %154 {strides = array<i32>} : memref<27x8xf32, #tpu.memory_space<vmem>>, vector<3x8xf32>,
    %156 = vector.extract_strided_slice %149 {offsets = [0, 1], sizes = [3, 8], strides = [1, 1]} : vector<3x9xf32> to vector<3x8xf32>
    %c24_101 = arith.constant 24 : index
    %c0_102 = arith.constant 0 : index
    %157 = vector.load %arg19[%c24_101, %c0_102] : memref<27x8xf32, #tpu.memory_space<vmem>>, vector<3x8xf32>
    tpu.vector_store %arg19[%c24_101, %c0_102], %156 {strides = array<i32>} : memref<27x8xf32, #tpu.memory_space<vmem>>, vector<3x8xf32>,
    %c0_103 = arith.constant 0 : index
    %c0_104 = arith.constant 0 : index
    %158 = vector.load %arg19[%c0_103, %c0_104] : memref<27x8xf32, #tpu.memory_space<vmem>>, vector<27x8xf32>
    %159 = arith.truncf %158 : vector<27x8xf32> to vector<27x8xbf16>
    %cst_105 = arith.constant dense<0.000000e+00> : vector<32x8xf32>
    %160 = tpu.matmul %12, %159, %cst_105 {dimension_numbers = #tpu.dot_dimension_numbers<[1], [0], [0], [1], [0, 0, 1, 1], [], []>} : vector<32x27xbf16>, vector<27x8xbf16>, vector<32x8xf32> -> vector<32x8xf32>
    %161 = vector.broadcast %13 : vector<32x1xf32> to vector<32x8xf32>
    %162 = arith.addf %160, %161 : vector<32x8xf32>
    %cst_106 = arith.constant 0.000000e+00 : f32
    %163 = vector.broadcast %cst_106 : f32 to vector<32x8xf32>
    %164 = arith.maximumf %162, %163 : vector<32x8xf32>
    %c0_107 = arith.constant 0 : index
    %c24_108 = arith.constant 24 : index
    %165 = vector.load %arg16[%c0_107, %c24_108] : memref<32x64xf32, #tpu.memory_space<vmem>>, vector<32x8xf32>
    tpu.vector_store %arg16[%c0_107, %c24_108], %164 {strides = array<i32>} : memref<32x64xf32, #tpu.memory_space<vmem>>, vector<32x8xf32>,
    %166 = vector.extract_strided_slice %8 {offsets = [0, 8, 0], sizes = [3, 1, 9], strides = [1, 1, 1]} : vector<3x18x9xf32> to vector<3x1x9xf32>
    %167 = vector.shape_cast %166 : vector<3x1x9xf32> to vector<3x9xf32>
    %168 = vector.extract_strided_slice %11 {offsets = [0, 8, 0], sizes = [3, 1, 9], strides = [1, 1, 1]} : vector<3x18x9xf32> to vector<3x1x9xf32>
    %169 = vector.shape_cast %168 : vector<3x1x9xf32> to vector<3x9xf32>
    %170 = vector.extract_strided_slice %167 {offsets = [0, 0], sizes = [3, 8], strides = [1, 1]} : vector<3x9xf32> to vector<3x8xf32>
    %c0_109 = arith.constant 0 : index
    %c0_110 = arith.constant 0 : index
    %171 = vector.load %arg19[%c0_109, %c0_110] : memref<27x8xf32, #tpu.memory_space<vmem>>, vector<3x8xf32>
    tpu.vector_store %arg19[%c0_109, %c0_110], %170 {strides = array<i32>} : memref<27x8xf32, #tpu.memory_space<vmem>>, vector<3x8xf32>,
    %172 = vector.extract_strided_slice %169 {offsets = [0, 0], sizes = [3, 8], strides = [1, 1]} : vector<3x9xf32> to vector<3x8xf32>
    %c3_111 = arith.constant 3 : index
    %c0_112 = arith.constant 0 : index
    %173 = vector.load %arg19[%c3_111, %c0_112] : memref<27x8xf32, #tpu.memory_space<vmem>>, vector<3x8xf32>
    tpu.vector_store %arg19[%c3_111, %c0_112], %172 {strides = array<i32>} : memref<27x8xf32, #tpu.memory_space<vmem>>, vector<3x8xf32>,
    %174 = vector.extract_strided_slice %167 {offsets = [0, 1], sizes = [3, 8], strides = [1, 1]} : vector<3x9xf32> to vector<3x8xf32>
    %c6_113 = arith.constant 6 : index
    %c0_114 = arith.constant 0 : index
    %175 = vector.load %arg19[%c6_113, %c0_114] : memref<27x8xf32, #tpu.memory_space<vmem>>, vector<3x8xf32>
    tpu.vector_store %arg19[%c6_113, %c0_114], %174 {strides = array<i32>} : memref<27x8xf32, #tpu.memory_space<vmem>>, vector<3x8xf32>,
    %176 = vector.extract_strided_slice %8 {offsets = [0, 9, 0], sizes = [3, 1, 9], strides = [1, 1, 1]} : vector<3x18x9xf32> to vector<3x1x9xf32>
    %177 = vector.shape_cast %176 : vector<3x1x9xf32> to vector<3x9xf32>
    %178 = vector.extract_strided_slice %11 {offsets = [0, 9, 0], sizes = [3, 1, 9], strides = [1, 1, 1]} : vector<3x18x9xf32> to vector<3x1x9xf32>
    %179 = vector.shape_cast %178 : vector<3x1x9xf32> to vector<3x9xf32>
    %180 = vector.extract_strided_slice %177 {offsets = [0, 0], sizes = [3, 8], strides = [1, 1]} : vector<3x9xf32> to vector<3x8xf32>
    %c9_115 = arith.constant 9 : index
    %c0_116 = arith.constant 0 : index
    %181 = vector.load %arg19[%c9_115, %c0_116] : memref<27x8xf32, #tpu.memory_space<vmem>>, vector<3x8xf32>
    tpu.vector_store %arg19[%c9_115, %c0_116], %180 {strides = array<i32>} : memref<27x8xf32, #tpu.memory_space<vmem>>, vector<3x8xf32>,
    %182 = vector.extract_strided_slice %179 {offsets = [0, 0], sizes = [3, 8], strides = [1, 1]} : vector<3x9xf32> to vector<3x8xf32>
    %c12_117 = arith.constant 12 : index
    %c0_118 = arith.constant 0 : index
    %183 = vector.load %arg19[%c12_117, %c0_118] : memref<27x8xf32, #tpu.memory_space<vmem>>, vector<3x8xf32>
    tpu.vector_store %arg19[%c12_117, %c0_118], %182 {strides = array<i32>} : memref<27x8xf32, #tpu.memory_space<vmem>>, vector<3x8xf32>,
    %184 = vector.extract_strided_slice %177 {offsets = [0, 1], sizes = [3, 8], strides = [1, 1]} : vector<3x9xf32> to vector<3x8xf32>
    %c15_119 = arith.constant 15 : index
    %c0_120 = arith.constant 0 : index
    %185 = vector.load %arg19[%c15_119, %c0_120] : memref<27x8xf32, #tpu.memory_space<vmem>>, vector<3x8xf32>
    tpu.vector_store %arg19[%c15_119, %c0_120], %184 {strides = array<i32>} : memref<27x8xf32, #tpu.memory_space<vmem>>, vector<3x8xf32>,
    %186 = vector.extract_strided_slice %8 {offsets = [0, 10, 0], sizes = [3, 1, 9], strides = [1, 1, 1]} : vector<3x18x9xf32> to vector<3x1x9xf32>
    %187 = vector.shape_cast %186 : vector<3x1x9xf32> to vector<3x9xf32>
    %188 = vector.extract_strided_slice %11 {offsets = [0, 10, 0], sizes = [3, 1, 9], strides = [1, 1, 1]} : vector<3x18x9xf32> to vector<3x1x9xf32>
    %189 = vector.shape_cast %188 : vector<3x1x9xf32> to vector<3x9xf32>
    %190 = vector.extract_strided_slice %187 {offsets = [0, 0], sizes = [3, 8], strides = [1, 1]} : vector<3x9xf32> to vector<3x8xf32>
    %c18_121 = arith.constant 18 : index
    %c0_122 = arith.constant 0 : index
    %191 = vector.load %arg19[%c18_121, %c0_122] : memref<27x8xf32, #tpu.memory_space<vmem>>, vector<3x8xf32>
    tpu.vector_store %arg19[%c18_121, %c0_122], %190 {strides = array<i32>} : memref<27x8xf32, #tpu.memory_space<vmem>>, vector<3x8xf32>,
    %192 = vector.extract_strided_slice %189 {offsets = [0, 0], sizes = [3, 8], strides = [1, 1]} : vector<3x9xf32> to vector<3x8xf32>
    %c21_123 = arith.constant 21 : index
    %c0_124 = arith.constant 0 : index
    %193 = vector.load %arg19[%c21_123, %c0_124] : memref<27x8xf32, #tpu.memory_space<vmem>>, vector<3x8xf32>
    tpu.vector_store %arg19[%c21_123, %c0_124], %192 {strides = array<i32>} : memref<27x8xf32, #tpu.memory_space<vmem>>, vector<3x8xf32>,
    %194 = vector.extract_strided_slice %187 {offsets = [0, 1], sizes = [3, 8], strides = [1, 1]} : vector<3x9xf32> to vector<3x8xf32>
    %c24_125 = arith.constant 24 : index
    %c0_126 = arith.constant 0 : index
    %195 = vector.load %arg19[%c24_125, %c0_126] : memref<27x8xf32, #tpu.memory_space<vmem>>, vector<3x8xf32>
    tpu.vector_store %arg19[%c24_125, %c0_126], %194 {strides = array<i32>} : memref<27x8xf32, #tpu.memory_space<vmem>>, vector<3x8xf32>,
    %c0_127 = arith.constant 0 : index
    %c0_128 = arith.constant 0 : index
    %196 = vector.load %arg19[%c0_127, %c0_128] : memref<27x8xf32, #tpu.memory_space<vmem>>, vector<27x8xf32>
    %197 = arith.truncf %196 : vector<27x8xf32> to vector<27x8xbf16>
    %cst_129 = arith.constant dense<0.000000e+00> : vector<32x8xf32>
    %198 = tpu.matmul %12, %197, %cst_129 {dimension_numbers = #tpu.dot_dimension_numbers<[1], [0], [0], [1], [0, 0, 1, 1], [], []>} : vector<32x27xbf16>, vector<27x8xbf16>, vector<32x8xf32> -> vector<32x8xf32>
    %199 = vector.broadcast %13 : vector<32x1xf32> to vector<32x8xf32>
    %200 = arith.addf %198, %199 : vector<32x8xf32>
    %cst_130 = arith.constant 0.000000e+00 : f32
    %201 = vector.broadcast %cst_130 : f32 to vector<32x8xf32>
    %202 = arith.maximumf %200, %201 : vector<32x8xf32>
    %c0_131 = arith.constant 0 : index
    %c32 = arith.constant 32 : index
    %203 = vector.load %arg16[%c0_131, %c32] : memref<32x64xf32, #tpu.memory_space<vmem>>, vector<32x8xf32>
    tpu.vector_store %arg16[%c0_131, %c32], %202 {strides = array<i32>} : memref<32x64xf32, #tpu.memory_space<vmem>>, vector<32x8xf32>,
    %204 = vector.extract_strided_slice %8 {offsets = [0, 10, 0], sizes = [3, 1, 9], strides = [1, 1, 1]} : vector<3x18x9xf32> to vector<3x1x9xf32>
    %205 = vector.shape_cast %204 : vector<3x1x9xf32> to vector<3x9xf32>
    %206 = vector.extract_strided_slice %11 {offsets = [0, 10, 0], sizes = [3, 1, 9], strides = [1, 1, 1]} : vector<3x18x9xf32> to vector<3x1x9xf32>
    %207 = vector.shape_cast %206 : vector<3x1x9xf32> to vector<3x9xf32>
    %208 = vector.extract_strided_slice %205 {offsets = [0, 0], sizes = [3, 8], strides = [1, 1]} : vector<3x9xf32> to vector<3x8xf32>
    %c0_132 = arith.constant 0 : index
    %c0_133 = arith.constant 0 : index
    %209 = vector.load %arg19[%c0_132, %c0_133] : memref<27x8xf32, #tpu.memory_space<vmem>>, vector<3x8xf32>
    tpu.vector_store %arg19[%c0_132, %c0_133], %208 {strides = array<i32>} : memref<27x8xf32, #tpu.memory_space<vmem>>, vector<3x8xf32>,
    %210 = vector.extract_strided_slice %207 {offsets = [0, 0], sizes = [3, 8], strides = [1, 1]} : vector<3x9xf32> to vector<3x8xf32>
    %c3_134 = arith.constant 3 : index
    %c0_135 = arith.constant 0 : index
    %211 = vector.load %arg19[%c3_134, %c0_135] : memref<27x8xf32, #tpu.memory_space<vmem>>, vector<3x8xf32>
    tpu.vector_store %arg19[%c3_134, %c0_135], %210 {strides = array<i32>} : memref<27x8xf32, #tpu.memory_space<vmem>>, vector<3x8xf32>,
    %212 = vector.extract_strided_slice %205 {offsets = [0, 1], sizes = [3, 8], strides = [1, 1]} : vector<3x9xf32> to vector<3x8xf32>
    %c6_136 = arith.constant 6 : index
    %c0_137 = arith.constant 0 : index
    %213 = vector.load %arg19[%c6_136, %c0_137] : memref<27x8xf32, #tpu.memory_space<vmem>>, vector<3x8xf32>
    tpu.vector_store %arg19[%c6_136, %c0_137], %212 {strides = array<i32>} : memref<27x8xf32, #tpu.memory_space<vmem>>, vector<3x8xf32>,
    %214 = vector.extract_strided_slice %8 {offsets = [0, 11, 0], sizes = [3, 1, 9], strides = [1, 1, 1]} : vector<3x18x9xf32> to vector<3x1x9xf32>
    %215 = vector.shape_cast %214 : vector<3x1x9xf32> to vector<3x9xf32>
    %216 = vector.extract_strided_slice %11 {offsets = [0, 11, 0], sizes = [3, 1, 9], strides = [1, 1, 1]} : vector<3x18x9xf32> to vector<3x1x9xf32>
    %217 = vector.shape_cast %216 : vector<3x1x9xf32> to vector<3x9xf32>
    %218 = vector.extract_strided_slice %215 {offsets = [0, 0], sizes = [3, 8], strides = [1, 1]} : vector<3x9xf32> to vector<3x8xf32>
    %c9_138 = arith.constant 9 : index
    %c0_139 = arith.constant 0 : index
    %219 = vector.load %arg19[%c9_138, %c0_139] : memref<27x8xf32, #tpu.memory_space<vmem>>, vector<3x8xf32>
    tpu.vector_store %arg19[%c9_138, %c0_139], %218 {strides = array<i32>} : memref<27x8xf32, #tpu.memory_space<vmem>>, vector<3x8xf32>,
    %220 = vector.extract_strided_slice %217 {offsets = [0, 0], sizes = [3, 8], strides = [1, 1]} : vector<3x9xf32> to vector<3x8xf32>
    %c12_140 = arith.constant 12 : index
    %c0_141 = arith.constant 0 : index
    %221 = vector.load %arg19[%c12_140, %c0_141] : memref<27x8xf32, #tpu.memory_space<vmem>>, vector<3x8xf32>
    tpu.vector_store %arg19[%c12_140, %c0_141], %220 {strides = array<i32>} : memref<27x8xf32, #tpu.memory_space<vmem>>, vector<3x8xf32>,
    %222 = vector.extract_strided_slice %215 {offsets = [0, 1], sizes = [3, 8], strides = [1, 1]} : vector<3x9xf32> to vector<3x8xf32>
    %c15_142 = arith.constant 15 : index
    %c0_143 = arith.constant 0 : index
    %223 = vector.load %arg19[%c15_142, %c0_143] : memref<27x8xf32, #tpu.memory_space<vmem>>, vector<3x8xf32>
    tpu.vector_store %arg19[%c15_142, %c0_143], %222 {strides = array<i32>} : memref<27x8xf32, #tpu.memory_space<vmem>>, vector<3x8xf32>,
    %224 = vector.extract_strided_slice %8 {offsets = [0, 12, 0], sizes = [3, 1, 9], strides = [1, 1, 1]} : vector<3x18x9xf32> to vector<3x1x9xf32>
    %225 = vector.shape_cast %224 : vector<3x1x9xf32> to vector<3x9xf32>
    %226 = vector.extract_strided_slice %11 {offsets = [0, 12, 0], sizes = [3, 1, 9], strides = [1, 1, 1]} : vector<3x18x9xf32> to vector<3x1x9xf32>
    %227 = vector.shape_cast %226 : vector<3x1x9xf32> to vector<3x9xf32>
    %228 = vector.extract_strided_slice %225 {offsets = [0, 0], sizes = [3, 8], strides = [1, 1]} : vector<3x9xf32> to vector<3x8xf32>
    %c18_144 = arith.constant 18 : index
    %c0_145 = arith.constant 0 : index
    %229 = vector.load %arg19[%c18_144, %c0_145] : memref<27x8xf32, #tpu.memory_space<vmem>>, vector<3x8xf32>
    tpu.vector_store %arg19[%c18_144, %c0_145], %228 {strides = array<i32>} : memref<27x8xf32, #tpu.memory_space<vmem>>, vector<3x8xf32>,
    %230 = vector.extract_strided_slice %227 {offsets = [0, 0], sizes = [3, 8], strides = [1, 1]} : vector<3x9xf32> to vector<3x8xf32>
    %c21_146 = arith.constant 21 : index
    %c0_147 = arith.constant 0 : index
    %231 = vector.load %arg19[%c21_146, %c0_147] : memref<27x8xf32, #tpu.memory_space<vmem>>, vector<3x8xf32>
    tpu.vector_store %arg19[%c21_146, %c0_147], %230 {strides = array<i32>} : memref<27x8xf32, #tpu.memory_space<vmem>>, vector<3x8xf32>,
    %232 = vector.extract_strided_slice %225 {offsets = [0, 1], sizes = [3, 8], strides = [1, 1]} : vector<3x9xf32> to vector<3x8xf32>
    %c24_148 = arith.constant 24 : index
    %c0_149 = arith.constant 0 : index
    %233 = vector.load %arg19[%c24_148, %c0_149] : memref<27x8xf32, #tpu.memory_space<vmem>>, vector<3x8xf32>
    tpu.vector_store %arg19[%c24_148, %c0_149], %232 {strides = array<i32>} : memref<27x8xf32, #tpu.memory_space<vmem>>, vector<3x8xf32>,
    %c0_150 = arith.constant 0 : index
    %c0_151 = arith.constant 0 : index
    %234 = vector.load %arg19[%c0_150, %c0_151] : memref<27x8xf32, #tpu.memory_space<vmem>>, vector<27x8xf32>
    %235 = arith.truncf %234 : vector<27x8xf32> to vector<27x8xbf16>
    %cst_152 = arith.constant dense<0.000000e+00> : vector<32x8xf32>
    %236 = tpu.matmul %12, %235, %cst_152 {dimension_numbers = #tpu.dot_dimension_numbers<[1], [0], [0], [1], [0, 0, 1, 1], [], []>} : vector<32x27xbf16>, vector<27x8xbf16>, vector<32x8xf32> -> vector<32x8xf32>
    %237 = vector.broadcast %13 : vector<32x1xf32> to vector<32x8xf32>
    %238 = arith.addf %236, %237 : vector<32x8xf32>
    %cst_153 = arith.constant 0.000000e+00 : f32
    %239 = vector.broadcast %cst_153 : f32 to vector<32x8xf32>
    %240 = arith.maximumf %238, %239 : vector<32x8xf32>
    %c0_154 = arith.constant 0 : index
    %c40 = arith.constant 40 : index
    %241 = vector.load %arg16[%c0_154, %c40] : memref<32x64xf32, #tpu.memory_space<vmem>>, vector<32x8xf32>
    tpu.vector_store %arg16[%c0_154, %c40], %240 {strides = array<i32>} : memref<32x64xf32, #tpu.memory_space<vmem>>, vector<32x8xf32>,
    %242 = vector.extract_strided_slice %8 {offsets = [0, 12, 0], sizes = [3, 1, 9], strides = [1, 1, 1]} : vector<3x18x9xf32> to vector<3x1x9xf32>
    %243 = vector.shape_cast %242 : vector<3x1x9xf32> to vector<3x9xf32>
    %244 = vector.extract_strided_slice %11 {offsets = [0, 12, 0], sizes = [3, 1, 9], strides = [1, 1, 1]} : vector<3x18x9xf32> to vector<3x1x9xf32>
    %245 = vector.shape_cast %244 : vector<3x1x9xf32> to vector<3x9xf32>
    %246 = vector.extract_strided_slice %243 {offsets = [0, 0], sizes = [3, 8], strides = [1, 1]} : vector<3x9xf32> to vector<3x8xf32>
    %c0_155 = arith.constant 0 : index
    %c0_156 = arith.constant 0 : index
    %247 = vector.load %arg19[%c0_155, %c0_156] : memref<27x8xf32, #tpu.memory_space<vmem>>, vector<3x8xf32>
    tpu.vector_store %arg19[%c0_155, %c0_156], %246 {strides = array<i32>} : memref<27x8xf32, #tpu.memory_space<vmem>>, vector<3x8xf32>,
    %248 = vector.extract_strided_slice %245 {offsets = [0, 0], sizes = [3, 8], strides = [1, 1]} : vector<3x9xf32> to vector<3x8xf32>
    %c3_157 = arith.constant 3 : index
    %c0_158 = arith.constant 0 : index
    %249 = vector.load %arg19[%c3_157, %c0_158] : memref<27x8xf32, #tpu.memory_space<vmem>>, vector<3x8xf32>
    tpu.vector_store %arg19[%c3_157, %c0_158], %248 {strides = array<i32>} : memref<27x8xf32, #tpu.memory_space<vmem>>, vector<3x8xf32>,
    %250 = vector.extract_strided_slice %243 {offsets = [0, 1], sizes = [3, 8], strides = [1, 1]} : vector<3x9xf32> to vector<3x8xf32>
    %c6_159 = arith.constant 6 : index
    %c0_160 = arith.constant 0 : index
    %251 = vector.load %arg19[%c6_159, %c0_160] : memref<27x8xf32, #tpu.memory_space<vmem>>, vector<3x8xf32>
    tpu.vector_store %arg19[%c6_159, %c0_160], %250 {strides = array<i32>} : memref<27x8xf32, #tpu.memory_space<vmem>>, vector<3x8xf32>,
    %252 = vector.extract_strided_slice %8 {offsets = [0, 13, 0], sizes = [3, 1, 9], strides = [1, 1, 1]} : vector<3x18x9xf32> to vector<3x1x9xf32>
    %253 = vector.shape_cast %252 : vector<3x1x9xf32> to vector<3x9xf32>
    %254 = vector.extract_strided_slice %11 {offsets = [0, 13, 0], sizes = [3, 1, 9], strides = [1, 1, 1]} : vector<3x18x9xf32> to vector<3x1x9xf32>
    %255 = vector.shape_cast %254 : vector<3x1x9xf32> to vector<3x9xf32>
    %256 = vector.extract_strided_slice %253 {offsets = [0, 0], sizes = [3, 8], strides = [1, 1]} : vector<3x9xf32> to vector<3x8xf32>
    %c9_161 = arith.constant 9 : index
    %c0_162 = arith.constant 0 : index
    %257 = vector.load %arg19[%c9_161, %c0_162] : memref<27x8xf32, #tpu.memory_space<vmem>>, vector<3x8xf32>
    tpu.vector_store %arg19[%c9_161, %c0_162], %256 {strides = array<i32>} : memref<27x8xf32, #tpu.memory_space<vmem>>, vector<3x8xf32>,
    %258 = vector.extract_strided_slice %255 {offsets = [0, 0], sizes = [3, 8], strides = [1, 1]} : vector<3x9xf32> to vector<3x8xf32>
    %c12_163 = arith.constant 12 : index
    %c0_164 = arith.constant 0 : index
    %259 = vector.load %arg19[%c12_163, %c0_164] : memref<27x8xf32, #tpu.memory_space<vmem>>, vector<3x8xf32>
    tpu.vector_store %arg19[%c12_163, %c0_164], %258 {strides = array<i32>} : memref<27x8xf32, #tpu.memory_space<vmem>>, vector<3x8xf32>,
    %260 = vector.extract_strided_slice %253 {offsets = [0, 1], sizes = [3, 8], strides = [1, 1]} : vector<3x9xf32> to vector<3x8xf32>
    %c15_165 = arith.constant 15 : index
    %c0_166 = arith.constant 0 : index
    %261 = vector.load %arg19[%c15_165, %c0_166] : memref<27x8xf32, #tpu.memory_space<vmem>>, vector<3x8xf32>
    tpu.vector_store %arg19[%c15_165, %c0_166], %260 {strides = array<i32>} : memref<27x8xf32, #tpu.memory_space<vmem>>, vector<3x8xf32>,
    %262 = vector.extract_strided_slice %8 {offsets = [0, 14, 0], sizes = [3, 1, 9], strides = [1, 1, 1]} : vector<3x18x9xf32> to vector<3x1x9xf32>
    %263 = vector.shape_cast %262 : vector<3x1x9xf32> to vector<3x9xf32>
    %264 = vector.extract_strided_slice %11 {offsets = [0, 14, 0], sizes = [3, 1, 9], strides = [1, 1, 1]} : vector<3x18x9xf32> to vector<3x1x9xf32>
    %265 = vector.shape_cast %264 : vector<3x1x9xf32> to vector<3x9xf32>
    %266 = vector.extract_strided_slice %263 {offsets = [0, 0], sizes = [3, 8], strides = [1, 1]} : vector<3x9xf32> to vector<3x8xf32>
    %c18_167 = arith.constant 18 : index
    %c0_168 = arith.constant 0 : index
    %267 = vector.load %arg19[%c18_167, %c0_168] : memref<27x8xf32, #tpu.memory_space<vmem>>, vector<3x8xf32>
    tpu.vector_store %arg19[%c18_167, %c0_168], %266 {strides = array<i32>} : memref<27x8xf32, #tpu.memory_space<vmem>>, vector<3x8xf32>,
    %268 = vector.extract_strided_slice %265 {offsets = [0, 0], sizes = [3, 8], strides = [1, 1]} : vector<3x9xf32> to vector<3x8xf32>
    %c21_169 = arith.constant 21 : index
    %c0_170 = arith.constant 0 : index
    %269 = vector.load %arg19[%c21_169, %c0_170] : memref<27x8xf32, #tpu.memory_space<vmem>>, vector<3x8xf32>
    tpu.vector_store %arg19[%c21_169, %c0_170], %268 {strides = array<i32>} : memref<27x8xf32, #tpu.memory_space<vmem>>, vector<3x8xf32>,
    %270 = vector.extract_strided_slice %263 {offsets = [0, 1], sizes = [3, 8], strides = [1, 1]} : vector<3x9xf32> to vector<3x8xf32>
    %c24_171 = arith.constant 24 : index
    %c0_172 = arith.constant 0 : index
    %271 = vector.load %arg19[%c24_171, %c0_172] : memref<27x8xf32, #tpu.memory_space<vmem>>, vector<3x8xf32>
    tpu.vector_store %arg19[%c24_171, %c0_172], %270 {strides = array<i32>} : memref<27x8xf32, #tpu.memory_space<vmem>>, vector<3x8xf32>,
    %c0_173 = arith.constant 0 : index
    %c0_174 = arith.constant 0 : index
    %272 = vector.load %arg19[%c0_173, %c0_174] : memref<27x8xf32, #tpu.memory_space<vmem>>, vector<27x8xf32>
    %273 = arith.truncf %272 : vector<27x8xf32> to vector<27x8xbf16>
    %cst_175 = arith.constant dense<0.000000e+00> : vector<32x8xf32>
    %274 = tpu.matmul %12, %273, %cst_175 {dimension_numbers = #tpu.dot_dimension_numbers<[1], [0], [0], [1], [0, 0, 1, 1], [], []>} : vector<32x27xbf16>, vector<27x8xbf16>, vector<32x8xf32> -> vector<32x8xf32>
    %275 = vector.broadcast %13 : vector<32x1xf32> to vector<32x8xf32>
    %276 = arith.addf %274, %275 : vector<32x8xf32>
    %cst_176 = arith.constant 0.000000e+00 : f32
    %277 = vector.broadcast %cst_176 : f32 to vector<32x8xf32>
    %278 = arith.maximumf %276, %277 : vector<32x8xf32>
    %c0_177 = arith.constant 0 : index
    %c48 = arith.constant 48 : index
    %279 = vector.load %arg16[%c0_177, %c48] : memref<32x64xf32, #tpu.memory_space<vmem>>, vector<32x8xf32>
    tpu.vector_store %arg16[%c0_177, %c48], %278 {strides = array<i32>} : memref<32x64xf32, #tpu.memory_space<vmem>>, vector<32x8xf32>,
    %280 = vector.extract_strided_slice %8 {offsets = [0, 14, 0], sizes = [3, 1, 9], strides = [1, 1, 1]} : vector<3x18x9xf32> to vector<3x1x9xf32>
    %281 = vector.shape_cast %280 : vector<3x1x9xf32> to vector<3x9xf32>
    %282 = vector.extract_strided_slice %11 {offsets = [0, 14, 0], sizes = [3, 1, 9], strides = [1, 1, 1]} : vector<3x18x9xf32> to vector<3x1x9xf32>
    %283 = vector.shape_cast %282 : vector<3x1x9xf32> to vector<3x9xf32>
    %284 = vector.extract_strided_slice %281 {offsets = [0, 0], sizes = [3, 8], strides = [1, 1]} : vector<3x9xf32> to vector<3x8xf32>
    %c0_178 = arith.constant 0 : index
    %c0_179 = arith.constant 0 : index
    %285 = vector.load %arg19[%c0_178, %c0_179] : memref<27x8xf32, #tpu.memory_space<vmem>>, vector<3x8xf32>
    tpu.vector_store %arg19[%c0_178, %c0_179], %284 {strides = array<i32>} : memref<27x8xf32, #tpu.memory_space<vmem>>, vector<3x8xf32>,
    %286 = vector.extract_strided_slice %283 {offsets = [0, 0], sizes = [3, 8], strides = [1, 1]} : vector<3x9xf32> to vector<3x8xf32>
    %c3_180 = arith.constant 3 : index
    %c0_181 = arith.constant 0 : index
    %287 = vector.load %arg19[%c3_180, %c0_181] : memref<27x8xf32, #tpu.memory_space<vmem>>, vector<3x8xf32>
    tpu.vector_store %arg19[%c3_180, %c0_181], %286 {strides = array<i32>} : memref<27x8xf32, #tpu.memory_space<vmem>>, vector<3x8xf32>,
    %288 = vector.extract_strided_slice %281 {offsets = [0, 1], sizes = [3, 8], strides = [1, 1]} : vector<3x9xf32> to vector<3x8xf32>
    %c6_182 = arith.constant 6 : index
    %c0_183 = arith.constant 0 : index
    %289 = vector.load %arg19[%c6_182, %c0_183] : memref<27x8xf32, #tpu.memory_space<vmem>>, vector<3x8xf32>
    tpu.vector_store %arg19[%c6_182, %c0_183], %288 {strides = array<i32>} : memref<27x8xf32, #tpu.memory_space<vmem>>, vector<3x8xf32>,
    %290 = vector.extract_strided_slice %8 {offsets = [0, 15, 0], sizes = [3, 1, 9], strides = [1, 1, 1]} : vector<3x18x9xf32> to vector<3x1x9xf32>
    %291 = vector.shape_cast %290 : vector<3x1x9xf32> to vector<3x9xf32>
    %292 = vector.extract_strided_slice %11 {offsets = [0, 15, 0], sizes = [3, 1, 9], strides = [1, 1, 1]} : vector<3x18x9xf32> to vector<3x1x9xf32>
    %293 = vector.shape_cast %292 : vector<3x1x9xf32> to vector<3x9xf32>
    %294 = vector.extract_strided_slice %291 {offsets = [0, 0], sizes = [3, 8], strides = [1, 1]} : vector<3x9xf32> to vector<3x8xf32>
    %c9_184 = arith.constant 9 : index
    %c0_185 = arith.constant 0 : index
    %295 = vector.load %arg19[%c9_184, %c0_185] : memref<27x8xf32, #tpu.memory_space<vmem>>, vector<3x8xf32>
    tpu.vector_store %arg19[%c9_184, %c0_185], %294 {strides = array<i32>} : memref<27x8xf32, #tpu.memory_space<vmem>>, vector<3x8xf32>,
    %296 = vector.extract_strided_slice %293 {offsets = [0, 0], sizes = [3, 8], strides = [1, 1]} : vector<3x9xf32> to vector<3x8xf32>
    %c12_186 = arith.constant 12 : index
    %c0_187 = arith.constant 0 : index
    %297 = vector.load %arg19[%c12_186, %c0_187] : memref<27x8xf32, #tpu.memory_space<vmem>>, vector<3x8xf32>
    tpu.vector_store %arg19[%c12_186, %c0_187], %296 {strides = array<i32>} : memref<27x8xf32, #tpu.memory_space<vmem>>, vector<3x8xf32>,
    %298 = vector.extract_strided_slice %291 {offsets = [0, 1], sizes = [3, 8], strides = [1, 1]} : vector<3x9xf32> to vector<3x8xf32>
    %c15_188 = arith.constant 15 : index
    %c0_189 = arith.constant 0 : index
    %299 = vector.load %arg19[%c15_188, %c0_189] : memref<27x8xf32, #tpu.memory_space<vmem>>, vector<3x8xf32>
    tpu.vector_store %arg19[%c15_188, %c0_189], %298 {strides = array<i32>} : memref<27x8xf32, #tpu.memory_space<vmem>>, vector<3x8xf32>,
    %300 = vector.extract_strided_slice %8 {offsets = [0, 16, 0], sizes = [3, 1, 9], strides = [1, 1, 1]} : vector<3x18x9xf32> to vector<3x1x9xf32>
    %301 = vector.shape_cast %300 : vector<3x1x9xf32> to vector<3x9xf32>
    %302 = vector.extract_strided_slice %11 {offsets = [0, 16, 0], sizes = [3, 1, 9], strides = [1, 1, 1]} : vector<3x18x9xf32> to vector<3x1x9xf32>
    %303 = vector.shape_cast %302 : vector<3x1x9xf32> to vector<3x9xf32>
    %304 = vector.extract_strided_slice %301 {offsets = [0, 0], sizes = [3, 8], strides = [1, 1]} : vector<3x9xf32> to vector<3x8xf32>
    %c18_190 = arith.constant 18 : index
    %c0_191 = arith.constant 0 : index
    %305 = vector.load %arg19[%c18_190, %c0_191] : memref<27x8xf32, #tpu.memory_space<vmem>>, vector<3x8xf32>
    tpu.vector_store %arg19[%c18_190, %c0_191], %304 {strides = array<i32>} : memref<27x8xf32, #tpu.memory_space<vmem>>, vector<3x8xf32>,
    %306 = vector.extract_strided_slice %303 {offsets = [0, 0], sizes = [3, 8], strides = [1, 1]} : vector<3x9xf32> to vector<3x8xf32>
    %c21_192 = arith.constant 21 : index
    %c0_193 = arith.constant 0 : index
    %307 = vector.load %arg19[%c21_192, %c0_193] : memref<27x8xf32, #tpu.memory_space<vmem>>, vector<3x8xf32>
    tpu.vector_store %arg19[%c21_192, %c0_193], %306 {strides = array<i32>} : memref<27x8xf32, #tpu.memory_space<vmem>>, vector<3x8xf32>,
    %308 = vector.extract_strided_slice %301 {offsets = [0, 1], sizes = [3, 8], strides = [1, 1]} : vector<3x9xf32> to vector<3x8xf32>
    %c24_194 = arith.constant 24 : index
    %c0_195 = arith.constant 0 : index
    %309 = vector.load %arg19[%c24_194, %c0_195] : memref<27x8xf32, #tpu.memory_space<vmem>>, vector<3x8xf32>
    tpu.vector_store %arg19[%c24_194, %c0_195], %308 {strides = array<i32>} : memref<27x8xf32, #tpu.memory_space<vmem>>, vector<3x8xf32>,
    %c0_196 = arith.constant 0 : index
    %c0_197 = arith.constant 0 : index
    %310 = vector.load %arg19[%c0_196, %c0_197] : memref<27x8xf32, #tpu.memory_space<vmem>>, vector<27x8xf32>
    %311 = arith.truncf %310 : vector<27x8xf32> to vector<27x8xbf16>
    %cst_198 = arith.constant dense<0.000000e+00> : vector<32x8xf32>
    %312 = tpu.matmul %12, %311, %cst_198 {dimension_numbers = #tpu.dot_dimension_numbers<[1], [0], [0], [1], [0, 0, 1, 1], [], []>} : vector<32x27xbf16>, vector<27x8xbf16>, vector<32x8xf32> -> vector<32x8xf32>
    %313 = vector.broadcast %13 : vector<32x1xf32> to vector<32x8xf32>
    %314 = arith.addf %312, %313 : vector<32x8xf32>
    %cst_199 = arith.constant 0.000000e+00 : f32
    %315 = vector.broadcast %cst_199 : f32 to vector<32x8xf32>
    %316 = arith.maximumf %314, %315 : vector<32x8xf32>
    %c0_200 = arith.constant 0 : index
    %c56 = arith.constant 56 : index
    %317 = vector.load %arg16[%c0_200, %c56] : memref<32x64xf32, #tpu.memory_space<vmem>>, vector<32x8xf32>
    tpu.vector_store %arg16[%c0_200, %c56], %316 {strides = array<i32>} : memref<32x64xf32, #tpu.memory_space<vmem>>, vector<32x8xf32>,
    %c0_201 = arith.constant 0 : index
    %c0_202 = arith.constant 0 : index
    %318 = vector.load %arg16[%c0_201, %c0_202] : memref<32x64xf32, #tpu.memory_space<vmem>>, vector<32x64xf32>
    %c0_203 = arith.constant 0 : index
    %c0_204 = arith.constant 0 : index
    %c0_205 = arith.constant 0 : index
    %319 = vector.load %arg4[%c0_203, %c0_204, %c0_205] : memref<4x64x16xf32, #tpu.memory_space<vmem>>, vector<1x64x16xf32>
    %320 = vector.shape_cast %319 : vector<1x64x16xf32> to vector<64x16xf32>
    %cst_206 = arith.constant dense<0.000000e+00> : vector<32x16xf32>
    %321 = tpu.matmul %318, %320, %cst_206 {dimension_numbers = #tpu.dot_dimension_numbers<[1], [0], [0], [1], [0, 0, 1, 1], [], []>} : vector<32x64xf32>, vector<64x16xf32>, vector<32x16xf32> -> vector<32x16xf32>
    %c1_207 = arith.constant 1 : index
    %c0_208 = arith.constant 0 : index
    %c0_209 = arith.constant 0 : index
    %322 = vector.load %arg4[%c1_207, %c0_208, %c0_209] : memref<4x64x16xf32, #tpu.memory_space<vmem>>, vector<1x64x16xf32>
    %323 = vector.shape_cast %322 : vector<1x64x16xf32> to vector<64x16xf32>
    %cst_210 = arith.constant dense<0.000000e+00> : vector<32x16xf32>
    %324 = tpu.matmul %318, %323, %cst_210 {dimension_numbers = #tpu.dot_dimension_numbers<[1], [0], [0], [1], [0, 0, 1, 1], [], []>} : vector<32x64xf32>, vector<64x16xf32>, vector<32x16xf32> -> vector<32x16xf32>
    %325 = arith.maximumf %321, %324 : vector<32x16xf32>
    %c2 = arith.constant 2 : index
    %c0_211 = arith.constant 0 : index
    %c0_212 = arith.constant 0 : index
    %326 = vector.load %arg4[%c2, %c0_211, %c0_212] : memref<4x64x16xf32, #tpu.memory_space<vmem>>, vector<1x64x16xf32>
    %327 = vector.shape_cast %326 : vector<1x64x16xf32> to vector<64x16xf32>
    %cst_213 = arith.constant dense<0.000000e+00> : vector<32x16xf32>
    %328 = tpu.matmul %318, %327, %cst_213 {dimension_numbers = #tpu.dot_dimension_numbers<[1], [0], [0], [1], [0, 0, 1, 1], [], []>} : vector<32x64xf32>, vector<64x16xf32>, vector<32x16xf32> -> vector<32x16xf32>
    %329 = arith.maximumf %325, %328 : vector<32x16xf32>
    %c3_214 = arith.constant 3 : index
    %c0_215 = arith.constant 0 : index
    %c0_216 = arith.constant 0 : index
    %330 = vector.load %arg4[%c3_214, %c0_215, %c0_216] : memref<4x64x16xf32, #tpu.memory_space<vmem>>, vector<1x64x16xf32>
    %331 = vector.shape_cast %330 : vector<1x64x16xf32> to vector<64x16xf32>
    %cst_217 = arith.constant dense<0.000000e+00> : vector<32x16xf32>
    %332 = tpu.matmul %318, %331, %cst_217 {dimension_numbers = #tpu.dot_dimension_numbers<[1], [0], [0], [1], [0, 0, 1, 1], [], []>} : vector<32x64xf32>, vector<64x16xf32>, vector<32x16xf32> -> vector<32x16xf32>
    %333 = arith.maximumf %329, %332 : vector<32x16xf32>
    %c0_218 = arith.constant 0 : index
    %c0_219 = arith.constant 0 : index
    %334 = vector.load %arg7[%c0_218, %c0_219] : memref<16x32xbf16, #tpu.memory_space<vmem>>, vector<16x32xbf16>
    %335 = arith.truncf %318 : vector<32x64xf32> to vector<32x64xbf16>
    %cst_220 = arith.constant dense<0.000000e+00> : vector<16x64xf32>
    %336 = tpu.matmul %334, %335, %cst_220 {dimension_numbers = #tpu.dot_dimension_numbers<[1], [0], [0], [1], [0, 0, 1, 1], [], []>} : vector<16x32xbf16>, vector<32x64xbf16>, vector<16x64xf32> -> vector<16x64xf32>
    %c0_221 = arith.constant 0 : index
    %c0_222 = arith.constant 0 : index
    %337 = vector.load %arg8[%c0_221, %c0_222] : memref<16x1xf32, #tpu.memory_space<vmem>>, vector<16x1xf32>
    %338 = vector.broadcast %337 : vector<16x1xf32> to vector<16x64xf32>
    %339 = arith.addf %336, %338 : vector<16x64xf32>
    %cst_223 = arith.constant 0.000000e+00 : f32
    %340 = vector.broadcast %cst_223 : f32 to vector<16x64xf32>
    %341 = arith.maximumf %339, %340 : vector<16x64xf32>
    %cst_224 = arith.constant 0.000000e+00 : f32
    %342 = vector.broadcast %cst_224 : f32 to vector<16x10x10xf32>
    %c0_225 = arith.constant 0 : index
    %c0_226 = arith.constant 0 : index
    %c0_227 = arith.constant 0 : index
    %343 = vector.load %arg17[%c0_225, %c0_226, %c0_227] : memref<16x10x10xf32, #tpu.memory_space<vmem>>, vector<16x10x10xf32>
    tpu.vector_store %arg17[%c0_225, %c0_226, %c0_227], %342 {strides = array<i32>} : memref<16x10x10xf32, #tpu.memory_space<vmem>>, vector<16x10x10xf32>,
    %344 = vector.extract_strided_slice %341 {offsets = [0, 0], sizes = [16, 8], strides = [1, 1]} : vector<16x64xf32> to vector<16x8xf32>
    %c0_228 = arith.constant 0 : index
    %c1_229 = arith.constant 1 : index
    %c1_230 = arith.constant 1 : index
    %345 = vector.load %arg17[%c0_228, %c1_229, %c1_230] : memref<16x10x10xf32, #tpu.memory_space<vmem>>, vector<16x1x8xf32>
    %346 = vector.shape_cast %345 : vector<16x1x8xf32> to vector<16x8xf32>
    %347 = vector.shape_cast %344 : vector<16x8xf32> to vector<16x1x8xf32>
    tpu.vector_store %arg17[%c0_228, %c1_229, %c1_230], %347 {strides = array<i32>} : memref<16x10x10xf32, #tpu.memory_space<vmem>>, vector<16x1x8xf32>,
    %348 = vector.extract_strided_slice %341 {offsets = [0, 8], sizes = [16, 8], strides = [1, 1]} : vector<16x64xf32> to vector<16x8xf32>
    %c0_231 = arith.constant 0 : index
    %c2_232 = arith.constant 2 : index
    %c1_233 = arith.constant 1 : index
    %349 = vector.load %arg17[%c0_231, %c2_232, %c1_233] : memref<16x10x10xf32, #tpu.memory_space<vmem>>, vector<16x1x8xf32>
    %350 = vector.shape_cast %349 : vector<16x1x8xf32> to vector<16x8xf32>
    %351 = vector.shape_cast %348 : vector<16x8xf32> to vector<16x1x8xf32>
    tpu.vector_store %arg17[%c0_231, %c2_232, %c1_233], %351 {strides = array<i32>} : memref<16x10x10xf32, #tpu.memory_space<vmem>>, vector<16x1x8xf32>,
    %352 = vector.extract_strided_slice %341 {offsets = [0, 16], sizes = [16, 8], strides = [1, 1]} : vector<16x64xf32> to vector<16x8xf32>
    %c0_234 = arith.constant 0 : index
    %c3_235 = arith.constant 3 : index
    %c1_236 = arith.constant 1 : index
    %353 = vector.load %arg17[%c0_234, %c3_235, %c1_236] : memref<16x10x10xf32, #tpu.memory_space<vmem>>, vector<16x1x8xf32>
    %354 = vector.shape_cast %353 : vector<16x1x8xf32> to vector<16x8xf32>
    %355 = vector.shape_cast %352 : vector<16x8xf32> to vector<16x1x8xf32>
    tpu.vector_store %arg17[%c0_234, %c3_235, %c1_236], %355 {strides = array<i32>} : memref<16x10x10xf32, #tpu.memory_space<vmem>>, vector<16x1x8xf32>,
    %356 = vector.extract_strided_slice %341 {offsets = [0, 24], sizes = [16, 8], strides = [1, 1]} : vector<16x64xf32> to vector<16x8xf32>
    %c0_237 = arith.constant 0 : index
    %c4 = arith.constant 4 : index
    %c1_238 = arith.constant 1 : index
    %357 = vector.load %arg17[%c0_237, %c4, %c1_238] : memref<16x10x10xf32, #tpu.memory_space<vmem>>, vector<16x1x8xf32>
    %358 = vector.shape_cast %357 : vector<16x1x8xf32> to vector<16x8xf32>
    %359 = vector.shape_cast %356 : vector<16x8xf32> to vector<16x1x8xf32>
    tpu.vector_store %arg17[%c0_237, %c4, %c1_238], %359 {strides = array<i32>} : memref<16x10x10xf32, #tpu.memory_space<vmem>>, vector<16x1x8xf32>,
    %360 = vector.extract_strided_slice %341 {offsets = [0, 32], sizes = [16, 8], strides = [1, 1]} : vector<16x64xf32> to vector<16x8xf32>
    %c0_239 = arith.constant 0 : index
    %c5 = arith.constant 5 : index
    %c1_240 = arith.constant 1 : index
    %361 = vector.load %arg17[%c0_239, %c5, %c1_240] : memref<16x10x10xf32, #tpu.memory_space<vmem>>, vector<16x1x8xf32>
    %362 = vector.shape_cast %361 : vector<16x1x8xf32> to vector<16x8xf32>
    %363 = vector.shape_cast %360 : vector<16x8xf32> to vector<16x1x8xf32>
    tpu.vector_store %arg17[%c0_239, %c5, %c1_240], %363 {strides = array<i32>} : memref<16x10x10xf32, #tpu.memory_space<vmem>>, vector<16x1x8xf32>,
    %364 = vector.extract_strided_slice %341 {offsets = [0, 40], sizes = [16, 8], strides = [1, 1]} : vector<16x64xf32> to vector<16x8xf32>
    %c0_241 = arith.constant 0 : index
    %c6_242 = arith.constant 6 : index
    %c1_243 = arith.constant 1 : index
    %365 = vector.load %arg17[%c0_241, %c6_242, %c1_243] : memref<16x10x10xf32, #tpu.memory_space<vmem>>, vector<16x1x8xf32>
    %366 = vector.shape_cast %365 : vector<16x1x8xf32> to vector<16x8xf32>
    %367 = vector.shape_cast %364 : vector<16x8xf32> to vector<16x1x8xf32>
    tpu.vector_store %arg17[%c0_241, %c6_242, %c1_243], %367 {strides = array<i32>} : memref<16x10x10xf32, #tpu.memory_space<vmem>>, vector<16x1x8xf32>,
    %368 = vector.extract_strided_slice %341 {offsets = [0, 48], sizes = [16, 8], strides = [1, 1]} : vector<16x64xf32> to vector<16x8xf32>
    %c0_244 = arith.constant 0 : index
    %c7 = arith.constant 7 : index
    %c1_245 = arith.constant 1 : index
    %369 = vector.load %arg17[%c0_244, %c7, %c1_245] : memref<16x10x10xf32, #tpu.memory_space<vmem>>, vector<16x1x8xf32>
    %370 = vector.shape_cast %369 : vector<16x1x8xf32> to vector<16x8xf32>
    %371 = vector.shape_cast %368 : vector<16x8xf32> to vector<16x1x8xf32>
    tpu.vector_store %arg17[%c0_244, %c7, %c1_245], %371 {strides = array<i32>} : memref<16x10x10xf32, #tpu.memory_space<vmem>>, vector<16x1x8xf32>,
    %372 = vector.extract_strided_slice %341 {offsets = [0, 56], sizes = [16, 8], strides = [1, 1]} : vector<16x64xf32> to vector<16x8xf32>
    %c0_246 = arith.constant 0 : index
    %c8_247 = arith.constant 8 : index
    %c1_248 = arith.constant 1 : index
    %373 = vector.load %arg17[%c0_246, %c8_247, %c1_248] : memref<16x10x10xf32, #tpu.memory_space<vmem>>, vector<16x1x8xf32>
    %374 = vector.shape_cast %373 : vector<16x1x8xf32> to vector<16x8xf32>
    %375 = vector.shape_cast %372 : vector<16x8xf32> to vector<16x1x8xf32>
    tpu.vector_store %arg17[%c0_246, %c8_247, %c1_248], %375 {strides = array<i32>} : memref<16x10x10xf32, #tpu.memory_space<vmem>>, vector<16x1x8xf32>,
    %c0_249 = arith.constant 0 : index
    %c0_250 = arith.constant 0 : index
    %c0_251 = arith.constant 0 : index
    %376 = vector.load %arg17[%c0_249, %c0_250, %c0_251] : memref<16x10x10xf32, #tpu.memory_space<vmem>>, vector<16x10x10xf32>
    %c0_252 = arith.constant 0 : index
    %c0_253 = arith.constant 0 : index
    %c0_254 = arith.constant 0 : index
    %377 = vector.load %arg3[%c0_252, %c0_253, %c0_254] : memref<2x10x5xf32, #tpu.memory_space<vmem>>, vector<1x10x5xf32>
    %378 = vector.shape_cast %377 : vector<1x10x5xf32> to vector<10x5xf32>
    %cst_255 = arith.constant dense<0.000000e+00> : vector<16x10x5xf32>
    %379 = tpu.matmul %376, %378, %cst_255 {dimension_numbers = #tpu.dot_dimension_numbers<[2], [0], [0, 1], [1], [0, 0, 0, 1, 1, 1], [], []>} : vector<16x10x10xf32>, vector<10x5xf32>, vector<16x10x5xf32> -> vector<16x10x5xf32>
    %c1_256 = arith.constant 1 : index
    %c0_257 = arith.constant 0 : index
    %c0_258 = arith.constant 0 : index
    %380 = vector.load %arg3[%c1_256, %c0_257, %c0_258] : memref<2x10x5xf32, #tpu.memory_space<vmem>>, vector<1x10x5xf32>
    %381 = vector.shape_cast %380 : vector<1x10x5xf32> to vector<10x5xf32>
    %cst_259 = arith.constant dense<0.000000e+00> : vector<16x10x5xf32>
    %382 = tpu.matmul %376, %381, %cst_259 {dimension_numbers = #tpu.dot_dimension_numbers<[2], [0], [0, 1], [1], [0, 0, 0, 1, 1, 1], [], []>} : vector<16x10x10xf32>, vector<10x5xf32>, vector<16x10x5xf32> -> vector<16x10x5xf32>
    %c0_260 = arith.constant 0 : index
    %c0_261 = arith.constant 0 : index
    %383 = vector.load %arg9[%c0_260, %c0_261] : memref<32x144xbf16, #tpu.memory_space<vmem>>, vector<32x144xbf16>
    %c0_262 = arith.constant 0 : index
    %c0_263 = arith.constant 0 : index
    %384 = vector.load %arg10[%c0_262, %c0_263] : memref<32x1xf32, #tpu.memory_space<vmem>>, vector<32x1xf32>
    %385 = vector.extract_strided_slice %379 {offsets = [0, 0, 0], sizes = [16, 1, 5], strides = [1, 1, 1]} : vector<16x10x5xf32> to vector<16x1x5xf32>
    %386 = vector.shape_cast %385 : vector<16x1x5xf32> to vector<16x5xf32>
    %387 = vector.extract_strided_slice %382 {offsets = [0, 0, 0], sizes = [16, 1, 5], strides = [1, 1, 1]} : vector<16x10x5xf32> to vector<16x1x5xf32>
    %388 = vector.shape_cast %387 : vector<16x1x5xf32> to vector<16x5xf32>
    %389 = vector.extract_strided_slice %386 {offsets = [0, 0], sizes = [16, 4], strides = [1, 1]} : vector<16x5xf32> to vector<16x4xf32>
    %c0_264 = arith.constant 0 : index
    %c0_265 = arith.constant 0 : index
    %390 = vector.load %arg20[%c0_264, %c0_265] : memref<144x4xf32, #tpu.memory_space<vmem>>, vector<16x4xf32>
    tpu.vector_store %arg20[%c0_264, %c0_265], %389 {strides = array<i32>} : memref<144x4xf32, #tpu.memory_space<vmem>>, vector<16x4xf32>,
    %391 = vector.extract_strided_slice %388 {offsets = [0, 0], sizes = [16, 4], strides = [1, 1]} : vector<16x5xf32> to vector<16x4xf32>
    %c16_266 = arith.constant 16 : index
    %c0_267 = arith.constant 0 : index
    %392 = vector.load %arg20[%c16_266, %c0_267] : memref<144x4xf32, #tpu.memory_space<vmem>>, vector<16x4xf32>
    tpu.vector_store %arg20[%c16_266, %c0_267], %391 {strides = array<i32>} : memref<144x4xf32, #tpu.memory_space<vmem>>, vector<16x4xf32>,
    %393 = vector.extract_strided_slice %386 {offsets = [0, 1], sizes = [16, 4], strides = [1, 1]} : vector<16x5xf32> to vector<16x4xf32>
    %c32_268 = arith.constant 32 : index
    %c0_269 = arith.constant 0 : index
    %394 = vector.load %arg20[%c32_268, %c0_269] : memref<144x4xf32, #tpu.memory_space<vmem>>, vector<16x4xf32>
    tpu.vector_store %arg20[%c32_268, %c0_269], %393 {strides = array<i32>} : memref<144x4xf32, #tpu.memory_space<vmem>>, vector<16x4xf32>,
    %395 = vector.extract_strided_slice %379 {offsets = [0, 1, 0], sizes = [16, 1, 5], strides = [1, 1, 1]} : vector<16x10x5xf32> to vector<16x1x5xf32>
    %396 = vector.shape_cast %395 : vector<16x1x5xf32> to vector<16x5xf32>
    %397 = vector.extract_strided_slice %382 {offsets = [0, 1, 0], sizes = [16, 1, 5], strides = [1, 1, 1]} : vector<16x10x5xf32> to vector<16x1x5xf32>
    %398 = vector.shape_cast %397 : vector<16x1x5xf32> to vector<16x5xf32>
    %399 = vector.extract_strided_slice %396 {offsets = [0, 0], sizes = [16, 4], strides = [1, 1]} : vector<16x5xf32> to vector<16x4xf32>
    %c48_270 = arith.constant 48 : index
    %c0_271 = arith.constant 0 : index
    %400 = vector.load %arg20[%c48_270, %c0_271] : memref<144x4xf32, #tpu.memory_space<vmem>>, vector<16x4xf32>
    tpu.vector_store %arg20[%c48_270, %c0_271], %399 {strides = array<i32>} : memref<144x4xf32, #tpu.memory_space<vmem>>, vector<16x4xf32>,
    %401 = vector.extract_strided_slice %398 {offsets = [0, 0], sizes = [16, 4], strides = [1, 1]} : vector<16x5xf32> to vector<16x4xf32>
    %c64 = arith.constant 64 : index
    %c0_272 = arith.constant 0 : index
    %402 = vector.load %arg20[%c64, %c0_272] : memref<144x4xf32, #tpu.memory_space<vmem>>, vector<16x4xf32>
    tpu.vector_store %arg20[%c64, %c0_272], %401 {strides = array<i32>} : memref<144x4xf32, #tpu.memory_space<vmem>>, vector<16x4xf32>,
    %403 = vector.extract_strided_slice %396 {offsets = [0, 1], sizes = [16, 4], strides = [1, 1]} : vector<16x5xf32> to vector<16x4xf32>
    %c80 = arith.constant 80 : index
    %c0_273 = arith.constant 0 : index
    %404 = vector.load %arg20[%c80, %c0_273] : memref<144x4xf32, #tpu.memory_space<vmem>>, vector<16x4xf32>
    tpu.vector_store %arg20[%c80, %c0_273], %403 {strides = array<i32>} : memref<144x4xf32, #tpu.memory_space<vmem>>, vector<16x4xf32>,
    %405 = vector.extract_strided_slice %379 {offsets = [0, 2, 0], sizes = [16, 1, 5], strides = [1, 1, 1]} : vector<16x10x5xf32> to vector<16x1x5xf32>
    %406 = vector.shape_cast %405 : vector<16x1x5xf32> to vector<16x5xf32>
    %407 = vector.extract_strided_slice %382 {offsets = [0, 2, 0], sizes = [16, 1, 5], strides = [1, 1, 1]} : vector<16x10x5xf32> to vector<16x1x5xf32>
    %408 = vector.shape_cast %407 : vector<16x1x5xf32> to vector<16x5xf32>
    %409 = vector.extract_strided_slice %406 {offsets = [0, 0], sizes = [16, 4], strides = [1, 1]} : vector<16x5xf32> to vector<16x4xf32>
    %c96 = arith.constant 96 : index
    %c0_274 = arith.constant 0 : index
    %410 = vector.load %arg20[%c96, %c0_274] : memref<144x4xf32, #tpu.memory_space<vmem>>, vector<16x4xf32>
    tpu.vector_store %arg20[%c96, %c0_274], %409 {strides = array<i32>} : memref<144x4xf32, #tpu.memory_space<vmem>>, vector<16x4xf32>,
    %411 = vector.extract_strided_slice %408 {offsets = [0, 0], sizes = [16, 4], strides = [1, 1]} : vector<16x5xf32> to vector<16x4xf32>
    %c112 = arith.constant 112 : index
    %c0_275 = arith.constant 0 : index
    %412 = vector.load %arg20[%c112, %c0_275] : memref<144x4xf32, #tpu.memory_space<vmem>>, vector<16x4xf32>
    tpu.vector_store %arg20[%c112, %c0_275], %411 {strides = array<i32>} : memref<144x4xf32, #tpu.memory_space<vmem>>, vector<16x4xf32>,
    %413 = vector.extract_strided_slice %406 {offsets = [0, 1], sizes = [16, 4], strides = [1, 1]} : vector<16x5xf32> to vector<16x4xf32>
    %c128 = arith.constant 128 : index
    %c0_276 = arith.constant 0 : index
    %414 = vector.load %arg20[%c128, %c0_276] : memref<144x4xf32, #tpu.memory_space<vmem>>, vector<16x4xf32>
    tpu.vector_store %arg20[%c128, %c0_276], %413 {strides = array<i32>} : memref<144x4xf32, #tpu.memory_space<vmem>>, vector<16x4xf32>,
    %c0_277 = arith.constant 0 : index
    %c0_278 = arith.constant 0 : index
    %415 = vector.load %arg20[%c0_277, %c0_278] : memref<144x4xf32, #tpu.memory_space<vmem>>, vector<144x4xf32>
    %416 = arith.truncf %415 : vector<144x4xf32> to vector<144x4xbf16>
    %cst_279 = arith.constant dense<0.000000e+00> : vector<32x4xf32>
    %417 = tpu.matmul %383, %416, %cst_279 {dimension_numbers = #tpu.dot_dimension_numbers<[1], [0], [0], [1], [0, 0, 1, 1], [], []>} : vector<32x144xbf16>, vector<144x4xbf16>, vector<32x4xf32> -> vector<32x4xf32>
    %418 = vector.broadcast %384 : vector<32x1xf32> to vector<32x4xf32>
    %419 = arith.addf %417, %418 : vector<32x4xf32>
    %cst_280 = arith.constant 0.000000e+00 : f32
    %420 = vector.broadcast %cst_280 : f32 to vector<32x4xf32>
    %421 = arith.maximumf %419, %420 : vector<32x4xf32>
    %c0_281 = arith.constant 0 : index
    %c0_282 = arith.constant 0 : index
    %422 = vector.load %arg18[%c0_281, %c0_282] : memref<32x16xf32, #tpu.memory_space<vmem>>, vector<32x4xf32>
    tpu.vector_store %arg18[%c0_281, %c0_282], %421 {strides = array<i32>} : memref<32x16xf32, #tpu.memory_space<vmem>>, vector<32x4xf32>,
    %423 = vector.extract_strided_slice %379 {offsets = [0, 2, 0], sizes = [16, 1, 5], strides = [1, 1, 1]} : vector<16x10x5xf32> to vector<16x1x5xf32>
    %424 = vector.shape_cast %423 : vector<16x1x5xf32> to vector<16x5xf32>
    %425 = vector.extract_strided_slice %382 {offsets = [0, 2, 0], sizes = [16, 1, 5], strides = [1, 1, 1]} : vector<16x10x5xf32> to vector<16x1x5xf32>
    %426 = vector.shape_cast %425 : vector<16x1x5xf32> to vector<16x5xf32>
    %427 = vector.extract_strided_slice %424 {offsets = [0, 0], sizes = [16, 4], strides = [1, 1]} : vector<16x5xf32> to vector<16x4xf32>
    %c0_283 = arith.constant 0 : index
    %c0_284 = arith.constant 0 : index
    %428 = vector.load %arg20[%c0_283, %c0_284] : memref<144x4xf32, #tpu.memory_space<vmem>>, vector<16x4xf32>
    tpu.vector_store %arg20[%c0_283, %c0_284], %427 {strides = array<i32>} : memref<144x4xf32, #tpu.memory_space<vmem>>, vector<16x4xf32>,
    %429 = vector.extract_strided_slice %426 {offsets = [0, 0], sizes = [16, 4], strides = [1, 1]} : vector<16x5xf32> to vector<16x4xf32>
    %c16_285 = arith.constant 16 : index
    %c0_286 = arith.constant 0 : index
    %430 = vector.load %arg20[%c16_285, %c0_286] : memref<144x4xf32, #tpu.memory_space<vmem>>, vector<16x4xf32>
    tpu.vector_store %arg20[%c16_285, %c0_286], %429 {strides = array<i32>} : memref<144x4xf32, #tpu.memory_space<vmem>>, vector<16x4xf32>,
    %431 = vector.extract_strided_slice %424 {offsets = [0, 1], sizes = [16, 4], strides = [1, 1]} : vector<16x5xf32> to vector<16x4xf32>
    %c32_287 = arith.constant 32 : index
    %c0_288 = arith.constant 0 : index
    %432 = vector.load %arg20[%c32_287, %c0_288] : memref<144x4xf32, #tpu.memory_space<vmem>>, vector<16x4xf32>
    tpu.vector_store %arg20[%c32_287, %c0_288], %431 {strides = array<i32>} : memref<144x4xf32, #tpu.memory_space<vmem>>, vector<16x4xf32>,
    %433 = vector.extract_strided_slice %379 {offsets = [0, 3, 0], sizes = [16, 1, 5], strides = [1, 1, 1]} : vector<16x10x5xf32> to vector<16x1x5xf32>
    %434 = vector.shape_cast %433 : vector<16x1x5xf32> to vector<16x5xf32>
    %435 = vector.extract_strided_slice %382 {offsets = [0, 3, 0], sizes = [16, 1, 5], strides = [1, 1, 1]} : vector<16x10x5xf32> to vector<16x1x5xf32>
    %436 = vector.shape_cast %435 : vector<16x1x5xf32> to vector<16x5xf32>
    %437 = vector.extract_strided_slice %434 {offsets = [0, 0], sizes = [16, 4], strides = [1, 1]} : vector<16x5xf32> to vector<16x4xf32>
    %c48_289 = arith.constant 48 : index
    %c0_290 = arith.constant 0 : index
    %438 = vector.load %arg20[%c48_289, %c0_290] : memref<144x4xf32, #tpu.memory_space<vmem>>, vector<16x4xf32>
    tpu.vector_store %arg20[%c48_289, %c0_290], %437 {strides = array<i32>} : memref<144x4xf32, #tpu.memory_space<vmem>>, vector<16x4xf32>,
    %439 = vector.extract_strided_slice %436 {offsets = [0, 0], sizes = [16, 4], strides = [1, 1]} : vector<16x5xf32> to vector<16x4xf32>
    %c64_291 = arith.constant 64 : index
    %c0_292 = arith.constant 0 : index
    %440 = vector.load %arg20[%c64_291, %c0_292] : memref<144x4xf32, #tpu.memory_space<vmem>>, vector<16x4xf32>
    tpu.vector_store %arg20[%c64_291, %c0_292], %439 {strides = array<i32>} : memref<144x4xf32, #tpu.memory_space<vmem>>, vector<16x4xf32>,
    %441 = vector.extract_strided_slice %434 {offsets = [0, 1], sizes = [16, 4], strides = [1, 1]} : vector<16x5xf32> to vector<16x4xf32>
    %c80_293 = arith.constant 80 : index
    %c0_294 = arith.constant 0 : index
    %442 = vector.load %arg20[%c80_293, %c0_294] : memref<144x4xf32, #tpu.memory_space<vmem>>, vector<16x4xf32>
    tpu.vector_store %arg20[%c80_293, %c0_294], %441 {strides = array<i32>} : memref<144x4xf32, #tpu.memory_space<vmem>>, vector<16x4xf32>,
    %443 = vector.extract_strided_slice %379 {offsets = [0, 4, 0], sizes = [16, 1, 5], strides = [1, 1, 1]} : vector<16x10x5xf32> to vector<16x1x5xf32>
    %444 = vector.shape_cast %443 : vector<16x1x5xf32> to vector<16x5xf32>
    %445 = vector.extract_strided_slice %382 {offsets = [0, 4, 0], sizes = [16, 1, 5], strides = [1, 1, 1]} : vector<16x10x5xf32> to vector<16x1x5xf32>
    %446 = vector.shape_cast %445 : vector<16x1x5xf32> to vector<16x5xf32>
    %447 = vector.extract_strided_slice %444 {offsets = [0, 0], sizes = [16, 4], strides = [1, 1]} : vector<16x5xf32> to vector<16x4xf32>
    %c96_295 = arith.constant 96 : index
    %c0_296 = arith.constant 0 : index
    %448 = vector.load %arg20[%c96_295, %c0_296] : memref<144x4xf32, #tpu.memory_space<vmem>>, vector<16x4xf32>
    tpu.vector_store %arg20[%c96_295, %c0_296], %447 {strides = array<i32>} : memref<144x4xf32, #tpu.memory_space<vmem>>, vector<16x4xf32>,
    %449 = vector.extract_strided_slice %446 {offsets = [0, 0], sizes = [16, 4], strides = [1, 1]} : vector<16x5xf32> to vector<16x4xf32>
    %c112_297 = arith.constant 112 : index
    %c0_298 = arith.constant 0 : index
    %450 = vector.load %arg20[%c112_297, %c0_298] : memref<144x4xf32, #tpu.memory_space<vmem>>, vector<16x4xf32>
    tpu.vector_store %arg20[%c112_297, %c0_298], %449 {strides = array<i32>} : memref<144x4xf32, #tpu.memory_space<vmem>>, vector<16x4xf32>,
    %451 = vector.extract_strided_slice %444 {offsets = [0, 1], sizes = [16, 4], strides = [1, 1]} : vector<16x5xf32> to vector<16x4xf32>
    %c128_299 = arith.constant 128 : index
    %c0_300 = arith.constant 0 : index
    %452 = vector.load %arg20[%c128_299, %c0_300] : memref<144x4xf32, #tpu.memory_space<vmem>>, vector<16x4xf32>
    tpu.vector_store %arg20[%c128_299, %c0_300], %451 {strides = array<i32>} : memref<144x4xf32, #tpu.memory_space<vmem>>, vector<16x4xf32>,
    %c0_301 = arith.constant 0 : index
    %c0_302 = arith.constant 0 : index
    %453 = vector.load %arg20[%c0_301, %c0_302] : memref<144x4xf32, #tpu.memory_space<vmem>>, vector<144x4xf32>
    %454 = arith.truncf %453 : vector<144x4xf32> to vector<144x4xbf16>
    %cst_303 = arith.constant dense<0.000000e+00> : vector<32x4xf32>
    %455 = tpu.matmul %383, %454, %cst_303 {dimension_numbers = #tpu.dot_dimension_numbers<[1], [0], [0], [1], [0, 0, 1, 1], [], []>} : vector<32x144xbf16>, vector<144x4xbf16>, vector<32x4xf32> -> vector<32x4xf32>
    %456 = vector.broadcast %384 : vector<32x1xf32> to vector<32x4xf32>
    %457 = arith.addf %455, %456 : vector<32x4xf32>
    %cst_304 = arith.constant 0.000000e+00 : f32
    %458 = vector.broadcast %cst_304 : f32 to vector<32x4xf32>
    %459 = arith.maximumf %457, %458 : vector<32x4xf32>
    %c0_305 = arith.constant 0 : index
    %c4_306 = arith.constant 4 : index
    %460 = vector.load %arg18[%c0_305, %c4_306] : memref<32x16xf32, #tpu.memory_space<vmem>>, vector<32x4xf32>
    tpu.vector_store %arg18[%c0_305, %c4_306], %459 {strides = array<i32>} : memref<32x16xf32, #tpu.memory_space<vmem>>, vector<32x4xf32>,
    %461 = vector.extract_strided_slice %379 {offsets = [0, 4, 0], sizes = [16, 1, 5], strides = [1, 1, 1]} : vector<16x10x5xf32> to vector<16x1x5xf32>
    %462 = vector.shape_cast %461 : vector<16x1x5xf32> to vector<16x5xf32>
    %463 = vector.extract_strided_slice %382 {offsets = [0, 4, 0], sizes = [16, 1, 5], strides = [1, 1, 1]} : vector<16x10x5xf32> to vector<16x1x5xf32>
    %464 = vector.shape_cast %463 : vector<16x1x5xf32> to vector<16x5xf32>
    %465 = vector.extract_strided_slice %462 {offsets = [0, 0], sizes = [16, 4], strides = [1, 1]} : vector<16x5xf32> to vector<16x4xf32>
    %c0_307 = arith.constant 0 : index
    %c0_308 = arith.constant 0 : index
    %466 = vector.load %arg20[%c0_307, %c0_308] : memref<144x4xf32, #tpu.memory_space<vmem>>, vector<16x4xf32>
    tpu.vector_store %arg20[%c0_307, %c0_308], %465 {strides = array<i32>} : memref<144x4xf32, #tpu.memory_space<vmem>>, vector<16x4xf32>,
    %467 = vector.extract_strided_slice %464 {offsets = [0, 0], sizes = [16, 4], strides = [1, 1]} : vector<16x5xf32> to vector<16x4xf32>
    %c16_309 = arith.constant 16 : index
    %c0_310 = arith.constant 0 : index
    %468 = vector.load %arg20[%c16_309, %c0_310] : memref<144x4xf32, #tpu.memory_space<vmem>>, vector<16x4xf32>
    tpu.vector_store %arg20[%c16_309, %c0_310], %467 {strides = array<i32>} : memref<144x4xf32, #tpu.memory_space<vmem>>, vector<16x4xf32>,
    %469 = vector.extract_strided_slice %462 {offsets = [0, 1], sizes = [16, 4], strides = [1, 1]} : vector<16x5xf32> to vector<16x4xf32>
    %c32_311 = arith.constant 32 : index
    %c0_312 = arith.constant 0 : index
    %470 = vector.load %arg20[%c32_311, %c0_312] : memref<144x4xf32, #tpu.memory_space<vmem>>, vector<16x4xf32>
    tpu.vector_store %arg20[%c32_311, %c0_312], %469 {strides = array<i32>} : memref<144x4xf32, #tpu.memory_space<vmem>>, vector<16x4xf32>,
    %471 = vector.extract_strided_slice %379 {offsets = [0, 5, 0], sizes = [16, 1, 5], strides = [1, 1, 1]} : vector<16x10x5xf32> to vector<16x1x5xf32>
    %472 = vector.shape_cast %471 : vector<16x1x5xf32> to vector<16x5xf32>
    %473 = vector.extract_strided_slice %382 {offsets = [0, 5, 0], sizes = [16, 1, 5], strides = [1, 1, 1]} : vector<16x10x5xf32> to vector<16x1x5xf32>
    %474 = vector.shape_cast %473 : vector<16x1x5xf32> to vector<16x5xf32>
    %475 = vector.extract_strided_slice %472 {offsets = [0, 0], sizes = [16, 4], strides = [1, 1]} : vector<16x5xf32> to vector<16x4xf32>
    %c48_313 = arith.constant 48 : index
    %c0_314 = arith.constant 0 : index
    %476 = vector.load %arg20[%c48_313, %c0_314] : memref<144x4xf32, #tpu.memory_space<vmem>>, vector<16x4xf32>
    tpu.vector_store %arg20[%c48_313, %c0_314], %475 {strides = array<i32>} : memref<144x4xf32, #tpu.memory_space<vmem>>, vector<16x4xf32>,
    %477 = vector.extract_strided_slice %474 {offsets = [0, 0], sizes = [16, 4], strides = [1, 1]} : vector<16x5xf32> to vector<16x4xf32>
    %c64_315 = arith.constant 64 : index
    %c0_316 = arith.constant 0 : index
    %478 = vector.load %arg20[%c64_315, %c0_316] : memref<144x4xf32, #tpu.memory_space<vmem>>, vector<16x4xf32>
    tpu.vector_store %arg20[%c64_315, %c0_316], %477 {strides = array<i32>} : memref<144x4xf32, #tpu.memory_space<vmem>>, vector<16x4xf32>,
    %479 = vector.extract_strided_slice %472 {offsets = [0, 1], sizes = [16, 4], strides = [1, 1]} : vector<16x5xf32> to vector<16x4xf32>
    %c80_317 = arith.constant 80 : index
    %c0_318 = arith.constant 0 : index
    %480 = vector.load %arg20[%c80_317, %c0_318] : memref<144x4xf32, #tpu.memory_space<vmem>>, vector<16x4xf32>
    tpu.vector_store %arg20[%c80_317, %c0_318], %479 {strides = array<i32>} : memref<144x4xf32, #tpu.memory_space<vmem>>, vector<16x4xf32>,
    %481 = vector.extract_strided_slice %379 {offsets = [0, 6, 0], sizes = [16, 1, 5], strides = [1, 1, 1]} : vector<16x10x5xf32> to vector<16x1x5xf32>
    %482 = vector.shape_cast %481 : vector<16x1x5xf32> to vector<16x5xf32>
    %483 = vector.extract_strided_slice %382 {offsets = [0, 6, 0], sizes = [16, 1, 5], strides = [1, 1, 1]} : vector<16x10x5xf32> to vector<16x1x5xf32>
    %484 = vector.shape_cast %483 : vector<16x1x5xf32> to vector<16x5xf32>
    %485 = vector.extract_strided_slice %482 {offsets = [0, 0], sizes = [16, 4], strides = [1, 1]} : vector<16x5xf32> to vector<16x4xf32>
    %c96_319 = arith.constant 96 : index
    %c0_320 = arith.constant 0 : index
    %486 = vector.load %arg20[%c96_319, %c0_320] : memref<144x4xf32, #tpu.memory_space<vmem>>, vector<16x4xf32>
    tpu.vector_store %arg20[%c96_319, %c0_320], %485 {strides = array<i32>} : memref<144x4xf32, #tpu.memory_space<vmem>>, vector<16x4xf32>,
    %487 = vector.extract_strided_slice %484 {offsets = [0, 0], sizes = [16, 4], strides = [1, 1]} : vector<16x5xf32> to vector<16x4xf32>
    %c112_321 = arith.constant 112 : index
    %c0_322 = arith.constant 0 : index
    %488 = vector.load %arg20[%c112_321, %c0_322] : memref<144x4xf32, #tpu.memory_space<vmem>>, vector<16x4xf32>
    tpu.vector_store %arg20[%c112_321, %c0_322], %487 {strides = array<i32>} : memref<144x4xf32, #tpu.memory_space<vmem>>, vector<16x4xf32>,
    %489 = vector.extract_strided_slice %482 {offsets = [0, 1], sizes = [16, 4], strides = [1, 1]} : vector<16x5xf32> to vector<16x4xf32>
    %c128_323 = arith.constant 128 : index
    %c0_324 = arith.constant 0 : index
    %490 = vector.load %arg20[%c128_323, %c0_324] : memref<144x4xf32, #tpu.memory_space<vmem>>, vector<16x4xf32>
    tpu.vector_store %arg20[%c128_323, %c0_324], %489 {strides = array<i32>} : memref<144x4xf32, #tpu.memory_space<vmem>>, vector<16x4xf32>,
    %c0_325 = arith.constant 0 : index
    %c0_326 = arith.constant 0 : index
    %491 = vector.load %arg20[%c0_325, %c0_326] : memref<144x4xf32, #tpu.memory_space<vmem>>, vector<144x4xf32>
    %492 = arith.truncf %491 : vector<144x4xf32> to vector<144x4xbf16>
    %cst_327 = arith.constant dense<0.000000e+00> : vector<32x4xf32>
    %493 = tpu.matmul %383, %492, %cst_327 {dimension_numbers = #tpu.dot_dimension_numbers<[1], [0], [0], [1], [0, 0, 1, 1], [], []>} : vector<32x144xbf16>, vector<144x4xbf16>, vector<32x4xf32> -> vector<32x4xf32>
    %494 = vector.broadcast %384 : vector<32x1xf32> to vector<32x4xf32>
    %495 = arith.addf %493, %494 : vector<32x4xf32>
    %cst_328 = arith.constant 0.000000e+00 : f32
    %496 = vector.broadcast %cst_328 : f32 to vector<32x4xf32>
    %497 = arith.maximumf %495, %496 : vector<32x4xf32>
    %c0_329 = arith.constant 0 : index
    %c8_330 = arith.constant 8 : index
    %498 = vector.load %arg18[%c0_329, %c8_330] : memref<32x16xf32, #tpu.memory_space<vmem>>, vector<32x4xf32>
    tpu.vector_store %arg18[%c0_329, %c8_330], %497 {strides = array<i32>} : memref<32x16xf32, #tpu.memory_space<vmem>>, vector<32x4xf32>,
    %499 = vector.extract_strided_slice %379 {offsets = [0, 6, 0], sizes = [16, 1, 5], strides = [1, 1, 1]} : vector<16x10x5xf32> to vector<16x1x5xf32>
    %500 = vector.shape_cast %499 : vector<16x1x5xf32> to vector<16x5xf32>
    %501 = vector.extract_strided_slice %382 {offsets = [0, 6, 0], sizes = [16, 1, 5], strides = [1, 1, 1]} : vector<16x10x5xf32> to vector<16x1x5xf32>
    %502 = vector.shape_cast %501 : vector<16x1x5xf32> to vector<16x5xf32>
    %503 = vector.extract_strided_slice %500 {offsets = [0, 0], sizes = [16, 4], strides = [1, 1]} : vector<16x5xf32> to vector<16x4xf32>
    %c0_331 = arith.constant 0 : index
    %c0_332 = arith.constant 0 : index
    %504 = vector.load %arg20[%c0_331, %c0_332] : memref<144x4xf32, #tpu.memory_space<vmem>>, vector<16x4xf32>
    tpu.vector_store %arg20[%c0_331, %c0_332], %503 {strides = array<i32>} : memref<144x4xf32, #tpu.memory_space<vmem>>, vector<16x4xf32>,
    %505 = vector.extract_strided_slice %502 {offsets = [0, 0], sizes = [16, 4], strides = [1, 1]} : vector<16x5xf32> to vector<16x4xf32>
    %c16_333 = arith.constant 16 : index
    %c0_334 = arith.constant 0 : index
    %506 = vector.load %arg20[%c16_333, %c0_334] : memref<144x4xf32, #tpu.memory_space<vmem>>, vector<16x4xf32>
    tpu.vector_store %arg20[%c16_333, %c0_334], %505 {strides = array<i32>} : memref<144x4xf32, #tpu.memory_space<vmem>>, vector<16x4xf32>,
    %507 = vector.extract_strided_slice %500 {offsets = [0, 1], sizes = [16, 4], strides = [1, 1]} : vector<16x5xf32> to vector<16x4xf32>
    %c32_335 = arith.constant 32 : index
    %c0_336 = arith.constant 0 : index
    %508 = vector.load %arg20[%c32_335, %c0_336] : memref<144x4xf32, #tpu.memory_space<vmem>>, vector<16x4xf32>
    tpu.vector_store %arg20[%c32_335, %c0_336], %507 {strides = array<i32>} : memref<144x4xf32, #tpu.memory_space<vmem>>, vector<16x4xf32>,
    %509 = vector.extract_strided_slice %379 {offsets = [0, 7, 0], sizes = [16, 1, 5], strides = [1, 1, 1]} : vector<16x10x5xf32> to vector<16x1x5xf32>
    %510 = vector.shape_cast %509 : vector<16x1x5xf32> to vector<16x5xf32>
    %511 = vector.extract_strided_slice %382 {offsets = [0, 7, 0], sizes = [16, 1, 5], strides = [1, 1, 1]} : vector<16x10x5xf32> to vector<16x1x5xf32>
    %512 = vector.shape_cast %511 : vector<16x1x5xf32> to vector<16x5xf32>
    %513 = vector.extract_strided_slice %510 {offsets = [0, 0], sizes = [16, 4], strides = [1, 1]} : vector<16x5xf32> to vector<16x4xf32>
    %c48_337 = arith.constant 48 : index
    %c0_338 = arith.constant 0 : index
    %514 = vector.load %arg20[%c48_337, %c0_338] : memref<144x4xf32, #tpu.memory_space<vmem>>, vector<16x4xf32>
    tpu.vector_store %arg20[%c48_337, %c0_338], %513 {strides = array<i32>} : memref<144x4xf32, #tpu.memory_space<vmem>>, vector<16x4xf32>,
    %515 = vector.extract_strided_slice %512 {offsets = [0, 0], sizes = [16, 4], strides = [1, 1]} : vector<16x5xf32> to vector<16x4xf32>
    %c64_339 = arith.constant 64 : index
    %c0_340 = arith.constant 0 : index
    %516 = vector.load %arg20[%c64_339, %c0_340] : memref<144x4xf32, #tpu.memory_space<vmem>>, vector<16x4xf32>
    tpu.vector_store %arg20[%c64_339, %c0_340], %515 {strides = array<i32>} : memref<144x4xf32, #tpu.memory_space<vmem>>, vector<16x4xf32>,
    %517 = vector.extract_strided_slice %510 {offsets = [0, 1], sizes = [16, 4], strides = [1, 1]} : vector<16x5xf32> to vector<16x4xf32>
    %c80_341 = arith.constant 80 : index
    %c0_342 = arith.constant 0 : index
    %518 = vector.load %arg20[%c80_341, %c0_342] : memref<144x4xf32, #tpu.memory_space<vmem>>, vector<16x4xf32>
    tpu.vector_store %arg20[%c80_341, %c0_342], %517 {strides = array<i32>} : memref<144x4xf32, #tpu.memory_space<vmem>>, vector<16x4xf32>,
    %519 = vector.extract_strided_slice %379 {offsets = [0, 8, 0], sizes = [16, 1, 5], strides = [1, 1, 1]} : vector<16x10x5xf32> to vector<16x1x5xf32>
    %520 = vector.shape_cast %519 : vector<16x1x5xf32> to vector<16x5xf32>
    %521 = vector.extract_strided_slice %382 {offsets = [0, 8, 0], sizes = [16, 1, 5], strides = [1, 1, 1]} : vector<16x10x5xf32> to vector<16x1x5xf32>
    %522 = vector.shape_cast %521 : vector<16x1x5xf32> to vector<16x5xf32>
    %523 = vector.extract_strided_slice %520 {offsets = [0, 0], sizes = [16, 4], strides = [1, 1]} : vector<16x5xf32> to vector<16x4xf32>
    %c96_343 = arith.constant 96 : index
    %c0_344 = arith.constant 0 : index
    %524 = vector.load %arg20[%c96_343, %c0_344] : memref<144x4xf32, #tpu.memory_space<vmem>>, vector<16x4xf32>
    tpu.vector_store %arg20[%c96_343, %c0_344], %523 {strides = array<i32>} : memref<144x4xf32, #tpu.memory_space<vmem>>, vector<16x4xf32>,
    %525 = vector.extract_strided_slice %522 {offsets = [0, 0], sizes = [16, 4], strides = [1, 1]} : vector<16x5xf32> to vector<16x4xf32>
    %c112_345 = arith.constant 112 : index
    %c0_346 = arith.constant 0 : index
    %526 = vector.load %arg20[%c112_345, %c0_346] : memref<144x4xf32, #tpu.memory_space<vmem>>, vector<16x4xf32>
    tpu.vector_store %arg20[%c112_345, %c0_346], %525 {strides = array<i32>} : memref<144x4xf32, #tpu.memory_space<vmem>>, vector<16x4xf32>,
    %527 = vector.extract_strided_slice %520 {offsets = [0, 1], sizes = [16, 4], strides = [1, 1]} : vector<16x5xf32> to vector<16x4xf32>
    %c128_347 = arith.constant 128 : index
    %c0_348 = arith.constant 0 : index
    %528 = vector.load %arg20[%c128_347, %c0_348] : memref<144x4xf32, #tpu.memory_space<vmem>>, vector<16x4xf32>
    tpu.vector_store %arg20[%c128_347, %c0_348], %527 {strides = array<i32>} : memref<144x4xf32, #tpu.memory_space<vmem>>, vector<16x4xf32>,
    %c0_349 = arith.constant 0 : index
    %c0_350 = arith.constant 0 : index
    %529 = vector.load %arg20[%c0_349, %c0_350] : memref<144x4xf32, #tpu.memory_space<vmem>>, vector<144x4xf32>
    %530 = arith.truncf %529 : vector<144x4xf32> to vector<144x4xbf16>
    %cst_351 = arith.constant dense<0.000000e+00> : vector<32x4xf32>
    %531 = tpu.matmul %383, %530, %cst_351 {dimension_numbers = #tpu.dot_dimension_numbers<[1], [0], [0], [1], [0, 0, 1, 1], [], []>} : vector<32x144xbf16>, vector<144x4xbf16>, vector<32x4xf32> -> vector<32x4xf32>
    %532 = vector.broadcast %384 : vector<32x1xf32> to vector<32x4xf32>
    %533 = arith.addf %531, %532 : vector<32x4xf32>
    %cst_352 = arith.constant 0.000000e+00 : f32
    %534 = vector.broadcast %cst_352 : f32 to vector<32x4xf32>
    %535 = arith.maximumf %533, %534 : vector<32x4xf32>
    %c0_353 = arith.constant 0 : index
    %c12_354 = arith.constant 12 : index
    %536 = vector.load %arg18[%c0_353, %c12_354] : memref<32x16xf32, #tpu.memory_space<vmem>>, vector<32x4xf32>
    tpu.vector_store %arg18[%c0_353, %c12_354], %535 {strides = array<i32>} : memref<32x16xf32, #tpu.memory_space<vmem>>, vector<32x4xf32>,
    %c0_355 = arith.constant 0 : index
    %c0_356 = arith.constant 0 : index
    %537 = vector.load %arg11[%c0_355, %c0_356] : memref<32x32xbf16, #tpu.memory_space<vmem>>, vector<32x32xbf16>
    %538 = arith.truncf %333 : vector<32x16xf32> to vector<32x16xbf16>
    %cst_357 = arith.constant dense<0.000000e+00> : vector<32x16xf32>
    %539 = tpu.matmul %537, %538, %cst_357 {dimension_numbers = #tpu.dot_dimension_numbers<[1], [0], [0], [1], [0, 0, 1, 1], [], []>} : vector<32x32xbf16>, vector<32x16xbf16>, vector<32x16xf32> -> vector<32x16xf32>
    %c0_358 = arith.constant 0 : index
    %c0_359 = arith.constant 0 : index
    %540 = vector.load %arg12[%c0_358, %c0_359] : memref<32x32xbf16, #tpu.memory_space<vmem>>, vector<32x32xbf16>
    %c0_360 = arith.constant 0 : index
    %c0_361 = arith.constant 0 : index
    %541 = vector.load %arg18[%c0_360, %c0_361] : memref<32x16xf32, #tpu.memory_space<vmem>>, vector<32x16xf32>
    %542 = arith.truncf %541 : vector<32x16xf32> to vector<32x16xbf16>
    %cst_362 = arith.constant dense<0.000000e+00> : vector<32x16xf32>
    %543 = tpu.matmul %540, %542, %cst_362 {dimension_numbers = #tpu.dot_dimension_numbers<[1], [0], [0], [1], [0, 0, 1, 1], [], []>} : vector<32x32xbf16>, vector<32x16xbf16>, vector<32x16xf32> -> vector<32x16xf32>
    %544 = arith.addf %539, %543 : vector<32x16xf32>
    %c0_363 = arith.constant 0 : index
    %c0_364 = arith.constant 0 : index
    %545 = vector.load %arg13[%c0_363, %c0_364] : memref<32x1xf32, #tpu.memory_space<vmem>>, vector<32x1xf32>
    %546 = vector.broadcast %545 : vector<32x1xf32> to vector<32x16xf32>
    %547 = arith.addf %544, %546 : vector<32x16xf32>
    %cst_365 = arith.constant 0.000000e+00 : f32
    %548 = vector.broadcast %cst_365 : f32 to vector<32x16xf32>
    %549 = arith.maximumf %547, %548 : vector<32x16xf32>
    %c0_366 = arith.constant 0 : index
    %c0_367 = arith.constant 0 : index
    %c0_368 = arith.constant 0 : index
    %550 = vector.load %arg14[%c0_366, %c0_367, %c0_368] : memref<1x32x16xf32, #tpu.memory_space<vmem>>, vector<1x32x16xf32>
    %551 = vector.shape_cast %550 : vector<1x32x16xf32> to vector<32x16xf32>
    %552 = vector.shape_cast %549 : vector<32x16xf32> to vector<1x32x16xf32>
    tpu.vector_store %arg14[%c0_366, %c0_367, %c0_368], %552 {strides = array<i32>} : memref<1x32x16xf32, #tpu.memory_space<vmem>>, vector<1x32x16xf32>,
    return
  }
  func.func @transform_0(%arg0: i32) -> (i32, i32, i32, i32) {
    %c0_i32 = arith.constant 0 : i32
    %c0_i32_0 = arith.constant 0 : i32
    %c0_i32_1 = arith.constant 0 : i32
    %c0_i32_2 = arith.constant 0 : i32
    return %arg0, %c0_i32, %c0_i32_0, %c0_i32_1 : i32, i32, i32, i32
  }
  func.func @transform_1(%arg0: i32) -> (i32, i32, i32) {
    %c0_i32 = arith.constant 0 : i32
    %c0_i32_0 = arith.constant 0 : i32
    %c0_i32_1 = arith.constant 0 : i32
    %c0_i32_2 = arith.constant 0 : i32
    return %c0_i32, %c0_i32_0, %c0_i32_1 : i32, i32, i32
  }
  func.func @transform_2(%arg0: i32) -> (i32, i32, i32) {
    %c0_i32 = arith.constant 0 : i32
    %c0_i32_0 = arith.constant 0 : i32
    %c0_i32_1 = arith.constant 0 : i32
    %c0_i32_2 = arith.constant 0 : i32
    return %c0_i32, %c0_i32_0, %c0_i32_1 : i32, i32, i32
  }
  func.func @transform_3(%arg0: i32) -> (i32, i32, i32) {
    %c0_i32 = arith.constant 0 : i32
    %c0_i32_0 = arith.constant 0 : i32
    %c0_i32_1 = arith.constant 0 : i32
    %c0_i32_2 = arith.constant 0 : i32
    return %c0_i32, %c0_i32_0, %c0_i32_1 : i32, i32, i32
  }
  func.func @transform_4(%arg0: i32) -> (i32, i32) {
    %c0_i32 = arith.constant 0 : i32
    %c0_i32_0 = arith.constant 0 : i32
    %c0_i32_1 = arith.constant 0 : i32
    return %c0_i32, %c0_i32_0 : i32, i32
  }
  func.func @transform_5(%arg0: i32) -> (i32, i32) {
    %c0_i32 = arith.constant 0 : i32
    %c0_i32_0 = arith.constant 0 : i32
    %c0_i32_1 = arith.constant 0 : i32
    return %c0_i32, %c0_i32_0 : i32, i32
  }
  func.func @transform_6(%arg0: i32) -> (i32, i32) {
    %c0_i32 = arith.constant 0 : i32
    %c0_i32_0 = arith.constant 0 : i32
    %c0_i32_1 = arith.constant 0 : i32
    return %c0_i32, %c0_i32_0 : i32, i32
  }
  func.func @transform_7(%arg0: i32) -> (i32, i32) {
    %c0_i32 = arith.constant 0 : i32
    %c0_i32_0 = arith.constant 0 : i32
    %c0_i32_1 = arith.constant 0 : i32
    return %c0_i32, %c0_i32_0 : i32, i32
  }
  func.func @transform_8(%arg0: i32) -> (i32, i32) {
    %c0_i32 = arith.constant 0 : i32
    %c0_i32_0 = arith.constant 0 : i32
    %c0_i32_1 = arith.constant 0 : i32
    return %c0_i32, %c0_i32_0 : i32, i32
  }
  func.func @transform_9(%arg0: i32) -> (i32, i32) {
    %c0_i32 = arith.constant 0 : i32
    %c0_i32_0 = arith.constant 0 : i32
    %c0_i32_1 = arith.constant 0 : i32
    return %c0_i32, %c0_i32_0 : i32, i32
  }
  func.func @transform_10(%arg0: i32) -> (i32, i32) {
    %c0_i32 = arith.constant 0 : i32
    %c0_i32_0 = arith.constant 0 : i32
    %c0_i32_1 = arith.constant 0 : i32
    return %c0_i32, %c0_i32_0 : i32, i32
  }
  func.func @transform_11(%arg0: i32) -> (i32, i32) {
    %c0_i32 = arith.constant 0 : i32
    %c0_i32_0 = arith.constant 0 : i32
    %c0_i32_1 = arith.constant 0 : i32
    return %c0_i32, %c0_i32_0 : i32, i32
  }
  func.func @transform_12(%arg0: i32) -> (i32, i32) {
    %c0_i32 = arith.constant 0 : i32
    %c0_i32_0 = arith.constant 0 : i32
    %c0_i32_1 = arith.constant 0 : i32
    return %c0_i32, %c0_i32_0 : i32, i32
  }
  func.func @transform_13(%arg0: i32) -> (i32, i32, i32) {
    %c0_i32 = arith.constant 0 : i32
    %c0_i32_0 = arith.constant 0 : i32
    %c0_i32_1 = arith.constant 0 : i32
    return %arg0, %c0_i32, %c0_i32_0 : i32, i32, i32
  }
}

</mosaic_0001>

<llo_original>
// kernel: tpu_custom_call.1
$region0: #{tpu_custom_call.1}
  #allocation0 [shape = 'u32[]', space=smem, size = 0x4, offset = 0x4, fixed_abs, tag = 'smem constant byte address 0x4 - core index']
  #allocation1 [shape = 'u32[144,128]{1,0:T(1,128)}', space=vmem, size = 0x12000, scoped, tag = 'internal scratch']
  #allocation2 [shape = 'f32[3,18,18]{2,1,0:T(8,128)}', space=vmem, size = 0x9000, scoped, tag = 'scratch operand']
  #allocation3 [shape = 'f32[32,64]{1,0:T(8,128)}', space=vmem, size = 0x4000, scoped, tag = 'scratch operand']
  #allocation4 [shape = 'f32[16,10,10]{2,1,0:T(8,128)}', space=vmem, size = 0x20000, scoped, tag = 'scratch operand']
  #allocation5 [shape = 'f32[32,16]{1,0:T(8,128)}', space=vmem, size = 0x4000, scoped, tag = 'scratch operand']
  #allocation6 [shape = 'f32[27,8]{1,0:T(8,128)}', space=vmem, size = 0x4000, scoped, tag = 'scratch operand']
  #allocation7 [shape = 'f32[144,4]{1,0:T(8,128)}', space=vmem, size = 0x12000, scoped, tag = 'scratch operand']
  %s0 = inlined_call_operand.vmem [shape: f32[2,3,16,16], index: 0, kind: input, shape index: {}]
  %s1 = inlined_call_operand.vmem [shape: f32[2,18,9], index: 1, kind: input, shape index: {}]
  %s2 = inlined_call_operand.vmem [shape: f32[2,10,5], index: 2, kind: input, shape index: {}]
  %s3 = inlined_call_operand.vmem [shape: f32[4,64,16], index: 3, kind: input, shape index: {}]
  %s4 = inlined_call_operand.vmem [shape: bf16[32,27], index: 4, kind: input, shape index: {}]
  %s5 = inlined_call_operand.vmem [shape: f32[32,1], index: 5, kind: input, shape index: {}]
  %s6 = inlined_call_operand.vmem [shape: bf16[16,32], index: 6, kind: input, shape index: {}]
  %s7 = inlined_call_operand.vmem [shape: f32[16,1], index: 7, kind: input, shape index: {}]
  %s8 = inlined_call_operand.vmem [shape: bf16[32,144], index: 8, kind: input, shape index: {}]
  %s9 = inlined_call_operand.vmem [shape: f32[32,1], index: 9, kind: input, shape index: {}]
  %s10 = inlined_call_operand.vmem [shape: bf16[32,32], index: 10, kind: input, shape index: {}]
  %s11 = inlined_call_operand.vmem [shape: bf16[32,32], index: 11, kind: input, shape index: {}]
  %s12 = inlined_call_operand.vmem [shape: f32[32,1], index: 12, kind: input, shape index: {}]
  %s13 = inlined_call_operand.vmem [shape: f32[2,32,16], index: 13, kind: output, shape index: {}]
  %s14 = sld [smem:[#allocation0]]
  $region85: #{tpu_custom_call.1} parent=0
    _
  %s16 = ssub.s32 1, %s14
  %s17 = scalar_select 0, %s16, %s14
  loop: start=0, step=1, limit=4
  $region2: #{tpu_custom_call.1} parent=0 // loop_pre_header
    _
  $region3: #{tpu_custom_call.1} parent=0 // loop_header
    %s19 = sphi 0, %s23
    %p20 = scmp.ge.s32.totalorder %s19, 4
    %s29 = sphi 0, %s31
    %s32 = sphi 0, %s29
    %s33 = sphi 0, %s32
    %s49 = sphi 0, %s33
    %s53 = sphi 0, %s53
    %s55 = sphi 0, %s53
    %s56 = sphi 0, %s55
    %s70 = sphi 0, %s56
    %s74 = sphi 0, %s74
    %s76 = sphi 0, %s74
    %s77 = sphi 0, %s76
    %s91 = sphi 0, %s77
    %s95 = sphi 0, %s95
    %s97 = sphi 0, %s95
    %s98 = sphi 0, %s97
    %s112 = sphi 0, %s98
    %s116 = sphi 0, %s116
    %s118 = sphi 0, %s116
    %s119 = sphi 0, %s118
    %s133 = sphi 0, %s119
    %s137 = sphi 0, %s137
    %s139 = sphi 0, %s137
    %s140 = sphi 0, %s139
    %s154 = sphi 0, %s140
    %s158 = sphi 0, %s158
    %s160 = sphi 0, %s158
    %s161 = sphi 0, %s160
    %s175 = sphi 0, %s161
    %s179 = sphi 0, %s179
    %s181 = sphi 0, %s179
    %s182 = sphi 0, %s181
    %s196 = sphi 0, %s182
    %s200 = sphi 0, %s200
    %s202 = sphi 0, %s200
    %s203 = sphi 0, %s202
    %s217 = sphi 0, %s203
    %s221 = sphi 0, %s221
    %s223 = sphi 0, %s221
    %s224 = sphi 0, %s223
    %s238 = sphi 0, %s224
    %s242 = sphi 0, %s242
    %s244 = sphi 0, %s242
    %s245 = sphi 0, %s244
    %s259 = sphi 0, %s245
    %s263 = sphi 0, %s263
    %s265 = sphi 0, %s263
    %s266 = sphi 0, %s265
    %s280 = sphi 0, %s266
    %s284 = sphi 0, %s284
    %s286 = sphi 0, %s284
    %s287 = sphi 0, %s286
    %s301 = sphi 0, %s287
    %s307 = sphi 0, %s309
    %s310 = sphi 0, %s307
    %s311 = sphi 0, %s310
    %s327 = sphi 0, %s311
  $region4: #{tpu_custom_call.1} parent=0 // loop_header_branch
    %22 = sbr.rel (%p20) target = $region8
  $region5: #{tpu_custom_call.1} parent=0 // loop_body
    %s24 = ssub.s32 %s19, 1
    %s25 = ssub.s32 %s19, 2
    %s26 = sadd.s32 %s19, 1
    %s27 = ssub.s32 %s19, %s26
    %p28 = scmp.eq.s32.totalorder %s27, 0
    %s30 = sadd.s32 %s29, 1
    %s31 = scalar_select %p28, %s29, %s30
    %p34 = pneg %p28
    %p35 = scmp.eq.s32.totalorder %s19, 1
    %p36 = por %p34, %p35
    %p37 = scmp.ne.s32.totalorder %s29, %s32
    %p38 = scmp.eq.s32.totalorder %s19, 0
    %p39 = por %p37, %p38
    %p40 = scmp.ne.s32.totalorder %s29, %s32
    %p41 = scmp.eq.s32.totalorder %s24, 1
    %p42 = por %p40, %p41
    %p43 = scmp.ne.s32.totalorder %s32, %s33
    %p44 = scmp.eq.s32.totalorder %s24, 0
    %p45 = por %p43, %p44
    %p46 = scmp.ne.s32.totalorder %s32, %s33
    %p47 = scmp.eq.s32.totalorder %s25, 1
    %p48 = por %p46, %p47
    %p50 = scmp.ne.s32.totalorder %s33, %s49
    %p51 = scmp.eq.s32.totalorder %s25, 0
    %p52 = por %p50, %p51
    %s54 = sadd.s32 %s53, 1
    %p57 = scmp.eq.s32.totalorder %s19, 1
    %p58 = scmp.ne.s32.totalorder %s53, %s55
    %p59 = scmp.eq.s32.totalorder %s19, 0
    %p60 = por %p58, %p59
    %p61 = scmp.ne.s32.totalorder %s53, %s55
    %p62 = scmp.eq.s32.totalorder %s24, 1
    %p63 = por %p61, %p62
    %p64 = scmp.ne.s32.totalorder %s55, %s56
    %p65 = scmp.eq.s32.totalorder %s24, 0
    %p66 = por %p64, %p65
    %p67 = scmp.ne.s32.totalorder %s55, %s56
    %p68 = scmp.eq.s32.totalorder %s25, 1
    %p69 = por %p67, %p68
    %p71 = scmp.ne.s32.totalorder %s56, %s70
    %p72 = scmp.eq.s32.totalorder %s25, 0
    %p73 = por %p71, %p72
    %s75 = sadd.s32 %s74, 1
    %p78 = scmp.eq.s32.totalorder %s19, 1
    %p79 = scmp.ne.s32.totalorder %s74, %s76
    %p80 = scmp.eq.s32.totalorder %s19, 0
    %p81 = por %p79, %p80
    %p82 = scmp.ne.s32.totalorder %s74, %s76
    %p83 = scmp.eq.s32.totalorder %s24, 1
    %p84 = por %p82, %p83
    %p85 = scmp.ne.s32.totalorder %s76, %s77
    %p86 = scmp.eq.s32.totalorder %s24, 0
    %p87 = por %p85, %p86
    %p88 = scmp.ne.s32.totalorder %s76, %s77
    %p89 = scmp.eq.s32.totalorder %s25, 1
    %p90 = por %p88, %p89
    %p92 = scmp.ne.s32.totalorder %s77, %s91
    %p93 = scmp.eq.s32.totalorder %s25, 0
    %p94 = por %p92, %p93
    %s96 = sadd.s32 %s95, 1
    %p99 = scmp.eq.s32.totalorder %s19, 1
    %p100 = scmp.ne.s32.totalorder %s95, %s97
    %p101 = scmp.eq.s32.totalorder %s19, 0
    %p102 = por %p100, %p101
    %p103 = scmp.ne.s32.totalorder %s95, %s97
    %p104 = scmp.eq.s32.totalorder %s24, 1
    %p105 = por %p103, %p104
    %p106 = scmp.ne.s32.totalorder %s97, %s98
    %p107 = scmp.eq.s32.totalorder %s24, 0
    %p108 = por %p106, %p107
    %p109 = scmp.ne.s32.totalorder %s97, %s98
    %p110 = scmp.eq.s32.totalorder %s25, 1
    %p111 = por %p109, %p110
    %p113 = scmp.ne.s32.totalorder %s98, %s112
    %p114 = scmp.eq.s32.totalorder %s25, 0
    %p115 = por %p113, %p114
    %s117 = sadd.s32 %s116, 1
    %p120 = scmp.eq.s32.totalorder %s19, 1
    %p121 = scmp.ne.s32.totalorder %s116, %s118
    %p122 = scmp.eq.s32.totalorder %s19, 0
    %p123 = por %p121, %p122
    %p124 = scmp.ne.s32.totalorder %s116, %s118
    %p125 = scmp.eq.s32.totalorder %s24, 1
    %p126 = por %p124, %p125
    %p127 = scmp.ne.s32.totalorder %s118, %s119
    %p128 = scmp.eq.s32.totalorder %s24, 0
    %p129 = por %p127, %p128
    %p130 = scmp.ne.s32.totalorder %s118, %s119
    %p131 = scmp.eq.s32.totalorder %s25, 1
    %p132 = por %p130, %p131
    %p134 = scmp.ne.s32.totalorder %s119, %s133
    %p135 = scmp.eq.s32.totalorder %s25, 0
    %p136 = por %p134, %p135
    %s138 = sadd.s32 %s137, 1
    %p141 = scmp.eq.s32.totalorder %s19, 1
    %p142 = scmp.ne.s32.totalorder %s137, %s139
    %p143 = scmp.eq.s32.totalorder %s19, 0
    %p144 = por %p142, %p143
    %p145 = scmp.ne.s32.totalorder %s137, %s139
    %p146 = scmp.eq.s32.totalorder %s24, 1
    %p147 = por %p145, %p146
    %p148 = scmp.ne.s32.totalorder %s139, %s140
    %p149 = scmp.eq.s32.totalorder %s24, 0
    %p150 = por %p148, %p149
    %p151 = scmp.ne.s32.totalorder %s139, %s140
    %p152 = scmp.eq.s32.totalorder %s25, 1
    %p153 = por %p151, %p152
    %p155 = scmp.ne.s32.totalorder %s140, %s154
    %p156 = scmp.eq.s32.totalorder %s25, 0
    %p157 = por %p155, %p156
    %s159 = sadd.s32 %s158, 1
    %p162 = scmp.eq.s32.totalorder %s19, 1
    %p163 = scmp.ne.s32.totalorder %s158, %s160
    %p164 = scmp.eq.s32.totalorder %s19, 0
    %p165 = por %p163, %p164
    %p166 = scmp.ne.s32.totalorder %s158, %s160
    %p167 = scmp.eq.s32.totalorder %s24, 1
    %p168 = por %p166, %p167
    %p169 = scmp.ne.s32.totalorder %s160, %s161
    %p170 = scmp.eq.s32.totalorder %s24, 0
    %p171 = por %p169, %p170
    %p172 = scmp.ne.s32.totalorder %s160, %s161
    %p173 = scmp.eq.s32.totalorder %s25, 1
    %p174 = por %p172, %p173
    %p176 = scmp.ne.s32.totalorder %s161, %s175
    %p177 = scmp.eq.s32.totalorder %s25, 0
    %p178 = por %p176, %p177
    %s180 = sadd.s32 %s179, 1
    %p183 = scmp.eq.s32.totalorder %s19, 1
    %p184 = scmp.ne.s32.totalorder %s179, %s181
    %p185 = scmp.eq.s32.totalorder %s19, 0
    %p186 = por %p184, %p185
    %p187 = scmp.ne.s32.totalorder %s179, %s181
    %p188 = scmp.eq.s32.totalorder %s24, 1
    %p189 = por %p187, %p188
    %p190 = scmp.ne.s32.totalorder %s181, %s182
    %p191 = scmp.eq.s32.totalorder %s24, 0
    %p192 = por %p190, %p191
    %p193 = scmp.ne.s32.totalorder %s181, %s182
    %p194 = scmp.eq.s32.totalorder %s25, 1
    %p195 = por %p193, %p194
    %p197 = scmp.ne.s32.totalorder %s182, %s196
    %p198 = scmp.eq.s32.totalorder %s25, 0
    %p199 = por %p197, %p198
    %s201 = sadd.s32 %s200, 1
    %p204 = scmp.eq.s32.totalorder %s19, 1
    %p205 = scmp.ne.s32.totalorder %s200, %s202
    %p206 = scmp.eq.s32.totalorder %s19, 0
    %p207 = por %p205, %p206
    %p208 = scmp.ne.s32.totalorder %s200, %s202
    %p209 = scmp.eq.s32.totalorder %s24, 1
    %p210 = por %p208, %p209
    %p211 = scmp.ne.s32.totalorder %s202, %s203
    %p212 = scmp.eq.s32.totalorder %s24, 0
    %p213 = por %p211, %p212
    %p214 = scmp.ne.s32.totalorder %s202, %s203
    %p215 = scmp.eq.s32.totalorder %s25, 1
    %p216 = por %p214, %p215
    %p218 = scmp.ne.s32.totalorder %s203, %s217
    %p219 = scmp.eq.s32.totalorder %s25, 0
    %p220 = por %p218, %p219
    %s222 = sadd.s32 %s221, 1
    %p225 = scmp.eq.s32.totalorder %s19, 1
    %p226 = scmp.ne.s32.totalorder %s221, %s223
    %p227 = scmp.eq.s32.totalorder %s19, 0
    %p228 = por %p226, %p227
    %p229 = scmp.ne.s32.totalorder %s221, %s223
    %p230 = scmp.eq.s32.totalorder %s24, 1
    %p231 = por %p229, %p230
    %p232 = scmp.ne.s32.totalorder %s223, %s224
    %p233 = scmp.eq.s32.totalorder %s24, 0
    %p234 = por %p232, %p233
    %p235 = scmp.ne.s32.totalorder %s223, %s224
    %p236 = scmp.eq.s32.totalorder %s25, 1
    %p237 = por %p235, %p236
    %p239 = scmp.ne.s32.totalorder %s224, %s238
    %p240 = scmp.eq.s32.totalorder %s25, 0
    %p241 = por %p239, %p240
    %s243 = sadd.s32 %s242, 1
    %p246 = scmp.eq.s32.totalorder %s19, 1
    %p247 = scmp.ne.s32.totalorder %s242, %s244
    %p248 = scmp.eq.s32.totalorder %s19, 0
    %p249 = por %p247, %p248
    %p250 = scmp.ne.s32.totalorder %s242, %s244
    %p251 = scmp.eq.s32.totalorder %s24, 1
    %p252 = por %p250, %p251
    %p253 = scmp.ne.s32.totalorder %s244, %s245
    %p254 = scmp.eq.s32.totalorder %s24, 0
    %p255 = por %p253, %p254
    %p256 = scmp.ne.s32.totalorder %s244, %s245
    %p257 = scmp.eq.s32.totalorder %s25, 1
    %p258 = por %p256, %p257
    %p260 = scmp.ne.s32.totalorder %s245, %s259
    %p261 = scmp.eq.s32.totalorder %s25, 0
    %p262 = por %p260, %p261
    %s264 = sadd.s32 %s263, 1
    %p267 = scmp.eq.s32.totalorder %s19, 1
    %p268 = scmp.ne.s32.totalorder %s263, %s265
    %p269 = scmp.eq.s32.totalorder %s19, 0
    %p270 = por %p268, %p269
    %p271 = scmp.ne.s32.totalorder %s263, %s265
    %p272 = scmp.eq.s32.totalorder %s24, 1
    %p273 = por %p271, %p272
    %p274 = scmp.ne.s32.totalorder %s265, %s266
    %p275 = scmp.eq.s32.totalorder %s24, 0
    %p276 = por %p274, %p275
    %p277 = scmp.ne.s32.totalorder %s265, %s266
    %p278 = scmp.eq.s32.totalorder %s25, 1
    %p279 = por %p277, %p278
    %p281 = scmp.ne.s32.totalorder %s266, %s280
    %p282 = scmp.eq.s32.totalorder %s25, 0
    %p283 = por %p281, %p282
    %s285 = sadd.s32 %s284, 1
    %p288 = scmp.eq.s32.totalorder %s19, 1
    %p289 = scmp.ne.s32.totalorder %s284, %s286
    %p290 = scmp.eq.s32.totalorder %s19, 0
    %p291 = por %p289, %p290
    %p292 = scmp.ne.s32.totalorder %s284, %s286
    %p293 = scmp.eq.s32.totalorder %s24, 1
    %p294 = por %p292, %p293
    %p295 = scmp.ne.s32.totalorder %s286, %s287
    %p296 = scmp.eq.s32.totalorder %s24, 0
    %p297 = por %p295, %p296
    %p298 = scmp.ne.s32.totalorder %s286, %s287
    %p299 = scmp.eq.s32.totalorder %s25, 1
    %p300 = por %p298, %p299
    %p302 = scmp.ne.s32.totalorder %s287, %s301
    %p303 = scmp.eq.s32.totalorder %s25, 0
    %p304 = por %p302, %p303
    %s305 = ssub.s32 %s19, %s26
    %p306 = scmp.eq.s32.totalorder %s305, 0
    %s308 = sadd.s32 %s307, 1
    %s309 = scalar_select %p306, %s307, %s308
    %p312 = pneg %p306
    %p313 = scmp.eq.s32.totalorder %s19, 1
    %p314 = por %p312, %p313
    %p315 = scmp.ne.s32.totalorder %s307, %s310
    %p316 = scmp.eq.s32.totalorder %s19, 0
    %p317 = por %p315, %p316
    %p318 = scmp.ne.s32.totalorder %s307, %s310
    %p319 = scmp.eq.s32.totalorder %s24, 1
    %p320 = por %p318, %p319
    %p321 = scmp.ne.s32.totalorder %s310, %s311
    %p322 = scmp.eq.s32.totalorder %s24, 0
    %p323 = por %p321, %p322
    %p324 = scmp.ne.s32.totalorder %s310, %s311
    %p325 = scmp.eq.s32.totalorder %s25, 1
    %p326 = por %p324, %p325
    %p328 = scmp.ne.s32.totalorder %s311, %s327
    %p329 = scmp.eq.s32.totalorder %s25, 0
    %p330 = por %p328, %p329
    %p331 = scmp.le.s32.totalorder 1, %s19
    %p332 = scmp.lt.s32.totalorder %s19, 3
    %p333 = pnand %p331, %p332
    %p334 = pneg %p333
    // Predicated region
    $region9: #{tpu_custom_call.1} parent=5 // pred_check
      _
    $region10: #{tpu_custom_call.1} parent=5 // pred_check_branch
      %336 = sbr.rel (%p333) target = $region12
    $region11: #{tpu_custom_call.1} parent=5 // pred_region
      %s337 = ssub.s32 %s19, 1
      // Predicated region
      $region13: #{tpu_custom_call.1} parent=11 // pred_check
        %p338 = pneg %p66
      $region14: #{tpu_custom_call.1} parent=11 // pred_check_branch
        %340 = sbr.rel (%p338) target = $region16
      $region15: #{tpu_custom_call.1} parent=11 // pred_region
        _
      $region16: #{tpu_custom_call.1} parent=11 // pred_fallthru
        _
      // Predicated region
      $region17: #{tpu_custom_call.1} parent=11 // pred_check
        %p341 = pneg %p87
      $region18: #{tpu_custom_call.1} parent=11 // pred_check_branch
        %343 = sbr.rel (%p341) target = $region20
      $region19: #{tpu_custom_call.1} parent=11 // pred_region
        _
      $region20: #{tpu_custom_call.1} parent=11 // pred_fallthru
        _
      // Predicated region
      $region21: #{tpu_custom_call.1} parent=11 // pred_check
        %p344 = pneg %p108
      $region22: #{tpu_custom_call.1} parent=11 // pred_check_branch
        %346 = sbr.rel (%p344) target = $region24
      $region23: #{tpu_custom_call.1} parent=11 // pred_region
        _
      $region24: #{tpu_custom_call.1} parent=11 // pred_fallthru
        _
      // Predicated region
      $region25: #{tpu_custom_call.1} parent=11 // pred_check
        %p347 = pneg %p129
      $region26: #{tpu_custom_call.1} parent=11 // pred_check_branch
        %349 = sbr.rel (%p347) target = $region28
      $region27: #{tpu_custom_call.1} parent=11 // pred_region
        _
      $region28: #{tpu_custom_call.1} parent=11 // pred_fallthru
        _
      // Predicated region
      $region29: #{tpu_custom_call.1} parent=11 // pred_check
        %p350 = pneg %p150
      $region30: #{tpu_custom_call.1} parent=11 // pred_check_branch
        %352 = sbr.rel (%p350) target = $region32
      $region31: #{tpu_custom_call.1} parent=11 // pred_region
        _
      $region32: #{tpu_custom_call.1} parent=11 // pred_fallthru
        _
      // Predicated region
      $region33: #{tpu_custom_call.1} parent=11 // pred_check
        %p353 = pneg %p171
      $region34: #{tpu_custom_call.1} parent=11 // pred_check_branch
        %355 = sbr.rel (%p353) target = $region36
      $region35: #{tpu_custom_call.1} parent=11 // pred_region
        _
      $region36: #{tpu_custom_call.1} parent=11 // pred_fallthru
        _
      // Predicated region
      $region37: #{tpu_custom_call.1} parent=11 // pred_check
        %p356 = pneg %p192
      $region38: #{tpu_custom_call.1} parent=11 // pred_check_branch
        %358 = sbr.rel (%p356) target = $region40
      $region39: #{tpu_custom_call.1} parent=11 // pred_region
        _
      $region40: #{tpu_custom_call.1} parent=11 // pred_fallthru
        _
      // Predicated region
      $region41: #{tpu_custom_call.1} parent=11 // pred_check
        %p359 = pneg %p213
      $region42: #{tpu_custom_call.1} parent=11 // pred_check_branch
        %361 = sbr.rel (%p359) target = $region44
      $region43: #{tpu_custom_call.1} parent=11 // pred_region
        _
      $region44: #{tpu_custom_call.1} parent=11 // pred_fallthru
        _
      // Predicated region
      $region45: #{tpu_custom_call.1} parent=11 // pred_check
        %p362 = pneg %p234
      $region46: #{tpu_custom_call.1} parent=11 // pred_check_branch
        %364 = sbr.rel (%p362) target = $region48
      $region47: #{tpu_custom_call.1} parent=11 // pred_region
        _
      $region48: #{tpu_custom_call.1} parent=11 // pred_fallthru
        _
      // Predicated region
      $region49: #{tpu_custom_call.1} parent=11 // pred_check
        %p365 = pneg %p255
      $region50: #{tpu_custom_call.1} parent=11 // pred_check_branch
        %367 = sbr.rel (%p365) target = $region52
      $region51: #{tpu_custom_call.1} parent=11 // pred_region
        _
      $region52: #{tpu_custom_call.1} parent=11 // pred_fallthru
        _
      // Predicated region
      $region53: #{tpu_custom_call.1} parent=11 // pred_check
        %p368 = pneg %p276
      $region54: #{tpu_custom_call.1} parent=11 // pred_check_branch
        %370 = sbr.rel (%p368) target = $region56
      $region55: #{tpu_custom_call.1} parent=11 // pred_region
        _
      $region56: #{tpu_custom_call.1} parent=11 // pred_fallthru
        _
      // Predicated region
      $region57: #{tpu_custom_call.1} parent=11 // pred_check
        %p371 = pneg %p297
      $region58: #{tpu_custom_call.1} parent=11 // pred_check_branch
        %373 = sbr.rel (%p371) target = $region60
      $region59: #{tpu_custom_call.1} parent=11 // pred_region
        _
      $region60: #{tpu_custom_call.1} parent=11 // pred_fallthru
        _
    $region12: #{tpu_custom_call.1} parent=5 // pred_fallthru
      _
    %p374 = scmp.lt.s32.totalorder %s19, 2
    // Predicated region
    $region61: #{tpu_custom_call.1} parent=5 // pred_check
      %p375 = pneg %p374
    $region62: #{tpu_custom_call.1} parent=5 // pred_check_branch
      %377 = sbr.rel (%p375) target = $region64
    $region63: #{tpu_custom_call.1} parent=5 // pred_region
      // Predicated region
      $region65: #{tpu_custom_call.1} parent=63 // pred_check
        %p378 = pneg %p39
      $region66: #{tpu_custom_call.1} parent=63 // pred_check_branch
        %380 = sbr.rel (%p378) target = $region68
      $region67: #{tpu_custom_call.1} parent=63 // pred_region
        %p381 = scmp.lt.s32.totalorder %s19, 1
        %s382 = scalar_select %p381, %s19, 1
        %s383 = smul.addr %s382, 6
        %s384 = smul.addr %s383, 8
        %s385 = scalar_lea.vmem %s0, %s384
      $region68: #{tpu_custom_call.1} parent=63 // pred_fallthru
        _
    $region64: #{tpu_custom_call.1} parent=5 // pred_fallthru
      _
    %p386 = scmp.le.s32.totalorder 1, %s19
    %p387 = scmp.lt.s32.totalorder %s19, 3
    %p388 = pnand %p386, %p387
    %p389 = pneg %p388
    // Predicated region
    $region69: #{tpu_custom_call.1} parent=5 // pred_check
      _
    $region70: #{tpu_custom_call.1} parent=5 // pred_check_branch
      %391 = sbr.rel (%p388) target = $region72
    $region71: #{tpu_custom_call.1} parent=5 // pred_region
      %s392 = ssub.s32 %s19, 1
      %p393 = scmp.lt.s32.totalorder %s24, 1
      %s394 = scalar_select %p393, %s24, 1
      %s395 = smul.addr %s394, 6
      %s396 = smul.addr %s395, 8
      %s397 = scalar_lea.vmem %s0, %s396
      %p398 = pneg %p45
      %p399 = pneg %p42
      %p400 = pneg %p66
      %p401 = pneg %p63
      %p402 = pneg %p87
      %p403 = pneg %p84
      %p404 = pneg %p108
      %p405 = pneg %p105
      %p406 = pneg %p129
      %p407 = pneg %p126
      %p408 = pneg %p150
      %p409 = pneg %p147
      %p410 = pneg %p171
      %p411 = pneg %p168
      %p412 = pneg %p192
      %p413 = pneg %p189
      %p414 = pneg %p213
      %p415 = pneg %p210
      %p416 = pneg %p234
      %p417 = pneg %p231
      %p418 = pneg %p255
      %p419 = pneg %p252
      %p420 = pneg %p276
      %p421 = pneg %p273
      %p422 = pneg %p297
      %p423 = pneg %p294
      %p424 = pneg %p323
      %p425 = pneg %p320
      %p426 = scmp.lt.s32.totalorder %s24, 1
      %s427 = scalar_select %p426, %s24, 1
      %s428 = smul.addr %s427, 4
      %s429 = smul.addr %s428, 8
      %s430 = scalar_lea.vmem %s13, %s429
      %p431 = scmp.lt.s32.totalorder %s24, 1
      %s432 = scalar_select %p431, %s24, 1
      %s433 = smul.addr %s432, 6
      %s434 = smul.addr %s433, 8
      %s435 = scalar_lea.vmem %s0, %s434
      %p436 = scmp.lt.s32.totalorder %s24, 1
      %s437 = scalar_select %p436, %s24, 1
      %s438 = smul.addr %s437, 4
      %s439 = smul.addr %s438, 8
      %s440 = scalar_lea.vmem %s13, %s439
      %vm442 = vcmask 146432
      %443 = vst.msk [vmem:[#allocation2] sm:$0xff] %vm442, 0.0
      %444 = vst.msk [vmem:[#allocation2 + $0x8] sm:$0xff] %vm442, 0.0
      %vm445 = vcmask 140288
      %446 = vst.msk [vmem:[#allocation2 + $0x10] sm:$0x3] %vm445, 0.0
      %447 = vst.msk [vmem:[#allocation2 + $0x18] sm:$0xff] %vm442, 0.0
      %448 = vst.msk [vmem:[#allocation2 + $0x20] sm:$0xff] %vm442, 0.0
      %449 = vst.msk [vmem:[#allocation2 + $0x28] sm:$0x3] %vm445, 0.0
      %450 = vst.msk [vmem:[#allocation2 + $0x30] sm:$0xff] %vm442, 0.0
      %451 = vst.msk [vmem:[#allocation2 + $0x38] sm:$0xff] %vm442, 0.0
      %452 = vst.msk [vmem:[#allocation2 + $0x40] sm:$0x3] %vm445, 0.0
      %v453 = vld [vmem:[%s435] sm:$0xff]
      %v454 = vld [vmem:[%s435 + $0x8] sm:$0xff]
      %v455 = vld [vmem:[%s435 + $0x10] sm:$0xff]
      %v456 = vld [vmem:[%s435 + $0x18] sm:$0xff]
      %v457 = vld [vmem:[%s435 + $0x20] sm:$0xff]
      %v458 = vld [vmem:[%s435 + $0x28] sm:$0xff]
      %465 = vrot.lane.b32.xlu0 %v453, 1
      %v466 = vpop.permute.xlu0 %465
      %467 = vrot.lane.b32.xlu0 %v454, 1
      %v468 = vpop.permute.xlu0 %467
      %469 = vrot.lane.b32.xlu0 %v455, 1
      %v470 = vpop.permute.xlu0 %469
      %471 = vrot.lane.b32.xlu0 %v456, 1
      %v472 = vpop.permute.xlu0 %471
      %473 = vrot.lane.b32.xlu0 %v457, 1
      %v474 = vpop.permute.xlu0 %473
      %475 = vrot.lane.b32.xlu0 %v458, 1
      %v476 = vpop.permute.xlu0 %475
      %vm483 = vcmask 138248
      %484 = vst.msk [vmem:[#allocation2 + $0x1] sm:$0xff] %vm483, %v466
      %485 = vst.msk [vmem:[#allocation2 + $0x9] sm:$0xff] %vm483, %v468
      %486 = vst.msk [vmem:[#allocation2 + $0x19] sm:$0xff] %vm483, %v470
      %487 = vst.msk [vmem:[#allocation2 + $0x21] sm:$0xff] %vm483, %v472
      %488 = vst.msk [vmem:[#allocation2 + $0x31] sm:$0xff] %vm483, %v474
      %489 = vst.msk [vmem:[#allocation2 + $0x39] sm:$0xff] %vm483, %v476
      %v490 = vld [vmem:[#allocation2] sm:$0xff]
      %v491 = vld [vmem:[#allocation2 + $0x8] sm:$0xff]
      %v492 = vld [vmem:[#allocation2 + $0x10] sm:$0x3]
      %v493 = vld [vmem:[#allocation2 + $0x18] sm:$0xff]
      %v494 = vld [vmem:[#allocation2 + $0x20] sm:$0xff]
      %v495 = vld [vmem:[#allocation2 + $0x28] sm:$0x3]
      %v496 = vld [vmem:[#allocation2 + $0x30] sm:$0xff]
      %v497 = vld [vmem:[#allocation2 + $0x38] sm:$0xff]
      %v498 = vld [vmem:[#allocation2 + $0x40] sm:$0x3]
      %v499 = vld [vmem:[%s1] sm:$0xff]
      %v500 = vld [vmem:[%s1 + $0x8] sm:$0xff]
      %v501 = vld [vmem:[%s1 + $0x10] sm:$0x3]
      %v511 = vcombine.high %v490, %v490
      %v513 = vunpack.c.l.s4 1983009808
      %v514 = vunpack.c.0.s8 %v513
      %v515 = vlaneseq
      %v516 = vshrl.u32 %v515, 7
      %v517 = vsub.s32 %v514, %v516
      %v518 = vrot.slane %v490, %v517
      %v520 = vunpack.c.l.s4 1983009808
      %v521 = vunpack.c.0.s8 %v520
      %v522 = vlaneseq
      %v523 = vshrl.u32 %v522, 7
      %v524 = vsub.s32 %v521, %v523
      %v525 = vrot.slane %v511, %v524
      %v526 = vcombine.high %v518, %v518
      %v527 = vcombine.high %v525, %v525
      %v528 = vcombine.high %v491, %v491
      %v530 = vunpack.c.l.s4 1983009808
      %v531 = vunpack.c.0.s8 %v530
      %v532 = vlaneseq
      %v533 = vshrl.u32 %v532, 7
      %v534 = vsub.s32 %v531, %v533
      %v535 = vrot.slane %v491, %v534
      %v537 = vunpack.c.l.s4 1983009808
      %v538 = vunpack.c.0.s8 %v537
      %v539 = vlaneseq
      %v540 = vshrl.u32 %v539, 7
      %v541 = vsub.s32 %v538, %v540
      %v542 = vrot.slane %v528, %v541
      %v543 = vcombine.high %v535, %v535
      %v544 = vcombine.high %v542, %v542
      %v546 = vunpack.c.l.s4 1983009808
      %v547 = vunpack.c.0.s8 %v546
      %v548 = vlaneseq
      %v549 = vshrl.u32 %v548, 7
      %v550 = vsub.s32 %v547, %v549
      %v551 = vrot.slane %v492, %v550
      %v552 = vcombine.high %v493, %v493
      %v554 = vunpack.c.l.s4 1983009808
      %v555 = vunpack.c.0.s8 %v554
      %v556 = vlaneseq
      %v557 = vshrl.u32 %v556, 7
      %v558 = vsub.s32 %v555, %v557
      %v559 = vrot.slane %v493, %v558
      %v561 = vunpack.c.l.s4 1983009808
      %v562 = vunpack.c.0.s8 %v561
      %v563 = vlaneseq
      %v564 = vshrl.u32 %v563, 7
      %v565 = vsub.s32 %v562, %v564
      %v566 = vrot.slane %v552, %v565
      %v567 = vcombine.high %v559, %v559
      %v568 = vcombine.high %v566, %v566
      %v569 = vcombine.high %v494, %v494
      %v571 = vunpack.c.l.s4 1983009808
      %v572 = vunpack.c.0.s8 %v571
      %v573 = vlaneseq
      %v574 = vshrl.u32 %v573, 7
      %v575 = vsub.s32 %v572, %v574
      %v576 = vrot.slane %v494, %v575
      %v578 = vunpack.c.l.s4 1983009808
      %v579 = vunpack.c.0.s8 %v578
      %v580 = vlaneseq
      %v581 = vshrl.u32 %v580, 7
      %v582 = vsub.s32 %v579, %v581
      %v583 = vrot.slane %v569, %v582
      %v584 = vcombine.high %v576, %v576
      %v585 = vcombine.high %v583, %v583
      %v587 = vunpack.c.l.s4 1983009808
      %v588 = vunpack.c.0.s8 %v587
      %v589 = vlaneseq
      %v590 = vshrl.u32 %v589, 7
      %v591 = vsub.s32 %v588, %v590
      %v592 = vrot.slane %v495, %v591
      %v593 = vcombine.high %v496, %v496
      %v595 = vunpack.c.l.s4 1983009808
      %v596 = vunpack.c.0.s8 %v595
      %v597 = vlaneseq
      %v598 = vshrl.u32 %v597, 7
      %v599 = vsub.s32 %v596, %v598
      %v600 = vrot.slane %v496, %v599
      %v602 = vunpack.c.l.s4 1983009808
      %v603 = vunpack.c.0.s8 %v602
      %v604 = vlaneseq
      %v605 = vshrl.u32 %v604, 7
      %v606 = vsub.s32 %v603, %v605
      %v607 = vrot.slane %v593, %v606
      %v608 = vcombine.high %v600, %v600
      %v609 = vcombine.high %v607, %v607
      %v610 = vcombine.high %v497, %v497
      %v612 = vunpack.c.l.s4 1983009808
      %v613 = vunpack.c.0.s8 %v612
      %v614 = vlaneseq
      %v615 = vshrl.u32 %v614, 7
      %v616 = vsub.s32 %v613, %v615
      %v617 = vrot.slane %v497, %v616
      %v619 = vunpack.c.l.s4 1983009808
      %v620 = vunpack.c.0.s8 %v619
      %v621 = vlaneseq
      %v622 = vshrl.u32 %v621, 7
      %v623 = vsub.s32 %v620, %v622
      %v624 = vrot.slane %v610, %v623
      %v625 = vcombine.high %v617, %v617
      %v626 = vcombine.high %v624, %v624
      %v628 = vunpack.c.l.s4 1983009808
      %v629 = vunpack.c.0.s8 %v628
      %v630 = vlaneseq
      %v631 = vshrl.u32 %v630, 7
      %v632 = vsub.s32 %v629, %v631
      %v633 = vrot.slane %v498, %v632
      %v634 = vcombine.low %v518, %v526
      %v635 = vcombine.low %v525, %v527
      %v637 = vunpack.c.l.s4 1983009808
      %v638 = vunpack.c.0.s8 %v637
      %v639 = vlaneseq
      %v640 = vshrl.u32 %v639, 7
      %v641 = vsub.s32 %v638, %v640
      %v642 = vrot.slane %v634, %v641
      %v644 = vunpack.c.l.s4 1983009808
      %v645 = vunpack.c.0.s8 %v644
      %v646 = vlaneseq
      %v647 = vshrl.u32 %v646, 7
      %v648 = vsub.s32 %v645, %v647
      %v649 = vrot.slane %v635, %v648
      %v650 = vcombine.low %v642, %v649
      %v651 = vcombine.low %v535, %v543
      %v652 = vcombine.low %v542, %v544
      %v654 = vunpack.c.l.s4 1983009808
      %v655 = vunpack.c.0.s8 %v654
      %v656 = vlaneseq
      %v657 = vshrl.u32 %v656, 7
      %v658 = vsub.s32 %v655, %v657
      %v659 = vrot.slane %v651, %v658
      %v661 = vunpack.c.l.s4 1983009808
      %v662 = vunpack.c.0.s8 %v661
      %v663 = vlaneseq
      %v664 = vshrl.u32 %v663, 7
      %v665 = vsub.s32 %v662, %v664
      %v666 = vrot.slane %v652, %v665
      %v667 = vcombine.low %v659, %v666
      %v668 = vcombine.low %v551, %v559
      %v669 = vcombine.low %v567, %v566
      %v671 = vunpack.c.l.s4 1983009808
      %v672 = vunpack.c.0.s8 %v671
      %v673 = vlaneseq
      %v674 = vshrl.u32 %v673, 7
      %v675 = vsub.s32 %v672, %v674
      %v676 = vrot.slane %v668, %v675
      %v678 = vunpack.c.l.s4 1983009808
      %v679 = vunpack.c.0.s8 %v678
      %v680 = vlaneseq
      %v681 = vshrl.u32 %v680, 7
      %v682 = vsub.s32 %v679, %v681
      %v683 = vrot.slane %v669, %v682
      %v684 = vcombine.low %v676, %v683
      %v685 = vcombine.low %v568, %v576
      %v686 = vcombine.low %v584, %v583
      %v688 = vunpack.c.l.s4 1983009808
      %v689 = vunpack.c.0.s8 %v688
      %v690 = vlaneseq
      %v691 = vshrl.u32 %v690, 7
      %v692 = vsub.s32 %v689, %v691
      %v693 = vrot.slane %v685, %v692
      %v695 = vunpack.c.l.s4 1983009808
      %v696 = vunpack.c.0.s8 %v695
      %v697 = vlaneseq
      %v698 = vshrl.u32 %v697, 7
      %v699 = vsub.s32 %v696, %v698
      %v700 = vrot.slane %v686, %v699
      %v701 = vcombine.low %v693, %v700
      %v702 = vcombine.low %v585, %v592
      %v703 = vcombine.low %v600, %v608
      %v705 = vunpack.c.l.s4 1983009808
      %v706 = vunpack.c.0.s8 %v705
      %v707 = vlaneseq
      %v708 = vshrl.u32 %v707, 7
      %v709 = vsub.s32 %v706, %v708
      %v710 = vrot.slane %v702, %v709
      %v712 = vunpack.c.l.s4 1983009808
      %v713 = vunpack.c.0.s8 %v712
      %v714 = vlaneseq
      %v715 = vshrl.u32 %v714, 7
      %v716 = vsub.s32 %v713, %v715
      %v717 = vrot.slane %v703, %v716
      %v718 = vcombine.low %v710, %v717
      %v719 = vcombine.low %v607, %v609
      %v720 = vcombine.low %v617, %v625
      %v722 = vunpack.c.l.s4 1983009808
      %v723 = vunpack.c.0.s8 %v722
      %v724 = vlaneseq
      %v725 = vshrl.u32 %v724, 7
      %v726 = vsub.s32 %v723, %v725
      %v727 = vrot.slane %v719, %v726
      %v729 = vunpack.c.l.s4 1983009808
      %v730 = vunpack.c.0.s8 %v729
      %v731 = vlaneseq
      %v732 = vshrl.u32 %v731, 7
      %v733 = vsub.s32 %v730, %v732
      %v734 = vrot.slane %v720, %v733
      %v735 = vcombine.low %v727, %v734
      %v736 = vcombine.low %v624, %v626
      %v738 = vunpack.c.l.s4 1983009808
      %v739 = vunpack.c.0.s8 %v738
      %v740 = vlaneseq
      %v741 = vshrl.u32 %v740, 7
      %v742 = vsub.s32 %v739, %v741
      %v743 = vrot.slane %v736, %v742
      %v745 = vunpack.c.l.s4 1983009808
      %v746 = vunpack.c.0.s8 %v745
      %v747 = vlaneseq
      %v748 = vshrl.u32 %v747, 7
      %v749 = vsub.s32 %v746, %v748
      %v750 = vrot.slane %v633, %v749
      %v751 = vcombine.low %v743, %v750
      %v752 = vsel %vm442, %v650, 0
      %v754 = vsel %vm442, %v667, 0
      %v756 = vsel %vm442, %v684, 0
      %v758 = vsel %vm442, %v701, 0
      %v760 = vsel %vm442, %v718, 0
      %v762 = vsel %vm442, %v735, 0
      %v764 = vsel %vm442, %v751, 0
      %vm766 = vcmask 1041408
      %v768 = vsel %vm766, %v501, 0
      %770 = vmatprep.subr.mxu0 0.0
      %771 = vmatpush1.msra.mxu0 %v499
      %772 = vmatprep.subr.mxu0 0.0
      %773 = vmatpush1.msra.mxu0 %v500
      %774 = vmatprep.subr.mxu0 0.0
      %775 = vmatpush1.msra.mxu0 %v768
      %776 = vmatprep.subr.mxu0 0.0
      %777 = vmatpush1.msra.mxu0 0.0
      %778 = vmatprep.subr.mxu0 0.0
      %779 = vmatpush1.msra.mxu0 0.0
      %780 = vmatprep.subr.mxu0 0.0
      %781 = vmatpush1.msra.mxu0 0.0
      %782 = vmatprep.subr.mxu0 0.0
      %783 = vmatpush1.msra.mxu0 0.0
      %784 = vmatprep.subr.mxu0 0.0
      %785 = vmatpush1.msra.mxu0 0.0
      %786 = vmatprep.subr.mxu0 0.0
      %787 = vmatpush1.msra.mxu0 0.0
      %788 = vmatprep.subr.mxu0 0.0
      %789 = vmatpush1.msra.mxu0 0.0
      %790 = vmatprep.subr.mxu0 0.0
      %791 = vmatpush1.msra.mxu0 0.0
      %792 = vmatprep.subr.mxu0 0.0
      %793 = vmatpush1.msra.mxu0 0.0
      %794 = vmatprep.subr.mxu0 0.0
      %795 = vmatpush1.msra.mxu0 0.0
      %796 = vmatprep.subr.mxu0 0.0
      %797 = vmatpush1.msra.mxu0 0.0
      %798 = vmatprep.subr.mxu0 0.0
      %799 = vmatpush1.msra.mxu0 0.0
      %800 = vmatprep.subr.mxu0 0.0
      %801 = vmatpush1.msra.mxu0 0.0
      %802 = vmatprep.subr.mxu0 0.0
      %803 = vmatpush1.msra.mxu0 0.0
      %804 = vmatprep.subr.mxu0 0.0
      %805 = vmatpush1.msra.mxu0 0.0
      %806 = vmatprep.subr.mxu0 0.0
      %807 = vmatpush1.msra.mxu0 0.0
      %808 = vmatprep.subr.mxu0 0.0
      %809 = vmatpush1.msra.mxu0 0.0
      %810 = vmatprep.subr.mxu0 0.0
      %811 = vmatpush1.msra.mxu0 0.0
      %812 = vmatprep.subr.mxu0 0.0
      %813 = vmatpush1.msra.mxu0 0.0
      %814 = vmatprep.subr.mxu0 0.0
      %815 = vmatpush1.msra.mxu0 0.0
      %816 = vmatprep.subr.mxu0 0.0
      %817 = vmatpush1.msra.mxu0 0.0
      %818 = vmatprep.subr.mxu0 0.0
      %819 = vmatpush1.msra.mxu0 0.0
      %820 = vmatprep.subr.mxu0 0.0
      %821 = vmatpush1.msra.mxu0 0.0
      %822 = vmatprep.subr.mxu0 0.0
      %823 = vmatpush1.msra.mxu0 0.0
      %824 = vmatprep.subr.mxu0 0.0
      %825 = vmatpush1.msra.mxu0 0.0
      %826 = vmatprep.subr.mxu0 0.0
      %827 = vmatpush1.msra.mxu0 0.0
      %828 = vmatprep.subr.mxu0 0.0
      %829 = vmatpush1.msra.mxu0 0.0
      %830 = vmatprep.subr.mxu0 0.0
      %831 = vmatpush1.msra.mxu0 0.0
      %832 = vmatprep.subr.mxu0 0.0
      %833 = vmatpush1.msra.mxu0 0.0
      %834 = vmatprep.mubr.f32.mxu0 0.0
      %835 = vmatmul.mubr.f32.gmra.mrb[0].mxu0 %v752
      %v836 = vpop.f32.mrb[0].mxu0
      %v837 = vadd.f32 0.0, %v836
      %v838 = vpop.f32.mrb[0].mxu0
      %839 = vmatprep.mubr.f32.mxu0 0.0
      %840 = vmatmul.mubr.f32.gmra.mrb[0].mxu0 %v754
      %v841 = vpop.f32.mrb[0].mxu0
      %v842 = vadd.f32 0.0, %v841
      %v843 = vpop.f32.mrb[0].mxu0
      %844 = vmatprep.mubr.f32.mxu0 0.0
      %845 = vmatmul.mubr.f32.gmra.mrb[0].mxu0 %v756
      %v846 = vpop.f32.mrb[0].mxu0
      %v847 = vadd.f32 0.0, %v846
      %v848 = vpop.f32.mrb[0].mxu0
      %849 = vmatprep.mubr.f32.mxu0 0.0
      %850 = vmatmul.mubr.f32.gmra.mrb[0].mxu0 %v758
      %v851 = vpop.f32.mrb[0].mxu0
      %v852 = vadd.f32 0.0, %v851
      %v853 = vpop.f32.mrb[0].mxu0
      %854 = vmatprep.mubr.f32.mxu0 0.0
      %855 = vmatmul.mubr.f32.gmra.mrb[0].mxu0 %v760
      %v856 = vpop.f32.mrb[0].mxu0
      %v857 = vadd.f32 0.0, %v856
      %v858 = vpop.f32.mrb[0].mxu0
      %859 = vmatprep.mubr.f32.mxu0 0.0
      %860 = vmatmul.mubr.f32.gmra.mrb[0].mxu0 %v762
      %v861 = vpop.f32.mrb[0].mxu0
      %v862 = vadd.f32 0.0, %v861
      %v863 = vpop.f32.mrb[0].mxu0
      %864 = vmatprep.mubr.f32.mxu0 0.0
      %865 = vmatmul.mubr.f32.gmra.mrb[0].mxu0 %v764
      %v866 = vpop.f32.mrb[0].mxu0
      %v867 = vadd.f32 0.0, %v866
      %v868 = vpop.f32.mrb[0].mxu0
      %869 = vdwg.mxu0
      %v877 = vcombine.high %v837, %v837
      %v879 = vunpack.c.l.s4 1983009808
      %v880 = vunpack.c.0.s8 %v879
      %v881 = vlaneseq
      %v882 = vshrl.u32 %v881, 7
      %v883 = vsub.s32 %v880, %v882
      %v884 = vrot.slane %v837, %v883
      %v886 = vunpack.c.l.s4 1983009808
      %v887 = vunpack.c.0.s8 %v886
      %v888 = vlaneseq
      %v889 = vshrl.u32 %v888, 7
      %v890 = vsub.s32 %v887, %v889
      %v891 = vrot.slane %v877, %v890
      %v892 = vcombine.high %v884, %v884
      %v893 = vcombine.high %v891, %v891
      %v894 = vcombine.high %v842, %v842
      %v896 = vunpack.c.l.s4 1983009808
      %v897 = vunpack.c.0.s8 %v896
      %v898 = vlaneseq
      %v899 = vshrl.u32 %v898, 7
      %v900 = vsub.s32 %v897, %v899
      %v901 = vrot.slane %v842, %v900
      %v903 = vunpack.c.l.s4 1983009808
      %v904 = vunpack.c.0.s8 %v903
      %v905 = vlaneseq
      %v906 = vshrl.u32 %v905, 7
      %v907 = vsub.s32 %v904, %v906
      %v908 = vrot.slane %v894, %v907
      %v909 = vcombine.high %v901, %v901
      %v910 = vcombine.high %v908, %v908
      %v911 = vcombine.high %v847, %v847
      %v913 = vunpack.c.l.s4 1983009808
      %v914 = vunpack.c.0.s8 %v913
      %v915 = vlaneseq
      %v916 = vshrl.u32 %v915, 7
      %v917 = vsub.s32 %v914, %v916
      %v918 = vrot.slane %v847, %v917
      %v920 = vunpack.c.l.s4 1983009808
      %v921 = vunpack.c.0.s8 %v920
      %v922 = vlaneseq
      %v923 = vshrl.u32 %v922, 7
      %v924 = vsub.s32 %v921, %v923
      %v925 = vrot.slane %v911, %v924
      %v926 = vcombine.high %v918, %v918
      %v927 = vcombine.high %v925, %v925
      %v928 = vcombine.high %v852, %v852
      %v930 = vunpack.c.l.s4 1983009808
      %v931 = vunpack.c.0.s8 %v930
      %v932 = vlaneseq
      %v933 = vshrl.u32 %v932, 7
      %v934 = vsub.s32 %v931, %v933
      %v935 = vrot.slane %v852, %v934
      %v937 = vunpack.c.l.s4 1983009808
      %v938 = vunpack.c.0.s8 %v937
      %v939 = vlaneseq
      %v940 = vshrl.u32 %v939, 7
      %v941 = vsub.s32 %v938, %v940
      %v942 = vrot.slane %v928, %v941
      %v943 = vcombine.high %v935, %v935
      %v944 = vcombine.high %v942, %v942
      %v945 = vcombine.high %v857, %v857
      %v947 = vunpack.c.l.s4 1983009808
      %v948 = vunpack.c.0.s8 %v947
      %v949 = vlaneseq
      %v950 = vshrl.u32 %v949, 7
      %v951 = vsub.s32 %v948, %v950
      %v952 = vrot.slane %v857, %v951
      %v954 = vunpack.c.l.s4 1983009808
      %v955 = vunpack.c.0.s8 %v954
      %v956 = vlaneseq
      %v957 = vshrl.u32 %v956, 7
      %v958 = vsub.s32 %v955, %v957
      %v959 = vrot.slane %v945, %v958
      %v960 = vcombine.high %v952, %v952
      %v961 = vcombine.high %v959, %v959
      %v962 = vcombine.high %v862, %v862
      %v964 = vunpack.c.l.s4 1983009808
      %v965 = vunpack.c.0.s8 %v964
      %v966 = vlaneseq
      %v967 = vshrl.u32 %v966, 7
      %v968 = vsub.s32 %v965, %v967
      %v969 = vrot.slane %v862, %v968
      %v971 = vunpack.c.l.s4 1983009808
      %v972 = vunpack.c.0.s8 %v971
      %v973 = vlaneseq
      %v974 = vshrl.u32 %v973, 7
      %v975 = vsub.s32 %v972, %v974
      %v976 = vrot.slane %v962, %v975
      %v977 = vcombine.high %v969, %v969
      %v978 = vcombine.high %v976, %v976
      %v979 = vcombine.high %v867, %v867
      %v981 = vunpack.c.l.s4 1983009808
      %v982 = vunpack.c.0.s8 %v981
      %v983 = vlaneseq
      %v984 = vshrl.u32 %v983, 7
      %v985 = vsub.s32 %v982, %v984
      %v986 = vrot.slane %v867, %v985
      %v988 = vunpack.c.l.s4 1983009808
      %v989 = vunpack.c.0.s8 %v988
      %v990 = vlaneseq
      %v991 = vshrl.u32 %v990, 7
      %v992 = vsub.s32 %v989, %v991
      %v993 = vrot.slane %v979, %v992
      %v994 = vcombine.high %v986, %v986
      %s995 = scalar_lea.vmem %s1, 24
      %v996 = vld [vmem:[%s995] sm:$0xff]
      %v997 = vld [vmem:[%s995 + $0x8] sm:$0xff]
      %v998 = vld [vmem:[%s995 + $0x10] sm:$0x3]
      %v1000 = vsel %vm766, %v998, 0
      %1002 = vmatprep.subr.mxu0 0.0
      %1003 = vmatpush1.msra.mxu0 %v996
      %1004 = vmatprep.subr.mxu0 0.0
      %1005 = vmatpush1.msra.mxu0 %v997
      %1006 = vmatprep.subr.mxu0 0.0
      %1007 = vmatpush1.msra.mxu0 %v1000
      %1008 = vmatprep.subr.mxu0 0.0
      %1009 = vmatpush1.msra.mxu0 0.0
      %1010 = vmatprep.subr.mxu0 0.0
      %1011 = vmatpush1.msra.mxu0 0.0
      %1012 = vmatprep.subr.mxu0 0.0
      %1013 = vmatpush1.msra.mxu0 0.0
      %1014 = vmatprep.subr.mxu0 0.0
      %1015 = vmatpush1.msra.mxu0 0.0
      %1016 = vmatprep.subr.mxu0 0.0
      %1017 = vmatpush1.msra.mxu0 0.0
      %1018 = vmatprep.subr.mxu0 0.0
      %1019 = vmatpush1.msra.mxu0 0.0
      %1020 = vmatprep.subr.mxu0 0.0
      %1021 = vmatpush1.msra.mxu0 0.0
      %1022 = vmatprep.subr.mxu0 0.0
      %1023 = vmatpush1.msra.mxu0 0.0
      %1024 = vmatprep.subr.mxu0 0.0
      %1025 = vmatpush1.msra.mxu0 0.0
      %1026 = vmatprep.subr.mxu0 0.0
      %1027 = vmatpush1.msra.mxu0 0.0
      %1028 = vmatprep.subr.mxu0 0.0
      %1029 = vmatpush1.msra.mxu0 0.0
      %1030 = vmatprep.subr.mxu0 0.0
      %1031 = vmatpush1.msra.mxu0 0.0
      %1032 = vmatprep.subr.mxu0 0.0
      %1033 = vmatpush1.msra.mxu0 0.0
      %1034 = vmatprep.subr.mxu0 0.0
      %1035 = vmatpush1.msra.mxu0 0.0
      %1036 = vmatprep.subr.mxu0 0.0
      %1037 = vmatpush1.msra.mxu0 0.0
      %1038 = vmatprep.subr.mxu0 0.0
      %1039 = vmatpush1.msra.mxu0 0.0
      %1040 = vmatprep.subr.mxu0 0.0
      %1041 = vmatpush1.msra.mxu0 0.0
      %1042 = vmatprep.subr.mxu0 0.0
      %1043 = vmatpush1.msra.mxu0 0.0
      %1044 = vmatprep.subr.mxu0 0.0
      %1045 = vmatpush1.msra.mxu0 0.0
      %1046 = vmatprep.subr.mxu0 0.0
      %1047 = vmatpush1.msra.mxu0 0.0
      %1048 = vmatprep.subr.mxu0 0.0
      %1049 = vmatpush1.msra.mxu0 0.0
      %1050 = vmatprep.subr.mxu0 0.0
      %1051 = vmatpush1.msra.mxu0 0.0
      %1052 = vmatprep.subr.mxu0 0.0
      %1053 = vmatpush1.msra.mxu0 0.0
      %1054 = vmatprep.subr.mxu0 0.0
      %1055 = vmatpush1.msra.mxu0 0.0
      %1056 = vmatprep.subr.mxu0 0.0
      %1057 = vmatpush1.msra.mxu0 0.0
      %1058 = vmatprep.subr.mxu0 0.0
      %1059 = vmatpush1.msra.mxu0 0.0
      %1060 = vmatprep.subr.mxu0 0.0
      %1061 = vmatpush1.msra.mxu0 0.0
      %1062 = vmatprep.subr.mxu0 0.0
      %1063 = vmatpush1.msra.mxu0 0.0
      %1064 = vmatprep.subr.mxu0 0.0
      %1065 = vmatpush1.msra.mxu0 0.0
      %1066 = vmatprep.mubr.f32.mxu0 0.0
      %1067 = vmatmul.mubr.f32.gmra.mrb[0].mxu0 %v752
      %v1068 = vpop.f32.mrb[0].mxu0
      %v1069 = vadd.f32 0.0, %v1068
      %v1070 = vpop.f32.mrb[0].mxu0
      %1071 = vmatprep.mubr.f32.mxu0 0.0
      %1072 = vmatmul.mubr.f32.gmra.mrb[0].mxu0 %v754
      %v1073 = vpop.f32.mrb[0].mxu0
      %v1074 = vadd.f32 0.0, %v1073
      %v1075 = vpop.f32.mrb[0].mxu0
      %1076 = vmatprep.mubr.f32.mxu0 0.0
      %1077 = vmatmul.mubr.f32.gmra.mrb[0].mxu0 %v756
      %v1078 = vpop.f32.mrb[0].mxu0
      %v1079 = vadd.f32 0.0, %v1078
      %v1080 = vpop.f32.mrb[0].mxu0
      %1081 = vmatprep.mubr.f32.mxu0 0.0
      %1082 = vmatmul.mubr.f32.gmra.mrb[0].mxu0 %v758
      %v1083 = vpop.f32.mrb[0].mxu0
      %v1084 = vadd.f32 0.0, %v1083
      %v1085 = vpop.f32.mrb[0].mxu0
      %1086 = vmatprep.mubr.f32.mxu0 0.0
      %1087 = vmatmul.mubr.f32.gmra.mrb[0].mxu0 %v760
      %v1088 = vpop.f32.mrb[0].mxu0
      %v1089 = vadd.f32 0.0, %v1088
      %v1090 = vpop.f32.mrb[0].mxu0
      %1091 = vmatprep.mubr.f32.mxu0 0.0
      %1092 = vmatmul.mubr.f32.gmra.mrb[0].mxu0 %v762
      %v1093 = vpop.f32.mrb[0].mxu0
      %v1094 = vadd.f32 0.0, %v1093
      %v1095 = vpop.f32.mrb[0].mxu0
      %1096 = vmatprep.mubr.f32.mxu0 0.0
      %1097 = vmatmul.mubr.f32.gmra.mrb[0].mxu0 %v764
      %v1098 = vpop.f32.mrb[0].mxu0
      %v1099 = vadd.f32 0.0, %v1098
      %v1100 = vpop.f32.mrb[0].mxu0
      %1101 = vdwg.mxu0
      %v1109 = vcombine.high %v1069, %v1069
      %v1111 = vunpack.c.l.s4 1983009808
      %v1112 = vunpack.c.0.s8 %v1111
      %v1113 = vlaneseq
      %v1114 = vshrl.u32 %v1113, 7
      %v1115 = vsub.s32 %v1112, %v1114
      %v1116 = vrot.slane %v1069, %v1115
      %v1118 = vunpack.c.l.s4 1983009808
      %v1119 = vunpack.c.0.s8 %v1118
      %v1120 = vlaneseq
      %v1121 = vshrl.u32 %v1120, 7
      %v1122 = vsub.s32 %v1119, %v1121
      %v1123 = vrot.slane %v1109, %v1122
      %v1124 = vcombine.high %v1116, %v1116
      %v1125 = vcombine.high %v1123, %v1123
      %v1126 = vcombine.high %v1074, %v1074
      %v1128 = vunpack.c.l.s4 1983009808
      %v1129 = vunpack.c.0.s8 %v1128
      %v1130 = vlaneseq
      %v1131 = vshrl.u32 %v1130, 7
      %v1132 = vsub.s32 %v1129, %v1131
      %v1133 = vrot.slane %v1074, %v1132
      %v1135 = vunpack.c.l.s4 1983009808
      %v1136 = vunpack.c.0.s8 %v1135
      %v1137 = vlaneseq
      %v1138 = vshrl.u32 %v1137, 7
      %v1139 = vsub.s32 %v1136, %v1138
      %v1140 = vrot.slane %v1126, %v1139
      %v1141 = vcombine.high %v1133, %v1133
      %v1142 = vcombine.high %v1140, %v1140
      %v1143 = vcombine.high %v1079, %v1079
      %v1145 = vunpack.c.l.s4 1983009808
      %v1146 = vunpack.c.0.s8 %v1145
      %v1147 = vlaneseq
      %v1148 = vshrl.u32 %v1147, 7
      %v1149 = vsub.s32 %v1146, %v1148
      %v1150 = vrot.slane %v1079, %v1149
      %v1152 = vunpack.c.l.s4 1983009808
      %v1153 = vunpack.c.0.s8 %v1152
      %v1154 = vlaneseq
      %v1155 = vshrl.u32 %v1154, 7
      %v1156 = vsub.s32 %v1153, %v1155
      %v1157 = vrot.slane %v1143, %v1156
      %v1158 = vcombine.high %v1150, %v1150
      %v1159 = vcombine.high %v1157, %v1157
      %v1160 = vcombine.high %v1084, %v1084
      %v1162 = vunpack.c.l.s4 1983009808
      %v1163 = vunpack.c.0.s8 %v1162
      %v1164 = vlaneseq
      %v1165 = vshrl.u32 %v1164, 7
      %v1166 = vsub.s32 %v1163, %v1165
      %v1167 = vrot.slane %v1084, %v1166
      %v1169 = vunpack.c.l.s4 1983009808
      %v1170 = vunpack.c.0.s8 %v1169
      %v1171 = vlaneseq
      %v1172 = vshrl.u32 %v1171, 7
      %v1173 = vsub.s32 %v1170, %v1172
      %v1174 = vrot.slane %v1160, %v1173
      %v1175 = vcombine.high %v1167, %v1167
      %v1176 = vcombine.high %v1174, %v1174
      %v1177 = vcombine.high %v1089, %v1089
      %v1179 = vunpack.c.l.s4 1983009808
      %v1180 = vunpack.c.0.s8 %v1179
      %v1181 = vlaneseq
      %v1182 = vshrl.u32 %v1181, 7
      %v1183 = vsub.s32 %v1180, %v1182
      %v1184 = vrot.slane %v1089, %v1183
      %v1186 = vunpack.c.l.s4 1983009808
      %v1187 = vunpack.c.0.s8 %v1186
      %v1188 = vlaneseq
      %v1189 = vshrl.u32 %v1188, 7
      %v1190 = vsub.s32 %v1187, %v1189
      %v1191 = vrot.slane %v1177, %v1190
      %v1192 = vcombine.high %v1184, %v1184
      %v1193 = vcombine.high %v1191, %v1191
      %v1194 = vcombine.high %v1094, %v1094
      %v1196 = vunpack.c.l.s4 1983009808
      %v1197 = vunpack.c.0.s8 %v1196
      %v1198 = vlaneseq
      %v1199 = vshrl.u32 %v1198, 7
      %v1200 = vsub.s32 %v1197, %v1199
      %v1201 = vrot.slane %v1094, %v1200
      %v1203 = vunpack.c.l.s4 1983009808
      %v1204 = vunpack.c.0.s8 %v1203
      %v1205 = vlaneseq
      %v1206 = vshrl.u32 %v1205, 7
      %v1207 = vsub.s32 %v1204, %v1206
      %v1208 = vrot.slane %v1194, %v1207
      %v1209 = vcombine.high %v1201, %v1201
      %v1210 = vcombine.high %v1208, %v1208
      %v1211 = vcombine.high %v1099, %v1099
      %v1213 = vunpack.c.l.s4 1983009808
      %v1214 = vunpack.c.0.s8 %v1213
      %v1215 = vlaneseq
      %v1216 = vshrl.u32 %v1215, 7
      %v1217 = vsub.s32 %v1214, %v1216
      %v1218 = vrot.slane %v1099, %v1217
      %v1220 = vunpack.c.l.s4 1983009808
      %v1221 = vunpack.c.0.s8 %v1220
      %v1222 = vlaneseq
      %v1223 = vshrl.u32 %v1222, 7
      %v1224 = vsub.s32 %v1221, %v1223
      %v1225 = vrot.slane %v1211, %v1224
      %v1226 = vcombine.high %v1218, %v1218
      %v1227 = vld [vmem:[%s4] sm:$0xf]
      %v1228 = vld [vmem:[%s4 + $0x4] sm:$0xf]
      %v1229 = vld [vmem:[%s4 + $0x8] sm:$0xf]
      %v1230 = vld [vmem:[%s4 + $0xc] sm:$0xf]
      %v1231 = vld [vmem:[%s5] sm:$0xff]
      %v1232 = vld [vmem:[%s5 + $0x8] sm:$0xff]
      %v1233 = vld [vmem:[%s5 + $0x10] sm:$0xff]
      %v1234 = vld [vmem:[%s5 + $0x18] sm:$0xff]
      %v1235 = vlaneseq
      %v1236 = vshrl.u32 %v1235, 7
      %v1237 = vsub.s32 0, %v1236
      %v1238 = vrot.slane %v884, %v1237
      %v1239 = vlaneseq
      %v1240 = vshrl.u32 %v1239, 7
      %v1241 = vsub.s32 0, %v1240
      %v1242 = vrot.slane %v926, %v1241
      %v1243 = vlaneseq
      %v1244 = vshrl.u32 %v1243, 7
      %v1245 = vsub.s32 0, %v1244
      %v1246 = vrot.slane %v959, %v1245
      %vm1247 = vcmask 1041409
      %v1248 = vsel %vm1247, %v1242, %v1238
      %vm1249 = vcmask 1042434
      %v1250 = vsel %vm1249, %v1246, %v1248
      %vm1252 = vcmask 59392
      %1253 = vst.msk [vmem:[#allocation6] sm:$0x7] %vm1252, %v1250
      %v1254 = vlaneseq
      %v1255 = vshrl.u32 %v1254, 7
      %v1256 = vsub.s32 0, %v1255
      %v1257 = vrot.slane %v1116, %v1256
      %v1258 = vlaneseq
      %v1259 = vshrl.u32 %v1258, 7
      %v1260 = vsub.s32 0, %v1259
      %v1261 = vrot.slane %v1158, %v1260
      %v1262 = vlaneseq
      %v1263 = vshrl.u32 %v1262, 7
      %v1264 = vsub.s32 0, %v1263
      %v1265 = vrot.slane %v1191, %v1264
      %v1266 = vsel %vm1247, %v1261, %v1257
      %v1267 = vsel %vm1249, %v1265, %v1266
      %1269 = vst.msk [vmem:[#allocation6 + $0x3] sm:$0x7] %vm1252, %v1267
      %1270 = vrot.lane.b32.xlu0 %v1250, 127
      %v1271 = vpop.permute.xlu0 %1270
      %1273 = vst.msk [vmem:[#allocation6 + $0x6] sm:$0x7] %vm1252, %v1271
      %v1274 = vlaneseq
      %v1275 = vshrl.u32 %v1274, 7
      %v1276 = vsub.s32 1, %v1275
      %v1277 = vrot.slane %v884, %v1276
      %v1278 = vlaneseq
      %v1279 = vshrl.u32 %v1278, 7
      %v1280 = vsub.s32 1, %v1279
      %v1281 = vrot.slane %v926, %v1280
      %v1282 = vlaneseq
      %v1283 = vshrl.u32 %v1282, 7
      %v1284 = vsub.s32 1, %v1283
      %v1285 = vrot.slane %v959, %v1284
      %v1286 = vsel %vm1249, %v1281, %v1277
      %vm1287 = vcmask 1043459
      %v1288 = vsel %vm1287, %v1285, %v1286
      %vm1290 = vcmask 60417
      %1291 = vst.msk [vmem:[#allocation6 + $0x8] sm:$0xe] %vm1290, %v1288
      %v1292 = vlaneseq
      %v1293 = vshrl.u32 %v1292, 7
      %v1294 = vsub.s32 1, %v1293
      %v1295 = vrot.slane %v1116, %v1294
      %v1296 = vlaneseq
      %v1297 = vshrl.u32 %v1296, 7
      %v1298 = vsub.s32 1, %v1297
      %v1299 = vrot.slane %v1158, %v1298
      %v1300 = vlaneseq
      %v1301 = vshrl.u32 %v1300, 7
      %v1302 = vsub.s32 1, %v1301
      %v1303 = vrot.slane %v1191, %v1302
      %v1304 = vsel %vm1249, %v1299, %v1295
      %v1305 = vsel %vm1287, %v1303, %v1304
      %1307 = vst.msk [vmem:[#allocation6 + $0xb] sm:$0xe] %vm1290, %v1305
      %1308 = vrot.lane.b32.xlu0 %v1288, 127
      %v1309 = vpop.permute.xlu0 %1308
      %1311 = vst.msk [vmem:[#allocation6 + $0xe] sm:$0xe] %vm1290, %v1309
      %v1312 = vlaneseq
      %v1313 = vshrl.u32 %v1312, 7
      %v1314 = vsub.s32 0, %v1313
      %v1315 = vrot.slane %v892, %v1314
      %v1316 = vlaneseq
      %v1317 = vshrl.u32 %v1316, 7
      %v1318 = vsub.s32 0, %v1317
      %v1319 = vrot.slane %v925, %v1318
      %v1320 = vlaneseq
      %v1321 = vshrl.u32 %v1320, 7
      %v1322 = vsub.s32 0, %v1321
      %v1323 = vrot.slane %v961, %v1322
      %v1324 = vsel %vm1247, %v1319, %v1315
      %v1325 = vsel %vm1249, %v1323, %v1324
      %1327 = vst.msk [vmem:[#allocation6 + $0x12] sm:$0x7] %vm1252, %v1325
      %v1328 = vlaneseq
      %v1329 = vshrl.u32 %v1328, 7
      %v1330 = vsub.s32 0, %v1329
      %v1331 = vrot.slane %v1124, %v1330
      %v1332 = vlaneseq
      %v1333 = vshrl.u32 %v1332, 7
      %v1334 = vsub.s32 0, %v1333
      %v1335 = vrot.slane %v1157, %v1334
      %v1336 = vlaneseq
      %v1337 = vshrl.u32 %v1336, 7
      %v1338 = vsub.s32 0, %v1337
      %v1339 = vrot.slane %v1193, %v1338
      %v1340 = vsel %vm1247, %v1335, %v1331
      %v1341 = vsel %vm1249, %v1339, %v1340
      %1343 = vst.msk [vmem:[#allocation6 + $0x15] sm:$0x7] %vm1252, %v1341
      %1344 = vrot.lane.b32.xlu0 %v1325, 127
      %v1345 = vpop.permute.xlu0 %1344
      %1347 = vst.msk [vmem:[#allocation6 + $0x18] sm:$0x7] %vm1252, %v1345
      %v1348 = vld [vmem:[#allocation6] sm:$0xff]
      %v1349 = vld [vmem:[#allocation6 + $0x8] sm:$0xff]
      %v1350 = vld [vmem:[#allocation6 + $0x10] sm:$0xff]
      %v1351 = vld [vmem:[#allocation6 + $0x18] sm:$0x7]
      %v1352 = vpack.c.bf16 %v1349, %v1348
      %v1353 = vpack.c.bf16 %v1351, %v1350
      %1355 = vset.pattern.permute.xlu0 0
      %1356 = vperm.xlu0 %1355, %v1231
      %v1357 = vpop.permute.xlu0 %1356
      %1360 = vset.pattern.permute.xlu0 0
      %1361 = vperm.xlu0 %1360, %v1232
      %v1362 = vpop.permute.xlu0 %1361
      %1365 = vset.pattern.permute.xlu0 0
      %1366 = vperm.xlu0 %1365, %v1233
      %v1367 = vpop.permute.xlu0 %1366
      %1370 = vset.pattern.permute.xlu0 0
      %1371 = vperm.xlu0 %1370, %v1234
      %v1372 = vpop.permute.xlu0 %1371
      %v1378 = vunpack.c.l.b16 %v1227
      %v1379 = vunpack.c.l.b16 %v1228
      %v1380 = vunpack.c.l.b16 %v1229
      %v1381 = vunpack.c.l.b16 %v1230
      %v1382 = vpack.c.b16 %v1379, %v1378
      %v1383 = vpack.c.b16 %v1381, %v1380
      %vm1384 = vcmask 220160
      %v1386 = vsel %vm1384, %v1382, 0
      %v1389 = vsel %vm1384, %v1383, 0
      %vm1391 = vcmask 1044480
      %vm1392 = vcmask 1045504
      %v1393 = vsel %vm1391, 4294967295, 65535
      %v1394 = vsel %vm1392, %v1393, 0
      %v1396 = vand.u32 %v1353, %v1394
      %1398 = vmatprep.subr.bf16.mxu0 0
      %1399 = vmatpush1.bf16.msra.mxu0 %v1352
      %1400 = vmatprep.subr.bf16.mxu0 0
      %1401 = vmatpush1.bf16.msra.mxu0 %v1396
      %1402 = vmatprep.subr.bf16.mxu0 0
      %1403 = vmatpush1.bf16.msra.mxu0 0
      %1404 = vmatprep.subr.bf16.mxu0 0
      %1405 = vmatpush1.bf16.msra.mxu0 0
      %1406 = vmatprep.subr.bf16.mxu0 0
      %1407 = vmatpush1.bf16.msra.mxu0 0
      %1408 = vmatprep.subr.bf16.mxu0 0
      %1409 = vmatpush1.bf16.msra.mxu0 0
      %1410 = vmatprep.subr.bf16.mxu0 0
      %1411 = vmatpush1.bf16.msra.mxu0 0
      %1412 = vmatprep.subr.bf16.mxu0 0
      %1413 = vmatpush1.bf16.msra.mxu0 0
      %1414 = vmatprep.subr.bf16.mxu0 0
      %1415 = vmatpush1.bf16.msra.mxu0 0
      %1416 = vmatprep.subr.bf16.mxu0 0
      %1417 = vmatpush1.bf16.msra.mxu0 0
      %1418 = vmatprep.subr.bf16.mxu0 0
      %1419 = vmatpush1.bf16.msra.mxu0 0
      %1420 = vmatprep.subr.bf16.mxu0 0
      %1421 = vmatpush1.bf16.msra.mxu0 0
      %1422 = vmatprep.subr.bf16.mxu0 0
      %1423 = vmatpush1.bf16.msra.mxu0 0
      %1424 = vmatprep.subr.bf16.mxu0 0
      %1425 = vmatpush1.bf16.msra.mxu0 0
      %1426 = vmatprep.subr.bf16.mxu0 0
      %1427 = vmatpush1.bf16.msra.mxu0 0
      %1428 = vmatprep.subr.bf16.mxu0 0
      %1429 = vmatpush1.bf16.msra.mxu0 0
      %1430 = vmatprep.mubr.bf16.mxu0 0
      %1431 = vmatmul.mubr.bf16.gmra.mrb[0].mxu0 %v1386
      %v1432 = vpop.f32.mrb[0].mxu0
      %v1433 = vadd.f32 %v1357, %v1432
      %v1434 = vpop.f32.mrb[0].mxu0
      %v1435 = vpop.f32.mrb[0].mxu0
      %v1436 = vadd.f32 %v1362, %v1435
      %v1437 = vpop.f32.mrb[0].mxu0
      %1438 = vmatprep.mubr.bf16.mxu0 0
      %1439 = vmatmul.mubr.bf16.gmra.mrb[0].mxu0 %v1389
      %v1440 = vpop.f32.mrb[0].mxu0
      %v1441 = vadd.f32 %v1367, %v1440
      %v1442 = vpop.f32.mrb[0].mxu0
      %v1443 = vpop.f32.mrb[0].mxu0
      %v1444 = vadd.f32 %v1372, %v1443
      %v1445 = vpop.f32.mrb[0].mxu0
      %1446 = vdwg.mxu0
      %v1447 = vmax.f32 %v1433, 0.0
      %v1448 = vmax.f32 %v1436, 0.0
      %v1449 = vmax.f32 %v1441, 0.0
      %v1450 = vmax.f32 %v1444, 0.0
      %vm1451 = vcmask 64512
      %1452 = vst.msk [vmem:[#allocation3] sm:$0xff] %vm1451, %v1447
      %1453 = vst.msk [vmem:[#allocation3 + $0x8] sm:$0xff] %vm1451, %v1448
      %1454 = vst.msk [vmem:[#allocation3 + $0x10] sm:$0xff] %vm1451, %v1449
      %1455 = vst.msk [vmem:[#allocation3 + $0x18] sm:$0xff] %vm1451, %v1450
      %1456 = vst.msk [vmem:[#allocation6] sm:$0x7] %vm1252, %v1325
      %1457 = vst.msk [vmem:[#allocation6 + $0x3] sm:$0x7] %vm1252, %v1341
      %1458 = vst.msk [vmem:[#allocation6 + $0x6] sm:$0x7] %vm1252, %v1345
      %v1459 = vlaneseq
      %v1460 = vshrl.u32 %v1459, 7
      %v1461 = vsub.s32 1, %v1460
      %v1462 = vrot.slane %v892, %v1461
      %v1463 = vlaneseq
      %v1464 = vshrl.u32 %v1463, 7
      %v1465 = vsub.s32 1, %v1464
      %v1466 = vrot.slane %v925, %v1465
      %v1467 = vlaneseq
      %v1468 = vshrl.u32 %v1467, 7
      %v1469 = vsub.s32 1, %v1468
      %v1470 = vrot.slane %v961, %v1469
      %v1471 = vsel %vm1249, %v1466, %v1462
      %v1472 = vsel %vm1287, %v1470, %v1471
      %1474 = vst.msk [vmem:[#allocation6 + $0x8] sm:$0xe] %vm1290, %v1472
      %v1475 = vlaneseq
      %v1476 = vshrl.u32 %v1475, 7
      %v1477 = vsub.s32 1, %v1476
      %v1478 = vrot.slane %v1124, %v1477
      %v1479 = vlaneseq
      %v1480 = vshrl.u32 %v1479, 7
      %v1481 = vsub.s32 1, %v1480
      %v1482 = vrot.slane %v1157, %v1481
      %v1483 = vlaneseq
      %v1484 = vshrl.u32 %v1483, 7
      %v1485 = vsub.s32 1, %v1484
      %v1486 = vrot.slane %v1193, %v1485
      %v1487 = vsel %vm1249, %v1482, %v1478
      %v1488 = vsel %vm1287, %v1486, %v1487
      %1490 = vst.msk [vmem:[#allocation6 + $0xb] sm:$0xe] %vm1290, %v1488
      %1491 = vrot.lane.b32.xlu0 %v1472, 127
      %v1492 = vpop.permute.xlu0 %1491
      %1494 = vst.msk [vmem:[#allocation6 + $0xe] sm:$0xe] %vm1290, %v1492
      %v1495 = vlaneseq
      %v1496 = vshrl.u32 %v1495, 7
      %v1497 = vsub.s32 0, %v1496
      %v1498 = vrot.slane %v891, %v1497
      %v1499 = vlaneseq
      %v1500 = vshrl.u32 %v1499, 7
      %v1501 = vsub.s32 0, %v1500
      %v1502 = vrot.slane %v927, %v1501
      %v1503 = vlaneseq
      %v1504 = vshrl.u32 %v1503, 7
      %v1505 = vsub.s32 0, %v1504
      %v1506 = vrot.slane %v969, %v1505
      %v1507 = vsel %vm1247, %v1502, %v1498
      %v1508 = vsel %vm1249, %v1506, %v1507
      %1510 = vst.msk [vmem:[#allocation6 + $0x12] sm:$0x7] %vm1252, %v1508
      %v1511 = vlaneseq
      %v1512 = vshrl.u32 %v1511, 7
      %v1513 = vsub.s32 0, %v1512
      %v1514 = vrot.slane %v1123, %v1513
      %v1515 = vlaneseq
      %v1516 = vshrl.u32 %v1515, 7
      %v1517 = vsub.s32 0, %v1516
      %v1518 = vrot.slane %v1159, %v1517
      %v1519 = vlaneseq
      %v1520 = vshrl.u32 %v1519, 7
      %v1521 = vsub.s32 0, %v1520
      %v1522 = vrot.slane %v1201, %v1521
      %v1523 = vsel %vm1247, %v1518, %v1514
      %v1524 = vsel %vm1249, %v1522, %v1523
      %1526 = vst.msk [vmem:[#allocation6 + $0x15] sm:$0x7] %vm1252, %v1524
      %1527 = vrot.lane.b32.xlu0 %v1508, 127
      %v1528 = vpop.permute.xlu0 %1527
      %1530 = vst.msk [vmem:[#allocation6 + $0x18] sm:$0x7] %vm1252, %v1528
      %v1531 = vld [vmem:[#allocation6] sm:$0xff]
      %v1532 = vld [vmem:[#allocation6 + $0x8] sm:$0xff]
      %v1533 = vld [vmem:[#allocation6 + $0x10] sm:$0xff]
      %v1534 = vld [vmem:[#allocation6 + $0x18] sm:$0x7]
      %v1535 = vpack.c.bf16 %v1532, %v1531
      %v1536 = vpack.c.bf16 %v1534, %v1533
      %v1538 = vand.u32 %v1536, %v1394
      %1540 = vmatprep.subr.bf16.mxu0 0
      %1541 = vmatpush1.bf16.msra.mxu0 %v1535
      %1542 = vmatprep.subr.bf16.mxu0 0
      %1543 = vmatpush1.bf16.msra.mxu0 %v1538
      %1544 = vmatprep.subr.bf16.mxu0 0
      %1545 = vmatpush1.bf16.msra.mxu0 0
      %1546 = vmatprep.subr.bf16.mxu0 0
      %1547 = vmatpush1.bf16.msra.mxu0 0
      %1548 = vmatprep.subr.bf16.mxu0 0
      %1549 = vmatpush1.bf16.msra.mxu0 0
      %1550 = vmatprep.subr.bf16.mxu0 0
      %1551 = vmatpush1.bf16.msra.mxu0 0
      %1552 = vmatprep.subr.bf16.mxu0 0
      %1553 = vmatpush1.bf16.msra.mxu0 0
      %1554 = vmatprep.subr.bf16.mxu0 0
      %1555 = vmatpush1.bf16.msra.mxu0 0
      %1556 = vmatprep.subr.bf16.mxu0 0
      %1557 = vmatpush1.bf16.msra.mxu0 0
      %1558 = vmatprep.subr.bf16.mxu0 0
      %1559 = vmatpush1.bf16.msra.mxu0 0
      %1560 = vmatprep.subr.bf16.mxu0 0
      %1561 = vmatpush1.bf16.msra.mxu0 0
      %1562 = vmatprep.subr.bf16.mxu0 0
      %1563 = vmatpush1.bf16.msra.mxu0 0
      %1564 = vmatprep.subr.bf16.mxu0 0
      %1565 = vmatpush1.bf16.msra.mxu0 0
      %1566 = vmatprep.subr.bf16.mxu0 0
      %1567 = vmatpush1.bf16.msra.mxu0 0
      %1568 = vmatprep.subr.bf16.mxu0 0
      %1569 = vmatpush1.bf16.msra.mxu0 0
      %1570 = vmatprep.subr.bf16.mxu0 0
      %1571 = vmatpush1.bf16.msra.mxu0 0
      %1572 = vmatprep.mubr.bf16.mxu0 0
      %1573 = vmatmul.mubr.bf16.gmra.mrb[0].mxu0 %v1386
      %v1574 = vpop.f32.mrb[0].mxu0
      %v1575 = vadd.f32 %v1357, %v1574
      %v1576 = vpop.f32.mrb[0].mxu0
      %v1577 = vpop.f32.mrb[0].mxu0
      %v1578 = vadd.f32 %v1362, %v1577
      %v1579 = vpop.f32.mrb[0].mxu0
      %1580 = vmatprep.mubr.bf16.mxu0 0
      %1581 = vmatmul.mubr.bf16.gmra.mrb[0].mxu0 %v1389
      %v1582 = vpop.f32.mrb[0].mxu0
      %v1583 = vadd.f32 %v1367, %v1582
      %v1584 = vpop.f32.mrb[0].mxu0
      %v1585 = vpop.f32.mrb[0].mxu0
      %v1586 = vadd.f32 %v1372, %v1585
      %v1587 = vpop.f32.mrb[0].mxu0
      %1588 = vdwg.mxu0
      %v1589 = vmax.f32 %v1575, 0.0
      %v1590 = vmax.f32 %v1578, 0.0
      %v1591 = vmax.f32 %v1583, 0.0
      %v1592 = vmax.f32 %v1586, 0.0
      %1597 = vrot.lane.b32.xlu0 %v1589, 8
      %v1598 = vpop.permute.xlu0 %1597
      %1599 = vrot.lane.b32.xlu0 %v1590, 8
      %v1600 = vpop.permute.xlu0 %1599
      %1601 = vrot.lane.b32.xlu0 %v1591, 8
      %v1602 = vpop.permute.xlu0 %1601
      %1603 = vrot.lane.b32.xlu0 %v1592, 8
      %v1604 = vpop.permute.xlu0 %1603
      %vm1609 = vcmask 130112
      %1610 = vst.msk [vmem:[#allocation3] sm:$0xff] %vm1609, %v1598
      %1611 = vst.msk [vmem:[#allocation3 + $0x8] sm:$0xff] %vm1609, %v1600
      %1612 = vst.msk [vmem:[#allocation3 + $0x10] sm:$0xff] %vm1609, %v1602
      %1613 = vst.msk [vmem:[#allocation3 + $0x18] sm:$0xff] %vm1609, %v1604
      %1614 = vst.msk [vmem:[#allocation6] sm:$0x7] %vm1252, %v1508
      %1615 = vst.msk [vmem:[#allocation6 + $0x3] sm:$0x7] %vm1252, %v1524
      %1616 = vst.msk [vmem:[#allocation6 + $0x6] sm:$0x7] %vm1252, %v1528
      %v1617 = vlaneseq
      %v1618 = vshrl.u32 %v1617, 7
      %v1619 = vsub.s32 1, %v1618
      %v1620 = vrot.slane %v891, %v1619
      %v1621 = vlaneseq
      %v1622 = vshrl.u32 %v1621, 7
      %v1623 = vsub.s32 1, %v1622
      %v1624 = vrot.slane %v927, %v1623
      %v1625 = vlaneseq
      %v1626 = vshrl.u32 %v1625, 7
      %v1627 = vsub.s32 1, %v1626
      %v1628 = vrot.slane %v969, %v1627
      %v1629 = vsel %vm1249, %v1624, %v1620
      %v1630 = vsel %vm1287, %v1628, %v1629
      %1632 = vst.msk [vmem:[#allocation6 + $0x8] sm:$0xe] %vm1290, %v1630
      %v1633 = vlaneseq
      %v1634 = vshrl.u32 %v1633, 7
      %v1635 = vsub.s32 1, %v1634
      %v1636 = vrot.slane %v1123, %v1635
      %v1637 = vlaneseq
      %v1638 = vshrl.u32 %v1637, 7
      %v1639 = vsub.s32 1, %v1638
      %v1640 = vrot.slane %v1159, %v1639
      %v1641 = vlaneseq
      %v1642 = vshrl.u32 %v1641, 7
      %v1643 = vsub.s32 1, %v1642
      %v1644 = vrot.slane %v1201, %v1643
      %v1645 = vsel %vm1249, %v1640, %v1636
      %v1646 = vsel %vm1287, %v1644, %v1645
      %1648 = vst.msk [vmem:[#allocation6 + $0xb] sm:$0xe] %vm1290, %v1646
      %1649 = vrot.lane.b32.xlu0 %v1630, 127
      %v1650 = vpop.permute.xlu0 %1649
      %1652 = vst.msk [vmem:[#allocation6 + $0xe] sm:$0xe] %vm1290, %v1650
      %v1653 = vlaneseq
      %v1654 = vshrl.u32 %v1653, 7
      %v1655 = vsub.s32 0, %v1654
      %v1656 = vrot.slane %v893, %v1655
      %v1657 = vlaneseq
      %v1658 = vshrl.u32 %v1657, 7
      %v1659 = vsub.s32 0, %v1658
      %v1660 = vrot.slane %v935, %v1659
      %v1661 = vlaneseq
      %v1662 = vshrl.u32 %v1661, 7
      %v1663 = vsub.s32 0, %v1662
      %v1664 = vrot.slane %v977, %v1663
      %v1665 = vsel %vm1247, %v1660, %v1656
      %v1666 = vsel %vm1249, %v1664, %v1665
      %1668 = vst.msk [vmem:[#allocation6 + $0x12] sm:$0x7] %vm1252, %v1666
      %v1669 = vlaneseq
      %v1670 = vshrl.u32 %v1669, 7
      %v1671 = vsub.s32 0, %v1670
      %v1672 = vrot.slane %v1125, %v1671
      %v1673 = vlaneseq
      %v1674 = vshrl.u32 %v1673, 7
      %v1675 = vsub.s32 0, %v1674
      %v1676 = vrot.slane %v1167, %v1675
      %v1677 = vlaneseq
      %v1678 = vshrl.u32 %v1677, 7
      %v1679 = vsub.s32 0, %v1678
      %v1680 = vrot.slane %v1209, %v1679
      %v1681 = vsel %vm1247, %v1676, %v1672
      %v1682 = vsel %vm1249, %v1680, %v1681
      %1684 = vst.msk [vmem:[#allocation6 + $0x15] sm:$0x7] %vm1252, %v1682
      %1685 = vrot.lane.b32.xlu0 %v1666, 127
      %v1686 = vpop.permute.xlu0 %1685
      %1688 = vst.msk [vmem:[#allocation6 + $0x18] sm:$0x7] %vm1252, %v1686
      %v1689 = vld [vmem:[#allocation6] sm:$0xff]
      %v1690 = vld [vmem:[#allocation6 + $0x8] sm:$0xff]
      %v1691 = vld [vmem:[#allocation6 + $0x10] sm:$0xff]
      %v1692 = vld [vmem:[#allocation6 + $0x18] sm:$0x7]
      %v1693 = vpack.c.bf16 %v1690, %v1689
      %v1694 = vpack.c.bf16 %v1692, %v1691
      %v1696 = vand.u32 %v1694, %v1394
      %1698 = vmatprep.subr.bf16.mxu0 0
      %1699 = vmatpush1.bf16.msra.mxu0 %v1693
      %1700 = vmatprep.subr.bf16.mxu0 0
      %1701 = vmatpush1.bf16.msra.mxu0 %v1696
      %1702 = vmatprep.subr.bf16.mxu0 0
      %1703 = vmatpush1.bf16.msra.mxu0 0
      %1704 = vmatprep.subr.bf16.mxu0 0
      %1705 = vmatpush1.bf16.msra.mxu0 0
      %1706 = vmatprep.subr.bf16.mxu0 0
      %1707 = vmatpush1.bf16.msra.mxu0 0
      %1708 = vmatprep.subr.bf16.mxu0 0
      %1709 = vmatpush1.bf16.msra.mxu0 0
      %1710 = vmatprep.subr.bf16.mxu0 0
      %1711 = vmatpush1.bf16.msra.mxu0 0
      %1712 = vmatprep.subr.bf16.mxu0 0
      %1713 = vmatpush1.bf16.msra.mxu0 0
      %1714 = vmatprep.subr.bf16.mxu0 0
      %1715 = vmatpush1.bf16.msra.mxu0 0
      %1716 = vmatprep.subr.bf16.mxu0 0
      %1717 = vmatpush1.bf16.msra.mxu0 0
      %1718 = vmatprep.subr.bf16.mxu0 0
      %1719 = vmatpush1.bf16.msra.mxu0 0
      %1720 = vmatprep.subr.bf16.mxu0 0
      %1721 = vmatpush1.bf16.msra.mxu0 0
      %1722 = vmatprep.subr.bf16.mxu0 0
      %1723 = vmatpush1.bf16.msra.mxu0 0
      %1724 = vmatprep.subr.bf16.mxu0 0
      %1725 = vmatpush1.bf16.msra.mxu0 0
      %1726 = vmatprep.subr.bf16.mxu0 0
      %1727 = vmatpush1.bf16.msra.mxu0 0
      %1728 = vmatprep.subr.bf16.mxu0 0
      %1729 = vmatpush1.bf16.msra.mxu0 0
      %1730 = vmatprep.mubr.bf16.mxu0 0
      %1731 = vmatmul.mubr.bf16.gmra.mrb[0].mxu0 %v1386
      %v1732 = vpop.f32.mrb[0].mxu0
      %v1733 = vadd.f32 %v1357, %v1732
      %v1734 = vpop.f32.mrb[0].mxu0
      %v1735 = vpop.f32.mrb[0].mxu0
      %v1736 = vadd.f32 %v1362, %v1735
      %v1737 = vpop.f32.mrb[0].mxu0
      %1738 = vmatprep.mubr.bf16.mxu0 0
      %1739 = vmatmul.mubr.bf16.gmra.mrb[0].mxu0 %v1389
      %v1740 = vpop.f32.mrb[0].mxu0
      %v1741 = vadd.f32 %v1367, %v1740
      %v1742 = vpop.f32.mrb[0].mxu0
      %v1743 = vpop.f32.mrb[0].mxu0
      %v1744 = vadd.f32 %v1372, %v1743
      %v1745 = vpop.f32.mrb[0].mxu0
      %1746 = vdwg.mxu0
      %v1747 = vmax.f32 %v1733, 0.0
      %v1748 = vmax.f32 %v1736, 0.0
      %v1749 = vmax.f32 %v1741, 0.0
      %v1750 = vmax.f32 %v1744, 0.0
      %1755 = vrot.lane.b32.xlu0 %v1747, 16
      %v1756 = vpop.permute.xlu0 %1755
      %1757 = vrot.lane.b32.xlu0 %v1748, 16
      %v1758 = vpop.permute.xlu0 %1757
      %1759 = vrot.lane.b32.xlu0 %v1749, 16
      %v1760 = vpop.permute.xlu0 %1759
      %1761 = vrot.lane.b32.xlu0 %v1750, 16
      %v1762 = vpop.permute.xlu0 %1761
      %vm1767 = vcmask 195712
      %1768 = vst.msk [vmem:[#allocation3] sm:$0xff] %vm1767, %v1756
      %1769 = vst.msk [vmem:[#allocation3 + $0x8] sm:$0xff] %vm1767, %v1758
      %1770 = vst.msk [vmem:[#allocation3 + $0x10] sm:$0xff] %vm1767, %v1760
      %1771 = vst.msk [vmem:[#allocation3 + $0x18] sm:$0xff] %vm1767, %v1762
      %1772 = vst.msk [vmem:[#allocation6] sm:$0x7] %vm1252, %v1666
      %1773 = vst.msk [vmem:[#allocation6 + $0x3] sm:$0x7] %vm1252, %v1682
      %1774 = vst.msk [vmem:[#allocation6 + $0x6] sm:$0x7] %vm1252, %v1686
      %v1775 = vlaneseq
      %v1776 = vshrl.u32 %v1775, 7
      %v1777 = vsub.s32 1, %v1776
      %v1778 = vrot.slane %v893, %v1777
      %v1779 = vlaneseq
      %v1780 = vshrl.u32 %v1779, 7
      %v1781 = vsub.s32 1, %v1780
      %v1782 = vrot.slane %v935, %v1781
      %v1783 = vlaneseq
      %v1784 = vshrl.u32 %v1783, 7
      %v1785 = vsub.s32 1, %v1784
      %v1786 = vrot.slane %v977, %v1785
      %v1787 = vsel %vm1249, %v1782, %v1778
      %v1788 = vsel %vm1287, %v1786, %v1787
      %1790 = vst.msk [vmem:[#allocation6 + $0x8] sm:$0xe] %vm1290, %v1788
      %v1791 = vlaneseq
      %v1792 = vshrl.u32 %v1791, 7
      %v1793 = vsub.s32 1, %v1792
      %v1794 = vrot.slane %v1125, %v1793
      %v1795 = vlaneseq
      %v1796 = vshrl.u32 %v1795, 7
      %v1797 = vsub.s32 1, %v1796
      %v1798 = vrot.slane %v1167, %v1797
      %v1799 = vlaneseq
      %v1800 = vshrl.u32 %v1799, 7
      %v1801 = vsub.s32 1, %v1800
      %v1802 = vrot.slane %v1209, %v1801
      %v1803 = vsel %vm1249, %v1798, %v1794
      %v1804 = vsel %vm1287, %v1802, %v1803
      %1806 = vst.msk [vmem:[#allocation6 + $0xb] sm:$0xe] %vm1290, %v1804
      %1807 = vrot.lane.b32.xlu0 %v1788, 127
      %v1808 = vpop.permute.xlu0 %1807
      %1810 = vst.msk [vmem:[#allocation6 + $0xe] sm:$0xe] %vm1290, %v1808
      %v1811 = vlaneseq
      %v1812 = vshrl.u32 %v1811, 7
      %v1813 = vsub.s32 0, %v1812
      %v1814 = vrot.slane %v901, %v1813
      %v1815 = vlaneseq
      %v1816 = vshrl.u32 %v1815, 7
      %v1817 = vsub.s32 0, %v1816
      %v1818 = vrot.slane %v943, %v1817
      %v1819 = vlaneseq
      %v1820 = vshrl.u32 %v1819, 7
      %v1821 = vsub.s32 0, %v1820
      %v1822 = vrot.slane %v976, %v1821
      %v1823 = vsel %vm1247, %v1818, %v1814
      %v1824 = vsel %vm1249, %v1822, %v1823
      %1826 = vst.msk [vmem:[#allocation6 + $0x12] sm:$0x7] %vm1252, %v1824
      %v1827 = vlaneseq
      %v1828 = vshrl.u32 %v1827, 7
      %v1829 = vsub.s32 0, %v1828
      %v1830 = vrot.slane %v1133, %v1829
      %v1831 = vlaneseq
      %v1832 = vshrl.u32 %v1831, 7
      %v1833 = vsub.s32 0, %v1832
      %v1834 = vrot.slane %v1175, %v1833
      %v1835 = vlaneseq
      %v1836 = vshrl.u32 %v1835, 7
      %v1837 = vsub.s32 0, %v1836
      %v1838 = vrot.slane %v1208, %v1837
      %v1839 = vsel %vm1247, %v1834, %v1830
      %v1840 = vsel %vm1249, %v1838, %v1839
      %1842 = vst.msk [vmem:[#allocation6 + $0x15] sm:$0x7] %vm1252, %v1840
      %1843 = vrot.lane.b32.xlu0 %v1824, 127
      %v1844 = vpop.permute.xlu0 %1843
      %1846 = vst.msk [vmem:[#allocation6 + $0x18] sm:$0x7] %vm1252, %v1844
      %v1847 = vld [vmem:[#allocation6] sm:$0xff]
      %v1848 = vld [vmem:[#allocation6 + $0x8] sm:$0xff]
      %v1849 = vld [vmem:[#allocation6 + $0x10] sm:$0xff]
      %v1850 = vld [vmem:[#allocation6 + $0x18] sm:$0x7]
      %v1851 = vpack.c.bf16 %v1848, %v1847
      %v1852 = vpack.c.bf16 %v1850, %v1849
      %v1854 = vand.u32 %v1852, %v1394
      %1856 = vmatprep.subr.bf16.mxu0 0
      %1857 = vmatpush1.bf16.msra.mxu0 %v1851
      %1858 = vmatprep.subr.bf16.mxu0 0
      %1859 = vmatpush1.bf16.msra.mxu0 %v1854
      %1860 = vmatprep.subr.bf16.mxu0 0
      %1861 = vmatpush1.bf16.msra.mxu0 0
      %1862 = vmatprep.subr.bf16.mxu0 0
      %1863 = vmatpush1.bf16.msra.mxu0 0
      %1864 = vmatprep.subr.bf16.mxu0 0
      %1865 = vmatpush1.bf16.msra.mxu0 0
      %1866 = vmatprep.subr.bf16.mxu0 0
      %1867 = vmatpush1.bf16.msra.mxu0 0
      %1868 = vmatprep.subr.bf16.mxu0 0
      %1869 = vmatpush1.bf16.msra.mxu0 0
      %1870 = vmatprep.subr.bf16.mxu0 0
      %1871 = vmatpush1.bf16.msra.mxu0 0
      %1872 = vmatprep.subr.bf16.mxu0 0
      %1873 = vmatpush1.bf16.msra.mxu0 0
      %1874 = vmatprep.subr.bf16.mxu0 0
      %1875 = vmatpush1.bf16.msra.mxu0 0
      %1876 = vmatprep.subr.bf16.mxu0 0
      %1877 = vmatpush1.bf16.msra.mxu0 0
      %1878 = vmatprep.subr.bf16.mxu0 0
      %1879 = vmatpush1.bf16.msra.mxu0 0
      %1880 = vmatprep.subr.bf16.mxu0 0
      %1881 = vmatpush1.bf16.msra.mxu0 0
      %1882 = vmatprep.subr.bf16.mxu0 0
      %1883 = vmatpush1.bf16.msra.mxu0 0
      %1884 = vmatprep.subr.bf16.mxu0 0
      %1885 = vmatpush1.bf16.msra.mxu0 0
      %1886 = vmatprep.subr.bf16.mxu0 0
      %1887 = vmatpush1.bf16.msra.mxu0 0
      %1888 = vmatprep.mubr.bf16.mxu0 0
      %1889 = vmatmul.mubr.bf16.gmra.mrb[0].mxu0 %v1386
      %v1890 = vpop.f32.mrb[0].mxu0
      %v1891 = vadd.f32 %v1357, %v1890
      %v1892 = vpop.f32.mrb[0].mxu0
      %v1893 = vpop.f32.mrb[0].mxu0
      %v1894 = vadd.f32 %v1362, %v1893
      %v1895 = vpop.f32.mrb[0].mxu0
      %1896 = vmatprep.mubr.bf16.mxu0 0
      %1897 = vmatmul.mubr.bf16.gmra.mrb[0].mxu0 %v1389
      %v1898 = vpop.f32.mrb[0].mxu0
      %v1899 = vadd.f32 %v1367, %v1898
      %v1900 = vpop.f32.mrb[0].mxu0
      %v1901 = vpop.f32.mrb[0].mxu0
      %v1902 = vadd.f32 %v1372, %v1901
      %v1903 = vpop.f32.mrb[0].mxu0
      %1904 = vdwg.mxu0
      %v1905 = vmax.f32 %v1891, 0.0
      %v1906 = vmax.f32 %v1894, 0.0
      %v1907 = vmax.f32 %v1899, 0.0
      %v1908 = vmax.f32 %v1902, 0.0
      %1913 = vrot.lane.b32.xlu0 %v1905, 24
      %v1914 = vpop.permute.xlu0 %1913
      %1915 = vrot.lane.b32.xlu0 %v1906, 24
      %v1916 = vpop.permute.xlu0 %1915
      %1917 = vrot.lane.b32.xlu0 %v1907, 24
      %v1918 = vpop.permute.xlu0 %1917
      %1919 = vrot.lane.b32.xlu0 %v1908, 24
      %v1920 = vpop.permute.xlu0 %1919
      %vm1925 = vcmask 261312
      %1926 = vst.msk [vmem:[#allocation3] sm:$0xff] %vm1925, %v1914
      %1927 = vst.msk [vmem:[#allocation3 + $0x8] sm:$0xff] %vm1925, %v1916
      %1928 = vst.msk [vmem:[#allocation3 + $0x10] sm:$0xff] %vm1925, %v1918
      %1929 = vst.msk [vmem:[#allocation3 + $0x18] sm:$0xff] %vm1925, %v1920
      %1930 = vst.msk [vmem:[#allocation6] sm:$0x7] %vm1252, %v1824
      %1931 = vst.msk [vmem:[#allocation6 + $0x3] sm:$0x7] %vm1252, %v1840
      %1932 = vst.msk [vmem:[#allocation6 + $0x6] sm:$0x7] %vm1252, %v1844
      %v1933 = vlaneseq
      %v1934 = vshrl.u32 %v1933, 7
      %v1935 = vsub.s32 1, %v1934
      %v1936 = vrot.slane %v901, %v1935
      %v1937 = vlaneseq
      %v1938 = vshrl.u32 %v1937, 7
      %v1939 = vsub.s32 1, %v1938
      %v1940 = vrot.slane %v943, %v1939
      %v1941 = vlaneseq
      %v1942 = vshrl.u32 %v1941, 7
      %v1943 = vsub.s32 1, %v1942
      %v1944 = vrot.slane %v976, %v1943
      %v1945 = vsel %vm1249, %v1940, %v1936
      %v1946 = vsel %vm1287, %v1944, %v1945
      %1948 = vst.msk [vmem:[#allocation6 + $0x8] sm:$0xe] %vm1290, %v1946
      %v1949 = vlaneseq
      %v1950 = vshrl.u32 %v1949, 7
      %v1951 = vsub.s32 1, %v1950
      %v1952 = vrot.slane %v1133, %v1951
      %v1953 = vlaneseq
      %v1954 = vshrl.u32 %v1953, 7
      %v1955 = vsub.s32 1, %v1954
      %v1956 = vrot.slane %v1175, %v1955
      %v1957 = vlaneseq
      %v1958 = vshrl.u32 %v1957, 7
      %v1959 = vsub.s32 1, %v1958
      %v1960 = vrot.slane %v1208, %v1959
      %v1961 = vsel %vm1249, %v1956, %v1952
      %v1962 = vsel %vm1287, %v1960, %v1961
      %1964 = vst.msk [vmem:[#allocation6 + $0xb] sm:$0xe] %vm1290, %v1962
      %1965 = vrot.lane.b32.xlu0 %v1946, 127
      %v1966 = vpop.permute.xlu0 %1965
      %1968 = vst.msk [vmem:[#allocation6 + $0xe] sm:$0xe] %vm1290, %v1966
      %v1969 = vlaneseq
      %v1970 = vshrl.u32 %v1969, 7
      %v1971 = vsub.s32 0, %v1970
      %v1972 = vrot.slane %v909, %v1971
      %v1973 = vlaneseq
      %v1974 = vshrl.u32 %v1973, 7
      %v1975 = vsub.s32 0, %v1974
      %v1976 = vrot.slane %v942, %v1975
      %v1977 = vlaneseq
      %v1978 = vshrl.u32 %v1977, 7
      %v1979 = vsub.s32 0, %v1978
      %v1980 = vrot.slane %v978, %v1979
      %v1981 = vsel %vm1247, %v1976, %v1972
      %v1982 = vsel %vm1249, %v1980, %v1981
      %1984 = vst.msk [vmem:[#allocation6 + $0x12] sm:$0x7] %vm1252, %v1982
      %v1985 = vlaneseq
      %v1986 = vshrl.u32 %v1985, 7
      %v1987 = vsub.s32 0, %v1986
      %v1988 = vrot.slane %v1141, %v1987
      %v1989 = vlaneseq
      %v1990 = vshrl.u32 %v1989, 7
      %v1991 = vsub.s32 0, %v1990
      %v1992 = vrot.slane %v1174, %v1991
      %v1993 = vlaneseq
      %v1994 = vshrl.u32 %v1993, 7
      %v1995 = vsub.s32 0, %v1994
      %v1996 = vrot.slane %v1210, %v1995
      %v1997 = vsel %vm1247, %v1992, %v1988
      %v1998 = vsel %vm1249, %v1996, %v1997
      %2000 = vst.msk [vmem:[#allocation6 + $0x15] sm:$0x7] %vm1252, %v1998
      %2001 = vrot.lane.b32.xlu0 %v1982, 127
      %v2002 = vpop.permute.xlu0 %2001
      %2004 = vst.msk [vmem:[#allocation6 + $0x18] sm:$0x7] %vm1252, %v2002
      %v2005 = vld [vmem:[#allocation6] sm:$0xff]
      %v2006 = vld [vmem:[#allocation6 + $0x8] sm:$0xff]
      %v2007 = vld [vmem:[#allocation6 + $0x10] sm:$0xff]
      %v2008 = vld [vmem:[#allocation6 + $0x18] sm:$0x7]
      %v2009 = vpack.c.bf16 %v2006, %v2005
      %v2010 = vpack.c.bf16 %v2008, %v2007
      %v2012 = vand.u32 %v2010, %v1394
      %2014 = vmatprep.subr.bf16.mxu0 0
      %2015 = vmatpush1.bf16.msra.mxu0 %v2009
      %2016 = vmatprep.subr.bf16.mxu0 0
      %2017 = vmatpush1.bf16.msra.mxu0 %v2012
      %2018 = vmatprep.subr.bf16.mxu0 0
      %2019 = vmatpush1.bf16.msra.mxu0 0
      %2020 = vmatprep.subr.bf16.mxu0 0
      %2021 = vmatpush1.bf16.msra.mxu0 0
      %2022 = vmatprep.subr.bf16.mxu0 0
      %2023 = vmatpush1.bf16.msra.mxu0 0
      %2024 = vmatprep.subr.bf16.mxu0 0
      %2025 = vmatpush1.bf16.msra.mxu0 0
      %2026 = vmatprep.subr.bf16.mxu0 0
      %2027 = vmatpush1.bf16.msra.mxu0 0
      %2028 = vmatprep.subr.bf16.mxu0 0
      %2029 = vmatpush1.bf16.msra.mxu0 0
      %2030 = vmatprep.subr.bf16.mxu0 0
      %2031 = vmatpush1.bf16.msra.mxu0 0
      %2032 = vmatprep.subr.bf16.mxu0 0
      %2033 = vmatpush1.bf16.msra.mxu0 0
      %2034 = vmatprep.subr.bf16.mxu0 0
      %2035 = vmatpush1.bf16.msra.mxu0 0
      %2036 = vmatprep.subr.bf16.mxu0 0
      %2037 = vmatpush1.bf16.msra.mxu0 0
      %2038 = vmatprep.subr.bf16.mxu0 0
      %2039 = vmatpush1.bf16.msra.mxu0 0
      %2040 = vmatprep.subr.bf16.mxu0 0
      %2041 = vmatpush1.bf16.msra.mxu0 0
      %2042 = vmatprep.subr.bf16.mxu0 0
      %2043 = vmatpush1.bf16.msra.mxu0 0
      %2044 = vmatprep.subr.bf16.mxu0 0
      %2045 = vmatpush1.bf16.msra.mxu0 0
      %2046 = vmatprep.mubr.bf16.mxu0 0
      %2047 = vmatmul.mubr.bf16.gmra.mrb[0].mxu0 %v1386
      %v2048 = vpop.f32.mrb[0].mxu0
      %v2049 = vadd.f32 %v1357, %v2048
      %v2050 = vpop.f32.mrb[0].mxu0
      %v2051 = vpop.f32.mrb[0].mxu0
      %v2052 = vadd.f32 %v1362, %v2051
      %v2053 = vpop.f32.mrb[0].mxu0
      %2054 = vmatprep.mubr.bf16.mxu0 0
      %2055 = vmatmul.mubr.bf16.gmra.mrb[0].mxu0 %v1389
      %v2056 = vpop.f32.mrb[0].mxu0
      %v2057 = vadd.f32 %v1367, %v2056
      %v2058 = vpop.f32.mrb[0].mxu0
      %v2059 = vpop.f32.mrb[0].mxu0
      %v2060 = vadd.f32 %v1372, %v2059
      %v2061 = vpop.f32.mrb[0].mxu0
      %2062 = vdwg.mxu0
      %v2063 = vmax.f32 %v2049, 0.0
      %v2064 = vmax.f32 %v2052, 0.0
      %v2065 = vmax.f32 %v2057, 0.0
      %v2066 = vmax.f32 %v2060, 0.0
      %2071 = vrot.lane.b32.xlu0 %v2063, 32
      %v2072 = vpop.permute.xlu0 %2071
      %2073 = vrot.lane.b32.xlu0 %v2064, 32
      %v2074 = vpop.permute.xlu0 %2073
      %2075 = vrot.lane.b32.xlu0 %v2065, 32
      %v2076 = vpop.permute.xlu0 %2075
      %2077 = vrot.lane.b32.xlu0 %v2066, 32
      %v2078 = vpop.permute.xlu0 %2077
      %vm2083 = vcmask 326912
      %2084 = vst.msk [vmem:[#allocation3] sm:$0xff] %vm2083, %v2072
      %2085 = vst.msk [vmem:[#allocation3 + $0x8] sm:$0xff] %vm2083, %v2074
      %2086 = vst.msk [vmem:[#allocation3 + $0x10] sm:$0xff] %vm2083, %v2076
      %2087 = vst.msk [vmem:[#allocation3 + $0x18] sm:$0xff] %vm2083, %v2078
      %2088 = vst.msk [vmem:[#allocation6] sm:$0x7] %vm1252, %v1982
      %2089 = vst.msk [vmem:[#allocation6 + $0x3] sm:$0x7] %vm1252, %v1998
      %2090 = vst.msk [vmem:[#allocation6 + $0x6] sm:$0x7] %vm1252, %v2002
      %v2091 = vlaneseq
      %v2092 = vshrl.u32 %v2091, 7
      %v2093 = vsub.s32 1, %v2092
      %v2094 = vrot.slane %v909, %v2093
      %v2095 = vlaneseq
      %v2096 = vshrl.u32 %v2095, 7
      %v2097 = vsub.s32 1, %v2096
      %v2098 = vrot.slane %v942, %v2097
      %v2099 = vlaneseq
      %v2100 = vshrl.u32 %v2099, 7
      %v2101 = vsub.s32 1, %v2100
      %v2102 = vrot.slane %v978, %v2101
      %v2103 = vsel %vm1249, %v2098, %v2094
      %v2104 = vsel %vm1287, %v2102, %v2103
      %2106 = vst.msk [vmem:[#allocation6 + $0x8] sm:$0xe] %vm1290, %v2104
      %v2107 = vlaneseq
      %v2108 = vshrl.u32 %v2107, 7
      %v2109 = vsub.s32 1, %v2108
      %v2110 = vrot.slane %v1141, %v2109
      %v2111 = vlaneseq
      %v2112 = vshrl.u32 %v2111, 7
      %v2113 = vsub.s32 1, %v2112
      %v2114 = vrot.slane %v1174, %v2113
      %v2115 = vlaneseq
      %v2116 = vshrl.u32 %v2115, 7
      %v2117 = vsub.s32 1, %v2116
      %v2118 = vrot.slane %v1210, %v2117
      %v2119 = vsel %vm1249, %v2114, %v2110
      %v2120 = vsel %vm1287, %v2118, %v2119
      %2122 = vst.msk [vmem:[#allocation6 + $0xb] sm:$0xe] %vm1290, %v2120
      %2123 = vrot.lane.b32.xlu0 %v2104, 127
      %v2124 = vpop.permute.xlu0 %2123
      %2126 = vst.msk [vmem:[#allocation6 + $0xe] sm:$0xe] %vm1290, %v2124
      %v2127 = vlaneseq
      %v2128 = vshrl.u32 %v2127, 7
      %v2129 = vsub.s32 0, %v2128
      %v2130 = vrot.slane %v908, %v2129
      %v2131 = vlaneseq
      %v2132 = vshrl.u32 %v2131, 7
      %v2133 = vsub.s32 0, %v2132
      %v2134 = vrot.slane %v944, %v2133
      %v2135 = vlaneseq
      %v2136 = vshrl.u32 %v2135, 7
      %v2137 = vsub.s32 0, %v2136
      %v2138 = vrot.slane %v986, %v2137
      %v2139 = vsel %vm1247, %v2134, %v2130
      %v2140 = vsel %vm1249, %v2138, %v2139
      %2142 = vst.msk [vmem:[#allocation6 + $0x12] sm:$0x7] %vm1252, %v2140
      %v2143 = vlaneseq
      %v2144 = vshrl.u32 %v2143, 7
      %v2145 = vsub.s32 0, %v2144
      %v2146 = vrot.slane %v1140, %v2145
      %v2147 = vlaneseq
      %v2148 = vshrl.u32 %v2147, 7
      %v2149 = vsub.s32 0, %v2148
      %v2150 = vrot.slane %v1176, %v2149
      %v2151 = vlaneseq
      %v2152 = vshrl.u32 %v2151, 7
      %v2153 = vsub.s32 0, %v2152
      %v2154 = vrot.slane %v1218, %v2153
      %v2155 = vsel %vm1247, %v2150, %v2146
      %v2156 = vsel %vm1249, %v2154, %v2155
      %2158 = vst.msk [vmem:[#allocation6 + $0x15] sm:$0x7] %vm1252, %v2156
      %2159 = vrot.lane.b32.xlu0 %v2140, 127
      %v2160 = vpop.permute.xlu0 %2159
      %2162 = vst.msk [vmem:[#allocation6 + $0x18] sm:$0x7] %vm1252, %v2160
      %v2163 = vld [vmem:[#allocation6] sm:$0xff]
      %v2164 = vld [vmem:[#allocation6 + $0x8] sm:$0xff]
      %v2165 = vld [vmem:[#allocation6 + $0x10] sm:$0xff]
      %v2166 = vld [vmem:[#allocation6 + $0x18] sm:$0x7]
      %v2167 = vpack.c.bf16 %v2164, %v2163
      %v2168 = vpack.c.bf16 %v2166, %v2165
      %v2170 = vand.u32 %v2168, %v1394
      %2172 = vmatprep.subr.bf16.mxu0 0
      %2173 = vmatpush1.bf16.msra.mxu0 %v2167
      %2174 = vmatprep.subr.bf16.mxu0 0
      %2175 = vmatpush1.bf16.msra.mxu0 %v2170
      %2176 = vmatprep.subr.bf16.mxu0 0
      %2177 = vmatpush1.bf16.msra.mxu0 0
      %2178 = vmatprep.subr.bf16.mxu0 0
      %2179 = vmatpush1.bf16.msra.mxu0 0
      %2180 = vmatprep.subr.bf16.mxu0 0
      %2181 = vmatpush1.bf16.msra.mxu0 0
      %2182 = vmatprep.subr.bf16.mxu0 0
      %2183 = vmatpush1.bf16.msra.mxu0 0
      %2184 = vmatprep.subr.bf16.mxu0 0
      %2185 = vmatpush1.bf16.msra.mxu0 0
      %2186 = vmatprep.subr.bf16.mxu0 0
      %2187 = vmatpush1.bf16.msra.mxu0 0
      %2188 = vmatprep.subr.bf16.mxu0 0
      %2189 = vmatpush1.bf16.msra.mxu0 0
      %2190 = vmatprep.subr.bf16.mxu0 0
      %2191 = vmatpush1.bf16.msra.mxu0 0
      %2192 = vmatprep.subr.bf16.mxu0 0
      %2193 = vmatpush1.bf16.msra.mxu0 0
      %2194 = vmatprep.subr.bf16.mxu0 0
      %2195 = vmatpush1.bf16.msra.mxu0 0
      %2196 = vmatprep.subr.bf16.mxu0 0
      %2197 = vmatpush1.bf16.msra.mxu0 0
      %2198 = vmatprep.subr.bf16.mxu0 0
      %2199 = vmatpush1.bf16.msra.mxu0 0
      %2200 = vmatprep.subr.bf16.mxu0 0
      %2201 = vmatpush1.bf16.msra.mxu0 0
      %2202 = vmatprep.subr.bf16.mxu0 0
      %2203 = vmatpush1.bf16.msra.mxu0 0
      %2204 = vmatprep.mubr.bf16.mxu0 0
      %2205 = vmatmul.mubr.bf16.gmra.mrb[0].mxu0 %v1386
      %v2206 = vpop.f32.mrb[0].mxu0
      %v2207 = vadd.f32 %v1357, %v2206
      %v2208 = vpop.f32.mrb[0].mxu0
      %v2209 = vpop.f32.mrb[0].mxu0
      %v2210 = vadd.f32 %v1362, %v2209
      %v2211 = vpop.f32.mrb[0].mxu0
      %2212 = vmatprep.mubr.bf16.mxu0 0
      %2213 = vmatmul.mubr.bf16.gmra.mrb[0].mxu0 %v1389
      %v2214 = vpop.f32.mrb[0].mxu0
      %v2215 = vadd.f32 %v1367, %v2214
      %v2216 = vpop.f32.mrb[0].mxu0
      %v2217 = vpop.f32.mrb[0].mxu0
      %v2218 = vadd.f32 %v1372, %v2217
      %v2219 = vpop.f32.mrb[0].mxu0
      %2220 = vdwg.mxu0
      %v2221 = vmax.f32 %v2207, 0.0
      %v2222 = vmax.f32 %v2210, 0.0
      %v2223 = vmax.f32 %v2215, 0.0
      %v2224 = vmax.f32 %v2218, 0.0
      %2229 = vrot.lane.b32.xlu0 %v2221, 40
      %v2230 = vpop.permute.xlu0 %2229
      %2231 = vrot.lane.b32.xlu0 %v2222, 40
      %v2232 = vpop.permute.xlu0 %2231
      %2233 = vrot.lane.b32.xlu0 %v2223, 40
      %v2234 = vpop.permute.xlu0 %2233
      %2235 = vrot.lane.b32.xlu0 %v2224, 40
      %v2236 = vpop.permute.xlu0 %2235
      %vm2241 = vcmask 392512
      %2242 = vst.msk [vmem:[#allocation3] sm:$0xff] %vm2241, %v2230
      %2243 = vst.msk [vmem:[#allocation3 + $0x8] sm:$0xff] %vm2241, %v2232
      %2244 = vst.msk [vmem:[#allocation3 + $0x10] sm:$0xff] %vm2241, %v2234
      %2245 = vst.msk [vmem:[#allocation3 + $0x18] sm:$0xff] %vm2241, %v2236
      %2246 = vst.msk [vmem:[#allocation6] sm:$0x7] %vm1252, %v2140
      %2247 = vst.msk [vmem:[#allocation6 + $0x3] sm:$0x7] %vm1252, %v2156
      %2248 = vst.msk [vmem:[#allocation6 + $0x6] sm:$0x7] %vm1252, %v2160
      %v2249 = vlaneseq
      %v2250 = vshrl.u32 %v2249, 7
      %v2251 = vsub.s32 1, %v2250
      %v2252 = vrot.slane %v908, %v2251
      %v2253 = vlaneseq
      %v2254 = vshrl.u32 %v2253, 7
      %v2255 = vsub.s32 1, %v2254
      %v2256 = vrot.slane %v944, %v2255
      %v2257 = vlaneseq
      %v2258 = vshrl.u32 %v2257, 7
      %v2259 = vsub.s32 1, %v2258
      %v2260 = vrot.slane %v986, %v2259
      %v2261 = vsel %vm1249, %v2256, %v2252
      %v2262 = vsel %vm1287, %v2260, %v2261
      %2264 = vst.msk [vmem:[#allocation6 + $0x8] sm:$0xe] %vm1290, %v2262
      %v2265 = vlaneseq
      %v2266 = vshrl.u32 %v2265, 7
      %v2267 = vsub.s32 1, %v2266
      %v2268 = vrot.slane %v1140, %v2267
      %v2269 = vlaneseq
      %v2270 = vshrl.u32 %v2269, 7
      %v2271 = vsub.s32 1, %v2270
      %v2272 = vrot.slane %v1176, %v2271
      %v2273 = vlaneseq
      %v2274 = vshrl.u32 %v2273, 7
      %v2275 = vsub.s32 1, %v2274
      %v2276 = vrot.slane %v1218, %v2275
      %v2277 = vsel %vm1249, %v2272, %v2268
      %v2278 = vsel %vm1287, %v2276, %v2277
      %2280 = vst.msk [vmem:[#allocation6 + $0xb] sm:$0xe] %vm1290, %v2278
      %2281 = vrot.lane.b32.xlu0 %v2262, 127
      %v2282 = vpop.permute.xlu0 %2281
      %2284 = vst.msk [vmem:[#allocation6 + $0xe] sm:$0xe] %vm1290, %v2282
      %v2285 = vlaneseq
      %v2286 = vshrl.u32 %v2285, 7
      %v2287 = vsub.s32 0, %v2286
      %v2288 = vrot.slane %v910, %v2287
      %v2289 = vlaneseq
      %v2290 = vshrl.u32 %v2289, 7
      %v2291 = vsub.s32 0, %v2290
      %v2292 = vrot.slane %v952, %v2291
      %v2293 = vlaneseq
      %v2294 = vshrl.u32 %v2293, 7
      %v2295 = vsub.s32 0, %v2294
      %v2296 = vrot.slane %v994, %v2295
      %v2297 = vsel %vm1247, %v2292, %v2288
      %v2298 = vsel %vm1249, %v2296, %v2297
      %2300 = vst.msk [vmem:[#allocation6 + $0x12] sm:$0x7] %vm1252, %v2298
      %v2301 = vlaneseq
      %v2302 = vshrl.u32 %v2301, 7
      %v2303 = vsub.s32 0, %v2302
      %v2304 = vrot.slane %v1142, %v2303
      %v2305 = vlaneseq
      %v2306 = vshrl.u32 %v2305, 7
      %v2307 = vsub.s32 0, %v2306
      %v2308 = vrot.slane %v1184, %v2307
      %v2309 = vlaneseq
      %v2310 = vshrl.u32 %v2309, 7
      %v2311 = vsub.s32 0, %v2310
      %v2312 = vrot.slane %v1226, %v2311
      %v2313 = vsel %vm1247, %v2308, %v2304
      %v2314 = vsel %vm1249, %v2312, %v2313
      %2316 = vst.msk [vmem:[#allocation6 + $0x15] sm:$0x7] %vm1252, %v2314
      %2317 = vrot.lane.b32.xlu0 %v2298, 127
      %v2318 = vpop.permute.xlu0 %2317
      %2320 = vst.msk [vmem:[#allocation6 + $0x18] sm:$0x7] %vm1252, %v2318
      %v2321 = vld [vmem:[#allocation6] sm:$0xff]
      %v2322 = vld [vmem:[#allocation6 + $0x8] sm:$0xff]
      %v2323 = vld [vmem:[#allocation6 + $0x10] sm:$0xff]
      %v2324 = vld [vmem:[#allocation6 + $0x18] sm:$0x7]
      %v2325 = vpack.c.bf16 %v2322, %v2321
      %v2326 = vpack.c.bf16 %v2324, %v2323
      %v2328 = vand.u32 %v2326, %v1394
      %2330 = vmatprep.subr.bf16.mxu0 0
      %2331 = vmatpush1.bf16.msra.mxu0 %v2325
      %2332 = vmatprep.subr.bf16.mxu0 0
      %2333 = vmatpush1.bf16.msra.mxu0 %v2328
      %2334 = vmatprep.subr.bf16.mxu0 0
      %2335 = vmatpush1.bf16.msra.mxu0 0
      %2336 = vmatprep.subr.bf16.mxu0 0
      %2337 = vmatpush1.bf16.msra.mxu0 0
      %2338 = vmatprep.subr.bf16.mxu0 0
      %2339 = vmatpush1.bf16.msra.mxu0 0
      %2340 = vmatprep.subr.bf16.mxu0 0
      %2341 = vmatpush1.bf16.msra.mxu0 0
      %2342 = vmatprep.subr.bf16.mxu0 0
      %2343 = vmatpush1.bf16.msra.mxu0 0
      %2344 = vmatprep.subr.bf16.mxu0 0
      %2345 = vmatpush1.bf16.msra.mxu0 0
      %2346 = vmatprep.subr.bf16.mxu0 0
      %2347 = vmatpush1.bf16.msra.mxu0 0
      %2348 = vmatprep.subr.bf16.mxu0 0
      %2349 = vmatpush1.bf16.msra.mxu0 0
      %2350 = vmatprep.subr.bf16.mxu0 0
      %2351 = vmatpush1.bf16.msra.mxu0 0
      %2352 = vmatprep.subr.bf16.mxu0 0
      %2353 = vmatpush1.bf16.msra.mxu0 0
      %2354 = vmatprep.subr.bf16.mxu0 0
      %2355 = vmatpush1.bf16.msra.mxu0 0
      %2356 = vmatprep.subr.bf16.mxu0 0
      %2357 = vmatpush1.bf16.msra.mxu0 0
      %2358 = vmatprep.subr.bf16.mxu0 0
      %2359 = vmatpush1.bf16.msra.mxu0 0
      %2360 = vmatprep.subr.bf16.mxu0 0
      %2361 = vmatpush1.bf16.msra.mxu0 0
      %2362 = vmatprep.mubr.bf16.mxu0 0
      %2363 = vmatmul.mubr.bf16.gmra.mrb[0].mxu0 %v1386
      %v2364 = vpop.f32.mrb[0].mxu0
      %v2365 = vadd.f32 %v1357, %v2364
      %v2366 = vpop.f32.mrb[0].mxu0
      %v2367 = vpop.f32.mrb[0].mxu0
      %v2368 = vadd.f32 %v1362, %v2367
      %v2369 = vpop.f32.mrb[0].mxu0
      %2370 = vmatprep.mubr.bf16.mxu0 0
      %2371 = vmatmul.mubr.bf16.gmra.mrb[0].mxu0 %v1389
      %v2372 = vpop.f32.mrb[0].mxu0
      %v2373 = vadd.f32 %v1367, %v2372
      %v2374 = vpop.f32.mrb[0].mxu0
      %v2375 = vpop.f32.mrb[0].mxu0
      %v2376 = vadd.f32 %v1372, %v2375
      %v2377 = vpop.f32.mrb[0].mxu0
      %2378 = vdwg.mxu0
      %v2379 = vmax.f32 %v2365, 0.0
      %v2380 = vmax.f32 %v2368, 0.0
      %v2381 = vmax.f32 %v2373, 0.0
      %v2382 = vmax.f32 %v2376, 0.0
      %2387 = vrot.lane.b32.xlu0 %v2379, 48
      %v2388 = vpop.permute.xlu0 %2387
      %2389 = vrot.lane.b32.xlu0 %v2380, 48
      %v2390 = vpop.permute.xlu0 %2389
      %2391 = vrot.lane.b32.xlu0 %v2381, 48
      %v2392 = vpop.permute.xlu0 %2391
      %2393 = vrot.lane.b32.xlu0 %v2382, 48
      %v2394 = vpop.permute.xlu0 %2393
      %vm2399 = vcmask 458112
      %2400 = vst.msk [vmem:[#allocation3] sm:$0xff] %vm2399, %v2388
      %2401 = vst.msk [vmem:[#allocation3 + $0x8] sm:$0xff] %vm2399, %v2390
      %2402 = vst.msk [vmem:[#allocation3 + $0x10] sm:$0xff] %vm2399, %v2392
      %2403 = vst.msk [vmem:[#allocation3 + $0x18] sm:$0xff] %vm2399, %v2394
      %2404 = vst.msk [vmem:[#allocation6] sm:$0x7] %vm1252, %v2298
      %2405 = vst.msk [vmem:[#allocation6 + $0x3] sm:$0x7] %vm1252, %v2314
      %2406 = vst.msk [vmem:[#allocation6 + $0x6] sm:$0x7] %vm1252, %v2318
      %v2407 = vlaneseq
      %v2408 = vshrl.u32 %v2407, 7
      %v2409 = vsub.s32 1, %v2408
      %v2410 = vrot.slane %v910, %v2409
      %v2411 = vlaneseq
      %v2412 = vshrl.u32 %v2411, 7
      %v2413 = vsub.s32 1, %v2412
      %v2414 = vrot.slane %v952, %v2413
      %v2415 = vlaneseq
      %v2416 = vshrl.u32 %v2415, 7
      %v2417 = vsub.s32 1, %v2416
      %v2418 = vrot.slane %v994, %v2417
      %v2419 = vsel %vm1249, %v2414, %v2410
      %v2420 = vsel %vm1287, %v2418, %v2419
      %2422 = vst.msk [vmem:[#allocation6 + $0x8] sm:$0xe] %vm1290, %v2420
      %v2423 = vlaneseq
      %v2424 = vshrl.u32 %v2423, 7
      %v2425 = vsub.s32 1, %v2424
      %v2426 = vrot.slane %v1142, %v2425
      %v2427 = vlaneseq
      %v2428 = vshrl.u32 %v2427, 7
      %v2429 = vsub.s32 1, %v2428
      %v2430 = vrot.slane %v1184, %v2429
      %v2431 = vlaneseq
      %v2432 = vshrl.u32 %v2431, 7
      %v2433 = vsub.s32 1, %v2432
      %v2434 = vrot.slane %v1226, %v2433
      %v2435 = vsel %vm1249, %v2430, %v2426
      %v2436 = vsel %vm1287, %v2434, %v2435
      %2438 = vst.msk [vmem:[#allocation6 + $0xb] sm:$0xe] %vm1290, %v2436
      %2439 = vrot.lane.b32.xlu0 %v2420, 127
      %v2440 = vpop.permute.xlu0 %2439
      %2442 = vst.msk [vmem:[#allocation6 + $0xe] sm:$0xe] %vm1290, %v2440
      %v2443 = vlaneseq
      %v2444 = vshrl.u32 %v2443, 7
      %v2445 = vsub.s32 0, %v2444
      %v2446 = vrot.slane %v918, %v2445
      %v2447 = vlaneseq
      %v2448 = vshrl.u32 %v2447, 7
      %v2449 = vsub.s32 0, %v2448
      %v2450 = vrot.slane %v960, %v2449
      %v2451 = vlaneseq
      %v2452 = vshrl.u32 %v2451, 7
      %v2453 = vsub.s32 0, %v2452
      %v2454 = vrot.slane %v993, %v2453
      %v2455 = vsel %vm1247, %v2450, %v2446
      %v2456 = vsel %vm1249, %v2454, %v2455
      %2458 = vst.msk [vmem:[#allocation6 + $0x12] sm:$0x7] %vm1252, %v2456
      %v2459 = vlaneseq
      %v2460 = vshrl.u32 %v2459, 7
      %v2461 = vsub.s32 0, %v2460
      %v2462 = vrot.slane %v1150, %v2461
      %v2463 = vlaneseq
      %v2464 = vshrl.u32 %v2463, 7
      %v2465 = vsub.s32 0, %v2464
      %v2466 = vrot.slane %v1192, %v2465
      %v2467 = vlaneseq
      %v2468 = vshrl.u32 %v2467, 7
      %v2469 = vsub.s32 0, %v2468
      %v2470 = vrot.slane %v1225, %v2469
      %v2471 = vsel %vm1247, %v2466, %v2462
      %v2472 = vsel %vm1249, %v2470, %v2471
      %2474 = vst.msk [vmem:[#allocation6 + $0x15] sm:$0x7] %vm1252, %v2472
      %2475 = vrot.lane.b32.xlu0 %v2456, 127
      %v2476 = vpop.permute.xlu0 %2475
      %2478 = vst.msk [vmem:[#allocation6 + $0x18] sm:$0x7] %vm1252, %v2476
      %v2479 = vld [vmem:[#allocation6] sm:$0xff]
      %v2480 = vld [vmem:[#allocation6 + $0x8] sm:$0xff]
      %v2481 = vld [vmem:[#allocation6 + $0x10] sm:$0xff]
      %v2482 = vld [vmem:[#allocation6 + $0x18] sm:$0x7]
      %v2483 = vpack.c.bf16 %v2480, %v2479
      %v2484 = vpack.c.bf16 %v2482, %v2481
      %v2486 = vand.u32 %v2484, %v1394
      %2488 = vmatprep.subr.bf16.mxu0 0
      %2489 = vmatpush1.bf16.msra.mxu0 %v2483
      %2490 = vmatprep.subr.bf16.mxu0 0
      %2491 = vmatpush1.bf16.msra.mxu0 %v2486
      %2492 = vmatprep.subr.bf16.mxu0 0
      %2493 = vmatpush1.bf16.msra.mxu0 0
      %2494 = vmatprep.subr.bf16.mxu0 0
      %2495 = vmatpush1.bf16.msra.mxu0 0
      %2496 = vmatprep.subr.bf16.mxu0 0
      %2497 = vmatpush1.bf16.msra.mxu0 0
      %2498 = vmatprep.subr.bf16.mxu0 0
      %2499 = vmatpush1.bf16.msra.mxu0 0
      %2500 = vmatprep.subr.bf16.mxu0 0
      %2501 = vmatpush1.bf16.msra.mxu0 0
      %2502 = vmatprep.subr.bf16.mxu0 0
      %2503 = vmatpush1.bf16.msra.mxu0 0
      %2504 = vmatprep.subr.bf16.mxu0 0
      %2505 = vmatpush1.bf16.msra.mxu0 0
      %2506 = vmatprep.subr.bf16.mxu0 0
      %2507 = vmatpush1.bf16.msra.mxu0 0
      %2508 = vmatprep.subr.bf16.mxu0 0
      %2509 = vmatpush1.bf16.msra.mxu0 0
      %2510 = vmatprep.subr.bf16.mxu0 0
      %2511 = vmatpush1.bf16.msra.mxu0 0
      %2512 = vmatprep.subr.bf16.mxu0 0
      %2513 = vmatpush1.bf16.msra.mxu0 0
      %2514 = vmatprep.subr.bf16.mxu0 0
      %2515 = vmatpush1.bf16.msra.mxu0 0
      %2516 = vmatprep.subr.bf16.mxu0 0
      %2517 = vmatpush1.bf16.msra.mxu0 0
      %2518 = vmatprep.subr.bf16.mxu0 0
      %2519 = vmatpush1.bf16.msra.mxu0 0
      %2520 = vmatprep.mubr.bf16.mxu0 0
      %2521 = vmatmul.mubr.bf16.gmra.mrb[0].mxu0 %v1386
      %v2522 = vpop.f32.mrb[0].mxu0
      %v2523 = vadd.f32 %v1357, %v2522
      %v2524 = vpop.f32.mrb[0].mxu0
      %v2525 = vpop.f32.mrb[0].mxu0
      %v2526 = vadd.f32 %v1362, %v2525
      %v2527 = vpop.f32.mrb[0].mxu0
      %2528 = vmatprep.mubr.bf16.mxu0 0
      %2529 = vmatmul.mubr.bf16.gmra.mrb[0].mxu0 %v1389
      %v2530 = vpop.f32.mrb[0].mxu0
      %v2531 = vadd.f32 %v1367, %v2530
      %v2532 = vpop.f32.mrb[0].mxu0
      %v2533 = vpop.f32.mrb[0].mxu0
      %v2534 = vadd.f32 %v1372, %v2533
      %v2535 = vpop.f32.mrb[0].mxu0
      %2536 = vdwg.mxu0
      %v2537 = vmax.f32 %v2523, 0.0
      %v2538 = vmax.f32 %v2526, 0.0
      %v2539 = vmax.f32 %v2531, 0.0
      %v2540 = vmax.f32 %v2534, 0.0
      %2545 = vrot.lane.b32.xlu0 %v2537, 56
      %v2546 = vpop.permute.xlu0 %2545
      %2547 = vrot.lane.b32.xlu0 %v2538, 56
      %v2548 = vpop.permute.xlu0 %2547
      %2549 = vrot.lane.b32.xlu0 %v2539, 56
      %v2550 = vpop.permute.xlu0 %2549
      %2551 = vrot.lane.b32.xlu0 %v2540, 56
      %v2552 = vpop.permute.xlu0 %2551
      %vm2557 = vcmask 523712
      %2558 = vst.msk [vmem:[#allocation3] sm:$0xff] %vm2557, %v2546
      %2559 = vst.msk [vmem:[#allocation3 + $0x8] sm:$0xff] %vm2557, %v2548
      %2560 = vst.msk [vmem:[#allocation3 + $0x10] sm:$0xff] %vm2557, %v2550
      %2561 = vst.msk [vmem:[#allocation3 + $0x18] sm:$0xff] %vm2557, %v2552
      %v2562 = vld [vmem:[#allocation3] sm:$0xff]
      %v2563 = vld [vmem:[#allocation3 + $0x8] sm:$0xff]
      %v2564 = vld [vmem:[#allocation3 + $0x10] sm:$0xff]
      %v2565 = vld [vmem:[#allocation3 + $0x18] sm:$0xff]
      %v2566 = vld [vmem:[%s3] sm:$0xff]
      %v2567 = vld [vmem:[%s3 + $0x8] sm:$0xff]
      %v2568 = vld [vmem:[%s3 + $0x10] sm:$0xff]
      %v2569 = vld [vmem:[%s3 + $0x18] sm:$0xff]
      %v2570 = vld [vmem:[%s3 + $0x20] sm:$0xff]
      %v2571 = vld [vmem:[%s3 + $0x28] sm:$0xff]
      %v2572 = vld [vmem:[%s3 + $0x30] sm:$0xff]
      %v2573 = vld [vmem:[%s3 + $0x38] sm:$0xff]
      %vm2574 = vcmask 523264
      %v2576 = vsel %vm2574, %v2562, 0
      %v2579 = vsel %vm2574, %v2563, 0
      %v2582 = vsel %vm2574, %v2564, 0
      %v2585 = vsel %vm2574, %v2565, 0
      %2587 = vmatprep.subr.mxu0 0.0
      %2588 = vmatpush1.msra.mxu0 %v2566
      %2589 = vmatprep.subr.mxu0 0.0
      %2590 = vmatpush1.msra.mxu0 %v2567
      %2591 = vmatprep.subr.mxu0 0.0
      %2592 = vmatpush1.msra.mxu0 %v2568
      %2593 = vmatprep.subr.mxu0 0.0
      %2594 = vmatpush1.msra.mxu0 %v2569
      %2595 = vmatprep.subr.mxu0 0.0
      %2596 = vmatpush1.msra.mxu0 %v2570
      %2597 = vmatprep.subr.mxu0 0.0
      %2598 = vmatpush1.msra.mxu0 %v2571
      %2599 = vmatprep.subr.mxu0 0.0
      %2600 = vmatpush1.msra.mxu0 %v2572
      %2601 = vmatprep.subr.mxu0 0.0
      %2602 = vmatpush1.msra.mxu0 %v2573
      %2603 = vmatprep.subr.mxu0 0.0
      %2604 = vmatpush1.msra.mxu0 0.0
      %2605 = vmatprep.subr.mxu0 0.0
      %2606 = vmatpush1.msra.mxu0 0.0
      %2607 = vmatprep.subr.mxu0 0.0
      %2608 = vmatpush1.msra.mxu0 0.0
      %2609 = vmatprep.subr.mxu0 0.0
      %2610 = vmatpush1.msra.mxu0 0.0
      %2611 = vmatprep.subr.mxu0 0.0
      %2612 = vmatpush1.msra.mxu0 0.0
      %2613 = vmatprep.subr.mxu0 0.0
      %2614 = vmatpush1.msra.mxu0 0.0
      %2615 = vmatprep.subr.mxu0 0.0
      %2616 = vmatpush1.msra.mxu0 0.0
      %2617 = vmatprep.subr.mxu0 0.0
      %2618 = vmatpush1.msra.mxu0 0.0
      %2619 = vmatprep.subr.mxu0 0.0
      %2620 = vmatpush1.msra.mxu0 0.0
      %2621 = vmatprep.subr.mxu0 0.0
      %2622 = vmatpush1.msra.mxu0 0.0
      %2623 = vmatprep.subr.mxu0 0.0
      %2624 = vmatpush1.msra.mxu0 0.0
      %2625 = vmatprep.subr.mxu0 0.0
      %2626 = vmatpush1.msra.mxu0 0.0
      %2627 = vmatprep.subr.mxu0 0.0
      %2628 = vmatpush1.msra.mxu0 0.0
      %2629 = vmatprep.subr.mxu0 0.0
      %2630 = vmatpush1.msra.mxu0 0.0
      %2631 = vmatprep.subr.mxu0 0.0
      %2632 = vmatpush1.msra.mxu0 0.0
      %2633 = vmatprep.subr.mxu0 0.0
      %2634 = vmatpush1.msra.mxu0 0.0
      %2635 = vmatprep.subr.mxu0 0.0
      %2636 = vmatpush1.msra.mxu0 0.0
      %2637 = vmatprep.subr.mxu0 0.0
      %2638 = vmatpush1.msra.mxu0 0.0
      %2639 = vmatprep.subr.mxu0 0.0
      %2640 = vmatpush1.msra.mxu0 0.0
      %2641 = vmatprep.subr.mxu0 0.0
      %2642 = vmatpush1.msra.mxu0 0.0
      %2643 = vmatprep.subr.mxu0 0.0
      %2644 = vmatpush1.msra.mxu0 0.0
      %2645 = vmatprep.subr.mxu0 0.0
      %2646 = vmatpush1.msra.mxu0 0.0
      %2647 = vmatprep.subr.mxu0 0.0
      %2648 = vmatpush1.msra.mxu0 0.0
      %2649 = vmatprep.subr.mxu0 0.0
      %2650 = vmatpush1.msra.mxu0 0.0
      %2651 = vmatprep.mubr.f32.mxu0 0.0
      %2652 = vmatmul.mubr.f32.gmra.mrb[0].mxu0 %v2576
      %v2653 = vpop.f32.mrb[0].mxu0
      %v2654 = vadd.f32 0.0, %v2653
      %v2655 = vpop.f32.mrb[0].mxu0
      %2656 = vmatprep.mubr.f32.mxu0 0.0
      %2657 = vmatmul.mubr.f32.gmra.mrb[0].mxu0 %v2579
      %v2658 = vpop.f32.mrb[0].mxu0
      %v2659 = vadd.f32 0.0, %v2658
      %v2660 = vpop.f32.mrb[0].mxu0
      %2661 = vmatprep.mubr.f32.mxu0 0.0
      %2662 = vmatmul.mubr.f32.gmra.mrb[0].mxu0 %v2582
      %v2663 = vpop.f32.mrb[0].mxu0
      %v2664 = vadd.f32 0.0, %v2663
      %v2665 = vpop.f32.mrb[0].mxu0
      %2666 = vmatprep.mubr.f32.mxu0 0.0
      %2667 = vmatmul.mubr.f32.gmra.mrb[0].mxu0 %v2585
      %v2668 = vpop.f32.mrb[0].mxu0
      %v2669 = vadd.f32 0.0, %v2668
      %v2670 = vpop.f32.mrb[0].mxu0
      %2671 = vdwg.mxu0
      %s2672 = scalar_lea.vmem %s3, 64
      %v2673 = vld [vmem:[%s2672] sm:$0xff]
      %v2674 = vld [vmem:[%s2672 + $0x8] sm:$0xff]
      %v2675 = vld [vmem:[%s2672 + $0x10] sm:$0xff]
      %v2676 = vld [vmem:[%s2672 + $0x18] sm:$0xff]
      %v2677 = vld [vmem:[%s2672 + $0x20] sm:$0xff]
      %v2678 = vld [vmem:[%s2672 + $0x28] sm:$0xff]
      %v2679 = vld [vmem:[%s2672 + $0x30] sm:$0xff]
      %v2680 = vld [vmem:[%s2672 + $0x38] sm:$0xff]
      %2681 = vmatprep.subr.mxu0 0.0
      %2682 = vmatpush1.msra.mxu0 %v2673
      %2683 = vmatprep.subr.mxu0 0.0
      %2684 = vmatpush1.msra.mxu0 %v2674
      %2685 = vmatprep.subr.mxu0 0.0
      %2686 = vmatpush1.msra.mxu0 %v2675
      %2687 = vmatprep.subr.mxu0 0.0
      %2688 = vmatpush1.msra.mxu0 %v2676
      %2689 = vmatprep.subr.mxu0 0.0
      %2690 = vmatpush1.msra.mxu0 %v2677
      %2691 = vmatprep.subr.mxu0 0.0
      %2692 = vmatpush1.msra.mxu0 %v2678
      %2693 = vmatprep.subr.mxu0 0.0
      %2694 = vmatpush1.msra.mxu0 %v2679
      %2695 = vmatprep.subr.mxu0 0.0
      %2696 = vmatpush1.msra.mxu0 %v2680
      %2697 = vmatprep.subr.mxu0 0.0
      %2698 = vmatpush1.msra.mxu0 0.0
      %2699 = vmatprep.subr.mxu0 0.0
      %2700 = vmatpush1.msra.mxu0 0.0
      %2701 = vmatprep.subr.mxu0 0.0
      %2702 = vmatpush1.msra.mxu0 0.0
      %2703 = vmatprep.subr.mxu0 0.0
      %2704 = vmatpush1.msra.mxu0 0.0
      %2705 = vmatprep.subr.mxu0 0.0
      %2706 = vmatpush1.msra.mxu0 0.0
      %2707 = vmatprep.subr.mxu0 0.0
      %2708 = vmatpush1.msra.mxu0 0.0
      %2709 = vmatprep.subr.mxu0 0.0
      %2710 = vmatpush1.msra.mxu0 0.0
      %2711 = vmatprep.subr.mxu0 0.0
      %2712 = vmatpush1.msra.mxu0 0.0
      %2713 = vmatprep.subr.mxu0 0.0
      %2714 = vmatpush1.msra.mxu0 0.0
      %2715 = vmatprep.subr.mxu0 0.0
      %2716 = vmatpush1.msra.mxu0 0.0
      %2717 = vmatprep.subr.mxu0 0.0
      %2718 = vmatpush1.msra.mxu0 0.0
      %2719 = vmatprep.subr.mxu0 0.0
      %2720 = vmatpush1.msra.mxu0 0.0
      %2721 = vmatprep.subr.mxu0 0.0
      %2722 = vmatpush1.msra.mxu0 0.0
      %2723 = vmatprep.subr.mxu0 0.0
      %2724 = vmatpush1.msra.mxu0 0.0
      %2725 = vmatprep.subr.mxu0 0.0
      %2726 = vmatpush1.msra.mxu0 0.0
      %2727 = vmatprep.subr.mxu0 0.0
      %2728 = vmatpush1.msra.mxu0 0.0
      %2729 = vmatprep.subr.mxu0 0.0
      %2730 = vmatpush1.msra.mxu0 0.0
      %2731 = vmatprep.subr.mxu0 0.0
      %2732 = vmatpush1.msra.mxu0 0.0
      %2733 = vmatprep.subr.mxu0 0.0
      %2734 = vmatpush1.msra.mxu0 0.0
      %2735 = vmatprep.subr.mxu0 0.0
      %2736 = vmatpush1.msra.mxu0 0.0
      %2737 = vmatprep.subr.mxu0 0.0
      %2738 = vmatpush1.msra.mxu0 0.0
      %2739 = vmatprep.subr.mxu0 0.0
      %2740 = vmatpush1.msra.mxu0 0.0
      %2741 = vmatprep.subr.mxu0 0.0
      %2742 = vmatpush1.msra.mxu0 0.0
      %2743 = vmatprep.subr.mxu0 0.0
      %2744 = vmatpush1.msra.mxu0 0.0
      %2745 = vmatprep.mubr.f32.mxu0 0.0
      %2746 = vmatmul.mubr.f32.gmra.mrb[0].mxu0 %v2576
      %v2747 = vpop.f32.mrb[0].mxu0
      %v2748 = vadd.f32 0.0, %v2747
      %v2749 = vpop.f32.mrb[0].mxu0
      %2750 = vmatprep.mubr.f32.mxu0 0.0
      %2751 = vmatmul.mubr.f32.gmra.mrb[0].mxu0 %v2579
      %v2752 = vpop.f32.mrb[0].mxu0
      %v2753 = vadd.f32 0.0, %v2752
      %v2754 = vpop.f32.mrb[0].mxu0
      %2755 = vmatprep.mubr.f32.mxu0 0.0
      %2756 = vmatmul.mubr.f32.gmra.mrb[0].mxu0 %v2582
      %v2757 = vpop.f32.mrb[0].mxu0
      %v2758 = vadd.f32 0.0, %v2757
      %v2759 = vpop.f32.mrb[0].mxu0
      %2760 = vmatprep.mubr.f32.mxu0 0.0
      %2761 = vmatmul.mubr.f32.gmra.mrb[0].mxu0 %v2585
      %v2762 = vpop.f32.mrb[0].mxu0
      %v2763 = vadd.f32 0.0, %v2762
      %v2764 = vpop.f32.mrb[0].mxu0
      %2765 = vdwg.mxu0
      %v2766 = vmax.f32 %v2654, %v2748
      %v2767 = vmax.f32 %v2659, %v2753
      %v2768 = vmax.f32 %v2664, %v2758
      %v2769 = vmax.f32 %v2669, %v2763
      %s2770 = scalar_lea.vmem %s3, 128
      %v2771 = vld [vmem:[%s2770] sm:$0xff]
      %v2772 = vld [vmem:[%s2770 + $0x8] sm:$0xff]
      %v2773 = vld [vmem:[%s2770 + $0x10] sm:$0xff]
      %v2774 = vld [vmem:[%s2770 + $0x18] sm:$0xff]
      %v2775 = vld [vmem:[%s2770 + $0x20] sm:$0xff]
      %v2776 = vld [vmem:[%s2770 + $0x28] sm:$0xff]
      %v2777 = vld [vmem:[%s2770 + $0x30] sm:$0xff]
      %v2778 = vld [vmem:[%s2770 + $0x38] sm:$0xff]
      %2779 = vmatprep.subr.mxu0 0.0
      %2780 = vmatpush1.msra.mxu0 %v2771
      %2781 = vmatprep.subr.mxu0 0.0
      %2782 = vmatpush1.msra.mxu0 %v2772
      %2783 = vmatprep.subr.mxu0 0.0
      %2784 = vmatpush1.msra.mxu0 %v2773
      %2785 = vmatprep.subr.mxu0 0.0
      %2786 = vmatpush1.msra.mxu0 %v2774
      %2787 = vmatprep.subr.mxu0 0.0
      %2788 = vmatpush1.msra.mxu0 %v2775
      %2789 = vmatprep.subr.mxu0 0.0
      %2790 = vmatpush1.msra.mxu0 %v2776
      %2791 = vmatprep.subr.mxu0 0.0
      %2792 = vmatpush1.msra.mxu0 %v2777
      %2793 = vmatprep.subr.mxu0 0.0
      %2794 = vmatpush1.msra.mxu0 %v2778
      %2795 = vmatprep.subr.mxu0 0.0
      %2796 = vmatpush1.msra.mxu0 0.0
      %2797 = vmatprep.subr.mxu0 0.0
      %2798 = vmatpush1.msra.mxu0 0.0
      %2799 = vmatprep.subr.mxu0 0.0
      %2800 = vmatpush1.msra.mxu0 0.0
      %2801 = vmatprep.subr.mxu0 0.0
      %2802 = vmatpush1.msra.mxu0 0.0
      %2803 = vmatprep.subr.mxu0 0.0
      %2804 = vmatpush1.msra.mxu0 0.0
      %2805 = vmatprep.subr.mxu0 0.0
      %2806 = vmatpush1.msra.mxu0 0.0
      %2807 = vmatprep.subr.mxu0 0.0
      %2808 = vmatpush1.msra.mxu0 0.0
      %2809 = vmatprep.subr.mxu0 0.0
      %2810 = vmatpush1.msra.mxu0 0.0
      %2811 = vmatprep.subr.mxu0 0.0
      %2812 = vmatpush1.msra.mxu0 0.0
      %2813 = vmatprep.subr.mxu0 0.0
      %2814 = vmatpush1.msra.mxu0 0.0
      %2815 = vmatprep.subr.mxu0 0.0
      %2816 = vmatpush1.msra.mxu0 0.0
      %2817 = vmatprep.subr.mxu0 0.0
      %2818 = vmatpush1.msra.mxu0 0.0
      %2819 = vmatprep.subr.mxu0 0.0
      %2820 = vmatpush1.msra.mxu0 0.0
      %2821 = vmatprep.subr.mxu0 0.0
      %2822 = vmatpush1.msra.mxu0 0.0
      %2823 = vmatprep.subr.mxu0 0.0
      %2824 = vmatpush1.msra.mxu0 0.0
      %2825 = vmatprep.subr.mxu0 0.0
      %2826 = vmatpush1.msra.mxu0 0.0
      %2827 = vmatprep.subr.mxu0 0.0
      %2828 = vmatpush1.msra.mxu0 0.0
      %2829 = vmatprep.subr.mxu0 0.0
      %2830 = vmatpush1.msra.mxu0 0.0
      %2831 = vmatprep.subr.mxu0 0.0
      %2832 = vmatpush1.msra.mxu0 0.0
      %2833 = vmatprep.subr.mxu0 0.0
      %2834 = vmatpush1.msra.mxu0 0.0
      %2835 = vmatprep.subr.mxu0 0.0
      %2836 = vmatpush1.msra.mxu0 0.0
      %2837 = vmatprep.subr.mxu0 0.0
      %2838 = vmatpush1.msra.mxu0 0.0
      %2839 = vmatprep.subr.mxu0 0.0
      %2840 = vmatpush1.msra.mxu0 0.0
      %2841 = vmatprep.subr.mxu0 0.0
      %2842 = vmatpush1.msra.mxu0 0.0
      %2843 = vmatprep.mubr.f32.mxu0 0.0
      %2844 = vmatmul.mubr.f32.gmra.mrb[0].mxu0 %v2576
      %v2845 = vpop.f32.mrb[0].mxu0
      %v2846 = vadd.f32 0.0, %v2845
      %v2847 = vpop.f32.mrb[0].mxu0
      %2848 = vmatprep.mubr.f32.mxu0 0.0
      %2849 = vmatmul.mubr.f32.gmra.mrb[0].mxu0 %v2579
      %v2850 = vpop.f32.mrb[0].mxu0
      %v2851 = vadd.f32 0.0, %v2850
      %v2852 = vpop.f32.mrb[0].mxu0
      %2853 = vmatprep.mubr.f32.mxu0 0.0
      %2854 = vmatmul.mubr.f32.gmra.mrb[0].mxu0 %v2582
      %v2855 = vpop.f32.mrb[0].mxu0
      %v2856 = vadd.f32 0.0, %v2855
      %v2857 = vpop.f32.mrb[0].mxu0
      %2858 = vmatprep.mubr.f32.mxu0 0.0
      %2859 = vmatmul.mubr.f32.gmra.mrb[0].mxu0 %v2585
      %v2860 = vpop.f32.mrb[0].mxu0
      %v2861 = vadd.f32 0.0, %v2860
      %v2862 = vpop.f32.mrb[0].mxu0
      %2863 = vdwg.mxu0
      %v2864 = vmax.f32 %v2766, %v2846
      %v2865 = vmax.f32 %v2767, %v2851
      %v2866 = vmax.f32 %v2768, %v2856
      %v2867 = vmax.f32 %v2769, %v2861
      %s2868 = scalar_lea.vmem %s3, 192
      %v2869 = vld [vmem:[%s2868] sm:$0xff]
      %v2870 = vld [vmem:[%s2868 + $0x8] sm:$0xff]
      %v2871 = vld [vmem:[%s2868 + $0x10] sm:$0xff]
      %v2872 = vld [vmem:[%s2868 + $0x18] sm:$0xff]
      %v2873 = vld [vmem:[%s2868 + $0x20] sm:$0xff]
      %v2874 = vld [vmem:[%s2868 + $0x28] sm:$0xff]
      %v2875 = vld [vmem:[%s2868 + $0x30] sm:$0xff]
      %v2876 = vld [vmem:[%s2868 + $0x38] sm:$0xff]
      %2877 = vmatprep.subr.mxu0 0.0
      %2878 = vmatpush1.msra.mxu0 %v2869
      %2879 = vmatprep.subr.mxu0 0.0
      %2880 = vmatpush1.msra.mxu0 %v2870
      %2881 = vmatprep.subr.mxu0 0.0
      %2882 = vmatpush1.msra.mxu0 %v2871
      %2883 = vmatprep.subr.mxu0 0.0
      %2884 = vmatpush1.msra.mxu0 %v2872
      %2885 = vmatprep.subr.mxu0 0.0
      %2886 = vmatpush1.msra.mxu0 %v2873
      %2887 = vmatprep.subr.mxu0 0.0
      %2888 = vmatpush1.msra.mxu0 %v2874
      %2889 = vmatprep.subr.mxu0 0.0
      %2890 = vmatpush1.msra.mxu0 %v2875
      %2891 = vmatprep.subr.mxu0 0.0
      %2892 = vmatpush1.msra.mxu0 %v2876
      %2893 = vmatprep.subr.mxu0 0.0
      %2894 = vmatpush1.msra.mxu0 0.0
      %2895 = vmatprep.subr.mxu0 0.0
      %2896 = vmatpush1.msra.mxu0 0.0
      %2897 = vmatprep.subr.mxu0 0.0
      %2898 = vmatpush1.msra.mxu0 0.0
      %2899 = vmatprep.subr.mxu0 0.0
      %2900 = vmatpush1.msra.mxu0 0.0
      %2901 = vmatprep.subr.mxu0 0.0
      %2902 = vmatpush1.msra.mxu0 0.0
      %2903 = vmatprep.subr.mxu0 0.0
      %2904 = vmatpush1.msra.mxu0 0.0
      %2905 = vmatprep.subr.mxu0 0.0
      %2906 = vmatpush1.msra.mxu0 0.0
      %2907 = vmatprep.subr.mxu0 0.0
      %2908 = vmatpush1.msra.mxu0 0.0
      %2909 = vmatprep.subr.mxu0 0.0
      %2910 = vmatpush1.msra.mxu0 0.0
      %2911 = vmatprep.subr.mxu0 0.0
      %2912 = vmatpush1.msra.mxu0 0.0
      %2913 = vmatprep.subr.mxu0 0.0
      %2914 = vmatpush1.msra.mxu0 0.0
      %2915 = vmatprep.subr.mxu0 0.0
      %2916 = vmatpush1.msra.mxu0 0.0
      %2917 = vmatprep.subr.mxu0 0.0
      %2918 = vmatpush1.msra.mxu0 0.0
      %2919 = vmatprep.subr.mxu0 0.0
      %2920 = vmatpush1.msra.mxu0 0.0
      %2921 = vmatprep.subr.mxu0 0.0
      %2922 = vmatpush1.msra.mxu0 0.0
      %2923 = vmatprep.subr.mxu0 0.0
      %2924 = vmatpush1.msra.mxu0 0.0
      %2925 = vmatprep.subr.mxu0 0.0
      %2926 = vmatpush1.msra.mxu0 0.0
      %2927 = vmatprep.subr.mxu0 0.0
      %2928 = vmatpush1.msra.mxu0 0.0
      %2929 = vmatprep.subr.mxu0 0.0
      %2930 = vmatpush1.msra.mxu0 0.0
      %2931 = vmatprep.subr.mxu0 0.0
      %2932 = vmatpush1.msra.mxu0 0.0
      %2933 = vmatprep.subr.mxu0 0.0
      %2934 = vmatpush1.msra.mxu0 0.0
      %2935 = vmatprep.subr.mxu0 0.0
      %2936 = vmatpush1.msra.mxu0 0.0
      %2937 = vmatprep.subr.mxu0 0.0
      %2938 = vmatpush1.msra.mxu0 0.0
      %2939 = vmatprep.subr.mxu0 0.0
      %2940 = vmatpush1.msra.mxu0 0.0
      %2941 = vmatprep.mubr.f32.mxu0 0.0
      %2942 = vmatmul.mubr.f32.gmra.mrb[0].mxu0 %v2576
      %v2943 = vpop.f32.mrb[0].mxu0
      %v2944 = vadd.f32 0.0, %v2943
      %v2945 = vpop.f32.mrb[0].mxu0
      %2946 = vmatprep.mubr.f32.mxu0 0.0
      %2947 = vmatmul.mubr.f32.gmra.mrb[0].mxu0 %v2579
      %v2948 = vpop.f32.mrb[0].mxu0
      %v2949 = vadd.f32 0.0, %v2948
      %v2950 = vpop.f32.mrb[0].mxu0
      %2951 = vmatprep.mubr.f32.mxu0 0.0
      %2952 = vmatmul.mubr.f32.gmra.mrb[0].mxu0 %v2582
      %v2953 = vpop.f32.mrb[0].mxu0
      %v2954 = vadd.f32 0.0, %v2953
      %v2955 = vpop.f32.mrb[0].mxu0
      %2956 = vmatprep.mubr.f32.mxu0 0.0
      %2957 = vmatmul.mubr.f32.gmra.mrb[0].mxu0 %v2585
      %v2958 = vpop.f32.mrb[0].mxu0
      %v2959 = vadd.f32 0.0, %v2958
      %v2960 = vpop.f32.mrb[0].mxu0
      %2961 = vdwg.mxu0
      %v2962 = vmax.f32 %v2864, %v2944
      %v2963 = vmax.f32 %v2865, %v2949
      %v2964 = vmax.f32 %v2866, %v2954
      %v2965 = vmax.f32 %v2867, %v2959
      %v2966 = vld [vmem:[%s6] sm:$0xf]
      %v2967 = vld [vmem:[%s6 + $0x4] sm:$0xf]
      %v2968 = vpack.c.bf16 %v2563, %v2562
      %v2969 = vpack.c.bf16 %v2565, %v2564
      %v2970 = vld [vmem:[%s7] sm:$0xff]
      %v2971 = vld [vmem:[%s7 + $0x8] sm:$0xff]
      %2973 = vset.pattern.permute.xlu0 0
      %2974 = vperm.xlu0 %2973, %v2970
      %v2975 = vpop.permute.xlu0 %2974
      %2978 = vset.pattern.permute.xlu0 0
      %2979 = vperm.xlu0 %2978, %v2971
      %v2980 = vpop.permute.xlu0 %2979
      %v2984 = vunpack.c.l.b16 %v2966
      %v2985 = vunpack.c.l.b16 %v2967
      %v2986 = vpack.c.b16 %v2985, %v2984
      %vm2987 = vcmask 261120
      %v2989 = vsel %vm2987, %v2986, 0
      %2991 = vmatprep.subr.bf16.mxu0 0
      %2992 = vmatpush1.bf16.msra.mxu0 %v2968
      %2993 = vmatprep.subr.bf16.mxu0 0
      %2994 = vmatpush1.bf16.msra.mxu0 %v2969
      %2995 = vmatprep.subr.bf16.mxu0 0
      %2996 = vmatpush1.bf16.msra.mxu0 0
      %2997 = vmatprep.subr.bf16.mxu0 0
      %2998 = vmatpush1.bf16.msra.mxu0 0
      %2999 = vmatprep.subr.bf16.mxu0 0
      %3000 = vmatpush1.bf16.msra.mxu0 0
      %3001 = vmatprep.subr.bf16.mxu0 0
      %3002 = vmatpush1.bf16.msra.mxu0 0
      %3003 = vmatprep.subr.bf16.mxu0 0
      %3004 = vmatpush1.bf16.msra.mxu0 0
      %3005 = vmatprep.subr.bf16.mxu0 0
      %3006 = vmatpush1.bf16.msra.mxu0 0
      %3007 = vmatprep.subr.bf16.mxu0 0
      %3008 = vmatpush1.bf16.msra.mxu0 0
      %3009 = vmatprep.subr.bf16.mxu0 0
      %3010 = vmatpush1.bf16.msra.mxu0 0
      %3011 = vmatprep.subr.bf16.mxu0 0
      %3012 = vmatpush1.bf16.msra.mxu0 0
      %3013 = vmatprep.subr.bf16.mxu0 0
      %3014 = vmatpush1.bf16.msra.mxu0 0
      %3015 = vmatprep.subr.bf16.mxu0 0
      %3016 = vmatpush1.bf16.msra.mxu0 0
      %3017 = vmatprep.subr.bf16.mxu0 0
      %3018 = vmatpush1.bf16.msra.mxu0 0
      %3019 = vmatprep.subr.bf16.mxu0 0
      %3020 = vmatpush1.bf16.msra.mxu0 0
      %3021 = vmatprep.subr.bf16.mxu0 0
      %3022 = vmatpush1.bf16.msra.mxu0 0
      %3023 = vmatprep.mubr.bf16.mxu0 0
      %3024 = vmatmul.mubr.bf16.gmra.mrb[0].mxu0 %v2989
      %v3025 = vpop.f32.mrb[0].mxu0
      %v3026 = vadd.f32 %v2975, %v3025
      %v3027 = vpop.f32.mrb[0].mxu0
      %v3028 = vpop.f32.mrb[0].mxu0
      %v3029 = vadd.f32 %v2980, %v3028
      %v3030 = vpop.f32.mrb[0].mxu0
      %3031 = vdwg.mxu0
      %v3032 = vmax.f32 %v3026, 0.0
      %v3033 = vmax.f32 %v3029, 0.0
      %vm3034 = vcmask 80896
      %3035 = vst.msk [vmem:[#allocation4] sm:$0xff] %vm3034, 0.0
      %vm3036 = vcmask 74752
      %3037 = vst.msk [vmem:[#allocation4 + $0x8] sm:$0x3] %vm3036, 0.0
      %3038 = vst.msk [vmem:[#allocation4 + $0x10] sm:$0xff] %vm3034, 0.0
      %3039 = vst.msk [vmem:[#allocation4 + $0x18] sm:$0x3] %vm3036, 0.0
      %3040 = vst.msk [vmem:[#allocation4 + $0x20] sm:$0xff] %vm3034, 0.0
      %3041 = vst.msk [vmem:[#allocation4 + $0x28] sm:$0x3] %vm3036, 0.0
      %3042 = vst.msk [vmem:[#allocation4 + $0x30] sm:$0xff] %vm3034, 0.0
      %3043 = vst.msk [vmem:[#allocation4 + $0x38] sm:$0x3] %vm3036, 0.0
      %3044 = vst.msk [vmem:[#allocation4 + $0x40] sm:$0xff] %vm3034, 0.0
      %3045 = vst.msk [vmem:[#allocation4 + $0x48] sm:$0x3] %vm3036, 0.0
      %3046 = vst.msk [vmem:[#allocation4 + $0x50] sm:$0xff] %vm3034, 0.0
      %3047 = vst.msk [vmem:[#allocation4 + $0x58] sm:$0x3] %vm3036, 0.0
      %3048 = vst.msk [vmem:[#allocation4 + $0x60] sm:$0xff] %vm3034, 0.0
      %3049 = vst.msk [vmem:[#allocation4 + $0x68] sm:$0x3] %vm3036, 0.0
      %3050 = vst.msk [vmem:[#allocation4 + $0x70] sm:$0xff] %vm3034, 0.0
      %3051 = vst.msk [vmem:[#allocation4 + $0x78] sm:$0x3] %vm3036, 0.0
      %3052 = vst.msk [vmem:[#allocation4 + $0x80] sm:$0xff] %vm3034, 0.0
      %3053 = vst.msk [vmem:[#allocation4 + $0x88] sm:$0x3] %vm3036, 0.0
      %3054 = vst.msk [vmem:[#allocation4 + $0x90] sm:$0xff] %vm3034, 0.0
      %3055 = vst.msk [vmem:[#allocation4 + $0x98] sm:$0x3] %vm3036, 0.0
      %3056 = vst.msk [vmem:[#allocation4 + $0xa0] sm:$0xff] %vm3034, 0.0
      %3057 = vst.msk [vmem:[#allocation4 + $0xa8] sm:$0x3] %vm3036, 0.0
      %3058 = vst.msk [vmem:[#allocation4 + $0xb0] sm:$0xff] %vm3034, 0.0
      %3059 = vst.msk [vmem:[#allocation4 + $0xb8] sm:$0x3] %vm3036, 0.0
      %3060 = vst.msk [vmem:[#allocation4 + $0xc0] sm:$0xff] %vm3034, 0.0
      %3061 = vst.msk [vmem:[#allocation4 + $0xc8] sm:$0x3] %vm3036, 0.0
      %3062 = vst.msk [vmem:[#allocation4 + $0xd0] sm:$0xff] %vm3034, 0.0
      %3063 = vst.msk [vmem:[#allocation4 + $0xd8] sm:$0x3] %vm3036, 0.0
      %3064 = vst.msk [vmem:[#allocation4 + $0xe0] sm:$0xff] %vm3034, 0.0
      %3065 = vst.msk [vmem:[#allocation4 + $0xe8] sm:$0x3] %vm3036, 0.0
      %3066 = vst.msk [vmem:[#allocation4 + $0xf0] sm:$0xff] %vm3034, 0.0
      %3067 = vst.msk [vmem:[#allocation4 + $0xf8] sm:$0x3] %vm3036, 0.0
      %v3070 = vcombine.high %v3032, %v3032
      %v3072 = vunpack.c.l.s4 1966171168
      %v3073 = vunpack.c.0.s8 %v3072
      %v3074 = vlaneseq
      %v3075 = vshrl.u32 %v3074, 7
      %v3076 = vsub.s32 %v3073, %v3075
      %v3077 = vrot.slane %v3032, %v3076
      %v3079 = vunpack.c.l.s4 1966171168
      %v3080 = vunpack.c.0.s8 %v3079
      %v3081 = vlaneseq
      %v3082 = vshrl.u32 %v3081, 7
      %v3083 = vsub.s32 %v3080, %v3082
      %v3084 = vrot.slane %v3070, %v3083
      %v3085 = vcombine.high %v3077, %v3077
      %v3086 = vcombine.high %v3084, %v3084
      %v3088 = vunpack.c.l.s4 1966171168
      %v3089 = vunpack.c.0.s8 %v3088
      %v3090 = vlaneseq
      %v3091 = vshrl.u32 %v3090, 7
      %v3092 = vsub.s32 %v3089, %v3091
      %v3093 = vrot.slane %v3077, %v3092
      %v3095 = vunpack.c.l.s4 1966171168
      %v3096 = vunpack.c.0.s8 %v3095
      %v3097 = vlaneseq
      %v3098 = vshrl.u32 %v3097, 7
      %v3099 = vsub.s32 %v3096, %v3098
      %v3100 = vrot.slane %v3084, %v3099
      %v3102 = vunpack.c.l.s4 1966171168
      %v3103 = vunpack.c.0.s8 %v3102
      %v3104 = vlaneseq
      %v3105 = vshrl.u32 %v3104, 7
      %v3106 = vsub.s32 %v3103, %v3105
      %v3107 = vrot.slane %v3085, %v3106
      %v3109 = vunpack.c.l.s4 1966171168
      %v3110 = vunpack.c.0.s8 %v3109
      %v3111 = vlaneseq
      %v3112 = vshrl.u32 %v3111, 7
      %v3113 = vsub.s32 %v3110, %v3112
      %v3114 = vrot.slane %v3086, %v3113
      %v3115 = vcombine.high %v3093, %v3093
      %v3116 = vcombine.high %v3100, %v3100
      %v3117 = vcombine.high %v3107, %v3107
      %v3118 = vcombine.high %v3114, %v3114
      %v3119 = vcombine.high %v3033, %v3033
      %v3121 = vunpack.c.l.s4 1966171168
      %v3122 = vunpack.c.0.s8 %v3121
      %v3123 = vlaneseq
      %v3124 = vshrl.u32 %v3123, 7
      %v3125 = vsub.s32 %v3122, %v3124
      %v3126 = vrot.slane %v3033, %v3125
      %v3128 = vunpack.c.l.s4 1966171168
      %v3129 = vunpack.c.0.s8 %v3128
      %v3130 = vlaneseq
      %v3131 = vshrl.u32 %v3130, 7
      %v3132 = vsub.s32 %v3129, %v3131
      %v3133 = vrot.slane %v3119, %v3132
      %v3134 = vcombine.high %v3126, %v3126
      %v3135 = vcombine.high %v3133, %v3133
      %v3137 = vunpack.c.l.s4 1966171168
      %v3138 = vunpack.c.0.s8 %v3137
      %v3139 = vlaneseq
      %v3140 = vshrl.u32 %v3139, 7
      %v3141 = vsub.s32 %v3138, %v3140
      %v3142 = vrot.slane %v3126, %v3141
      %v3144 = vunpack.c.l.s4 1966171168
      %v3145 = vunpack.c.0.s8 %v3144
      %v3146 = vlaneseq
      %v3147 = vshrl.u32 %v3146, 7
      %v3148 = vsub.s32 %v3145, %v3147
      %v3149 = vrot.slane %v3133, %v3148
      %v3151 = vunpack.c.l.s4 1966171168
      %v3152 = vunpack.c.0.s8 %v3151
      %v3153 = vlaneseq
      %v3154 = vshrl.u32 %v3153, 7
      %v3155 = vsub.s32 %v3152, %v3154
      %v3156 = vrot.slane %v3134, %v3155
      %v3158 = vunpack.c.l.s4 1966171168
      %v3159 = vunpack.c.0.s8 %v3158
      %v3160 = vlaneseq
      %v3161 = vshrl.u32 %v3160, 7
      %v3162 = vsub.s32 %v3159, %v3161
      %v3163 = vrot.slane %v3135, %v3162
      %v3164 = vcombine.high %v3142, %v3142
      %v3165 = vcombine.high %v3149, %v3149
      %v3166 = vcombine.high %v3156, %v3156
      %v3167 = vcombine.high %v3163, %v3163
      %v3168 = vlaneseq
      %v3169 = vshrl.u32 %v3168, 7
      %v3170 = vsub.s32 0, %v3169
      %v3171 = vrot.slane %v3093, %v3170
      %v3172 = vlaneseq
      %v3173 = vshrl.u32 %v3172, 7
      %v3174 = vsub.s32 0, %v3173
      %v3175 = vrot.slane %v3107, %v3174
      %v3176 = vlaneseq
      %v3177 = vshrl.u32 %v3176, 7
      %v3178 = vsub.s32 0, %v3177
      %v3179 = vrot.slane %v3115, %v3178
      %v3180 = vlaneseq
      %v3181 = vshrl.u32 %v3180, 7
      %v3182 = vsub.s32 0, %v3181
      %v3183 = vrot.slane %v3117, %v3182
      %v3184 = vlaneseq
      %v3185 = vshrl.u32 %v3184, 7
      %v3186 = vsub.s32 0, %v3185
      %v3187 = vrot.slane %v3100, %v3186
      %v3188 = vlaneseq
      %v3189 = vshrl.u32 %v3188, 7
      %v3190 = vsub.s32 0, %v3189
      %v3191 = vrot.slane %v3114, %v3190
      %v3192 = vlaneseq
      %v3193 = vshrl.u32 %v3192, 7
      %v3194 = vsub.s32 0, %v3193
      %v3195 = vrot.slane %v3116, %v3194
      %v3196 = vlaneseq
      %v3197 = vshrl.u32 %v3196, 7
      %v3198 = vsub.s32 0, %v3197
      %v3199 = vrot.slane %v3118, %v3198
      %v3200 = vlaneseq
      %v3201 = vshrl.u32 %v3200, 7
      %v3202 = vsub.s32 0, %v3201
      %v3203 = vrot.slane %v3142, %v3202
      %v3204 = vlaneseq
      %v3205 = vshrl.u32 %v3204, 7
      %v3206 = vsub.s32 0, %v3205
      %v3207 = vrot.slane %v3156, %v3206
      %v3208 = vlaneseq
      %v3209 = vshrl.u32 %v3208, 7
      %v3210 = vsub.s32 0, %v3209
      %v3211 = vrot.slane %v3164, %v3210
      %v3212 = vlaneseq
      %v3213 = vshrl.u32 %v3212, 7
      %v3214 = vsub.s32 0, %v3213
      %v3215 = vrot.slane %v3166, %v3214
      %v3216 = vlaneseq
      %v3217 = vshrl.u32 %v3216, 7
      %v3218 = vsub.s32 0, %v3217
      %v3219 = vrot.slane %v3149, %v3218
      %v3220 = vlaneseq
      %v3221 = vshrl.u32 %v3220, 7
      %v3222 = vsub.s32 0, %v3221
      %v3223 = vrot.slane %v3163, %v3222
      %v3224 = vlaneseq
      %v3225 = vshrl.u32 %v3224, 7
      %v3226 = vsub.s32 0, %v3225
      %v3227 = vrot.slane %v3165, %v3226
      %v3228 = vlaneseq
      %v3229 = vshrl.u32 %v3228, 7
      %v3230 = vsub.s32 0, %v3229
      %v3231 = vrot.slane %v3167, %v3230
      %3232 = vrot.lane.b32.xlu0 %v3171, 1
      %v3233 = vpop.permute.xlu0 %3232
      %3234 = vrot.lane.b32.xlu0 %v3175, 1
      %v3235 = vpop.permute.xlu0 %3234
      %3236 = vrot.lane.b32.xlu0 %v3179, 1
      %v3237 = vpop.permute.xlu0 %3236
      %3238 = vrot.lane.b32.xlu0 %v3183, 1
      %v3239 = vpop.permute.xlu0 %3238
      %3240 = vrot.lane.b32.xlu0 %v3187, 1
      %v3241 = vpop.permute.xlu0 %3240
      %3242 = vrot.lane.b32.xlu0 %v3191, 1
      %v3243 = vpop.permute.xlu0 %3242
      %3244 = vrot.lane.b32.xlu0 %v3195, 1
      %v3245 = vpop.permute.xlu0 %3244
      %3246 = vrot.lane.b32.xlu0 %v3199, 1
      %v3247 = vpop.permute.xlu0 %3246
      %3248 = vrot.lane.b32.xlu0 %v3203, 1
      %v3249 = vpop.permute.xlu0 %3248
      %3250 = vrot.lane.b32.xlu0 %v3207, 1
      %v3251 = vpop.permute.xlu0 %3250
      %3252 = vrot.lane.b32.xlu0 %v3211, 1
      %v3253 = vpop.permute.xlu0 %3252
      %3254 = vrot.lane.b32.xlu0 %v3215, 1
      %v3255 = vpop.permute.xlu0 %3254
      %3256 = vrot.lane.b32.xlu0 %v3219, 1
      %v3257 = vpop.permute.xlu0 %3256
      %3258 = vrot.lane.b32.xlu0 %v3223, 1
      %v3259 = vpop.permute.xlu0 %3258
      %3260 = vrot.lane.b32.xlu0 %v3227, 1
      %v3261 = vpop.permute.xlu0 %3260
      %3262 = vrot.lane.b32.xlu0 %v3231, 1
      %v3263 = vpop.permute.xlu0 %3262
      %vm3280 = vcmask 65544
      %3281 = vst.msk [vmem:[#allocation4 + $0x1] sm:$0x1] %vm3280, %v3233
      %3282 = vst.msk [vmem:[#allocation4 + $0x11] sm:$0x1] %vm3280, %v3235
      %3283 = vst.msk [vmem:[#allocation4 + $0x21] sm:$0x1] %vm3280, %v3237
      %3284 = vst.msk [vmem:[#allocation4 + $0x31] sm:$0x1] %vm3280, %v3239
      %3285 = vst.msk [vmem:[#allocation4 + $0x41] sm:$0x1] %vm3280, %v3241
      %3286 = vst.msk [vmem:[#allocation4 + $0x51] sm:$0x1] %vm3280, %v3243
      %3287 = vst.msk [vmem:[#allocation4 + $0x61] sm:$0x1] %vm3280, %v3245
      %3288 = vst.msk [vmem:[#allocation4 + $0x71] sm:$0x1] %vm3280, %v3247
      %3289 = vst.msk [vmem:[#allocation4 + $0x81] sm:$0x1] %vm3280, %v3249
      %3290 = vst.msk [vmem:[#allocation4 + $0x91] sm:$0x1] %vm3280, %v3251
      %3291 = vst.msk [vmem:[#allocation4 + $0xa1] sm:$0x1] %vm3280, %v3253
      %3292 = vst.msk [vmem:[#allocation4 + $0xb1] sm:$0x1] %vm3280, %v3255
      %3293 = vst.msk [vmem:[#allocation4 + $0xc1] sm:$0x1] %vm3280, %v3257
      %3294 = vst.msk [vmem:[#allocation4 + $0xd1] sm:$0x1] %vm3280, %v3259
      %3295 = vst.msk [vmem:[#allocation4 + $0xe1] sm:$0x1] %vm3280, %v3261
      %3296 = vst.msk [vmem:[#allocation4 + $0xf1] sm:$0x1] %vm3280, %v3263
      %3297 = vrot.lane.b32.xlu0 %v3171, 121
      %v3298 = vpop.permute.xlu0 %3297
      %3299 = vrot.lane.b32.xlu0 %v3175, 121
      %v3300 = vpop.permute.xlu0 %3299
      %3301 = vrot.lane.b32.xlu0 %v3179, 121
      %v3302 = vpop.permute.xlu0 %3301
      %3303 = vrot.lane.b32.xlu0 %v3183, 121
      %v3304 = vpop.permute.xlu0 %3303
      %3305 = vrot.lane.b32.xlu0 %v3187, 121
      %v3306 = vpop.permute.xlu0 %3305
      %3307 = vrot.lane.b32.xlu0 %v3191, 121
      %v3308 = vpop.permute.xlu0 %3307
      %3309 = vrot.lane.b32.xlu0 %v3195, 121
      %v3310 = vpop.permute.xlu0 %3309
      %3311 = vrot.lane.b32.xlu0 %v3199, 121
      %v3312 = vpop.permute.xlu0 %3311
      %3313 = vrot.lane.b32.xlu0 %v3203, 121
      %v3314 = vpop.permute.xlu0 %3313
      %3315 = vrot.lane.b32.xlu0 %v3207, 121
      %v3316 = vpop.permute.xlu0 %3315
      %3317 = vrot.lane.b32.xlu0 %v3211, 121
      %v3318 = vpop.permute.xlu0 %3317
      %3319 = vrot.lane.b32.xlu0 %v3215, 121
      %v3320 = vpop.permute.xlu0 %3319
      %3321 = vrot.lane.b32.xlu0 %v3219, 121
      %v3322 = vpop.permute.xlu0 %3321
      %3323 = vrot.lane.b32.xlu0 %v3223, 121
      %v3324 = vpop.permute.xlu0 %3323
      %3325 = vrot.lane.b32.xlu0 %v3227, 121
      %v3326 = vpop.permute.xlu0 %3325
      %3327 = vrot.lane.b32.xlu0 %v3231, 121
      %v3328 = vpop.permute.xlu0 %3327
      %3345 = vst.msk [vmem:[#allocation4 + $0x2] sm:$0x1] %vm3280, %v3298
      %3346 = vst.msk [vmem:[#allocation4 + $0x12] sm:$0x1] %vm3280, %v3300
      %3347 = vst.msk [vmem:[#allocation4 + $0x22] sm:$0x1] %vm3280, %v3302
      %3348 = vst.msk [vmem:[#allocation4 + $0x32] sm:$0x1] %vm3280, %v3304
      %3349 = vst.msk [vmem:[#allocation4 + $0x42] sm:$0x1] %vm3280, %v3306
      %3350 = vst.msk [vmem:[#allocation4 + $0x52] sm:$0x1] %vm3280, %v3308
      %3351 = vst.msk [vmem:[#allocation4 + $0x62] sm:$0x1] %vm3280, %v3310
      %3352 = vst.msk [vmem:[#allocation4 + $0x72] sm:$0x1] %vm3280, %v3312
      %3353 = vst.msk [vmem:[#allocation4 + $0x82] sm:$0x1] %vm3280, %v3314
      %3354 = vst.msk [vmem:[#allocation4 + $0x92] sm:$0x1] %vm3280, %v3316
      %3355 = vst.msk [vmem:[#allocation4 + $0xa2] sm:$0x1] %vm3280, %v3318
      %3356 = vst.msk [vmem:[#allocation4 + $0xb2] sm:$0x1] %vm3280, %v3320
      %3357 = vst.msk [vmem:[#allocation4 + $0xc2] sm:$0x1] %vm3280, %v3322
      %3358 = vst.msk [vmem:[#allocation4 + $0xd2] sm:$0x1] %vm3280, %v3324
      %3359 = vst.msk [vmem:[#allocation4 + $0xe2] sm:$0x1] %vm3280, %v3326
      %3360 = vst.msk [vmem:[#allocation4 + $0xf2] sm:$0x1] %vm3280, %v3328
      %3361 = vrot.lane.b32.xlu0 %v3171, 113
      %v3362 = vpop.permute.xlu0 %3361
      %3363 = vrot.lane.b32.xlu0 %v3175, 113
      %v3364 = vpop.permute.xlu0 %3363
      %3365 = vrot.lane.b32.xlu0 %v3179, 113
      %v3366 = vpop.permute.xlu0 %3365
      %3367 = vrot.lane.b32.xlu0 %v3183, 113
      %v3368 = vpop.permute.xlu0 %3367
      %3369 = vrot.lane.b32.xlu0 %v3187, 113
      %v3370 = vpop.permute.xlu0 %3369
      %3371 = vrot.lane.b32.xlu0 %v3191, 113
      %v3372 = vpop.permute.xlu0 %3371
      %3373 = vrot.lane.b32.xlu0 %v3195, 113
      %v3374 = vpop.permute.xlu0 %3373
      %3375 = vrot.lane.b32.xlu0 %v3199, 113
      %v3376 = vpop.permute.xlu0 %3375
      %3377 = vrot.lane.b32.xlu0 %v3203, 113
      %v3378 = vpop.permute.xlu0 %3377
      %3379 = vrot.lane.b32.xlu0 %v3207, 113
      %v3380 = vpop.permute.xlu0 %3379
      %3381 = vrot.lane.b32.xlu0 %v3211, 113
      %v3382 = vpop.permute.xlu0 %3381
      %3383 = vrot.lane.b32.xlu0 %v3215, 113
      %v3384 = vpop.permute.xlu0 %3383
      %3385 = vrot.lane.b32.xlu0 %v3219, 113
      %v3386 = vpop.permute.xlu0 %3385
      %3387 = vrot.lane.b32.xlu0 %v3223, 113
      %v3388 = vpop.permute.xlu0 %3387
      %3389 = vrot.lane.b32.xlu0 %v3227, 113
      %v3390 = vpop.permute.xlu0 %3389
      %3391 = vrot.lane.b32.xlu0 %v3231, 113
      %v3392 = vpop.permute.xlu0 %3391
      %3409 = vst.msk [vmem:[#allocation4 + $0x3] sm:$0x1] %vm3280, %v3362
      %3410 = vst.msk [vmem:[#allocation4 + $0x13] sm:$0x1] %vm3280, %v3364
      %3411 = vst.msk [vmem:[#allocation4 + $0x23] sm:$0x1] %vm3280, %v3366
      %3412 = vst.msk [vmem:[#allocation4 + $0x33] sm:$0x1] %vm3280, %v3368
      %3413 = vst.msk [vmem:[#allocation4 + $0x43] sm:$0x1] %vm3280, %v3370
      %3414 = vst.msk [vmem:[#allocation4 + $0x53] sm:$0x1] %vm3280, %v3372
      %3415 = vst.msk [vmem:[#allocation4 + $0x63] sm:$0x1] %vm3280, %v3374
      %3416 = vst.msk [vmem:[#allocation4 + $0x73] sm:$0x1] %vm3280, %v3376
      %3417 = vst.msk [vmem:[#allocation4 + $0x83] sm:$0x1] %vm3280, %v3378
      %3418 = vst.msk [vmem:[#allocation4 + $0x93] sm:$0x1] %vm3280, %v3380
      %3419 = vst.msk [vmem:[#allocation4 + $0xa3] sm:$0x1] %vm3280, %v3382
      %3420 = vst.msk [vmem:[#allocation4 + $0xb3] sm:$0x1] %vm3280, %v3384
      %3421 = vst.msk [vmem:[#allocation4 + $0xc3] sm:$0x1] %vm3280, %v3386
      %3422 = vst.msk [vmem:[#allocation4 + $0xd3] sm:$0x1] %vm3280, %v3388
      %3423 = vst.msk [vmem:[#allocation4 + $0xe3] sm:$0x1] %vm3280, %v3390
      %3424 = vst.msk [vmem:[#allocation4 + $0xf3] sm:$0x1] %vm3280, %v3392
      %3425 = vrot.lane.b32.xlu0 %v3171, 105
      %v3426 = vpop.permute.xlu0 %3425
      %3427 = vrot.lane.b32.xlu0 %v3175, 105
      %v3428 = vpop.permute.xlu0 %3427
      %3429 = vrot.lane.b32.xlu0 %v3179, 105
      %v3430 = vpop.permute.xlu0 %3429
      %3431 = vrot.lane.b32.xlu0 %v3183, 105
      %v3432 = vpop.permute.xlu0 %3431
      %3433 = vrot.lane.b32.xlu0 %v3187, 105
      %v3434 = vpop.permute.xlu0 %3433
      %3435 = vrot.lane.b32.xlu0 %v3191, 105
      %v3436 = vpop.permute.xlu0 %3435
      %3437 = vrot.lane.b32.xlu0 %v3195, 105
      %v3438 = vpop.permute.xlu0 %3437
      %3439 = vrot.lane.b32.xlu0 %v3199, 105
      %v3440 = vpop.permute.xlu0 %3439
      %3441 = vrot.lane.b32.xlu0 %v3203, 105
      %v3442 = vpop.permute.xlu0 %3441
      %3443 = vrot.lane.b32.xlu0 %v3207, 105
      %v3444 = vpop.permute.xlu0 %3443
      %3445 = vrot.lane.b32.xlu0 %v3211, 105
      %v3446 = vpop.permute.xlu0 %3445
      %3447 = vrot.lane.b32.xlu0 %v3215, 105
      %v3448 = vpop.permute.xlu0 %3447
      %3449 = vrot.lane.b32.xlu0 %v3219, 105
      %v3450 = vpop.permute.xlu0 %3449
      %3451 = vrot.lane.b32.xlu0 %v3223, 105
      %v3452 = vpop.permute.xlu0 %3451
      %3453 = vrot.lane.b32.xlu0 %v3227, 105
      %v3454 = vpop.permute.xlu0 %3453
      %3455 = vrot.lane.b32.xlu0 %v3231, 105
      %v3456 = vpop.permute.xlu0 %3455
      %3473 = vst.msk [vmem:[#allocation4 + $0x4] sm:$0x1] %vm3280, %v3426
      %3474 = vst.msk [vmem:[#allocation4 + $0x14] sm:$0x1] %vm3280, %v3428
      %3475 = vst.msk [vmem:[#allocation4 + $0x24] sm:$0x1] %vm3280, %v3430
      %3476 = vst.msk [vmem:[#allocation4 + $0x34] sm:$0x1] %vm3280, %v3432
      %3477 = vst.msk [vmem:[#allocation4 + $0x44] sm:$0x1] %vm3280, %v3434
      %3478 = vst.msk [vmem:[#allocation4 + $0x54] sm:$0x1] %vm3280, %v3436
      %3479 = vst.msk [vmem:[#allocation4 + $0x64] sm:$0x1] %vm3280, %v3438
      %3480 = vst.msk [vmem:[#allocation4 + $0x74] sm:$0x1] %vm3280, %v3440
      %3481 = vst.msk [vmem:[#allocation4 + $0x84] sm:$0x1] %vm3280, %v3442
      %3482 = vst.msk [vmem:[#allocation4 + $0x94] sm:$0x1] %vm3280, %v3444
      %3483 = vst.msk [vmem:[#allocation4 + $0xa4] sm:$0x1] %vm3280, %v3446
      %3484 = vst.msk [vmem:[#allocation4 + $0xb4] sm:$0x1] %vm3280, %v3448
      %3485 = vst.msk [vmem:[#allocation4 + $0xc4] sm:$0x1] %vm3280, %v3450
      %3486 = vst.msk [vmem:[#allocation4 + $0xd4] sm:$0x1] %vm3280, %v3452
      %3487 = vst.msk [vmem:[#allocation4 + $0xe4] sm:$0x1] %vm3280, %v3454
      %3488 = vst.msk [vmem:[#allocation4 + $0xf4] sm:$0x1] %vm3280, %v3456
      %3489 = vrot.lane.b32.xlu0 %v3171, 97
      %v3490 = vpop.permute.xlu0 %3489
      %3491 = vrot.lane.b32.xlu0 %v3175, 97
      %v3492 = vpop.permute.xlu0 %3491
      %3493 = vrot.lane.b32.xlu0 %v3179, 97
      %v3494 = vpop.permute.xlu0 %3493
      %3495 = vrot.lane.b32.xlu0 %v3183, 97
      %v3496 = vpop.permute.xlu0 %3495
      %3497 = vrot.lane.b32.xlu0 %v3187, 97
      %v3498 = vpop.permute.xlu0 %3497
      %3499 = vrot.lane.b32.xlu0 %v3191, 97
      %v3500 = vpop.permute.xlu0 %3499
      %3501 = vrot.lane.b32.xlu0 %v3195, 97
      %v3502 = vpop.permute.xlu0 %3501
      %3503 = vrot.lane.b32.xlu0 %v3199, 97
      %v3504 = vpop.permute.xlu0 %3503
      %3505 = vrot.lane.b32.xlu0 %v3203, 97
      %v3506 = vpop.permute.xlu0 %3505
      %3507 = vrot.lane.b32.xlu0 %v3207, 97
      %v3508 = vpop.permute.xlu0 %3507
      %3509 = vrot.lane.b32.xlu0 %v3211, 97
      %v3510 = vpop.permute.xlu0 %3509
      %3511 = vrot.lane.b32.xlu0 %v3215, 97
      %v3512 = vpop.permute.xlu0 %3511
      %3513 = vrot.lane.b32.xlu0 %v3219, 97
      %v3514 = vpop.permute.xlu0 %3513
      %3515 = vrot.lane.b32.xlu0 %v3223, 97
      %v3516 = vpop.permute.xlu0 %3515
      %3517 = vrot.lane.b32.xlu0 %v3227, 97
      %v3518 = vpop.permute.xlu0 %3517
      %3519 = vrot.lane.b32.xlu0 %v3231, 97
      %v3520 = vpop.permute.xlu0 %3519
      %3537 = vst.msk [vmem:[#allocation4 + $0x5] sm:$0x1] %vm3280, %v3490
      %3538 = vst.msk [vmem:[#allocation4 + $0x15] sm:$0x1] %vm3280, %v3492
      %3539 = vst.msk [vmem:[#allocation4 + $0x25] sm:$0x1] %vm3280, %v3494
      %3540 = vst.msk [vmem:[#allocation4 + $0x35] sm:$0x1] %vm3280, %v3496
      %3541 = vst.msk [vmem:[#allocation4 + $0x45] sm:$0x1] %vm3280, %v3498
      %3542 = vst.msk [vmem:[#allocation4 + $0x55] sm:$0x1] %vm3280, %v3500
      %3543 = vst.msk [vmem:[#allocation4 + $0x65] sm:$0x1] %vm3280, %v3502
      %3544 = vst.msk [vmem:[#allocation4 + $0x75] sm:$0x1] %vm3280, %v3504
      %3545 = vst.msk [vmem:[#allocation4 + $0x85] sm:$0x1] %vm3280, %v3506
      %3546 = vst.msk [vmem:[#allocation4 + $0x95] sm:$0x1] %vm3280, %v3508
      %3547 = vst.msk [vmem:[#allocation4 + $0xa5] sm:$0x1] %vm3280, %v3510
      %3548 = vst.msk [vmem:[#allocation4 + $0xb5] sm:$0x1] %vm3280, %v3512
      %3549 = vst.msk [vmem:[#allocation4 + $0xc5] sm:$0x1] %vm3280, %v3514
      %3550 = vst.msk [vmem:[#allocation4 + $0xd5] sm:$0x1] %vm3280, %v3516
      %3551 = vst.msk [vmem:[#allocation4 + $0xe5] sm:$0x1] %vm3280, %v3518
      %3552 = vst.msk [vmem:[#allocation4 + $0xf5] sm:$0x1] %vm3280, %v3520
      %3553 = vrot.lane.b32.xlu0 %v3171, 89
      %v3554 = vpop.permute.xlu0 %3553
      %3555 = vrot.lane.b32.xlu0 %v3175, 89
      %v3556 = vpop.permute.xlu0 %3555
      %3557 = vrot.lane.b32.xlu0 %v3179, 89
      %v3558 = vpop.permute.xlu0 %3557
      %3559 = vrot.lane.b32.xlu0 %v3183, 89
      %v3560 = vpop.permute.xlu0 %3559
      %3561 = vrot.lane.b32.xlu0 %v3187, 89
      %v3562 = vpop.permute.xlu0 %3561
      %3563 = vrot.lane.b32.xlu0 %v3191, 89
      %v3564 = vpop.permute.xlu0 %3563
      %3565 = vrot.lane.b32.xlu0 %v3195, 89
      %v3566 = vpop.permute.xlu0 %3565
      %3567 = vrot.lane.b32.xlu0 %v3199, 89
      %v3568 = vpop.permute.xlu0 %3567
      %3569 = vrot.lane.b32.xlu0 %v3203, 89
      %v3570 = vpop.permute.xlu0 %3569
      %3571 = vrot.lane.b32.xlu0 %v3207, 89
      %v3572 = vpop.permute.xlu0 %3571
      %3573 = vrot.lane.b32.xlu0 %v3211, 89
      %v3574 = vpop.permute.xlu0 %3573
      %3575 = vrot.lane.b32.xlu0 %v3215, 89
      %v3576 = vpop.permute.xlu0 %3575
      %3577 = vrot.lane.b32.xlu0 %v3219, 89
      %v3578 = vpop.permute.xlu0 %3577
      %3579 = vrot.lane.b32.xlu0 %v3223, 89
      %v3580 = vpop.permute.xlu0 %3579
      %3581 = vrot.lane.b32.xlu0 %v3227, 89
      %v3582 = vpop.permute.xlu0 %3581
      %3583 = vrot.lane.b32.xlu0 %v3231, 89
      %v3584 = vpop.permute.xlu0 %3583
      %3601 = vst.msk [vmem:[#allocation4 + $0x6] sm:$0x1] %vm3280, %v3554
      %3602 = vst.msk [vmem:[#allocation4 + $0x16] sm:$0x1] %vm3280, %v3556
      %3603 = vst.msk [vmem:[#allocation4 + $0x26] sm:$0x1] %vm3280, %v3558
      %3604 = vst.msk [vmem:[#allocation4 + $0x36] sm:$0x1] %vm3280, %v3560
      %3605 = vst.msk [vmem:[#allocation4 + $0x46] sm:$0x1] %vm3280, %v3562
      %3606 = vst.msk [vmem:[#allocation4 + $0x56] sm:$0x1] %vm3280, %v3564
      %3607 = vst.msk [vmem:[#allocation4 + $0x66] sm:$0x1] %vm3280, %v3566
      %3608 = vst.msk [vmem:[#allocation4 + $0x76] sm:$0x1] %vm3280, %v3568
      %3609 = vst.msk [vmem:[#allocation4 + $0x86] sm:$0x1] %vm3280, %v3570
      %3610 = vst.msk [vmem:[#allocation4 + $0x96] sm:$0x1] %vm3280, %v3572
      %3611 = vst.msk [vmem:[#allocation4 + $0xa6] sm:$0x1] %vm3280, %v3574
      %3612 = vst.msk [vmem:[#allocation4 + $0xb6] sm:$0x1] %vm3280, %v3576
      %3613 = vst.msk [vmem:[#allocation4 + $0xc6] sm:$0x1] %vm3280, %v3578
      %3614 = vst.msk [vmem:[#allocation4 + $0xd6] sm:$0x1] %vm3280, %v3580
      %3615 = vst.msk [vmem:[#allocation4 + $0xe6] sm:$0x1] %vm3280, %v3582
      %3616 = vst.msk [vmem:[#allocation4 + $0xf6] sm:$0x1] %vm3280, %v3584
      %3617 = vrot.lane.b32.xlu0 %v3171, 81
      %v3618 = vpop.permute.xlu0 %3617
      %3619 = vrot.lane.b32.xlu0 %v3175, 81
      %v3620 = vpop.permute.xlu0 %3619
      %3621 = vrot.lane.b32.xlu0 %v3179, 81
      %v3622 = vpop.permute.xlu0 %3621
      %3623 = vrot.lane.b32.xlu0 %v3183, 81
      %v3624 = vpop.permute.xlu0 %3623
      %3625 = vrot.lane.b32.xlu0 %v3187, 81
      %v3626 = vpop.permute.xlu0 %3625
      %3627 = vrot.lane.b32.xlu0 %v3191, 81
      %v3628 = vpop.permute.xlu0 %3627
      %3629 = vrot.lane.b32.xlu0 %v3195, 81
      %v3630 = vpop.permute.xlu0 %3629
      %3631 = vrot.lane.b32.xlu0 %v3199, 81
      %v3632 = vpop.permute.xlu0 %3631
      %3633 = vrot.lane.b32.xlu0 %v3203, 81
      %v3634 = vpop.permute.xlu0 %3633
      %3635 = vrot.lane.b32.xlu0 %v3207, 81
      %v3636 = vpop.permute.xlu0 %3635
      %3637 = vrot.lane.b32.xlu0 %v3211, 81
      %v3638 = vpop.permute.xlu0 %3637
      %3639 = vrot.lane.b32.xlu0 %v3215, 81
      %v3640 = vpop.permute.xlu0 %3639
      %3641 = vrot.lane.b32.xlu0 %v3219, 81
      %v3642 = vpop.permute.xlu0 %3641
      %3643 = vrot.lane.b32.xlu0 %v3223, 81
      %v3644 = vpop.permute.xlu0 %3643
      %3645 = vrot.lane.b32.xlu0 %v3227, 81
      %v3646 = vpop.permute.xlu0 %3645
      %3647 = vrot.lane.b32.xlu0 %v3231, 81
      %v3648 = vpop.permute.xlu0 %3647
      %3665 = vst.msk [vmem:[#allocation4 + $0x7] sm:$0x1] %vm3280, %v3618
      %3666 = vst.msk [vmem:[#allocation4 + $0x17] sm:$0x1] %vm3280, %v3620
      %3667 = vst.msk [vmem:[#allocation4 + $0x27] sm:$0x1] %vm3280, %v3622
      %3668 = vst.msk [vmem:[#allocation4 + $0x37] sm:$0x1] %vm3280, %v3624
      %3669 = vst.msk [vmem:[#allocation4 + $0x47] sm:$0x1] %vm3280, %v3626
      %3670 = vst.msk [vmem:[#allocation4 + $0x57] sm:$0x1] %vm3280, %v3628
      %3671 = vst.msk [vmem:[#allocation4 + $0x67] sm:$0x1] %vm3280, %v3630
      %3672 = vst.msk [vmem:[#allocation4 + $0x77] sm:$0x1] %vm3280, %v3632
      %3673 = vst.msk [vmem:[#allocation4 + $0x87] sm:$0x1] %vm3280, %v3634
      %3674 = vst.msk [vmem:[#allocation4 + $0x97] sm:$0x1] %vm3280, %v3636
      %3675 = vst.msk [vmem:[#allocation4 + $0xa7] sm:$0x1] %vm3280, %v3638
      %3676 = vst.msk [vmem:[#allocation4 + $0xb7] sm:$0x1] %vm3280, %v3640
      %3677 = vst.msk [vmem:[#allocation4 + $0xc7] sm:$0x1] %vm3280, %v3642
      %3678 = vst.msk [vmem:[#allocation4 + $0xd7] sm:$0x1] %vm3280, %v3644
      %3679 = vst.msk [vmem:[#allocation4 + $0xe7] sm:$0x1] %vm3280, %v3646
      %3680 = vst.msk [vmem:[#allocation4 + $0xf7] sm:$0x1] %vm3280, %v3648
      %3681 = vrot.lane.b32.xlu0 %v3171, 73
      %v3682 = vpop.permute.xlu0 %3681
      %3683 = vrot.lane.b32.xlu0 %v3175, 73
      %v3684 = vpop.permute.xlu0 %3683
      %3685 = vrot.lane.b32.xlu0 %v3179, 73
      %v3686 = vpop.permute.xlu0 %3685
      %3687 = vrot.lane.b32.xlu0 %v3183, 73
      %v3688 = vpop.permute.xlu0 %3687
      %3689 = vrot.lane.b32.xlu0 %v3187, 73
      %v3690 = vpop.permute.xlu0 %3689
      %3691 = vrot.lane.b32.xlu0 %v3191, 73
      %v3692 = vpop.permute.xlu0 %3691
      %3693 = vrot.lane.b32.xlu0 %v3195, 73
      %v3694 = vpop.permute.xlu0 %3693
      %3695 = vrot.lane.b32.xlu0 %v3199, 73
      %v3696 = vpop.permute.xlu0 %3695
      %3697 = vrot.lane.b32.xlu0 %v3203, 73
      %v3698 = vpop.permute.xlu0 %3697
      %3699 = vrot.lane.b32.xlu0 %v3207, 73
      %v3700 = vpop.permute.xlu0 %3699
      %3701 = vrot.lane.b32.xlu0 %v3211, 73
      %v3702 = vpop.permute.xlu0 %3701
      %3703 = vrot.lane.b32.xlu0 %v3215, 73
      %v3704 = vpop.permute.xlu0 %3703
      %3705 = vrot.lane.b32.xlu0 %v3219, 73
      %v3706 = vpop.permute.xlu0 %3705
      %3707 = vrot.lane.b32.xlu0 %v3223, 73
      %v3708 = vpop.permute.xlu0 %3707
      %3709 = vrot.lane.b32.xlu0 %v3227, 73
      %v3710 = vpop.permute.xlu0 %3709
      %3711 = vrot.lane.b32.xlu0 %v3231, 73
      %v3712 = vpop.permute.xlu0 %3711
      %3729 = vst.msk [vmem:[#allocation4 + $0x8] sm:$0x1] %vm3280, %v3682
      %3730 = vst.msk [vmem:[#allocation4 + $0x18] sm:$0x1] %vm3280, %v3684
      %3731 = vst.msk [vmem:[#allocation4 + $0x28] sm:$0x1] %vm3280, %v3686
      %3732 = vst.msk [vmem:[#allocation4 + $0x38] sm:$0x1] %vm3280, %v3688
      %3733 = vst.msk [vmem:[#allocation4 + $0x48] sm:$0x1] %vm3280, %v3690
      %3734 = vst.msk [vmem:[#allocation4 + $0x58] sm:$0x1] %vm3280, %v3692
      %3735 = vst.msk [vmem:[#allocation4 + $0x68] sm:$0x1] %vm3280, %v3694
      %3736 = vst.msk [vmem:[#allocation4 + $0x78] sm:$0x1] %vm3280, %v3696
      %3737 = vst.msk [vmem:[#allocation4 + $0x88] sm:$0x1] %vm3280, %v3698
      %3738 = vst.msk [vmem:[#allocation4 + $0x98] sm:$0x1] %vm3280, %v3700
      %3739 = vst.msk [vmem:[#allocation4 + $0xa8] sm:$0x1] %vm3280, %v3702
      %3740 = vst.msk [vmem:[#allocation4 + $0xb8] sm:$0x1] %vm3280, %v3704
      %3741 = vst.msk [vmem:[#allocation4 + $0xc8] sm:$0x1] %vm3280, %v3706
      %3742 = vst.msk [vmem:[#allocation4 + $0xd8] sm:$0x1] %vm3280, %v3708
      %3743 = vst.msk [vmem:[#allocation4 + $0xe8] sm:$0x1] %vm3280, %v3710
      %3744 = vst.msk [vmem:[#allocation4 + $0xf8] sm:$0x1] %vm3280, %v3712
      %v3745 = vld [vmem:[#allocation4] sm:$0xff]
      %v3746 = vld [vmem:[#allocation4 + $0x8] sm:$0x3]
      %v3747 = vld [vmem:[#allocation4 + $0x10] sm:$0xff]
      %v3748 = vld [vmem:[#allocation4 + $0x18] sm:$0x3]
      %v3749 = vld [vmem:[#allocation4 + $0x20] sm:$0xff]
      %v3750 = vld [vmem:[#allocation4 + $0x28] sm:$0x3]
      %v3751 = vld [vmem:[#allocation4 + $0x30] sm:$0xff]
      %v3752 = vld [vmem:[#allocation4 + $0x38] sm:$0x3]
      %v3753 = vld [vmem:[#allocation4 + $0x40] sm:$0xff]
      %v3754 = vld [vmem:[#allocation4 + $0x48] sm:$0x3]
      %v3755 = vld [vmem:[#allocation4 + $0x50] sm:$0xff]
      %v3756 = vld [vmem:[#allocation4 + $0x58] sm:$0x3]
      %v3757 = vld [vmem:[#allocation4 + $0x60] sm:$0xff]
      %v3758 = vld [vmem:[#allocation4 + $0x68] sm:$0x3]
      %v3759 = vld [vmem:[#allocation4 + $0x70] sm:$0xff]
      %v3760 = vld [vmem:[#allocation4 + $0x78] sm:$0x3]
      %v3761 = vld [vmem:[#allocation4 + $0x80] sm:$0xff]
      %v3762 = vld [vmem:[#allocation4 + $0x88] sm:$0x3]
      %v3763 = vld [vmem:[#allocation4 + $0x90] sm:$0xff]
      %v3764 = vld [vmem:[#allocation4 + $0x98] sm:$0x3]
      %v3765 = vld [vmem:[#allocation4 + $0xa0] sm:$0xff]
      %v3766 = vld [vmem:[#allocation4 + $0xa8] sm:$0x3]
      %v3767 = vld [vmem:[#allocation4 + $0xb0] sm:$0xff]
      %v3768 = vld [vmem:[#allocation4 + $0xb8] sm:$0x3]
      %v3769 = vld [vmem:[#allocation4 + $0xc0] sm:$0xff]
      %v3770 = vld [vmem:[#allocation4 + $0xc8] sm:$0x3]
      %v3771 = vld [vmem:[#allocation4 + $0xd0] sm:$0xff]
      %v3772 = vld [vmem:[#allocation4 + $0xd8] sm:$0x3]
      %v3773 = vld [vmem:[#allocation4 + $0xe0] sm:$0xff]
      %v3774 = vld [vmem:[#allocation4 + $0xe8] sm:$0x3]
      %v3775 = vld [vmem:[#allocation4 + $0xf0] sm:$0xff]
      %v3776 = vld [vmem:[#allocation4 + $0xf8] sm:$0x3]
      %v3777 = vld [vmem:[%s2] sm:$0xff]
      %v3778 = vld [vmem:[%s2 + $0x8] sm:$0x3]
      %v3811 = vcombine.high %v3745, %v3745
      %v3813 = vunpack.c.l.s4 1983009808
      %v3814 = vunpack.c.0.s8 %v3813
      %v3815 = vlaneseq
      %v3816 = vshrl.u32 %v3815, 7
      %v3817 = vsub.s32 %v3814, %v3816
      %v3818 = vrot.slane %v3745, %v3817
      %v3820 = vunpack.c.l.s4 1983009808
      %v3821 = vunpack.c.0.s8 %v3820
      %v3822 = vlaneseq
      %v3823 = vshrl.u32 %v3822, 7
      %v3824 = vsub.s32 %v3821, %v3823
      %v3825 = vrot.slane %v3811, %v3824
      %v3826 = vcombine.high %v3818, %v3818
      %v3827 = vcombine.high %v3825, %v3825
      %v3829 = vunpack.c.l.s4 1983009808
      %v3830 = vunpack.c.0.s8 %v3829
      %v3831 = vlaneseq
      %v3832 = vshrl.u32 %v3831, 7
      %v3833 = vsub.s32 %v3830, %v3832
      %v3834 = vrot.slane %v3746, %v3833
      %v3835 = vcombine.high %v3747, %v3747
      %v3837 = vunpack.c.l.s4 1983009808
      %v3838 = vunpack.c.0.s8 %v3837
      %v3839 = vlaneseq
      %v3840 = vshrl.u32 %v3839, 7
      %v3841 = vsub.s32 %v3838, %v3840
      %v3842 = vrot.slane %v3747, %v3841
      %v3844 = vunpack.c.l.s4 1983009808
      %v3845 = vunpack.c.0.s8 %v3844
      %v3846 = vlaneseq
      %v3847 = vshrl.u32 %v3846, 7
      %v3848 = vsub.s32 %v3845, %v3847
      %v3849 = vrot.slane %v3835, %v3848
      %v3850 = vcombine.high %v3842, %v3842
      %v3851 = vcombine.high %v3849, %v3849
      %v3853 = vunpack.c.l.s4 1983009808
      %v3854 = vunpack.c.0.s8 %v3853
      %v3855 = vlaneseq
      %v3856 = vshrl.u32 %v3855, 7
      %v3857 = vsub.s32 %v3854, %v3856
      %v3858 = vrot.slane %v3748, %v3857
      %v3859 = vcombine.high %v3749, %v3749
      %v3861 = vunpack.c.l.s4 1983009808
      %v3862 = vunpack.c.0.s8 %v3861
      %v3863 = vlaneseq
      %v3864 = vshrl.u32 %v3863, 7
      %v3865 = vsub.s32 %v3862, %v3864
      %v3866 = vrot.slane %v3749, %v3865
      %v3868 = vunpack.c.l.s4 1983009808
      %v3869 = vunpack.c.0.s8 %v3868
      %v3870 = vlaneseq
      %v3871 = vshrl.u32 %v3870, 7
      %v3872 = vsub.s32 %v3869, %v3871
      %v3873 = vrot.slane %v3859, %v3872
      %v3874 = vcombine.high %v3866, %v3866
      %v3875 = vcombine.high %v3873, %v3873
      %v3877 = vunpack.c.l.s4 1983009808
      %v3878 = vunpack.c.0.s8 %v3877
      %v3879 = vlaneseq
      %v3880 = vshrl.u32 %v3879, 7
      %v3881 = vsub.s32 %v3878, %v3880
      %v3882 = vrot.slane %v3750, %v3881
      %v3883 = vcombine.high %v3751, %v3751
      %v3885 = vunpack.c.l.s4 1983009808
      %v3886 = vunpack.c.0.s8 %v3885
      %v3887 = vlaneseq
      %v3888 = vshrl.u32 %v3887, 7
      %v3889 = vsub.s32 %v3886, %v3888
      %v3890 = vrot.slane %v3751, %v3889
      %v3892 = vunpack.c.l.s4 1983009808
      %v3893 = vunpack.c.0.s8 %v3892
      %v3894 = vlaneseq
      %v3895 = vshrl.u32 %v3894, 7
      %v3896 = vsub.s32 %v3893, %v3895
      %v3897 = vrot.slane %v3883, %v3896
      %v3898 = vcombine.high %v3890, %v3890
      %v3899 = vcombine.high %v3897, %v3897
      %v3901 = vunpack.c.l.s4 1983009808
      %v3902 = vunpack.c.0.s8 %v3901
      %v3903 = vlaneseq
      %v3904 = vshrl.u32 %v3903, 7
      %v3905 = vsub.s32 %v3902, %v3904
      %v3906 = vrot.slane %v3752, %v3905
      %v3907 = vcombine.high %v3753, %v3753
      %v3909 = vunpack.c.l.s4 1983009808
      %v3910 = vunpack.c.0.s8 %v3909
      %v3911 = vlaneseq
      %v3912 = vshrl.u32 %v3911, 7
      %v3913 = vsub.s32 %v3910, %v3912
      %v3914 = vrot.slane %v3753, %v3913
      %v3916 = vunpack.c.l.s4 1983009808
      %v3917 = vunpack.c.0.s8 %v3916
      %v3918 = vlaneseq
      %v3919 = vshrl.u32 %v3918, 7
      %v3920 = vsub.s32 %v3917, %v3919
      %v3921 = vrot.slane %v3907, %v3920
      %v3922 = vcombine.high %v3914, %v3914
      %v3923 = vcombine.high %v3921, %v3921
      %v3925 = vunpack.c.l.s4 1983009808
      %v3926 = vunpack.c.0.s8 %v3925
      %v3927 = vlaneseq
      %v3928 = vshrl.u32 %v3927, 7
      %v3929 = vsub.s32 %v3926, %v3928
      %v3930 = vrot.slane %v3754, %v3929
      %v3931 = vcombine.high %v3755, %v3755
      %v3933 = vunpack.c.l.s4 1983009808
      %v3934 = vunpack.c.0.s8 %v3933
      %v3935 = vlaneseq
      %v3936 = vshrl.u32 %v3935, 7
      %v3937 = vsub.s32 %v3934, %v3936
      %v3938 = vrot.slane %v3755, %v3937
      %v3940 = vunpack.c.l.s4 1983009808
      %v3941 = vunpack.c.0.s8 %v3940
      %v3942 = vlaneseq
      %v3943 = vshrl.u32 %v3942, 7
      %v3944 = vsub.s32 %v3941, %v3943
      %v3945 = vrot.slane %v3931, %v3944
      %v3946 = vcombine.high %v3938, %v3938
      %v3947 = vcombine.high %v3945, %v3945
      %v3949 = vunpack.c.l.s4 1983009808
      %v3950 = vunpack.c.0.s8 %v3949
      %v3951 = vlaneseq
      %v3952 = vshrl.u32 %v3951, 7
      %v3953 = vsub.s32 %v3950, %v3952
      %v3954 = vrot.slane %v3756, %v3953
      %v3955 = vcombine.high %v3757, %v3757
      %v3957 = vunpack.c.l.s4 1983009808
      %v3958 = vunpack.c.0.s8 %v3957
      %v3959 = vlaneseq
      %v3960 = vshrl.u32 %v3959, 7
      %v3961 = vsub.s32 %v3958, %v3960
      %v3962 = vrot.slane %v3757, %v3961
      %v3964 = vunpack.c.l.s4 1983009808
      %v3965 = vunpack.c.0.s8 %v3964
      %v3966 = vlaneseq
      %v3967 = vshrl.u32 %v3966, 7
      %v3968 = vsub.s32 %v3965, %v3967
      %v3969 = vrot.slane %v3955, %v3968
      %v3970 = vcombine.high %v3962, %v3962
      %v3971 = vcombine.high %v3969, %v3969
      %v3973 = vunpack.c.l.s4 1983009808
      %v3974 = vunpack.c.0.s8 %v3973
      %v3975 = vlaneseq
      %v3976 = vshrl.u32 %v3975, 7
      %v3977 = vsub.s32 %v3974, %v3976
      %v3978 = vrot.slane %v3758, %v3977
      %v3979 = vcombine.high %v3759, %v3759
      %v3981 = vunpack.c.l.s4 1983009808
      %v3982 = vunpack.c.0.s8 %v3981
      %v3983 = vlaneseq
      %v3984 = vshrl.u32 %v3983, 7
      %v3985 = vsub.s32 %v3982, %v3984
      %v3986 = vrot.slane %v3759, %v3985
      %v3988 = vunpack.c.l.s4 1983009808
      %v3989 = vunpack.c.0.s8 %v3988
      %v3990 = vlaneseq
      %v3991 = vshrl.u32 %v3990, 7
      %v3992 = vsub.s32 %v3989, %v3991
      %v3993 = vrot.slane %v3979, %v3992
      %v3994 = vcombine.high %v3986, %v3986
      %v3995 = vcombine.high %v3993, %v3993
      %v3997 = vunpack.c.l.s4 1983009808
      %v3998 = vunpack.c.0.s8 %v3997
      %v3999 = vlaneseq
      %v4000 = vshrl.u32 %v3999, 7
      %v4001 = vsub.s32 %v3998, %v4000
      %v4002 = vrot.slane %v3760, %v4001
      %v4003 = vcombine.high %v3761, %v3761
      %v4005 = vunpack.c.l.s4 1983009808
      %v4006 = vunpack.c.0.s8 %v4005
      %v4007 = vlaneseq
      %v4008 = vshrl.u32 %v4007, 7
      %v4009 = vsub.s32 %v4006, %v4008
      %v4010 = vrot.slane %v3761, %v4009
      %v4012 = vunpack.c.l.s4 1983009808
      %v4013 = vunpack.c.0.s8 %v4012
      %v4014 = vlaneseq
      %v4015 = vshrl.u32 %v4014, 7
      %v4016 = vsub.s32 %v4013, %v4015
      %v4017 = vrot.slane %v4003, %v4016
      %v4018 = vcombine.high %v4010, %v4010
      %v4019 = vcombine.high %v4017, %v4017
      %v4021 = vunpack.c.l.s4 1983009808
      %v4022 = vunpack.c.0.s8 %v4021
      %v4023 = vlaneseq
      %v4024 = vshrl.u32 %v4023, 7
      %v4025 = vsub.s32 %v4022, %v4024
      %v4026 = vrot.slane %v3762, %v4025
      %v4027 = vcombine.high %v3763, %v3763
      %v4029 = vunpack.c.l.s4 1983009808
      %v4030 = vunpack.c.0.s8 %v4029
      %v4031 = vlaneseq
      %v4032 = vshrl.u32 %v4031, 7
      %v4033 = vsub.s32 %v4030, %v4032
      %v4034 = vrot.slane %v3763, %v4033
      %v4036 = vunpack.c.l.s4 1983009808
      %v4037 = vunpack.c.0.s8 %v4036
      %v4038 = vlaneseq
      %v4039 = vshrl.u32 %v4038, 7
      %v4040 = vsub.s32 %v4037, %v4039
      %v4041 = vrot.slane %v4027, %v4040
      %v4042 = vcombine.high %v4034, %v4034
      %v4043 = vcombine.high %v4041, %v4041
      %v4045 = vunpack.c.l.s4 1983009808
      %v4046 = vunpack.c.0.s8 %v4045
      %v4047 = vlaneseq
      %v4048 = vshrl.u32 %v4047, 7
      %v4049 = vsub.s32 %v4046, %v4048
      %v4050 = vrot.slane %v3764, %v4049
      %v4051 = vcombine.high %v3765, %v3765
      %v4053 = vunpack.c.l.s4 1983009808
      %v4054 = vunpack.c.0.s8 %v4053
      %v4055 = vlaneseq
      %v4056 = vshrl.u32 %v4055, 7
      %v4057 = vsub.s32 %v4054, %v4056
      %v4058 = vrot.slane %v3765, %v4057
      %v4060 = vunpack.c.l.s4 1983009808
      %v4061 = vunpack.c.0.s8 %v4060
      %v4062 = vlaneseq
      %v4063 = vshrl.u32 %v4062, 7
      %v4064 = vsub.s32 %v4061, %v4063
      %v4065 = vrot.slane %v4051, %v4064
      %v4066 = vcombine.high %v4058, %v4058
      %v4067 = vcombine.high %v4065, %v4065
      %v4069 = vunpack.c.l.s4 1983009808
      %v4070 = vunpack.c.0.s8 %v4069
      %v4071 = vlaneseq
      %v4072 = vshrl.u32 %v4071, 7
      %v4073 = vsub.s32 %v4070, %v4072
      %v4074 = vrot.slane %v3766, %v4073
      %v4075 = vcombine.high %v3767, %v3767
      %v4077 = vunpack.c.l.s4 1983009808
      %v4078 = vunpack.c.0.s8 %v4077
      %v4079 = vlaneseq
      %v4080 = vshrl.u32 %v4079, 7
      %v4081 = vsub.s32 %v4078, %v4080
      %v4082 = vrot.slane %v3767, %v4081
      %v4084 = vunpack.c.l.s4 1983009808
      %v4085 = vunpack.c.0.s8 %v4084
      %v4086 = vlaneseq
      %v4087 = vshrl.u32 %v4086, 7
      %v4088 = vsub.s32 %v4085, %v4087
      %v4089 = vrot.slane %v4075, %v4088
      %v4090 = vcombine.high %v4082, %v4082
      %v4091 = vcombine.high %v4089, %v4089
      %v4093 = vunpack.c.l.s4 1983009808
      %v4094 = vunpack.c.0.s8 %v4093
      %v4095 = vlaneseq
      %v4096 = vshrl.u32 %v4095, 7
      %v4097 = vsub.s32 %v4094, %v4096
      %v4098 = vrot.slane %v3768, %v4097
      %v4099 = vcombine.high %v3769, %v3769
      %v4101 = vunpack.c.l.s4 1983009808
      %v4102 = vunpack.c.0.s8 %v4101
      %v4103 = vlaneseq
      %v4104 = vshrl.u32 %v4103, 7
      %v4105 = vsub.s32 %v4102, %v4104
      %v4106 = vrot.slane %v3769, %v4105
      %v4108 = vunpack.c.l.s4 1983009808
      %v4109 = vunpack.c.0.s8 %v4108
      %v4110 = vlaneseq
      %v4111 = vshrl.u32 %v4110, 7
      %v4112 = vsub.s32 %v4109, %v4111
      %v4113 = vrot.slane %v4099, %v4112
      %v4114 = vcombine.high %v4106, %v4106
      %v4115 = vcombine.high %v4113, %v4113
      %v4117 = vunpack.c.l.s4 1983009808
      %v4118 = vunpack.c.0.s8 %v4117
      %v4119 = vlaneseq
      %v4120 = vshrl.u32 %v4119, 7
      %v4121 = vsub.s32 %v4118, %v4120
      %v4122 = vrot.slane %v3770, %v4121
      %v4123 = vcombine.high %v3771, %v3771
      %v4125 = vunpack.c.l.s4 1983009808
      %v4126 = vunpack.c.0.s8 %v4125
      %v4127 = vlaneseq
      %v4128 = vshrl.u32 %v4127, 7
      %v4129 = vsub.s32 %v4126, %v4128
      %v4130 = vrot.slane %v3771, %v4129
      %v4132 = vunpack.c.l.s4 1983009808
      %v4133 = vunpack.c.0.s8 %v4132
      %v4134 = vlaneseq
      %v4135 = vshrl.u32 %v4134, 7
      %v4136 = vsub.s32 %v4133, %v4135
      %v4137 = vrot.slane %v4123, %v4136
      %v4138 = vcombine.high %v4130, %v4130
      %v4139 = vcombine.high %v4137, %v4137
      %v4141 = vunpack.c.l.s4 1983009808
      %v4142 = vunpack.c.0.s8 %v4141
      %v4143 = vlaneseq
      %v4144 = vshrl.u32 %v4143, 7
      %v4145 = vsub.s32 %v4142, %v4144
      %v4146 = vrot.slane %v3772, %v4145
      %v4147 = vcombine.high %v3773, %v3773
      %v4149 = vunpack.c.l.s4 1983009808
      %v4150 = vunpack.c.0.s8 %v4149
      %v4151 = vlaneseq
      %v4152 = vshrl.u32 %v4151, 7
      %v4153 = vsub.s32 %v4150, %v4152
      %v4154 = vrot.slane %v3773, %v4153
      %v4156 = vunpack.c.l.s4 1983009808
      %v4157 = vunpack.c.0.s8 %v4156
      %v4158 = vlaneseq
      %v4159 = vshrl.u32 %v4158, 7
      %v4160 = vsub.s32 %v4157, %v4159
      %v4161 = vrot.slane %v4147, %v4160
      %v4162 = vcombine.high %v4154, %v4154
      %v4163 = vcombine.high %v4161, %v4161
      %v4165 = vunpack.c.l.s4 1983009808
      %v4166 = vunpack.c.0.s8 %v4165
      %v4167 = vlaneseq
      %v4168 = vshrl.u32 %v4167, 7
      %v4169 = vsub.s32 %v4166, %v4168
      %v4170 = vrot.slane %v3774, %v4169
      %v4171 = vcombine.high %v3775, %v3775
      %v4173 = vunpack.c.l.s4 1983009808
      %v4174 = vunpack.c.0.s8 %v4173
      %v4175 = vlaneseq
      %v4176 = vshrl.u32 %v4175, 7
      %v4177 = vsub.s32 %v4174, %v4176
      %v4178 = vrot.slane %v3775, %v4177
      %v4180 = vunpack.c.l.s4 1983009808
      %v4181 = vunpack.c.0.s8 %v4180
      %v4182 = vlaneseq
      %v4183 = vshrl.u32 %v4182, 7
      %v4184 = vsub.s32 %v4181, %v4183
      %v4185 = vrot.slane %v4171, %v4184
      %v4186 = vcombine.high %v4178, %v4178
      %v4187 = vcombine.high %v4185, %v4185
      %v4189 = vunpack.c.l.s4 1983009808
      %v4190 = vunpack.c.0.s8 %v4189
      %v4191 = vlaneseq
      %v4192 = vshrl.u32 %v4191, 7
      %v4193 = vsub.s32 %v4190, %v4192
      %v4194 = vrot.slane %v3776, %v4193
      %v4195 = vcombine.low %v3818, %v3826
      %v4196 = vcombine.low %v3825, %v3827
      %v4198 = vunpack.c.l.s4 1983009808
      %v4199 = vunpack.c.0.s8 %v4198
      %v4200 = vlaneseq
      %v4201 = vshrl.u32 %v4200, 7
      %v4202 = vsub.s32 %v4199, %v4201
      %v4203 = vrot.slane %v4195, %v4202
      %v4205 = vunpack.c.l.s4 1983009808
      %v4206 = vunpack.c.0.s8 %v4205
      %v4207 = vlaneseq
      %v4208 = vshrl.u32 %v4207, 7
      %v4209 = vsub.s32 %v4206, %v4208
      %v4210 = vrot.slane %v4196, %v4209
      %v4211 = vcombine.low %v4203, %v4210
      %v4212 = vcombine.low %v3834, %v3842
      %v4213 = vcombine.low %v3850, %v3849
      %v4215 = vunpack.c.l.s4 1983009808
      %v4216 = vunpack.c.0.s8 %v4215
      %v4217 = vlaneseq
      %v4218 = vshrl.u32 %v4217, 7
      %v4219 = vsub.s32 %v4216, %v4218
      %v4220 = vrot.slane %v4212, %v4219
      %v4222 = vunpack.c.l.s4 1983009808
      %v4223 = vunpack.c.0.s8 %v4222
      %v4224 = vlaneseq
      %v4225 = vshrl.u32 %v4224, 7
      %v4226 = vsub.s32 %v4223, %v4225
      %v4227 = vrot.slane %v4213, %v4226
      %v4228 = vcombine.low %v4220, %v4227
      %v4229 = vcombine.low %v3851, %v3858
      %v4230 = vcombine.low %v3866, %v3874
      %v4232 = vunpack.c.l.s4 1983009808
      %v4233 = vunpack.c.0.s8 %v4232
      %v4234 = vlaneseq
      %v4235 = vshrl.u32 %v4234, 7
      %v4236 = vsub.s32 %v4233, %v4235
      %v4237 = vrot.slane %v4229, %v4236
      %v4239 = vunpack.c.l.s4 1983009808
      %v4240 = vunpack.c.0.s8 %v4239
      %v4241 = vlaneseq
      %v4242 = vshrl.u32 %v4241, 7
      %v4243 = vsub.s32 %v4240, %v4242
      %v4244 = vrot.slane %v4230, %v4243
      %v4245 = vcombine.low %v4237, %v4244
      %v4246 = vcombine.low %v3873, %v3875
      %v4247 = vcombine.low %v3882, %v3890
      %v4249 = vunpack.c.l.s4 1983009808
      %v4250 = vunpack.c.0.s8 %v4249
      %v4251 = vlaneseq
      %v4252 = vshrl.u32 %v4251, 7
      %v4253 = vsub.s32 %v4250, %v4252
      %v4254 = vrot.slane %v4246, %v4253
      %v4256 = vunpack.c.l.s4 1983009808
      %v4257 = vunpack.c.0.s8 %v4256
      %v4258 = vlaneseq
      %v4259 = vshrl.u32 %v4258, 7
      %v4260 = vsub.s32 %v4257, %v4259
      %v4261 = vrot.slane %v4247, %v4260
      %v4262 = vcombine.low %v4254, %v4261
      %v4263 = vcombine.low %v3898, %v3897
      %v4264 = vcombine.low %v3899, %v3906
      %v4266 = vunpack.c.l.s4 1983009808
      %v4267 = vunpack.c.0.s8 %v4266
      %v4268 = vlaneseq
      %v4269 = vshrl.u32 %v4268, 7
      %v4270 = vsub.s32 %v4267, %v4269
      %v4271 = vrot.slane %v4263, %v4270
      %v4273 = vunpack.c.l.s4 1983009808
      %v4274 = vunpack.c.0.s8 %v4273
      %v4275 = vlaneseq
      %v4276 = vshrl.u32 %v4275, 7
      %v4277 = vsub.s32 %v4274, %v4276
      %v4278 = vrot.slane %v4264, %v4277
      %v4279 = vcombine.low %v4271, %v4278
      %v4280 = vcombine.low %v3914, %v3922
      %v4281 = vcombine.low %v3921, %v3923
      %v4283 = vunpack.c.l.s4 1983009808
      %v4284 = vunpack.c.0.s8 %v4283
      %v4285 = vlaneseq
      %v4286 = vshrl.u32 %v4285, 7
      %v4287 = vsub.s32 %v4284, %v4286
      %v4288 = vrot.slane %v4280, %v4287
      %v4290 = vunpack.c.l.s4 1983009808
      %v4291 = vunpack.c.0.s8 %v4290
      %v4292 = vlaneseq
      %v4293 = vshrl.u32 %v4292, 7
      %v4294 = vsub.s32 %v4291, %v4293
      %v4295 = vrot.slane %v4281, %v4294
      %v4296 = vcombine.low %v4288, %v4295
      %v4297 = vcombine.low %v3930, %v3938
      %v4298 = vcombine.low %v3946, %v3945
      %v4300 = vunpack.c.l.s4 1983009808
      %v4301 = vunpack.c.0.s8 %v4300
      %v4302 = vlaneseq
      %v4303 = vshrl.u32 %v4302, 7
      %v4304 = vsub.s32 %v4301, %v4303
      %v4305 = vrot.slane %v4297, %v4304
      %v4307 = vunpack.c.l.s4 1983009808
      %v4308 = vunpack.c.0.s8 %v4307
      %v4309 = vlaneseq
      %v4310 = vshrl.u32 %v4309, 7
      %v4311 = vsub.s32 %v4308, %v4310
      %v4312 = vrot.slane %v4298, %v4311
      %v4313 = vcombine.low %v4305, %v4312
      %v4314 = vcombine.low %v3947, %v3954
      %v4315 = vcombine.low %v3962, %v3970
      %v4317 = vunpack.c.l.s4 1983009808
      %v4318 = vunpack.c.0.s8 %v4317
      %v4319 = vlaneseq
      %v4320 = vshrl.u32 %v4319, 7
      %v4321 = vsub.s32 %v4318, %v4320
      %v4322 = vrot.slane %v4314, %v4321
      %v4324 = vunpack.c.l.s4 1983009808
      %v4325 = vunpack.c.0.s8 %v4324
      %v4326 = vlaneseq
      %v4327 = vshrl.u32 %v4326, 7
      %v4328 = vsub.s32 %v4325, %v4327
      %v4329 = vrot.slane %v4315, %v4328
      %v4330 = vcombine.low %v4322, %v4329
      %v4331 = vcombine.low %v3969, %v3971
      %v4332 = vcombine.low %v3978, %v3986
      %v4334 = vunpack.c.l.s4 1983009808
      %v4335 = vunpack.c.0.s8 %v4334
      %v4336 = vlaneseq
      %v4337 = vshrl.u32 %v4336, 7
      %v4338 = vsub.s32 %v4335, %v4337
      %v4339 = vrot.slane %v4331, %v4338
      %v4341 = vunpack.c.l.s4 1983009808
      %v4342 = vunpack.c.0.s8 %v4341
      %v4343 = vlaneseq
      %v4344 = vshrl.u32 %v4343, 7
      %v4345 = vsub.s32 %v4342, %v4344
      %v4346 = vrot.slane %v4332, %v4345
      %v4347 = vcombine.low %v4339, %v4346
      %v4348 = vcombine.low %v3994, %v3993
      %v4349 = vcombine.low %v3995, %v4002
      %v4351 = vunpack.c.l.s4 1983009808
      %v4352 = vunpack.c.0.s8 %v4351
      %v4353 = vlaneseq
      %v4354 = vshrl.u32 %v4353, 7
      %v4355 = vsub.s32 %v4352, %v4354
      %v4356 = vrot.slane %v4348, %v4355
      %v4358 = vunpack.c.l.s4 1983009808
      %v4359 = vunpack.c.0.s8 %v4358
      %v4360 = vlaneseq
      %v4361 = vshrl.u32 %v4360, 7
      %v4362 = vsub.s32 %v4359, %v4361
      %v4363 = vrot.slane %v4349, %v4362
      %v4364 = vcombine.low %v4356, %v4363
      %v4365 = vcombine.low %v4010, %v4018
      %v4366 = vcombine.low %v4017, %v4019
      %v4368 = vunpack.c.l.s4 1983009808
      %v4369 = vunpack.c.0.s8 %v4368
      %v4370 = vlaneseq
      %v4371 = vshrl.u32 %v4370, 7
      %v4372 = vsub.s32 %v4369, %v4371
      %v4373 = vrot.slane %v4365, %v4372
      %v4375 = vunpack.c.l.s4 1983009808
      %v4376 = vunpack.c.0.s8 %v4375
      %v4377 = vlaneseq
      %v4378 = vshrl.u32 %v4377, 7
      %v4379 = vsub.s32 %v4376, %v4378
      %v4380 = vrot.slane %v4366, %v4379
      %v4381 = vcombine.low %v4373, %v4380
      %v4382 = vcombine.low %v4026, %v4034
      %v4383 = vcombine.low %v4042, %v4041
      %v4385 = vunpack.c.l.s4 1983009808
      %v4386 = vunpack.c.0.s8 %v4385
      %v4387 = vlaneseq
      %v4388 = vshrl.u32 %v4387, 7
      %v4389 = vsub.s32 %v4386, %v4388
      %v4390 = vrot.slane %v4382, %v4389
      %v4392 = vunpack.c.l.s4 1983009808
      %v4393 = vunpack.c.0.s8 %v4392
      %v4394 = vlaneseq
      %v4395 = vshrl.u32 %v4394, 7
      %v4396 = vsub.s32 %v4393, %v4395
      %v4397 = vrot.slane %v4383, %v4396
      %v4398 = vcombine.low %v4390, %v4397
      %v4399 = vcombine.low %v4043, %v4050
      %v4400 = vcombine.low %v4058, %v4066
      %v4402 = vunpack.c.l.s4 1983009808
      %v4403 = vunpack.c.0.s8 %v4402
      %v4404 = vlaneseq
      %v4405 = vshrl.u32 %v4404, 7
      %v4406 = vsub.s32 %v4403, %v4405
      %v4407 = vrot.slane %v4399, %v4406
      %v4409 = vunpack.c.l.s4 1983009808
      %v4410 = vunpack.c.0.s8 %v4409
      %v4411 = vlaneseq
      %v4412 = vshrl.u32 %v4411, 7
      %v4413 = vsub.s32 %v4410, %v4412
      %v4414 = vrot.slane %v4400, %v4413
      %v4415 = vcombine.low %v4407, %v4414
      %v4416 = vcombine.low %v4065, %v4067
      %v4417 = vcombine.low %v4074, %v4082
      %v4419 = vunpack.c.l.s4 1983009808
      %v4420 = vunpack.c.0.s8 %v4419
      %v4421 = vlaneseq
      %v4422 = vshrl.u32 %v4421, 7
      %v4423 = vsub.s32 %v4420, %v4422
      %v4424 = vrot.slane %v4416, %v4423
      %v4426 = vunpack.c.l.s4 1983009808
      %v4427 = vunpack.c.0.s8 %v4426
      %v4428 = vlaneseq
      %v4429 = vshrl.u32 %v4428, 7
      %v4430 = vsub.s32 %v4427, %v4429
      %v4431 = vrot.slane %v4417, %v4430
      %v4432 = vcombine.low %v4424, %v4431
      %v4433 = vcombine.low %v4090, %v4089
      %v4434 = vcombine.low %v4091, %v4098
      %v4436 = vunpack.c.l.s4 1983009808
      %v4437 = vunpack.c.0.s8 %v4436
      %v4438 = vlaneseq
      %v4439 = vshrl.u32 %v4438, 7
      %v4440 = vsub.s32 %v4437, %v4439
      %v4441 = vrot.slane %v4433, %v4440
      %v4443 = vunpack.c.l.s4 1983009808
      %v4444 = vunpack.c.0.s8 %v4443
      %v4445 = vlaneseq
      %v4446 = vshrl.u32 %v4445, 7
      %v4447 = vsub.s32 %v4444, %v4446
      %v4448 = vrot.slane %v4434, %v4447
      %v4449 = vcombine.low %v4441, %v4448
      %v4450 = vcombine.low %v4106, %v4114
      %v4451 = vcombine.low %v4113, %v4115
      %v4453 = vunpack.c.l.s4 1983009808
      %v4454 = vunpack.c.0.s8 %v4453
      %v4455 = vlaneseq
      %v4456 = vshrl.u32 %v4455, 7
      %v4457 = vsub.s32 %v4454, %v4456
      %v4458 = vrot.slane %v4450, %v4457
      %v4460 = vunpack.c.l.s4 1983009808
      %v4461 = vunpack.c.0.s8 %v4460
      %v4462 = vlaneseq
      %v4463 = vshrl.u32 %v4462, 7
      %v4464 = vsub.s32 %v4461, %v4463
      %v4465 = vrot.slane %v4451, %v4464
      %v4466 = vcombine.low %v4458, %v4465
      %v4467 = vcombine.low %v4122, %v4130
      %v4468 = vcombine.low %v4138, %v4137
      %v4470 = vunpack.c.l.s4 1983009808
      %v4471 = vunpack.c.0.s8 %v4470
      %v4472 = vlaneseq
      %v4473 = vshrl.u32 %v4472, 7
      %v4474 = vsub.s32 %v4471, %v4473
      %v4475 = vrot.slane %v4467, %v4474
      %v4477 = vunpack.c.l.s4 1983009808
      %v4478 = vunpack.c.0.s8 %v4477
      %v4479 = vlaneseq
      %v4480 = vshrl.u32 %v4479, 7
      %v4481 = vsub.s32 %v4478, %v4480
      %v4482 = vrot.slane %v4468, %v4481
      %v4483 = vcombine.low %v4475, %v4482
      %v4484 = vcombine.low %v4139, %v4146
      %v4485 = vcombine.low %v4154, %v4162
      %v4487 = vunpack.c.l.s4 1983009808
      %v4488 = vunpack.c.0.s8 %v4487
      %v4489 = vlaneseq
      %v4490 = vshrl.u32 %v4489, 7
      %v4491 = vsub.s32 %v4488, %v4490
      %v4492 = vrot.slane %v4484, %v4491
      %v4494 = vunpack.c.l.s4 1983009808
      %v4495 = vunpack.c.0.s8 %v4494
      %v4496 = vlaneseq
      %v4497 = vshrl.u32 %v4496, 7
      %v4498 = vsub.s32 %v4495, %v4497
      %v4499 = vrot.slane %v4485, %v4498
      %v4500 = vcombine.low %v4492, %v4499
      %v4501 = vcombine.low %v4161, %v4163
      %v4502 = vcombine.low %v4170, %v4178
      %v4504 = vunpack.c.l.s4 1983009808
      %v4505 = vunpack.c.0.s8 %v4504
      %v4506 = vlaneseq
      %v4507 = vshrl.u32 %v4506, 7
      %v4508 = vsub.s32 %v4505, %v4507
      %v4509 = vrot.slane %v4501, %v4508
      %v4511 = vunpack.c.l.s4 1983009808
      %v4512 = vunpack.c.0.s8 %v4511
      %v4513 = vlaneseq
      %v4514 = vshrl.u32 %v4513, 7
      %v4515 = vsub.s32 %v4512, %v4514
      %v4516 = vrot.slane %v4502, %v4515
      %v4517 = vcombine.low %v4509, %v4516
      %v4518 = vcombine.low %v4186, %v4185
      %v4519 = vcombine.low %v4187, %v4194
      %v4521 = vunpack.c.l.s4 1983009808
      %v4522 = vunpack.c.0.s8 %v4521
      %v4523 = vlaneseq
      %v4524 = vshrl.u32 %v4523, 7
      %v4525 = vsub.s32 %v4522, %v4524
      %v4526 = vrot.slane %v4518, %v4525
      %v4528 = vunpack.c.l.s4 1983009808
      %v4529 = vunpack.c.0.s8 %v4528
      %v4530 = vlaneseq
      %v4531 = vshrl.u32 %v4530, 7
      %v4532 = vsub.s32 %v4529, %v4531
      %v4533 = vrot.slane %v4519, %v4532
      %v4534 = vcombine.low %v4526, %v4533
      %v4535 = vsel %vm3034, %v4211, 0
      %v4537 = vsel %vm3034, %v4228, 0
      %v4539 = vsel %vm3034, %v4245, 0
      %v4541 = vsel %vm3034, %v4262, 0
      %v4543 = vsel %vm3034, %v4279, 0
      %v4545 = vsel %vm3034, %v4296, 0
      %v4547 = vsel %vm3034, %v4313, 0
      %v4549 = vsel %vm3034, %v4330, 0
      %v4551 = vsel %vm3034, %v4347, 0
      %v4553 = vsel %vm3034, %v4364, 0
      %v4555 = vsel %vm3034, %v4381, 0
      %v4557 = vsel %vm3034, %v4398, 0
      %v4559 = vsel %vm3034, %v4415, 0
      %v4561 = vsel %vm3034, %v4432, 0
      %v4563 = vsel %vm3034, %v4449, 0
      %v4565 = vsel %vm3034, %v4466, 0
      %v4567 = vsel %vm3034, %v4483, 0
      %v4569 = vsel %vm3034, %v4500, 0
      %v4571 = vsel %vm3034, %v4517, 0
      %v4573 = vsel %vm3034, %v4534, 0
      %v4576 = vsel %vm766, %v3778, 0
      %4578 = vmatprep.subr.mxu0 0.0
      %4579 = vmatpush1.msra.mxu0 %v3777
      %4580 = vmatprep.subr.mxu0 0.0
      %4581 = vmatpush1.msra.mxu0 %v4576
      %4582 = vmatprep.subr.mxu0 0.0
      %4583 = vmatpush1.msra.mxu0 0.0
      %4584 = vmatprep.subr.mxu0 0.0
      %4585 = vmatpush1.msra.mxu0 0.0
      %4586 = vmatprep.subr.mxu0 0.0
      %4587 = vmatpush1.msra.mxu0 0.0
      %4588 = vmatprep.subr.mxu0 0.0
      %4589 = vmatpush1.msra.mxu0 0.0
      %4590 = vmatprep.subr.mxu0 0.0
      %4591 = vmatpush1.msra.mxu0 0.0
      %4592 = vmatprep.subr.mxu0 0.0
      %4593 = vmatpush1.msra.mxu0 0.0
      %4594 = vmatprep.subr.mxu0 0.0
      %4595 = vmatpush1.msra.mxu0 0.0
      %4596 = vmatprep.subr.mxu0 0.0
      %4597 = vmatpush1.msra.mxu0 0.0
      %4598 = vmatprep.subr.mxu0 0.0
      %4599 = vmatpush1.msra.mxu0 0.0
      %4600 = vmatprep.subr.mxu0 0.0
      %4601 = vmatpush1.msra.mxu0 0.0
      %4602 = vmatprep.subr.mxu0 0.0
      %4603 = vmatpush1.msra.mxu0 0.0
      %4604 = vmatprep.subr.mxu0 0.0
      %4605 = vmatpush1.msra.mxu0 0.0
      %4606 = vmatprep.subr.mxu0 0.0
      %4607 = vmatpush1.msra.mxu0 0.0
      %4608 = vmatprep.subr.mxu0 0.0
      %4609 = vmatpush1.msra.mxu0 0.0
      %4610 = vmatprep.subr.mxu0 0.0
      %4611 = vmatpush1.msra.mxu0 0.0
      %4612 = vmatprep.subr.mxu0 0.0
      %4613 = vmatpush1.msra.mxu0 0.0
      %4614 = vmatprep.subr.mxu0 0.0
      %4615 = vmatpush1.msra.mxu0 0.0
      %4616 = vmatprep.subr.mxu0 0.0
      %4617 = vmatpush1.msra.mxu0 0.0
      %4618 = vmatprep.subr.mxu0 0.0
      %4619 = vmatpush1.msra.mxu0 0.0
      %4620 = vmatprep.subr.mxu0 0.0
      %4621 = vmatpush1.msra.mxu0 0.0
      %4622 = vmatprep.subr.mxu0 0.0
      %4623 = vmatpush1.msra.mxu0 0.0
      %4624 = vmatprep.subr.mxu0 0.0
      %4625 = vmatpush1.msra.mxu0 0.0
      %4626 = vmatprep.subr.mxu0 0.0
      %4627 = vmatpush1.msra.mxu0 0.0
      %4628 = vmatprep.subr.mxu0 0.0
      %4629 = vmatpush1.msra.mxu0 0.0
      %4630 = vmatprep.subr.mxu0 0.0
      %4631 = vmatpush1.msra.mxu0 0.0
      %4632 = vmatprep.subr.mxu0 0.0
      %4633 = vmatpush1.msra.mxu0 0.0
      %4634 = vmatprep.subr.mxu0 0.0
      %4635 = vmatpush1.msra.mxu0 0.0
      %4636 = vmatprep.subr.mxu0 0.0
      %4637 = vmatpush1.msra.mxu0 0.0
      %4638 = vmatprep.subr.mxu0 0.0
      %4639 = vmatpush1.msra.mxu0 0.0
      %4640 = vmatprep.subr.mxu0 0.0
      %4641 = vmatpush1.msra.mxu0 0.0
      %4642 = vmatprep.mubr.f32.mxu0 0.0
      %4643 = vmatmul.mubr.f32.gmra.mrb[0].mxu0 %v4535
      %v4644 = vpop.f32.mrb[0].mxu0
      %v4645 = vadd.f32 0.0, %v4644
      %v4646 = vpop.f32.mrb[0].mxu0
      %4647 = vmatprep.mubr.f32.mxu0 0.0
      %4648 = vmatmul.mubr.f32.gmra.mrb[0].mxu0 %v4537
      %v4649 = vpop.f32.mrb[0].mxu0
      %v4650 = vadd.f32 0.0, %v4649
      %v4651 = vpop.f32.mrb[0].mxu0
      %4652 = vmatprep.mubr.f32.mxu0 0.0
      %4653 = vmatmul.mubr.f32.gmra.mrb[0].mxu0 %v4539
      %v4654 = vpop.f32.mrb[0].mxu0
      %v4655 = vadd.f32 0.0, %v4654
      %v4656 = vpop.f32.mrb[0].mxu0
      %4657 = vmatprep.mubr.f32.mxu0 0.0
      %4658 = vmatmul.mubr.f32.gmra.mrb[0].mxu0 %v4541
      %v4659 = vpop.f32.mrb[0].mxu0
      %v4660 = vadd.f32 0.0, %v4659
      %v4661 = vpop.f32.mrb[0].mxu0
      %4662 = vmatprep.mubr.f32.mxu0 0.0
      %4663 = vmatmul.mubr.f32.gmra.mrb[0].mxu0 %v4543
      %v4664 = vpop.f32.mrb[0].mxu0
      %v4665 = vadd.f32 0.0, %v4664
      %v4666 = vpop.f32.mrb[0].mxu0
      %4667 = vmatprep.mubr.f32.mxu0 0.0
      %4668 = vmatmul.mubr.f32.gmra.mrb[0].mxu0 %v4545
      %v4669 = vpop.f32.mrb[0].mxu0
      %v4670 = vadd.f32 0.0, %v4669
      %v4671 = vpop.f32.mrb[0].mxu0
      %4672 = vmatprep.mubr.f32.mxu0 0.0
      %4673 = vmatmul.mubr.f32.gmra.mrb[0].mxu0 %v4547
      %v4674 = vpop.f32.mrb[0].mxu0
      %v4675 = vadd.f32 0.0, %v4674
      %v4676 = vpop.f32.mrb[0].mxu0
      %4677 = vmatprep.mubr.f32.mxu0 0.0
      %4678 = vmatmul.mubr.f32.gmra.mrb[0].mxu0 %v4549
      %v4679 = vpop.f32.mrb[0].mxu0
      %v4680 = vadd.f32 0.0, %v4679
      %v4681 = vpop.f32.mrb[0].mxu0
      %4682 = vmatprep.mubr.f32.mxu0 0.0
      %4683 = vmatmul.mubr.f32.gmra.mrb[0].mxu0 %v4551
      %v4684 = vpop.f32.mrb[0].mxu0
      %v4685 = vadd.f32 0.0, %v4684
      %v4686 = vpop.f32.mrb[0].mxu0
      %4687 = vmatprep.mubr.f32.mxu0 0.0
      %4688 = vmatmul.mubr.f32.gmra.mrb[0].mxu0 %v4553
      %v4689 = vpop.f32.mrb[0].mxu0
      %v4690 = vadd.f32 0.0, %v4689
      %v4691 = vpop.f32.mrb[0].mxu0
      %4692 = vmatprep.mubr.f32.mxu0 0.0
      %4693 = vmatmul.mubr.f32.gmra.mrb[0].mxu0 %v4555
      %v4694 = vpop.f32.mrb[0].mxu0
      %v4695 = vadd.f32 0.0, %v4694
      %v4696 = vpop.f32.mrb[0].mxu0
      %4697 = vmatprep.mubr.f32.mxu0 0.0
      %4698 = vmatmul.mubr.f32.gmra.mrb[0].mxu0 %v4557
      %v4699 = vpop.f32.mrb[0].mxu0
      %v4700 = vadd.f32 0.0, %v4699
      %v4701 = vpop.f32.mrb[0].mxu0
      %4702 = vmatprep.mubr.f32.mxu0 0.0
      %4703 = vmatmul.mubr.f32.gmra.mrb[0].mxu0 %v4559
      %v4704 = vpop.f32.mrb[0].mxu0
      %v4705 = vadd.f32 0.0, %v4704
      %v4706 = vpop.f32.mrb[0].mxu0
      %4707 = vmatprep.mubr.f32.mxu0 0.0
      %4708 = vmatmul.mubr.f32.gmra.mrb[0].mxu0 %v4561
      %v4709 = vpop.f32.mrb[0].mxu0
      %v4710 = vadd.f32 0.0, %v4709
      %v4711 = vpop.f32.mrb[0].mxu0
      %4712 = vmatprep.mubr.f32.mxu0 0.0
      %4713 = vmatmul.mubr.f32.gmra.mrb[0].mxu0 %v4563
      %v4714 = vpop.f32.mrb[0].mxu0
      %v4715 = vadd.f32 0.0, %v4714
      %v4716 = vpop.f32.mrb[0].mxu0
      %4717 = vmatprep.mubr.f32.mxu0 0.0
      %4718 = vmatmul.mubr.f32.gmra.mrb[0].mxu0 %v4565
      %v4719 = vpop.f32.mrb[0].mxu0
      %v4720 = vadd.f32 0.0, %v4719
      %v4721 = vpop.f32.mrb[0].mxu0
      %4722 = vmatprep.mubr.f32.mxu0 0.0
      %4723 = vmatmul.mubr.f32.gmra.mrb[0].mxu0 %v4567
      %v4724 = vpop.f32.mrb[0].mxu0
      %v4725 = vadd.f32 0.0, %v4724
      %v4726 = vpop.f32.mrb[0].mxu0
      %4727 = vmatprep.mubr.f32.mxu0 0.0
      %4728 = vmatmul.mubr.f32.gmra.mrb[0].mxu0 %v4569
      %v4729 = vpop.f32.mrb[0].mxu0
      %v4730 = vadd.f32 0.0, %v4729
      %v4731 = vpop.f32.mrb[0].mxu0
      %4732 = vmatprep.mubr.f32.mxu0 0.0
      %4733 = vmatmul.mubr.f32.gmra.mrb[0].mxu0 %v4571
      %v4734 = vpop.f32.mrb[0].mxu0
      %v4735 = vadd.f32 0.0, %v4734
      %v4736 = vpop.f32.mrb[0].mxu0
      %4737 = vmatprep.mubr.f32.mxu0 0.0
      %4738 = vmatmul.mubr.f32.gmra.mrb[0].mxu0 %v4573
      %v4739 = vpop.f32.mrb[0].mxu0
      %v4740 = vadd.f32 0.0, %v4739
      %v4741 = vpop.f32.mrb[0].mxu0
      %4742 = vdwg.mxu0
      %v4763 = vcombine.high %v4645, %v4645
      %v4765 = vunpack.c.l.s4 1983009808
      %v4766 = vunpack.c.0.s8 %v4765
      %v4767 = vlaneseq
      %v4768 = vshrl.u32 %v4767, 7
      %v4769 = vsub.s32 %v4766, %v4768
      %v4770 = vrot.slane %v4645, %v4769
      %v4772 = vunpack.c.l.s4 1983009808
      %v4773 = vunpack.c.0.s8 %v4772
      %v4774 = vlaneseq
      %v4775 = vshrl.u32 %v4774, 7
      %v4776 = vsub.s32 %v4773, %v4775
      %v4777 = vrot.slane %v4763, %v4776
      %v4778 = vcombine.high %v4770, %v4770
      %v4779 = vcombine.high %v4777, %v4777
      %v4780 = vcombine.high %v4650, %v4650
      %v4782 = vunpack.c.l.s4 1983009808
      %v4783 = vunpack.c.0.s8 %v4782
      %v4784 = vlaneseq
      %v4785 = vshrl.u32 %v4784, 7
      %v4786 = vsub.s32 %v4783, %v4785
      %v4787 = vrot.slane %v4650, %v4786
      %v4789 = vunpack.c.l.s4 1983009808
      %v4790 = vunpack.c.0.s8 %v4789
      %v4791 = vlaneseq
      %v4792 = vshrl.u32 %v4791, 7
      %v4793 = vsub.s32 %v4790, %v4792
      %v4794 = vrot.slane %v4780, %v4793
      %v4795 = vcombine.high %v4787, %v4787
      %v4796 = vcombine.high %v4794, %v4794
      %v4797 = vcombine.high %v4655, %v4655
      %v4799 = vunpack.c.l.s4 1983009808
      %v4800 = vunpack.c.0.s8 %v4799
      %v4801 = vlaneseq
      %v4802 = vshrl.u32 %v4801, 7
      %v4803 = vsub.s32 %v4800, %v4802
      %v4804 = vrot.slane %v4655, %v4803
      %v4806 = vunpack.c.l.s4 1983009808
      %v4807 = vunpack.c.0.s8 %v4806
      %v4808 = vlaneseq
      %v4809 = vshrl.u32 %v4808, 7
      %v4810 = vsub.s32 %v4807, %v4809
      %v4811 = vrot.slane %v4797, %v4810
      %v4812 = vcombine.high %v4804, %v4804
      %v4813 = vcombine.high %v4811, %v4811
      %v4814 = vcombine.high %v4660, %v4660
      %v4816 = vunpack.c.l.s4 1983009808
      %v4817 = vunpack.c.0.s8 %v4816
      %v4818 = vlaneseq
      %v4819 = vshrl.u32 %v4818, 7
      %v4820 = vsub.s32 %v4817, %v4819
      %v4821 = vrot.slane %v4660, %v4820
      %v4823 = vunpack.c.l.s4 1983009808
      %v4824 = vunpack.c.0.s8 %v4823
      %v4825 = vlaneseq
      %v4826 = vshrl.u32 %v4825, 7
      %v4827 = vsub.s32 %v4824, %v4826
      %v4828 = vrot.slane %v4814, %v4827
      %v4829 = vcombine.high %v4821, %v4821
      %v4830 = vcombine.high %v4828, %v4828
      %v4831 = vcombine.high %v4665, %v4665
      %v4833 = vunpack.c.l.s4 1983009808
      %v4834 = vunpack.c.0.s8 %v4833
      %v4835 = vlaneseq
      %v4836 = vshrl.u32 %v4835, 7
      %v4837 = vsub.s32 %v4834, %v4836
      %v4838 = vrot.slane %v4665, %v4837
      %v4840 = vunpack.c.l.s4 1983009808
      %v4841 = vunpack.c.0.s8 %v4840
      %v4842 = vlaneseq
      %v4843 = vshrl.u32 %v4842, 7
      %v4844 = vsub.s32 %v4841, %v4843
      %v4845 = vrot.slane %v4831, %v4844
      %v4846 = vcombine.high %v4838, %v4838
      %v4847 = vcombine.high %v4845, %v4845
      %v4848 = vcombine.high %v4670, %v4670
      %v4850 = vunpack.c.l.s4 1983009808
      %v4851 = vunpack.c.0.s8 %v4850
      %v4852 = vlaneseq
      %v4853 = vshrl.u32 %v4852, 7
      %v4854 = vsub.s32 %v4851, %v4853
      %v4855 = vrot.slane %v4670, %v4854
      %v4857 = vunpack.c.l.s4 1983009808
      %v4858 = vunpack.c.0.s8 %v4857
      %v4859 = vlaneseq
      %v4860 = vshrl.u32 %v4859, 7
      %v4861 = vsub.s32 %v4858, %v4860
      %v4862 = vrot.slane %v4848, %v4861
      %v4863 = vcombine.high %v4855, %v4855
      %v4864 = vcombine.high %v4862, %v4862
      %v4865 = vcombine.high %v4675, %v4675
      %v4867 = vunpack.c.l.s4 1983009808
      %v4868 = vunpack.c.0.s8 %v4867
      %v4869 = vlaneseq
      %v4870 = vshrl.u32 %v4869, 7
      %v4871 = vsub.s32 %v4868, %v4870
      %v4872 = vrot.slane %v4675, %v4871
      %v4874 = vunpack.c.l.s4 1983009808
      %v4875 = vunpack.c.0.s8 %v4874
      %v4876 = vlaneseq
      %v4877 = vshrl.u32 %v4876, 7
      %v4878 = vsub.s32 %v4875, %v4877
      %v4879 = vrot.slane %v4865, %v4878
      %v4880 = vcombine.high %v4872, %v4872
      %v4881 = vcombine.high %v4879, %v4879
      %v4882 = vcombine.high %v4680, %v4680
      %v4884 = vunpack.c.l.s4 1983009808
      %v4885 = vunpack.c.0.s8 %v4884
      %v4886 = vlaneseq
      %v4887 = vshrl.u32 %v4886, 7
      %v4888 = vsub.s32 %v4885, %v4887
      %v4889 = vrot.slane %v4680, %v4888
      %v4891 = vunpack.c.l.s4 1983009808
      %v4892 = vunpack.c.0.s8 %v4891
      %v4893 = vlaneseq
      %v4894 = vshrl.u32 %v4893, 7
      %v4895 = vsub.s32 %v4892, %v4894
      %v4896 = vrot.slane %v4882, %v4895
      %v4897 = vcombine.high %v4889, %v4889
      %v4898 = vcombine.high %v4896, %v4896
      %v4899 = vcombine.high %v4685, %v4685
      %v4901 = vunpack.c.l.s4 1983009808
      %v4902 = vunpack.c.0.s8 %v4901
      %v4903 = vlaneseq
      %v4904 = vshrl.u32 %v4903, 7
      %v4905 = vsub.s32 %v4902, %v4904
      %v4906 = vrot.slane %v4685, %v4905
      %v4908 = vunpack.c.l.s4 1983009808
      %v4909 = vunpack.c.0.s8 %v4908
      %v4910 = vlaneseq
      %v4911 = vshrl.u32 %v4910, 7
      %v4912 = vsub.s32 %v4909, %v4911
      %v4913 = vrot.slane %v4899, %v4912
      %v4914 = vcombine.high %v4906, %v4906
      %v4915 = vcombine.high %v4913, %v4913
      %v4916 = vcombine.high %v4690, %v4690
      %v4918 = vunpack.c.l.s4 1983009808
      %v4919 = vunpack.c.0.s8 %v4918
      %v4920 = vlaneseq
      %v4921 = vshrl.u32 %v4920, 7
      %v4922 = vsub.s32 %v4919, %v4921
      %v4923 = vrot.slane %v4690, %v4922
      %v4925 = vunpack.c.l.s4 1983009808
      %v4926 = vunpack.c.0.s8 %v4925
      %v4927 = vlaneseq
      %v4928 = vshrl.u32 %v4927, 7
      %v4929 = vsub.s32 %v4926, %v4928
      %v4930 = vrot.slane %v4916, %v4929
      %v4931 = vcombine.high %v4923, %v4923
      %v4932 = vcombine.high %v4930, %v4930
      %v4933 = vcombine.high %v4695, %v4695
      %v4935 = vunpack.c.l.s4 1983009808
      %v4936 = vunpack.c.0.s8 %v4935
      %v4937 = vlaneseq
      %v4938 = vshrl.u32 %v4937, 7
      %v4939 = vsub.s32 %v4936, %v4938
      %v4940 = vrot.slane %v4695, %v4939
      %v4942 = vunpack.c.l.s4 1983009808
      %v4943 = vunpack.c.0.s8 %v4942
      %v4944 = vlaneseq
      %v4945 = vshrl.u32 %v4944, 7
      %v4946 = vsub.s32 %v4943, %v4945
      %v4947 = vrot.slane %v4933, %v4946
      %v4948 = vcombine.high %v4940, %v4940
      %v4949 = vcombine.high %v4947, %v4947
      %v4950 = vcombine.high %v4700, %v4700
      %v4952 = vunpack.c.l.s4 1983009808
      %v4953 = vunpack.c.0.s8 %v4952
      %v4954 = vlaneseq
      %v4955 = vshrl.u32 %v4954, 7
      %v4956 = vsub.s32 %v4953, %v4955
      %v4957 = vrot.slane %v4700, %v4956
      %v4959 = vunpack.c.l.s4 1983009808
      %v4960 = vunpack.c.0.s8 %v4959
      %v4961 = vlaneseq
      %v4962 = vshrl.u32 %v4961, 7
      %v4963 = vsub.s32 %v4960, %v4962
      %v4964 = vrot.slane %v4950, %v4963
      %v4965 = vcombine.high %v4957, %v4957
      %v4966 = vcombine.high %v4964, %v4964
      %v4967 = vcombine.high %v4705, %v4705
      %v4969 = vunpack.c.l.s4 1983009808
      %v4970 = vunpack.c.0.s8 %v4969
      %v4971 = vlaneseq
      %v4972 = vshrl.u32 %v4971, 7
      %v4973 = vsub.s32 %v4970, %v4972
      %v4974 = vrot.slane %v4705, %v4973
      %v4976 = vunpack.c.l.s4 1983009808
      %v4977 = vunpack.c.0.s8 %v4976
      %v4978 = vlaneseq
      %v4979 = vshrl.u32 %v4978, 7
      %v4980 = vsub.s32 %v4977, %v4979
      %v4981 = vrot.slane %v4967, %v4980
      %v4982 = vcombine.high %v4974, %v4974
      %v4983 = vcombine.high %v4981, %v4981
      %v4984 = vcombine.high %v4710, %v4710
      %v4986 = vunpack.c.l.s4 1983009808
      %v4987 = vunpack.c.0.s8 %v4986
      %v4988 = vlaneseq
      %v4989 = vshrl.u32 %v4988, 7
      %v4990 = vsub.s32 %v4987, %v4989
      %v4991 = vrot.slane %v4710, %v4990
      %v4993 = vunpack.c.l.s4 1983009808
      %v4994 = vunpack.c.0.s8 %v4993
      %v4995 = vlaneseq
      %v4996 = vshrl.u32 %v4995, 7
      %v4997 = vsub.s32 %v4994, %v4996
      %v4998 = vrot.slane %v4984, %v4997
      %v4999 = vcombine.high %v4991, %v4991
      %v5000 = vcombine.high %v4998, %v4998
      %v5001 = vcombine.high %v4715, %v4715
      %v5003 = vunpack.c.l.s4 1983009808
      %v5004 = vunpack.c.0.s8 %v5003
      %v5005 = vlaneseq
      %v5006 = vshrl.u32 %v5005, 7
      %v5007 = vsub.s32 %v5004, %v5006
      %v5008 = vrot.slane %v4715, %v5007
      %v5010 = vunpack.c.l.s4 1983009808
      %v5011 = vunpack.c.0.s8 %v5010
      %v5012 = vlaneseq
      %v5013 = vshrl.u32 %v5012, 7
      %v5014 = vsub.s32 %v5011, %v5013
      %v5015 = vrot.slane %v5001, %v5014
      %v5016 = vcombine.high %v5008, %v5008
      %v5017 = vcombine.high %v5015, %v5015
      %v5018 = vcombine.high %v4720, %v4720
      %v5020 = vunpack.c.l.s4 1983009808
      %v5021 = vunpack.c.0.s8 %v5020
      %v5022 = vlaneseq
      %v5023 = vshrl.u32 %v5022, 7
      %v5024 = vsub.s32 %v5021, %v5023
      %v5025 = vrot.slane %v4720, %v5024
      %v5027 = vunpack.c.l.s4 1983009808
      %v5028 = vunpack.c.0.s8 %v5027
      %v5029 = vlaneseq
      %v5030 = vshrl.u32 %v5029, 7
      %v5031 = vsub.s32 %v5028, %v5030
      %v5032 = vrot.slane %v5018, %v5031
      %v5033 = vcombine.high %v5025, %v5025
      %v5034 = vcombine.high %v5032, %v5032
      %v5035 = vcombine.high %v4725, %v4725
      %v5037 = vunpack.c.l.s4 1983009808
      %v5038 = vunpack.c.0.s8 %v5037
      %v5039 = vlaneseq
      %v5040 = vshrl.u32 %v5039, 7
      %v5041 = vsub.s32 %v5038, %v5040
      %v5042 = vrot.slane %v4725, %v5041
      %v5044 = vunpack.c.l.s4 1983009808
      %v5045 = vunpack.c.0.s8 %v5044
      %v5046 = vlaneseq
      %v5047 = vshrl.u32 %v5046, 7
      %v5048 = vsub.s32 %v5045, %v5047
      %v5049 = vrot.slane %v5035, %v5048
      %v5050 = vcombine.high %v5042, %v5042
      %v5051 = vcombine.high %v5049, %v5049
      %v5052 = vcombine.high %v4730, %v4730
      %v5054 = vunpack.c.l.s4 1983009808
      %v5055 = vunpack.c.0.s8 %v5054
      %v5056 = vlaneseq
      %v5057 = vshrl.u32 %v5056, 7
      %v5058 = vsub.s32 %v5055, %v5057
      %v5059 = vrot.slane %v4730, %v5058
      %v5061 = vunpack.c.l.s4 1983009808
      %v5062 = vunpack.c.0.s8 %v5061
      %v5063 = vlaneseq
      %v5064 = vshrl.u32 %v5063, 7
      %v5065 = vsub.s32 %v5062, %v5064
      %v5066 = vrot.slane %v5052, %v5065
      %v5067 = vcombine.high %v5059, %v5059
      %v5068 = vcombine.high %v5066, %v5066
      %v5069 = vcombine.high %v4735, %v4735
      %v5071 = vunpack.c.l.s4 1983009808
      %v5072 = vunpack.c.0.s8 %v5071
      %v5073 = vlaneseq
      %v5074 = vshrl.u32 %v5073, 7
      %v5075 = vsub.s32 %v5072, %v5074
      %v5076 = vrot.slane %v4735, %v5075
      %v5078 = vunpack.c.l.s4 1983009808
      %v5079 = vunpack.c.0.s8 %v5078
      %v5080 = vlaneseq
      %v5081 = vshrl.u32 %v5080, 7
      %v5082 = vsub.s32 %v5079, %v5081
      %v5083 = vrot.slane %v5069, %v5082
      %v5084 = vcombine.high %v5076, %v5076
      %v5085 = vcombine.high %v5083, %v5083
      %v5086 = vcombine.high %v4740, %v4740
      %v5088 = vunpack.c.l.s4 1983009808
      %v5089 = vunpack.c.0.s8 %v5088
      %v5090 = vlaneseq
      %v5091 = vshrl.u32 %v5090, 7
      %v5092 = vsub.s32 %v5089, %v5091
      %v5093 = vrot.slane %v4740, %v5092
      %v5095 = vunpack.c.l.s4 1983009808
      %v5096 = vunpack.c.0.s8 %v5095
      %v5097 = vlaneseq
      %v5098 = vshrl.u32 %v5097, 7
      %v5099 = vsub.s32 %v5096, %v5098
      %v5100 = vrot.slane %v5086, %v5099
      %v5101 = vcombine.high %v5093, %v5093
      %v5102 = vcombine.high %v5100, %v5100
      %s5103 = scalar_lea.vmem %s2, 16
      %v5104 = vld [vmem:[%s5103] sm:$0xff]
      %v5105 = vld [vmem:[%s5103 + $0x8] sm:$0x3]
      %v5107 = vsel %vm766, %v5105, 0
      %5109 = vmatprep.subr.mxu0 0.0
      %5110 = vmatpush1.msra.mxu0 %v5104
      %5111 = vmatprep.subr.mxu0 0.0
      %5112 = vmatpush1.msra.mxu0 %v5107
      %5113 = vmatprep.subr.mxu0 0.0
      %5114 = vmatpush1.msra.mxu0 0.0
      %5115 = vmatprep.subr.mxu0 0.0
      %5116 = vmatpush1.msra.mxu0 0.0
      %5117 = vmatprep.subr.mxu0 0.0
      %5118 = vmatpush1.msra.mxu0 0.0
      %5119 = vmatprep.subr.mxu0 0.0
      %5120 = vmatpush1.msra.mxu0 0.0
      %5121 = vmatprep.subr.mxu0 0.0
      %5122 = vmatpush1.msra.mxu0 0.0
      %5123 = vmatprep.subr.mxu0 0.0
      %5124 = vmatpush1.msra.mxu0 0.0
      %5125 = vmatprep.subr.mxu0 0.0
      %5126 = vmatpush1.msra.mxu0 0.0
      %5127 = vmatprep.subr.mxu0 0.0
      %5128 = vmatpush1.msra.mxu0 0.0
      %5129 = vmatprep.subr.mxu0 0.0
      %5130 = vmatpush1.msra.mxu0 0.0
      %5131 = vmatprep.subr.mxu0 0.0
      %5132 = vmatpush1.msra.mxu0 0.0
      %5133 = vmatprep.subr.mxu0 0.0
      %5134 = vmatpush1.msra.mxu0 0.0
      %5135 = vmatprep.subr.mxu0 0.0
      %5136 = vmatpush1.msra.mxu0 0.0
      %5137 = vmatprep.subr.mxu0 0.0
      %5138 = vmatpush1.msra.mxu0 0.0
      %5139 = vmatprep.subr.mxu0 0.0
      %5140 = vmatpush1.msra.mxu0 0.0
      %5141 = vmatprep.subr.mxu0 0.0
      %5142 = vmatpush1.msra.mxu0 0.0
      %5143 = vmatprep.subr.mxu0 0.0
      %5144 = vmatpush1.msra.mxu0 0.0
      %5145 = vmatprep.subr.mxu0 0.0
      %5146 = vmatpush1.msra.mxu0 0.0
      %5147 = vmatprep.subr.mxu0 0.0
      %5148 = vmatpush1.msra.mxu0 0.0
      %5149 = vmatprep.subr.mxu0 0.0
      %5150 = vmatpush1.msra.mxu0 0.0
      %5151 = vmatprep.subr.mxu0 0.0
      %5152 = vmatpush1.msra.mxu0 0.0
      %5153 = vmatprep.subr.mxu0 0.0
      %5154 = vmatpush1.msra.mxu0 0.0
      %5155 = vmatprep.subr.mxu0 0.0
      %5156 = vmatpush1.msra.mxu0 0.0
      %5157 = vmatprep.subr.mxu0 0.0
      %5158 = vmatpush1.msra.mxu0 0.0
      %5159 = vmatprep.subr.mxu0 0.0
      %5160 = vmatpush1.msra.mxu0 0.0
      %5161 = vmatprep.subr.mxu0 0.0
      %5162 = vmatpush1.msra.mxu0 0.0
      %5163 = vmatprep.subr.mxu0 0.0
      %5164 = vmatpush1.msra.mxu0 0.0
      %5165 = vmatprep.subr.mxu0 0.0
      %5166 = vmatpush1.msra.mxu0 0.0
      %5167 = vmatprep.subr.mxu0 0.0
      %5168 = vmatpush1.msra.mxu0 0.0
      %5169 = vmatprep.subr.mxu0 0.0
      %5170 = vmatpush1.msra.mxu0 0.0
      %5171 = vmatprep.subr.mxu0 0.0
      %5172 = vmatpush1.msra.mxu0 0.0
      %5173 = vmatprep.mubr.f32.mxu0 0.0
      %5174 = vmatmul.mubr.f32.gmra.mrb[0].mxu0 %v4535
      %v5175 = vpop.f32.mrb[0].mxu0
      %v5176 = vadd.f32 0.0, %v5175
      %v5177 = vpop.f32.mrb[0].mxu0
      %5178 = vmatprep.mubr.f32.mxu0 0.0
      %5179 = vmatmul.mubr.f32.gmra.mrb[0].mxu0 %v4537
      %v5180 = vpop.f32.mrb[0].mxu0
      %v5181 = vadd.f32 0.0, %v5180
      %v5182 = vpop.f32.mrb[0].mxu0
      %5183 = vmatprep.mubr.f32.mxu0 0.0
      %5184 = vmatmul.mubr.f32.gmra.mrb[0].mxu0 %v4539
      %v5185 = vpop.f32.mrb[0].mxu0
      %v5186 = vadd.f32 0.0, %v5185
      %v5187 = vpop.f32.mrb[0].mxu0
      %5188 = vmatprep.mubr.f32.mxu0 0.0
      %5189 = vmatmul.mubr.f32.gmra.mrb[0].mxu0 %v4541
      %v5190 = vpop.f32.mrb[0].mxu0
      %v5191 = vadd.f32 0.0, %v5190
      %v5192 = vpop.f32.mrb[0].mxu0
      %5193 = vmatprep.mubr.f32.mxu0 0.0
      %5194 = vmatmul.mubr.f32.gmra.mrb[0].mxu0 %v4543
      %v5195 = vpop.f32.mrb[0].mxu0
      %v5196 = vadd.f32 0.0, %v5195
      %v5197 = vpop.f32.mrb[0].mxu0
      %5198 = vmatprep.mubr.f32.mxu0 0.0
      %5199 = vmatmul.mubr.f32.gmra.mrb[0].mxu0 %v4545
      %v5200 = vpop.f32.mrb[0].mxu0
      %v5201 = vadd.f32 0.0, %v5200
      %v5202 = vpop.f32.mrb[0].mxu0
      %5203 = vmatprep.mubr.f32.mxu0 0.0
      %5204 = vmatmul.mubr.f32.gmra.mrb[0].mxu0 %v4547
      %v5205 = vpop.f32.mrb[0].mxu0
      %v5206 = vadd.f32 0.0, %v5205
      %v5207 = vpop.f32.mrb[0].mxu0
      %5208 = vmatprep.mubr.f32.mxu0 0.0
      %5209 = vmatmul.mubr.f32.gmra.mrb[0].mxu0 %v4549
      %v5210 = vpop.f32.mrb[0].mxu0
      %v5211 = vadd.f32 0.0, %v5210
      %v5212 = vpop.f32.mrb[0].mxu0
      %5213 = vmatprep.mubr.f32.mxu0 0.0
      %5214 = vmatmul.mubr.f32.gmra.mrb[0].mxu0 %v4551
      %v5215 = vpop.f32.mrb[0].mxu0
      %v5216 = vadd.f32 0.0, %v5215
      %v5217 = vpop.f32.mrb[0].mxu0
      %5218 = vmatprep.mubr.f32.mxu0 0.0
      %5219 = vmatmul.mubr.f32.gmra.mrb[0].mxu0 %v4553
      %v5220 = vpop.f32.mrb[0].mxu0
      %v5221 = vadd.f32 0.0, %v5220
      %v5222 = vpop.f32.mrb[0].mxu0
      %5223 = vmatprep.mubr.f32.mxu0 0.0
      %5224 = vmatmul.mubr.f32.gmra.mrb[0].mxu0 %v4555
      %v5225 = vpop.f32.mrb[0].mxu0
      %v5226 = vadd.f32 0.0, %v5225
      %v5227 = vpop.f32.mrb[0].mxu0
      %5228 = vmatprep.mubr.f32.mxu0 0.0
      %5229 = vmatmul.mubr.f32.gmra.mrb[0].mxu0 %v4557
      %v5230 = vpop.f32.mrb[0].mxu0
      %v5231 = vadd.f32 0.0, %v5230
      %v5232 = vpop.f32.mrb[0].mxu0
      %5233 = vmatprep.mubr.f32.mxu0 0.0
      %5234 = vmatmul.mubr.f32.gmra.mrb[0].mxu0 %v4559
      %v5235 = vpop.f32.mrb[0].mxu0
      %v5236 = vadd.f32 0.0, %v5235
      %v5237 = vpop.f32.mrb[0].mxu0
      %5238 = vmatprep.mubr.f32.mxu0 0.0
      %5239 = vmatmul.mubr.f32.gmra.mrb[0].mxu0 %v4561
      %v5240 = vpop.f32.mrb[0].mxu0
      %v5241 = vadd.f32 0.0, %v5240
      %v5242 = vpop.f32.mrb[0].mxu0
      %5243 = vmatprep.mubr.f32.mxu0 0.0
      %5244 = vmatmul.mubr.f32.gmra.mrb[0].mxu0 %v4563
      %v5245 = vpop.f32.mrb[0].mxu0
      %v5246 = vadd.f32 0.0, %v5245
      %v5247 = vpop.f32.mrb[0].mxu0
      %5248 = vmatprep.mubr.f32.mxu0 0.0
      %5249 = vmatmul.mubr.f32.gmra.mrb[0].mxu0 %v4565
      %v5250 = vpop.f32.mrb[0].mxu0
      %v5251 = vadd.f32 0.0, %v5250
      %v5252 = vpop.f32.mrb[0].mxu0
      %5253 = vmatprep.mubr.f32.mxu0 0.0
      %5254 = vmatmul.mubr.f32.gmra.mrb[0].mxu0 %v4567
      %v5255 = vpop.f32.mrb[0].mxu0
      %v5256 = vadd.f32 0.0, %v5255
      %v5257 = vpop.f32.mrb[0].mxu0
      %5258 = vmatprep.mubr.f32.mxu0 0.0
      %5259 = vmatmul.mubr.f32.gmra.mrb[0].mxu0 %v4569
      %v5260 = vpop.f32.mrb[0].mxu0
      %v5261 = vadd.f32 0.0, %v5260
      %v5262 = vpop.f32.mrb[0].mxu0
      %5263 = vmatprep.mubr.f32.mxu0 0.0
      %5264 = vmatmul.mubr.f32.gmra.mrb[0].mxu0 %v4571
      %v5265 = vpop.f32.mrb[0].mxu0
      %v5266 = vadd.f32 0.0, %v5265
      %v5267 = vpop.f32.mrb[0].mxu0
      %5268 = vmatprep.mubr.f32.mxu0 0.0
      %5269 = vmatmul.mubr.f32.gmra.mrb[0].mxu0 %v4573
      %v5270 = vpop.f32.mrb[0].mxu0
      %v5271 = vadd.f32 0.0, %v5270
      %v5272 = vpop.f32.mrb[0].mxu0
      %5273 = vdwg.mxu0
      %v5294 = vcombine.high %v5176, %v5176
      %v5296 = vunpack.c.l.s4 1983009808
      %v5297 = vunpack.c.0.s8 %v5296
      %v5298 = vlaneseq
      %v5299 = vshrl.u32 %v5298, 7
      %v5300 = vsub.s32 %v5297, %v5299
      %v5301 = vrot.slane %v5176, %v5300
      %v5303 = vunpack.c.l.s4 1983009808
      %v5304 = vunpack.c.0.s8 %v5303
      %v5305 = vlaneseq
      %v5306 = vshrl.u32 %v5305, 7
      %v5307 = vsub.s32 %v5304, %v5306
      %v5308 = vrot.slane %v5294, %v5307
      %v5309 = vcombine.high %v5301, %v5301
      %v5310 = vcombine.high %v5308, %v5308
      %v5311 = vcombine.high %v5181, %v5181
      %v5313 = vunpack.c.l.s4 1983009808
      %v5314 = vunpack.c.0.s8 %v5313
      %v5315 = vlaneseq
      %v5316 = vshrl.u32 %v5315, 7
      %v5317 = vsub.s32 %v5314, %v5316
      %v5318 = vrot.slane %v5181, %v5317
      %v5320 = vunpack.c.l.s4 1983009808
      %v5321 = vunpack.c.0.s8 %v5320
      %v5322 = vlaneseq
      %v5323 = vshrl.u32 %v5322, 7
      %v5324 = vsub.s32 %v5321, %v5323
      %v5325 = vrot.slane %v5311, %v5324
      %v5326 = vcombine.high %v5318, %v5318
      %v5327 = vcombine.high %v5325, %v5325
      %v5328 = vcombine.high %v5186, %v5186
      %v5330 = vunpack.c.l.s4 1983009808
      %v5331 = vunpack.c.0.s8 %v5330
      %v5332 = vlaneseq
      %v5333 = vshrl.u32 %v5332, 7
      %v5334 = vsub.s32 %v5331, %v5333
      %v5335 = vrot.slane %v5186, %v5334
      %v5337 = vunpack.c.l.s4 1983009808
      %v5338 = vunpack.c.0.s8 %v5337
      %v5339 = vlaneseq
      %v5340 = vshrl.u32 %v5339, 7
      %v5341 = vsub.s32 %v5338, %v5340
      %v5342 = vrot.slane %v5328, %v5341
      %v5343 = vcombine.high %v5335, %v5335
      %v5344 = vcombine.high %v5342, %v5342
      %v5345 = vcombine.high %v5191, %v5191
      %v5347 = vunpack.c.l.s4 1983009808
      %v5348 = vunpack.c.0.s8 %v5347
      %v5349 = vlaneseq
      %v5350 = vshrl.u32 %v5349, 7
      %v5351 = vsub.s32 %v5348, %v5350
      %v5352 = vrot.slane %v5191, %v5351
      %v5354 = vunpack.c.l.s4 1983009808
      %v5355 = vunpack.c.0.s8 %v5354
      %v5356 = vlaneseq
      %v5357 = vshrl.u32 %v5356, 7
      %v5358 = vsub.s32 %v5355, %v5357
      %v5359 = vrot.slane %v5345, %v5358
      %v5360 = vcombine.high %v5352, %v5352
      %v5361 = vcombine.high %v5359, %v5359
      %v5362 = vcombine.high %v5196, %v5196
      %v5364 = vunpack.c.l.s4 1983009808
      %v5365 = vunpack.c.0.s8 %v5364
      %v5366 = vlaneseq
      %v5367 = vshrl.u32 %v5366, 7
      %v5368 = vsub.s32 %v5365, %v5367
      %v5369 = vrot.slane %v5196, %v5368
      %v5371 = vunpack.c.l.s4 1983009808
      %v5372 = vunpack.c.0.s8 %v5371
      %v5373 = vlaneseq
      %v5374 = vshrl.u32 %v5373, 7
      %v5375 = vsub.s32 %v5372, %v5374
      %v5376 = vrot.slane %v5362, %v5375
      %v5377 = vcombine.high %v5369, %v5369
      %v5378 = vcombine.high %v5376, %v5376
      %v5379 = vcombine.high %v5201, %v5201
      %v5381 = vunpack.c.l.s4 1983009808
      %v5382 = vunpack.c.0.s8 %v5381
      %v5383 = vlaneseq
      %v5384 = vshrl.u32 %v5383, 7
      %v5385 = vsub.s32 %v5382, %v5384
      %v5386 = vrot.slane %v5201, %v5385
      %v5388 = vunpack.c.l.s4 1983009808
      %v5389 = vunpack.c.0.s8 %v5388
      %v5390 = vlaneseq
      %v5391 = vshrl.u32 %v5390, 7
      %v5392 = vsub.s32 %v5389, %v5391
      %v5393 = vrot.slane %v5379, %v5392
      %v5394 = vcombine.high %v5386, %v5386
      %v5395 = vcombine.high %v5393, %v5393
      %v5396 = vcombine.high %v5206, %v5206
      %v5398 = vunpack.c.l.s4 1983009808
      %v5399 = vunpack.c.0.s8 %v5398
      %v5400 = vlaneseq
      %v5401 = vshrl.u32 %v5400, 7
      %v5402 = vsub.s32 %v5399, %v5401
      %v5403 = vrot.slane %v5206, %v5402
      %v5405 = vunpack.c.l.s4 1983009808
      %v5406 = vunpack.c.0.s8 %v5405
      %v5407 = vlaneseq
      %v5408 = vshrl.u32 %v5407, 7
      %v5409 = vsub.s32 %v5406, %v5408
      %v5410 = vrot.slane %v5396, %v5409
      %v5411 = vcombine.high %v5403, %v5403
      %v5412 = vcombine.high %v5410, %v5410
      %v5413 = vcombine.high %v5211, %v5211
      %v5415 = vunpack.c.l.s4 1983009808
      %v5416 = vunpack.c.0.s8 %v5415
      %v5417 = vlaneseq
      %v5418 = vshrl.u32 %v5417, 7
      %v5419 = vsub.s32 %v5416, %v5418
      %v5420 = vrot.slane %v5211, %v5419
      %v5422 = vunpack.c.l.s4 1983009808
      %v5423 = vunpack.c.0.s8 %v5422
      %v5424 = vlaneseq
      %v5425 = vshrl.u32 %v5424, 7
      %v5426 = vsub.s32 %v5423, %v5425
      %v5427 = vrot.slane %v5413, %v5426
      %v5428 = vcombine.high %v5420, %v5420
      %v5429 = vcombine.high %v5427, %v5427
      %v5430 = vcombine.high %v5216, %v5216
      %v5432 = vunpack.c.l.s4 1983009808
      %v5433 = vunpack.c.0.s8 %v5432
      %v5434 = vlaneseq
      %v5435 = vshrl.u32 %v5434, 7
      %v5436 = vsub.s32 %v5433, %v5435
      %v5437 = vrot.slane %v5216, %v5436
      %v5439 = vunpack.c.l.s4 1983009808
      %v5440 = vunpack.c.0.s8 %v5439
      %v5441 = vlaneseq
      %v5442 = vshrl.u32 %v5441, 7
      %v5443 = vsub.s32 %v5440, %v5442
      %v5444 = vrot.slane %v5430, %v5443
      %v5445 = vcombine.high %v5437, %v5437
      %v5446 = vcombine.high %v5444, %v5444
      %v5447 = vcombine.high %v5221, %v5221
      %v5449 = vunpack.c.l.s4 1983009808
      %v5450 = vunpack.c.0.s8 %v5449
      %v5451 = vlaneseq
      %v5452 = vshrl.u32 %v5451, 7
      %v5453 = vsub.s32 %v5450, %v5452
      %v5454 = vrot.slane %v5221, %v5453
      %v5456 = vunpack.c.l.s4 1983009808
      %v5457 = vunpack.c.0.s8 %v5456
      %v5458 = vlaneseq
      %v5459 = vshrl.u32 %v5458, 7
      %v5460 = vsub.s32 %v5457, %v5459
      %v5461 = vrot.slane %v5447, %v5460
      %v5462 = vcombine.high %v5454, %v5454
      %v5463 = vcombine.high %v5461, %v5461
      %v5464 = vcombine.high %v5226, %v5226
      %v5466 = vunpack.c.l.s4 1983009808
      %v5467 = vunpack.c.0.s8 %v5466
      %v5468 = vlaneseq
      %v5469 = vshrl.u32 %v5468, 7
      %v5470 = vsub.s32 %v5467, %v5469
      %v5471 = vrot.slane %v5226, %v5470
      %v5473 = vunpack.c.l.s4 1983009808
      %v5474 = vunpack.c.0.s8 %v5473
      %v5475 = vlaneseq
      %v5476 = vshrl.u32 %v5475, 7
      %v5477 = vsub.s32 %v5474, %v5476
      %v5478 = vrot.slane %v5464, %v5477
      %v5479 = vcombine.high %v5471, %v5471
      %v5480 = vcombine.high %v5478, %v5478
      %v5481 = vcombine.high %v5231, %v5231
      %v5483 = vunpack.c.l.s4 1983009808
      %v5484 = vunpack.c.0.s8 %v5483
      %v5485 = vlaneseq
      %v5486 = vshrl.u32 %v5485, 7
      %v5487 = vsub.s32 %v5484, %v5486
      %v5488 = vrot.slane %v5231, %v5487
      %v5490 = vunpack.c.l.s4 1983009808
      %v5491 = vunpack.c.0.s8 %v5490
      %v5492 = vlaneseq
      %v5493 = vshrl.u32 %v5492, 7
      %v5494 = vsub.s32 %v5491, %v5493
      %v5495 = vrot.slane %v5481, %v5494
      %v5496 = vcombine.high %v5488, %v5488
      %v5497 = vcombine.high %v5495, %v5495
      %v5498 = vcombine.high %v5236, %v5236
      %v5500 = vunpack.c.l.s4 1983009808
      %v5501 = vunpack.c.0.s8 %v5500
      %v5502 = vlaneseq
      %v5503 = vshrl.u32 %v5502, 7
      %v5504 = vsub.s32 %v5501, %v5503
      %v5505 = vrot.slane %v5236, %v5504
      %v5507 = vunpack.c.l.s4 1983009808
      %v5508 = vunpack.c.0.s8 %v5507
      %v5509 = vlaneseq
      %v5510 = vshrl.u32 %v5509, 7
      %v5511 = vsub.s32 %v5508, %v5510
      %v5512 = vrot.slane %v5498, %v5511
      %v5513 = vcombine.high %v5505, %v5505
      %v5514 = vcombine.high %v5512, %v5512
      %v5515 = vcombine.high %v5241, %v5241
      %v5517 = vunpack.c.l.s4 1983009808
      %v5518 = vunpack.c.0.s8 %v5517
      %v5519 = vlaneseq
      %v5520 = vshrl.u32 %v5519, 7
      %v5521 = vsub.s32 %v5518, %v5520
      %v5522 = vrot.slane %v5241, %v5521
      %v5524 = vunpack.c.l.s4 1983009808
      %v5525 = vunpack.c.0.s8 %v5524
      %v5526 = vlaneseq
      %v5527 = vshrl.u32 %v5526, 7
      %v5528 = vsub.s32 %v5525, %v5527
      %v5529 = vrot.slane %v5515, %v5528
      %v5530 = vcombine.high %v5522, %v5522
      %v5531 = vcombine.high %v5529, %v5529
      %v5532 = vcombine.high %v5246, %v5246
      %v5534 = vunpack.c.l.s4 1983009808
      %v5535 = vunpack.c.0.s8 %v5534
      %v5536 = vlaneseq
      %v5537 = vshrl.u32 %v5536, 7
      %v5538 = vsub.s32 %v5535, %v5537
      %v5539 = vrot.slane %v5246, %v5538
      %v5541 = vunpack.c.l.s4 1983009808
      %v5542 = vunpack.c.0.s8 %v5541
      %v5543 = vlaneseq
      %v5544 = vshrl.u32 %v5543, 7
      %v5545 = vsub.s32 %v5542, %v5544
      %v5546 = vrot.slane %v5532, %v5545
      %v5547 = vcombine.high %v5539, %v5539
      %v5548 = vcombine.high %v5546, %v5546
      %v5549 = vcombine.high %v5251, %v5251
      %v5551 = vunpack.c.l.s4 1983009808
      %v5552 = vunpack.c.0.s8 %v5551
      %v5553 = vlaneseq
      %v5554 = vshrl.u32 %v5553, 7
      %v5555 = vsub.s32 %v5552, %v5554
      %v5556 = vrot.slane %v5251, %v5555
      %v5558 = vunpack.c.l.s4 1983009808
      %v5559 = vunpack.c.0.s8 %v5558
      %v5560 = vlaneseq
      %v5561 = vshrl.u32 %v5560, 7
      %v5562 = vsub.s32 %v5559, %v5561
      %v5563 = vrot.slane %v5549, %v5562
      %v5564 = vcombine.high %v5556, %v5556
      %v5565 = vcombine.high %v5563, %v5563
      %v5566 = vcombine.high %v5256, %v5256
      %v5568 = vunpack.c.l.s4 1983009808
      %v5569 = vunpack.c.0.s8 %v5568
      %v5570 = vlaneseq
      %v5571 = vshrl.u32 %v5570, 7
      %v5572 = vsub.s32 %v5569, %v5571
      %v5573 = vrot.slane %v5256, %v5572
      %v5575 = vunpack.c.l.s4 1983009808
      %v5576 = vunpack.c.0.s8 %v5575
      %v5577 = vlaneseq
      %v5578 = vshrl.u32 %v5577, 7
      %v5579 = vsub.s32 %v5576, %v5578
      %v5580 = vrot.slane %v5566, %v5579
      %v5581 = vcombine.high %v5573, %v5573
      %v5582 = vcombine.high %v5580, %v5580
      %v5583 = vcombine.high %v5261, %v5261
      %v5585 = vunpack.c.l.s4 1983009808
      %v5586 = vunpack.c.0.s8 %v5585
      %v5587 = vlaneseq
      %v5588 = vshrl.u32 %v5587, 7
      %v5589 = vsub.s32 %v5586, %v5588
      %v5590 = vrot.slane %v5261, %v5589
      %v5592 = vunpack.c.l.s4 1983009808
      %v5593 = vunpack.c.0.s8 %v5592
      %v5594 = vlaneseq
      %v5595 = vshrl.u32 %v5594, 7
      %v5596 = vsub.s32 %v5593, %v5595
      %v5597 = vrot.slane %v5583, %v5596
      %v5598 = vcombine.high %v5590, %v5590
      %v5599 = vcombine.high %v5597, %v5597
      %v5600 = vcombine.high %v5266, %v5266
      %v5602 = vunpack.c.l.s4 1983009808
      %v5603 = vunpack.c.0.s8 %v5602
      %v5604 = vlaneseq
      %v5605 = vshrl.u32 %v5604, 7
      %v5606 = vsub.s32 %v5603, %v5605
      %v5607 = vrot.slane %v5266, %v5606
      %v5609 = vunpack.c.l.s4 1983009808
      %v5610 = vunpack.c.0.s8 %v5609
      %v5611 = vlaneseq
      %v5612 = vshrl.u32 %v5611, 7
      %v5613 = vsub.s32 %v5610, %v5612
      %v5614 = vrot.slane %v5600, %v5613
      %v5615 = vcombine.high %v5607, %v5607
      %v5616 = vcombine.high %v5614, %v5614
      %v5617 = vcombine.high %v5271, %v5271
      %v5619 = vunpack.c.l.s4 1983009808
      %v5620 = vunpack.c.0.s8 %v5619
      %v5621 = vlaneseq
      %v5622 = vshrl.u32 %v5621, 7
      %v5623 = vsub.s32 %v5620, %v5622
      %v5624 = vrot.slane %v5271, %v5623
      %v5626 = vunpack.c.l.s4 1983009808
      %v5627 = vunpack.c.0.s8 %v5626
      %v5628 = vlaneseq
      %v5629 = vshrl.u32 %v5628, 7
      %v5630 = vsub.s32 %v5627, %v5629
      %v5631 = vrot.slane %v5617, %v5630
      %v5632 = vcombine.high %v5624, %v5624
      %v5633 = vcombine.high %v5631, %v5631
      %v5634 = vld [vmem:[%s8] sm:$0xff]
      %v5635 = vld [vmem:[%s8 + $0x8] sm:$0xff]
      %v5636 = vld [vmem:[%s8 + $0x10] sm:$0xff]
      %v5637 = vld [vmem:[%s8 + $0x18] sm:$0xff]
      %v5638 = vld [vmem:[%s9] sm:$0xff]
      %v5639 = vld [vmem:[%s9 + $0x8] sm:$0xff]
      %v5640 = vld [vmem:[%s9 + $0x10] sm:$0xff]
      %v5641 = vld [vmem:[%s9 + $0x18] sm:$0xff]
      %v5642 = vlaneseq
      %v5643 = vshrl.u32 %v5642, 7
      %v5644 = vsub.s32 0, %v5643
      %v5645 = vrot.slane %v4770, %v5644
      %v5646 = vlaneseq
      %v5647 = vshrl.u32 %v5646, 7
      %v5648 = vsub.s32 0, %v5647
      %v5649 = vrot.slane %v4795, %v5648
      %v5650 = vlaneseq
      %v5651 = vshrl.u32 %v5650, 7
      %v5652 = vsub.s32 0, %v5651
      %v5653 = vrot.slane %v4811, %v5652
      %v5654 = vlaneseq
      %v5655 = vshrl.u32 %v5654, 7
      %v5656 = vsub.s32 0, %v5655
      %v5657 = vrot.slane %v4830, %v5656
      %v5658 = vlaneseq
      %v5659 = vshrl.u32 %v5658, 7
      %v5660 = vsub.s32 0, %v5659
      %v5661 = vrot.slane %v4855, %v5660
      %v5662 = vlaneseq
      %v5663 = vshrl.u32 %v5662, 7
      %v5664 = vsub.s32 0, %v5663
      %v5665 = vrot.slane %v4880, %v5664
      %v5666 = vlaneseq
      %v5667 = vshrl.u32 %v5666, 7
      %v5668 = vsub.s32 0, %v5667
      %v5669 = vrot.slane %v4896, %v5668
      %v5670 = vlaneseq
      %v5671 = vshrl.u32 %v5670, 7
      %v5672 = vsub.s32 0, %v5671
      %v5673 = vrot.slane %v4915, %v5672
      %v5674 = vlaneseq
      %v5675 = vshrl.u32 %v5674, 7
      %v5676 = vsub.s32 0, %v5675
      %v5677 = vrot.slane %v4940, %v5676
      %v5678 = vlaneseq
      %v5679 = vshrl.u32 %v5678, 7
      %v5680 = vsub.s32 0, %v5679
      %v5681 = vrot.slane %v4965, %v5680
      %v5682 = vlaneseq
      %v5683 = vshrl.u32 %v5682, 7
      %v5684 = vsub.s32 0, %v5683
      %v5685 = vrot.slane %v4981, %v5684
      %v5686 = vlaneseq
      %v5687 = vshrl.u32 %v5686, 7
      %v5688 = vsub.s32 0, %v5687
      %v5689 = vrot.slane %v5000, %v5688
      %v5690 = vlaneseq
      %v5691 = vshrl.u32 %v5690, 7
      %v5692 = vsub.s32 0, %v5691
      %v5693 = vrot.slane %v5025, %v5692
      %v5694 = vlaneseq
      %v5695 = vshrl.u32 %v5694, 7
      %v5696 = vsub.s32 0, %v5695
      %v5697 = vrot.slane %v5050, %v5696
      %v5698 = vlaneseq
      %v5699 = vshrl.u32 %v5698, 7
      %v5700 = vsub.s32 0, %v5699
      %v5701 = vrot.slane %v5066, %v5700
      %v5702 = vlaneseq
      %v5703 = vshrl.u32 %v5702, 7
      %v5704 = vsub.s32 0, %v5703
      %v5705 = vrot.slane %v5085, %v5704
      %v5706 = vsel %vm1247, %v5649, %v5645
      %v5707 = vsel %vm1249, %v5653, %v5706
      %v5708 = vsel %vm1287, %v5657, %v5707
      %vm5709 = vcmask 1044484
      %v5710 = vsel %vm5709, %v5661, %v5708
      %vm5711 = vcmask 1045509
      %v5712 = vsel %vm5711, %v5665, %v5710
      %vm5713 = vcmask 1046534
      %v5714 = vsel %vm5713, %v5669, %v5712
      %vm5715 = vcmask 1047559
      %v5716 = vsel %vm5715, %v5673, %v5714
      %v5717 = vsel %vm1247, %v5681, %v5677
      %v5718 = vsel %vm1249, %v5685, %v5717
      %v5719 = vsel %vm1287, %v5689, %v5718
      %v5720 = vsel %vm5709, %v5693, %v5719
      %v5721 = vsel %vm5711, %v5697, %v5720
      %v5722 = vsel %vm5713, %v5701, %v5721
      %v5723 = vsel %vm5715, %v5705, %v5722
      %vm5726 = vcmask 31744
      %5727 = vst.msk [vmem:[#allocation7] sm:$0xff] %vm5726, %v5716
      %5728 = vst.msk [vmem:[#allocation7 + $0x8] sm:$0xff] %vm5726, %v5723
      %v5729 = vlaneseq
      %v5730 = vshrl.u32 %v5729, 7
      %v5731 = vsub.s32 0, %v5730
      %v5732 = vrot.slane %v5301, %v5731
      %v5733 = vlaneseq
      %v5734 = vshrl.u32 %v5733, 7
      %v5735 = vsub.s32 0, %v5734
      %v5736 = vrot.slane %v5326, %v5735
      %v5737 = vlaneseq
      %v5738 = vshrl.u32 %v5737, 7
      %v5739 = vsub.s32 0, %v5738
      %v5740 = vrot.slane %v5342, %v5739
      %v5741 = vlaneseq
      %v5742 = vshrl.u32 %v5741, 7
      %v5743 = vsub.s32 0, %v5742
      %v5744 = vrot.slane %v5361, %v5743
      %v5745 = vlaneseq
      %v5746 = vshrl.u32 %v5745, 7
      %v5747 = vsub.s32 0, %v5746
      %v5748 = vrot.slane %v5386, %v5747
      %v5749 = vlaneseq
      %v5750 = vshrl.u32 %v5749, 7
      %v5751 = vsub.s32 0, %v5750
      %v5752 = vrot.slane %v5411, %v5751
      %v5753 = vlaneseq
      %v5754 = vshrl.u32 %v5753, 7
      %v5755 = vsub.s32 0, %v5754
      %v5756 = vrot.slane %v5427, %v5755
      %v5757 = vlaneseq
      %v5758 = vshrl.u32 %v5757, 7
      %v5759 = vsub.s32 0, %v5758
      %v5760 = vrot.slane %v5446, %v5759
      %v5761 = vlaneseq
      %v5762 = vshrl.u32 %v5761, 7
      %v5763 = vsub.s32 0, %v5762
      %v5764 = vrot.slane %v5471, %v5763
      %v5765 = vlaneseq
      %v5766 = vshrl.u32 %v5765, 7
      %v5767 = vsub.s32 0, %v5766
      %v5768 = vrot.slane %v5496, %v5767
      %v5769 = vlaneseq
      %v5770 = vshrl.u32 %v5769, 7
      %v5771 = vsub.s32 0, %v5770
      %v5772 = vrot.slane %v5512, %v5771
      %v5773 = vlaneseq
      %v5774 = vshrl.u32 %v5773, 7
      %v5775 = vsub.s32 0, %v5774
      %v5776 = vrot.slane %v5531, %v5775
      %v5777 = vlaneseq
      %v5778 = vshrl.u32 %v5777, 7
      %v5779 = vsub.s32 0, %v5778
      %v5780 = vrot.slane %v5556, %v5779
      %v5781 = vlaneseq
      %v5782 = vshrl.u32 %v5781, 7
      %v5783 = vsub.s32 0, %v5782
      %v5784 = vrot.slane %v5581, %v5783
      %v5785 = vlaneseq
      %v5786 = vshrl.u32 %v5785, 7
      %v5787 = vsub.s32 0, %v5786
      %v5788 = vrot.slane %v5597, %v5787
      %v5789 = vlaneseq
      %v5790 = vshrl.u32 %v5789, 7
      %v5791 = vsub.s32 0, %v5790
      %v5792 = vrot.slane %v5616, %v5791
      %v5793 = vsel %vm1247, %v5736, %v5732
      %v5794 = vsel %vm1249, %v5740, %v5793
      %v5795 = vsel %vm1287, %v5744, %v5794
      %v5796 = vsel %vm5709, %v5748, %v5795
      %v5797 = vsel %vm5711, %v5752, %v5796
      %v5798 = vsel %vm5713, %v5756, %v5797
      %v5799 = vsel %vm5715, %v5760, %v5798
      %v5800 = vsel %vm1247, %v5768, %v5764
      %v5801 = vsel %vm1249, %v5772, %v5800
      %v5802 = vsel %vm1287, %v5776, %v5801
      %v5803 = vsel %vm5709, %v5780, %v5802
      %v5804 = vsel %vm5711, %v5784, %v5803
      %v5805 = vsel %vm5713, %v5788, %v5804
      %v5806 = vsel %vm5715, %v5792, %v5805
      %5809 = vst.msk [vmem:[#allocation7 + $0x10] sm:$0xff] %vm5726, %v5799
      %5810 = vst.msk [vmem:[#allocation7 + $0x18] sm:$0xff] %vm5726, %v5806
      %5811 = vrot.lane.b32.xlu0 %v5716, 127
      %v5812 = vpop.permute.xlu0 %5811
      %5813 = vrot.lane.b32.xlu0 %v5723, 127
      %v5814 = vpop.permute.xlu0 %5813
      %5817 = vst.msk [vmem:[#allocation7 + $0x20] sm:$0xff] %vm5726, %v5812
      %5818 = vst.msk [vmem:[#allocation7 + $0x28] sm:$0xff] %vm5726, %v5814
      %v5819 = vlaneseq
      %v5820 = vshrl.u32 %v5819, 7
      %v5821 = vsub.s32 1, %v5820
      %v5822 = vrot.slane %v4770, %v5821
      %v5823 = vlaneseq
      %v5824 = vshrl.u32 %v5823, 7
      %v5825 = vsub.s32 1, %v5824
      %v5826 = vrot.slane %v4795, %v5825
      %v5827 = vlaneseq
      %v5828 = vshrl.u32 %v5827, 7
      %v5829 = vsub.s32 1, %v5828
      %v5830 = vrot.slane %v4811, %v5829
      %v5831 = vlaneseq
      %v5832 = vshrl.u32 %v5831, 7
      %v5833 = vsub.s32 1, %v5832
      %v5834 = vrot.slane %v4830, %v5833
      %v5835 = vlaneseq
      %v5836 = vshrl.u32 %v5835, 7
      %v5837 = vsub.s32 1, %v5836
      %v5838 = vrot.slane %v4855, %v5837
      %v5839 = vlaneseq
      %v5840 = vshrl.u32 %v5839, 7
      %v5841 = vsub.s32 1, %v5840
      %v5842 = vrot.slane %v4880, %v5841
      %v5843 = vlaneseq
      %v5844 = vshrl.u32 %v5843, 7
      %v5845 = vsub.s32 1, %v5844
      %v5846 = vrot.slane %v4896, %v5845
      %v5847 = vlaneseq
      %v5848 = vshrl.u32 %v5847, 7
      %v5849 = vsub.s32 1, %v5848
      %v5850 = vrot.slane %v4915, %v5849
      %v5851 = vlaneseq
      %v5852 = vshrl.u32 %v5851, 7
      %v5853 = vsub.s32 1, %v5852
      %v5854 = vrot.slane %v4940, %v5853
      %v5855 = vlaneseq
      %v5856 = vshrl.u32 %v5855, 7
      %v5857 = vsub.s32 1, %v5856
      %v5858 = vrot.slane %v4965, %v5857
      %v5859 = vlaneseq
      %v5860 = vshrl.u32 %v5859, 7
      %v5861 = vsub.s32 1, %v5860
      %v5862 = vrot.slane %v4981, %v5861
      %v5863 = vlaneseq
      %v5864 = vshrl.u32 %v5863, 7
      %v5865 = vsub.s32 1, %v5864
      %v5866 = vrot.slane %v5000, %v5865
      %v5867 = vlaneseq
      %v5868 = vshrl.u32 %v5867, 7
      %v5869 = vsub.s32 1, %v5868
      %v5870 = vrot.slane %v5025, %v5869
      %v5871 = vlaneseq
      %v5872 = vshrl.u32 %v5871, 7
      %v5873 = vsub.s32 1, %v5872
      %v5874 = vrot.slane %v5050, %v5873
      %v5875 = vlaneseq
      %v5876 = vshrl.u32 %v5875, 7
      %v5877 = vsub.s32 1, %v5876
      %v5878 = vrot.slane %v5066, %v5877
      %v5879 = vlaneseq
      %v5880 = vshrl.u32 %v5879, 7
      %v5881 = vsub.s32 1, %v5880
      %v5882 = vrot.slane %v5085, %v5881
      %v5883 = vsel %vm1249, %v5826, %v5822
      %v5884 = vsel %vm1287, %v5830, %v5883
      %v5885 = vsel %vm5709, %v5834, %v5884
      %v5886 = vsel %vm5711, %v5838, %v5885
      %v5887 = vsel %vm5713, %v5842, %v5886
      %v5888 = vsel %vm5715, %v5846, %v5887
      %v5889 = vsel %vm1247, %v5854, %v5850
      %v5890 = vsel %vm1249, %v5858, %v5889
      %v5891 = vsel %vm1287, %v5862, %v5890
      %v5892 = vsel %vm5709, %v5866, %v5891
      %v5893 = vsel %vm5711, %v5870, %v5892
      %v5894 = vsel %vm5713, %v5874, %v5893
      %v5895 = vsel %vm5715, %v5878, %v5894
      %vm5899 = vcmask 31745
      %5900 = vst.msk [vmem:[#allocation7 + $0x2f] sm:$0xfe] %vm5899, %v5888
      %5901 = vst.msk [vmem:[#allocation7 + $0x37] sm:$0xff] %vm5726, %v5895
      %vm5902 = vcmask 24576
      %5903 = vst.msk [vmem:[#allocation7 + $0x3f] sm:$0x1] %vm5902, %v5882
      %v5904 = vlaneseq
      %v5905 = vshrl.u32 %v5904, 7
      %v5906 = vsub.s32 1, %v5905
      %v5907 = vrot.slane %v5301, %v5906
      %v5908 = vlaneseq
      %v5909 = vshrl.u32 %v5908, 7
      %v5910 = vsub.s32 1, %v5909
      %v5911 = vrot.slane %v5326, %v5910
      %v5912 = vlaneseq
      %v5913 = vshrl.u32 %v5912, 7
      %v5914 = vsub.s32 1, %v5913
      %v5915 = vrot.slane %v5342, %v5914
      %v5916 = vlaneseq
      %v5917 = vshrl.u32 %v5916, 7
      %v5918 = vsub.s32 1, %v5917
      %v5919 = vrot.slane %v5361, %v5918
      %v5920 = vlaneseq
      %v5921 = vshrl.u32 %v5920, 7
      %v5922 = vsub.s32 1, %v5921
      %v5923 = vrot.slane %v5386, %v5922
      %v5924 = vlaneseq
      %v5925 = vshrl.u32 %v5924, 7
      %v5926 = vsub.s32 1, %v5925
      %v5927 = vrot.slane %v5411, %v5926
      %v5928 = vlaneseq
      %v5929 = vshrl.u32 %v5928, 7
      %v5930 = vsub.s32 1, %v5929
      %v5931 = vrot.slane %v5427, %v5930
      %v5932 = vlaneseq
      %v5933 = vshrl.u32 %v5932, 7
      %v5934 = vsub.s32 1, %v5933
      %v5935 = vrot.slane %v5446, %v5934
      %v5936 = vlaneseq
      %v5937 = vshrl.u32 %v5936, 7
      %v5938 = vsub.s32 1, %v5937
      %v5939 = vrot.slane %v5471, %v5938
      %v5940 = vlaneseq
      %v5941 = vshrl.u32 %v5940, 7
      %v5942 = vsub.s32 1, %v5941
      %v5943 = vrot.slane %v5496, %v5942
      %v5944 = vlaneseq
      %v5945 = vshrl.u32 %v5944, 7
      %v5946 = vsub.s32 1, %v5945
      %v5947 = vrot.slane %v5512, %v5946
      %v5948 = vlaneseq
      %v5949 = vshrl.u32 %v5948, 7
      %v5950 = vsub.s32 1, %v5949
      %v5951 = vrot.slane %v5531, %v5950
      %v5952 = vlaneseq
      %v5953 = vshrl.u32 %v5952, 7
      %v5954 = vsub.s32 1, %v5953
      %v5955 = vrot.slane %v5556, %v5954
      %v5956 = vlaneseq
      %v5957 = vshrl.u32 %v5956, 7
      %v5958 = vsub.s32 1, %v5957
      %v5959 = vrot.slane %v5581, %v5958
      %v5960 = vlaneseq
      %v5961 = vshrl.u32 %v5960, 7
      %v5962 = vsub.s32 1, %v5961
      %v5963 = vrot.slane %v5597, %v5962
      %v5964 = vlaneseq
      %v5965 = vshrl.u32 %v5964, 7
      %v5966 = vsub.s32 1, %v5965
      %v5967 = vrot.slane %v5616, %v5966
      %v5968 = vsel %vm1249, %v5911, %v5907
      %v5969 = vsel %vm1287, %v5915, %v5968
      %v5970 = vsel %vm5709, %v5919, %v5969
      %v5971 = vsel %vm5711, %v5923, %v5970
      %v5972 = vsel %vm5713, %v5927, %v5971
      %v5973 = vsel %vm5715, %v5931, %v5972
      %v5974 = vsel %vm1247, %v5939, %v5935
      %v5975 = vsel %vm1249, %v5943, %v5974
      %v5976 = vsel %vm1287, %v5947, %v5975
      %v5977 = vsel %vm5709, %v5951, %v5976
      %v5978 = vsel %vm5711, %v5955, %v5977
      %v5979 = vsel %vm5713, %v5959, %v5978
      %v5980 = vsel %vm5715, %v5963, %v5979
      %5984 = vst.msk [vmem:[#allocation7 + $0x3f] sm:$0xfe] %vm5899, %v5973
      %5985 = vst.msk [vmem:[#allocation7 + $0x47] sm:$0xff] %vm5726, %v5980
      %5986 = vst.msk [vmem:[#allocation7 + $0x4f] sm:$0x1] %vm5902, %v5967
      %5987 = vrot.lane.b32.xlu0 %v5888, 127
      %v5988 = vpop.permute.xlu0 %5987
      %5989 = vrot.lane.b32.xlu0 %v5895, 127
      %v5990 = vpop.permute.xlu0 %5989
      %5991 = vrot.lane.b32.xlu0 %v5882, 127
      %v5992 = vpop.permute.xlu0 %5991
      %5996 = vst.msk [vmem:[#allocation7 + $0x4f] sm:$0xfe] %vm5899, %v5988
      %5997 = vst.msk [vmem:[#allocation7 + $0x57] sm:$0xff] %vm5726, %v5990
      %5998 = vst.msk [vmem:[#allocation7 + $0x5f] sm:$0x1] %vm5902, %v5992
      %v5999 = vlaneseq
      %v6000 = vshrl.u32 %v5999, 7
      %v6001 = vsub.s32 0, %v6000
      %v6002 = vrot.slane %v4778, %v6001
      %v6003 = vlaneseq
      %v6004 = vshrl.u32 %v6003, 7
      %v6005 = vsub.s32 0, %v6004
      %v6006 = vrot.slane %v4794, %v6005
      %v6007 = vlaneseq
      %v6008 = vshrl.u32 %v6007, 7
      %v6009 = vsub.s32 0, %v6008
      %v6010 = vrot.slane %v4813, %v6009
      %v6011 = vlaneseq
      %v6012 = vshrl.u32 %v6011, 7
      %v6013 = vsub.s32 0, %v6012
      %v6014 = vrot.slane %v4838, %v6013
      %v6015 = vlaneseq
      %v6016 = vshrl.u32 %v6015, 7
      %v6017 = vsub.s32 0, %v6016
      %v6018 = vrot.slane %v4863, %v6017
      %v6019 = vlaneseq
      %v6020 = vshrl.u32 %v6019, 7
      %v6021 = vsub.s32 0, %v6020
      %v6022 = vrot.slane %v4879, %v6021
      %v6023 = vlaneseq
      %v6024 = vshrl.u32 %v6023, 7
      %v6025 = vsub.s32 0, %v6024
      %v6026 = vrot.slane %v4898, %v6025
      %v6027 = vlaneseq
      %v6028 = vshrl.u32 %v6027, 7
      %v6029 = vsub.s32 0, %v6028
      %v6030 = vrot.slane %v4923, %v6029
      %v6031 = vlaneseq
      %v6032 = vshrl.u32 %v6031, 7
      %v6033 = vsub.s32 0, %v6032
      %v6034 = vrot.slane %v4948, %v6033
      %v6035 = vlaneseq
      %v6036 = vshrl.u32 %v6035, 7
      %v6037 = vsub.s32 0, %v6036
      %v6038 = vrot.slane %v4964, %v6037
      %v6039 = vlaneseq
      %v6040 = vshrl.u32 %v6039, 7
      %v6041 = vsub.s32 0, %v6040
      %v6042 = vrot.slane %v4983, %v6041
      %v6043 = vlaneseq
      %v6044 = vshrl.u32 %v6043, 7
      %v6045 = vsub.s32 0, %v6044
      %v6046 = vrot.slane %v5008, %v6045
      %v6047 = vlaneseq
      %v6048 = vshrl.u32 %v6047, 7
      %v6049 = vsub.s32 0, %v6048
      %v6050 = vrot.slane %v5033, %v6049
      %v6051 = vlaneseq
      %v6052 = vshrl.u32 %v6051, 7
      %v6053 = vsub.s32 0, %v6052
      %v6054 = vrot.slane %v5049, %v6053
      %v6055 = vlaneseq
      %v6056 = vshrl.u32 %v6055, 7
      %v6057 = vsub.s32 0, %v6056
      %v6058 = vrot.slane %v5068, %v6057
      %v6059 = vlaneseq
      %v6060 = vshrl.u32 %v6059, 7
      %v6061 = vsub.s32 0, %v6060
      %v6062 = vrot.slane %v5093, %v6061
      %v6063 = vsel %vm1247, %v6006, %v6002
      %v6064 = vsel %vm1249, %v6010, %v6063
      %v6065 = vsel %vm1287, %v6014, %v6064
      %v6066 = vsel %vm5709, %v6018, %v6065
      %v6067 = vsel %vm5711, %v6022, %v6066
      %v6068 = vsel %vm5713, %v6026, %v6067
      %v6069 = vsel %vm5715, %v6030, %v6068
      %v6070 = vsel %vm1247, %v6038, %v6034
      %v6071 = vsel %vm1249, %v6042, %v6070
      %v6072 = vsel %vm1287, %v6046, %v6071
      %v6073 = vsel %vm5709, %v6050, %v6072
      %v6074 = vsel %vm5711, %v6054, %v6073
      %v6075 = vsel %vm5713, %v6058, %v6074
      %v6076 = vsel %vm5715, %v6062, %v6075
      %6079 = vst.msk [vmem:[#allocation7 + $0x60] sm:$0xff] %vm5726, %v6069
      %6080 = vst.msk [vmem:[#allocation7 + $0x68] sm:$0xff] %vm5726, %v6076
      %v6081 = vlaneseq
      %v6082 = vshrl.u32 %v6081, 7
      %v6083 = vsub.s32 0, %v6082
      %v6084 = vrot.slane %v5309, %v6083
      %v6085 = vlaneseq
      %v6086 = vshrl.u32 %v6085, 7
      %v6087 = vsub.s32 0, %v6086
      %v6088 = vrot.slane %v5325, %v6087
      %v6089 = vlaneseq
      %v6090 = vshrl.u32 %v6089, 7
      %v6091 = vsub.s32 0, %v6090
      %v6092 = vrot.slane %v5344, %v6091
      %v6093 = vlaneseq
      %v6094 = vshrl.u32 %v6093, 7
      %v6095 = vsub.s32 0, %v6094
      %v6096 = vrot.slane %v5369, %v6095
      %v6097 = vlaneseq
      %v6098 = vshrl.u32 %v6097, 7
      %v6099 = vsub.s32 0, %v6098
      %v6100 = vrot.slane %v5394, %v6099
      %v6101 = vlaneseq
      %v6102 = vshrl.u32 %v6101, 7
      %v6103 = vsub.s32 0, %v6102
      %v6104 = vrot.slane %v5410, %v6103
      %v6105 = vlaneseq
      %v6106 = vshrl.u32 %v6105, 7
      %v6107 = vsub.s32 0, %v6106
      %v6108 = vrot.slane %v5429, %v6107
      %v6109 = vlaneseq
      %v6110 = vshrl.u32 %v6109, 7
      %v6111 = vsub.s32 0, %v6110
      %v6112 = vrot.slane %v5454, %v6111
      %v6113 = vlaneseq
      %v6114 = vshrl.u32 %v6113, 7
      %v6115 = vsub.s32 0, %v6114
      %v6116 = vrot.slane %v5479, %v6115
      %v6117 = vlaneseq
      %v6118 = vshrl.u32 %v6117, 7
      %v6119 = vsub.s32 0, %v6118
      %v6120 = vrot.slane %v5495, %v6119
      %v6121 = vlaneseq
      %v6122 = vshrl.u32 %v6121, 7
      %v6123 = vsub.s32 0, %v6122
      %v6124 = vrot.slane %v5514, %v6123
      %v6125 = vlaneseq
      %v6126 = vshrl.u32 %v6125, 7
      %v6127 = vsub.s32 0, %v6126
      %v6128 = vrot.slane %v5539, %v6127
      %v6129 = vlaneseq
      %v6130 = vshrl.u32 %v6129, 7
      %v6131 = vsub.s32 0, %v6130
      %v6132 = vrot.slane %v5564, %v6131
      %v6133 = vlaneseq
      %v6134 = vshrl.u32 %v6133, 7
      %v6135 = vsub.s32 0, %v6134
      %v6136 = vrot.slane %v5580, %v6135
      %v6137 = vlaneseq
      %v6138 = vshrl.u32 %v6137, 7
      %v6139 = vsub.s32 0, %v6138
      %v6140 = vrot.slane %v5599, %v6139
      %v6141 = vlaneseq
      %v6142 = vshrl.u32 %v6141, 7
      %v6143 = vsub.s32 0, %v6142
      %v6144 = vrot.slane %v5624, %v6143
      %v6145 = vsel %vm1247, %v6088, %v6084
      %v6146 = vsel %vm1249, %v6092, %v6145
      %v6147 = vsel %vm1287, %v6096, %v6146
      %v6148 = vsel %vm5709, %v6100, %v6147
      %v6149 = vsel %vm5711, %v6104, %v6148
      %v6150 = vsel %vm5713, %v6108, %v6149
      %v6151 = vsel %vm5715, %v6112, %v6150
      %v6152 = vsel %vm1247, %v6120, %v6116
      %v6153 = vsel %vm1249, %v6124, %v6152
      %v6154 = vsel %vm1287, %v6128, %v6153
      %v6155 = vsel %vm5709, %v6132, %v6154
      %v6156 = vsel %vm5711, %v6136, %v6155
      %v6157 = vsel %vm5713, %v6140, %v6156
      %v6158 = vsel %vm5715, %v6144, %v6157
      %6161 = vst.msk [vmem:[#allocation7 + $0x70] sm:$0xff] %vm5726, %v6151
      %6162 = vst.msk [vmem:[#allocation7 + $0x78] sm:$0xff] %vm5726, %v6158
      %6163 = vrot.lane.b32.xlu0 %v6069, 127
      %v6164 = vpop.permute.xlu0 %6163
      %6165 = vrot.lane.b32.xlu0 %v6076, 127
      %v6166 = vpop.permute.xlu0 %6165
      %6169 = vst.msk [vmem:[#allocation7 + $0x80] sm:$0xff] %vm5726, %v6164
      %6170 = vst.msk [vmem:[#allocation7 + $0x88] sm:$0xff] %vm5726, %v6166
      %v6171 = vld [vmem:[#allocation7] sm:$0xff]
      %v6172 = vld [vmem:[#allocation7 + $0x8] sm:$0xff]
      %v6173 = vld [vmem:[#allocation7 + $0x10] sm:$0xff]
      %v6174 = vld [vmem:[#allocation7 + $0x18] sm:$0xff]
      %v6175 = vld [vmem:[#allocation7 + $0x20] sm:$0xff]
      %v6176 = vld [vmem:[#allocation7 + $0x28] sm:$0xff]
      %v6177 = vld [vmem:[#allocation7 + $0x30] sm:$0xff]
      %v6178 = vld [vmem:[#allocation7 + $0x38] sm:$0xff]
      %v6179 = vld [vmem:[#allocation7 + $0x40] sm:$0xff]
      %v6180 = vld [vmem:[#allocation7 + $0x48] sm:$0xff]
      %v6181 = vld [vmem:[#allocation7 + $0x50] sm:$0xff]
      %v6182 = vld [vmem:[#allocation7 + $0x58] sm:$0xff]
      %v6183 = vld [vmem:[#allocation7 + $0x60] sm:$0xff]
      %v6184 = vld [vmem:[#allocation7 + $0x68] sm:$0xff]
      %v6185 = vld [vmem:[#allocation7 + $0x70] sm:$0xff]
      %v6186 = vld [vmem:[#allocation7 + $0x78] sm:$0xff]
      %v6187 = vld [vmem:[#allocation7 + $0x80] sm:$0xff]
      %v6188 = vld [vmem:[#allocation7 + $0x88] sm:$0xff]
      %v6189 = vpack.c.bf16 %v6172, %v6171
      %v6190 = vpack.c.bf16 %v6174, %v6173
      %v6191 = vpack.c.bf16 %v6176, %v6175
      %v6192 = vpack.c.bf16 %v6178, %v6177
      %v6193 = vpack.c.bf16 %v6180, %v6179
      %v6194 = vpack.c.bf16 %v6182, %v6181
      %v6195 = vpack.c.bf16 %v6184, %v6183
      %v6196 = vpack.c.bf16 %v6186, %v6185
      %v6197 = vpack.c.bf16 %v6188, %v6187
      %6199 = vset.pattern.permute.xlu0 0
      %6200 = vperm.xlu0 %6199, %v5638
      %v6201 = vpop.permute.xlu0 %6200
      %6204 = vset.pattern.permute.xlu0 0
      %6205 = vperm.xlu0 %6204, %v5639
      %v6206 = vpop.permute.xlu0 %6205
      %6209 = vset.pattern.permute.xlu0 0
      %6210 = vperm.xlu0 %6209, %v5640
      %v6211 = vpop.permute.xlu0 %6210
      %6214 = vset.pattern.permute.xlu0 0
      %6215 = vperm.xlu0 %6214, %v5641
      %v6216 = vpop.permute.xlu0 %6215
      %v6222 = vunpack.c.l.b16 %v5634
      %v6223 = vunpack.c.h.b16 %v5634
      %v6224 = vunpack.c.l.b16 %v5635
      %v6225 = vunpack.c.h.b16 %v5635
      %v6226 = vunpack.c.l.b16 %v5636
      %v6227 = vunpack.c.h.b16 %v5636
      %v6228 = vunpack.c.l.b16 %v5637
      %v6229 = vunpack.c.h.b16 %v5637
      %v6230 = vpack.c.b16 %v6224, %v6222
      %v6231 = vpack.c.b16 %v6225, %v6223
      %v6232 = vpack.c.b16 %v6228, %v6226
      %v6233 = vpack.c.b16 %v6229, %v6227
      %vm6236 = vcmask 130048
      %v6238 = vsel %vm6236, %v6231, 0
      %v6241 = vsel %vm6236, %v6233, 0
      %6243 = vmatprep.subr.bf16.mxu0 0
      %6244 = vmatpush1.bf16.msra.mxu0 %v6189
      %6245 = vmatprep.subr.bf16.mxu0 0
      %6246 = vmatpush1.bf16.msra.mxu0 %v6190
      %6247 = vmatprep.subr.bf16.mxu0 0
      %6248 = vmatpush1.bf16.msra.mxu0 %v6191
      %6249 = vmatprep.subr.bf16.mxu0 0
      %6250 = vmatpush1.bf16.msra.mxu0 %v6192
      %6251 = vmatprep.subr.bf16.mxu0 0
      %6252 = vmatpush1.bf16.msra.mxu0 %v6193
      %6253 = vmatprep.subr.bf16.mxu0 0
      %6254 = vmatpush1.bf16.msra.mxu0 %v6194
      %6255 = vmatprep.subr.bf16.mxu0 0
      %6256 = vmatpush1.bf16.msra.mxu0 %v6195
      %6257 = vmatprep.subr.bf16.mxu0 0
      %6258 = vmatpush1.bf16.msra.mxu0 %v6196
      %6259 = vmatprep.subr.bf16.mxu0 0
      %6260 = vmatpush1.bf16.msra.mxu0 %v6197
      %6261 = vmatprep.subr.bf16.mxu0 0
      %6262 = vmatpush1.bf16.msra.mxu0 0
      %6263 = vmatprep.subr.bf16.mxu0 0
      %6264 = vmatpush1.bf16.msra.mxu0 0
      %6265 = vmatprep.subr.bf16.mxu0 0
      %6266 = vmatpush1.bf16.msra.mxu0 0
      %6267 = vmatprep.subr.bf16.mxu0 0
      %6268 = vmatpush1.bf16.msra.mxu0 0
      %6269 = vmatprep.subr.bf16.mxu0 0
      %6270 = vmatpush1.bf16.msra.mxu0 0
      %6271 = vmatprep.subr.bf16.mxu0 0
      %6272 = vmatpush1.bf16.msra.mxu0 0
      %6273 = vmatprep.subr.bf16.mxu0 0
      %6274 = vmatpush1.bf16.msra.mxu0 0
      %6275 = vmatprep.mubr.bf16.mxu0 %v6238
      %6276 = vmatmul.mubr.bf16.gmra.mrb[0].mxu0 %v6230
      %v6277 = vpop.f32.mrb[0].mxu0
      %v6278 = vadd.f32 %v6201, %v6277
      %v6279 = vpop.f32.mrb[0].mxu0
      %v6280 = vpop.f32.mrb[0].mxu0
      %v6281 = vadd.f32 %v6206, %v6280
      %v6282 = vpop.f32.mrb[0].mxu0
      %6283 = vmatprep.mubr.bf16.mxu0 %v6241
      %6284 = vmatmul.mubr.bf16.gmra.mrb[0].mxu0 %v6232
      %v6285 = vpop.f32.mrb[0].mxu0
      %v6286 = vadd.f32 %v6211, %v6285
      %v6287 = vpop.f32.mrb[0].mxu0
      %v6288 = vpop.f32.mrb[0].mxu0
      %v6289 = vadd.f32 %v6216, %v6288
      %v6290 = vpop.f32.mrb[0].mxu0
      %6291 = vdwg.mxu0
      %v6292 = vmax.f32 %v6278, 0.0
      %v6293 = vmax.f32 %v6281, 0.0
      %v6294 = vmax.f32 %v6286, 0.0
      %v6295 = vmax.f32 %v6289, 0.0
      %6296 = vst.msk [vmem:[#allocation5] sm:$0xff] %vm5726, %v6292
      %6297 = vst.msk [vmem:[#allocation5 + $0x8] sm:$0xff] %vm5726, %v6293
      %6298 = vst.msk [vmem:[#allocation5 + $0x10] sm:$0xff] %vm5726, %v6294
      %6299 = vst.msk [vmem:[#allocation5 + $0x18] sm:$0xff] %vm5726, %v6295
      %6300 = vst.msk [vmem:[#allocation7] sm:$0xff] %vm5726, %v6069
      %6301 = vst.msk [vmem:[#allocation7 + $0x8] sm:$0xff] %vm5726, %v6076
      %6302 = vst.msk [vmem:[#allocation7 + $0x10] sm:$0xff] %vm5726, %v6151
      %6303 = vst.msk [vmem:[#allocation7 + $0x18] sm:$0xff] %vm5726, %v6158
      %6304 = vst.msk [vmem:[#allocation7 + $0x20] sm:$0xff] %vm5726, %v6164
      %6305 = vst.msk [vmem:[#allocation7 + $0x28] sm:$0xff] %vm5726, %v6166
      %v6306 = vlaneseq
      %v6307 = vshrl.u32 %v6306, 7
      %v6308 = vsub.s32 1, %v6307
      %v6309 = vrot.slane %v4778, %v6308
      %v6310 = vlaneseq
      %v6311 = vshrl.u32 %v6310, 7
      %v6312 = vsub.s32 1, %v6311
      %v6313 = vrot.slane %v4794, %v6312
      %v6314 = vlaneseq
      %v6315 = vshrl.u32 %v6314, 7
      %v6316 = vsub.s32 1, %v6315
      %v6317 = vrot.slane %v4813, %v6316
      %v6318 = vlaneseq
      %v6319 = vshrl.u32 %v6318, 7
      %v6320 = vsub.s32 1, %v6319
      %v6321 = vrot.slane %v4838, %v6320
      %v6322 = vlaneseq
      %v6323 = vshrl.u32 %v6322, 7
      %v6324 = vsub.s32 1, %v6323
      %v6325 = vrot.slane %v4863, %v6324
      %v6326 = vlaneseq
      %v6327 = vshrl.u32 %v6326, 7
      %v6328 = vsub.s32 1, %v6327
      %v6329 = vrot.slane %v4879, %v6328
      %v6330 = vlaneseq
      %v6331 = vshrl.u32 %v6330, 7
      %v6332 = vsub.s32 1, %v6331
      %v6333 = vrot.slane %v4898, %v6332
      %v6334 = vlaneseq
      %v6335 = vshrl.u32 %v6334, 7
      %v6336 = vsub.s32 1, %v6335
      %v6337 = vrot.slane %v4923, %v6336
      %v6338 = vlaneseq
      %v6339 = vshrl.u32 %v6338, 7
      %v6340 = vsub.s32 1, %v6339
      %v6341 = vrot.slane %v4948, %v6340
      %v6342 = vlaneseq
      %v6343 = vshrl.u32 %v6342, 7
      %v6344 = vsub.s32 1, %v6343
      %v6345 = vrot.slane %v4964, %v6344
      %v6346 = vlaneseq
      %v6347 = vshrl.u32 %v6346, 7
      %v6348 = vsub.s32 1, %v6347
      %v6349 = vrot.slane %v4983, %v6348
      %v6350 = vlaneseq
      %v6351 = vshrl.u32 %v6350, 7
      %v6352 = vsub.s32 1, %v6351
      %v6353 = vrot.slane %v5008, %v6352
      %v6354 = vlaneseq
      %v6355 = vshrl.u32 %v6354, 7
      %v6356 = vsub.s32 1, %v6355
      %v6357 = vrot.slane %v5033, %v6356
      %v6358 = vlaneseq
      %v6359 = vshrl.u32 %v6358, 7
      %v6360 = vsub.s32 1, %v6359
      %v6361 = vrot.slane %v5049, %v6360
      %v6362 = vlaneseq
      %v6363 = vshrl.u32 %v6362, 7
      %v6364 = vsub.s32 1, %v6363
      %v6365 = vrot.slane %v5068, %v6364
      %v6366 = vlaneseq
      %v6367 = vshrl.u32 %v6366, 7
      %v6368 = vsub.s32 1, %v6367
      %v6369 = vrot.slane %v5093, %v6368
      %v6370 = vsel %vm1249, %v6313, %v6309
      %v6371 = vsel %vm1287, %v6317, %v6370
      %v6372 = vsel %vm5709, %v6321, %v6371
      %v6373 = vsel %vm5711, %v6325, %v6372
      %v6374 = vsel %vm5713, %v6329, %v6373
      %v6375 = vsel %vm5715, %v6333, %v6374
      %v6376 = vsel %vm1247, %v6341, %v6337
      %v6377 = vsel %vm1249, %v6345, %v6376
      %v6378 = vsel %vm1287, %v6349, %v6377
      %v6379 = vsel %vm5709, %v6353, %v6378
      %v6380 = vsel %vm5711, %v6357, %v6379
      %v6381 = vsel %vm5713, %v6361, %v6380
      %v6382 = vsel %vm5715, %v6365, %v6381
      %6386 = vst.msk [vmem:[#allocation7 + $0x2f] sm:$0xfe] %vm5899, %v6375
      %6387 = vst.msk [vmem:[#allocation7 + $0x37] sm:$0xff] %vm5726, %v6382
      %6388 = vst.msk [vmem:[#allocation7 + $0x3f] sm:$0x1] %vm5902, %v6369
      %v6389 = vlaneseq
      %v6390 = vshrl.u32 %v6389, 7
      %v6391 = vsub.s32 1, %v6390
      %v6392 = vrot.slane %v5309, %v6391
      %v6393 = vlaneseq
      %v6394 = vshrl.u32 %v6393, 7
      %v6395 = vsub.s32 1, %v6394
      %v6396 = vrot.slane %v5325, %v6395
      %v6397 = vlaneseq
      %v6398 = vshrl.u32 %v6397, 7
      %v6399 = vsub.s32 1, %v6398
      %v6400 = vrot.slane %v5344, %v6399
      %v6401 = vlaneseq
      %v6402 = vshrl.u32 %v6401, 7
      %v6403 = vsub.s32 1, %v6402
      %v6404 = vrot.slane %v5369, %v6403
      %v6405 = vlaneseq
      %v6406 = vshrl.u32 %v6405, 7
      %v6407 = vsub.s32 1, %v6406
      %v6408 = vrot.slane %v5394, %v6407
      %v6409 = vlaneseq
      %v6410 = vshrl.u32 %v6409, 7
      %v6411 = vsub.s32 1, %v6410
      %v6412 = vrot.slane %v5410, %v6411
      %v6413 = vlaneseq
      %v6414 = vshrl.u32 %v6413, 7
      %v6415 = vsub.s32 1, %v6414
      %v6416 = vrot.slane %v5429, %v6415
      %v6417 = vlaneseq
      %v6418 = vshrl.u32 %v6417, 7
      %v6419 = vsub.s32 1, %v6418
      %v6420 = vrot.slane %v5454, %v6419
      %v6421 = vlaneseq
      %v6422 = vshrl.u32 %v6421, 7
      %v6423 = vsub.s32 1, %v6422
      %v6424 = vrot.slane %v5479, %v6423
      %v6425 = vlaneseq
      %v6426 = vshrl.u32 %v6425, 7
      %v6427 = vsub.s32 1, %v6426
      %v6428 = vrot.slane %v5495, %v6427
      %v6429 = vlaneseq
      %v6430 = vshrl.u32 %v6429, 7
      %v6431 = vsub.s32 1, %v6430
      %v6432 = vrot.slane %v5514, %v6431
      %v6433 = vlaneseq
      %v6434 = vshrl.u32 %v6433, 7
      %v6435 = vsub.s32 1, %v6434
      %v6436 = vrot.slane %v5539, %v6435
      %v6437 = vlaneseq
      %v6438 = vshrl.u32 %v6437, 7
      %v6439 = vsub.s32 1, %v6438
      %v6440 = vrot.slane %v5564, %v6439
      %v6441 = vlaneseq
      %v6442 = vshrl.u32 %v6441, 7
      %v6443 = vsub.s32 1, %v6442
      %v6444 = vrot.slane %v5580, %v6443
      %v6445 = vlaneseq
      %v6446 = vshrl.u32 %v6445, 7
      %v6447 = vsub.s32 1, %v6446
      %v6448 = vrot.slane %v5599, %v6447
      %v6449 = vlaneseq
      %v6450 = vshrl.u32 %v6449, 7
      %v6451 = vsub.s32 1, %v6450
      %v6452 = vrot.slane %v5624, %v6451
      %v6453 = vsel %vm1249, %v6396, %v6392
      %v6454 = vsel %vm1287, %v6400, %v6453
      %v6455 = vsel %vm5709, %v6404, %v6454
      %v6456 = vsel %vm5711, %v6408, %v6455
      %v6457 = vsel %vm5713, %v6412, %v6456
      %v6458 = vsel %vm5715, %v6416, %v6457
      %v6459 = vsel %vm1247, %v6424, %v6420
      %v6460 = vsel %vm1249, %v6428, %v6459
      %v6461 = vsel %vm1287, %v6432, %v6460
      %v6462 = vsel %vm5709, %v6436, %v6461
      %v6463 = vsel %vm5711, %v6440, %v6462
      %v6464 = vsel %vm5713, %v6444, %v6463
      %v6465 = vsel %vm5715, %v6448, %v6464
      %6469 = vst.msk [vmem:[#allocation7 + $0x3f] sm:$0xfe] %vm5899, %v6458
      %6470 = vst.msk [vmem:[#allocation7 + $0x47] sm:$0xff] %vm5726, %v6465
      %6471 = vst.msk [vmem:[#allocation7 + $0x4f] sm:$0x1] %vm5902, %v6452
      %6472 = vrot.lane.b32.xlu0 %v6375, 127
      %v6473 = vpop.permute.xlu0 %6472
      %6474 = vrot.lane.b32.xlu0 %v6382, 127
      %v6475 = vpop.permute.xlu0 %6474
      %6476 = vrot.lane.b32.xlu0 %v6369, 127
      %v6477 = vpop.permute.xlu0 %6476
      %6481 = vst.msk [vmem:[#allocation7 + $0x4f] sm:$0xfe] %vm5899, %v6473
      %6482 = vst.msk [vmem:[#allocation7 + $0x57] sm:$0xff] %vm5726, %v6475
      %6483 = vst.msk [vmem:[#allocation7 + $0x5f] sm:$0x1] %vm5902, %v6477
      %v6484 = vlaneseq
      %v6485 = vshrl.u32 %v6484, 7
      %v6486 = vsub.s32 0, %v6485
      %v6487 = vrot.slane %v4777, %v6486
      %v6488 = vlaneseq
      %v6489 = vshrl.u32 %v6488, 7
      %v6490 = vsub.s32 0, %v6489
      %v6491 = vrot.slane %v4796, %v6490
      %v6492 = vlaneseq
      %v6493 = vshrl.u32 %v6492, 7
      %v6494 = vsub.s32 0, %v6493
      %v6495 = vrot.slane %v4821, %v6494
      %v6496 = vlaneseq
      %v6497 = vshrl.u32 %v6496, 7
      %v6498 = vsub.s32 0, %v6497
      %v6499 = vrot.slane %v4846, %v6498
      %v6500 = vlaneseq
      %v6501 = vshrl.u32 %v6500, 7
      %v6502 = vsub.s32 0, %v6501
      %v6503 = vrot.slane %v4862, %v6502
      %v6504 = vlaneseq
      %v6505 = vshrl.u32 %v6504, 7
      %v6506 = vsub.s32 0, %v6505
      %v6507 = vrot.slane %v4881, %v6506
      %v6508 = vlaneseq
      %v6509 = vshrl.u32 %v6508, 7
      %v6510 = vsub.s32 0, %v6509
      %v6511 = vrot.slane %v4906, %v6510
      %v6512 = vlaneseq
      %v6513 = vshrl.u32 %v6512, 7
      %v6514 = vsub.s32 0, %v6513
      %v6515 = vrot.slane %v4931, %v6514
      %v6516 = vlaneseq
      %v6517 = vshrl.u32 %v6516, 7
      %v6518 = vsub.s32 0, %v6517
      %v6519 = vrot.slane %v4947, %v6518
      %v6520 = vlaneseq
      %v6521 = vshrl.u32 %v6520, 7
      %v6522 = vsub.s32 0, %v6521
      %v6523 = vrot.slane %v4966, %v6522
      %v6524 = vlaneseq
      %v6525 = vshrl.u32 %v6524, 7
      %v6526 = vsub.s32 0, %v6525
      %v6527 = vrot.slane %v4991, %v6526
      %v6528 = vlaneseq
      %v6529 = vshrl.u32 %v6528, 7
      %v6530 = vsub.s32 0, %v6529
      %v6531 = vrot.slane %v5016, %v6530
      %v6532 = vlaneseq
      %v6533 = vshrl.u32 %v6532, 7
      %v6534 = vsub.s32 0, %v6533
      %v6535 = vrot.slane %v5032, %v6534
      %v6536 = vlaneseq
      %v6537 = vshrl.u32 %v6536, 7
      %v6538 = vsub.s32 0, %v6537
      %v6539 = vrot.slane %v5051, %v6538
      %v6540 = vlaneseq
      %v6541 = vshrl.u32 %v6540, 7
      %v6542 = vsub.s32 0, %v6541
      %v6543 = vrot.slane %v5076, %v6542
      %v6544 = vlaneseq
      %v6545 = vshrl.u32 %v6544, 7
      %v6546 = vsub.s32 0, %v6545
      %v6547 = vrot.slane %v5101, %v6546
      %v6548 = vsel %vm1247, %v6491, %v6487
      %v6549 = vsel %vm1249, %v6495, %v6548
      %v6550 = vsel %vm1287, %v6499, %v6549
      %v6551 = vsel %vm5709, %v6503, %v6550
      %v6552 = vsel %vm5711, %v6507, %v6551
      %v6553 = vsel %vm5713, %v6511, %v6552
      %v6554 = vsel %vm5715, %v6515, %v6553
      %v6555 = vsel %vm1247, %v6523, %v6519
      %v6556 = vsel %vm1249, %v6527, %v6555
      %v6557 = vsel %vm1287, %v6531, %v6556
      %v6558 = vsel %vm5709, %v6535, %v6557
      %v6559 = vsel %vm5711, %v6539, %v6558
      %v6560 = vsel %vm5713, %v6543, %v6559
      %v6561 = vsel %vm5715, %v6547, %v6560
      %6564 = vst.msk [vmem:[#allocation7 + $0x60] sm:$0xff] %vm5726, %v6554
      %6565 = vst.msk [vmem:[#allocation7 + $0x68] sm:$0xff] %vm5726, %v6561
      %v6566 = vlaneseq
      %v6567 = vshrl.u32 %v6566, 7
      %v6568 = vsub.s32 0, %v6567
      %v6569 = vrot.slane %v5308, %v6568
      %v6570 = vlaneseq
      %v6571 = vshrl.u32 %v6570, 7
      %v6572 = vsub.s32 0, %v6571
      %v6573 = vrot.slane %v5327, %v6572
      %v6574 = vlaneseq
      %v6575 = vshrl.u32 %v6574, 7
      %v6576 = vsub.s32 0, %v6575
      %v6577 = vrot.slane %v5352, %v6576
      %v6578 = vlaneseq
      %v6579 = vshrl.u32 %v6578, 7
      %v6580 = vsub.s32 0, %v6579
      %v6581 = vrot.slane %v5377, %v6580
      %v6582 = vlaneseq
      %v6583 = vshrl.u32 %v6582, 7
      %v6584 = vsub.s32 0, %v6583
      %v6585 = vrot.slane %v5393, %v6584
      %v6586 = vlaneseq
      %v6587 = vshrl.u32 %v6586, 7
      %v6588 = vsub.s32 0, %v6587
      %v6589 = vrot.slane %v5412, %v6588
      %v6590 = vlaneseq
      %v6591 = vshrl.u32 %v6590, 7
      %v6592 = vsub.s32 0, %v6591
      %v6593 = vrot.slane %v5437, %v6592
      %v6594 = vlaneseq
      %v6595 = vshrl.u32 %v6594, 7
      %v6596 = vsub.s32 0, %v6595
      %v6597 = vrot.slane %v5462, %v6596
      %v6598 = vlaneseq
      %v6599 = vshrl.u32 %v6598, 7
      %v6600 = vsub.s32 0, %v6599
      %v6601 = vrot.slane %v5478, %v6600
      %v6602 = vlaneseq
      %v6603 = vshrl.u32 %v6602, 7
      %v6604 = vsub.s32 0, %v6603
      %v6605 = vrot.slane %v5497, %v6604
      %v6606 = vlaneseq
      %v6607 = vshrl.u32 %v6606, 7
      %v6608 = vsub.s32 0, %v6607
      %v6609 = vrot.slane %v5522, %v6608
      %v6610 = vlaneseq
      %v6611 = vshrl.u32 %v6610, 7
      %v6612 = vsub.s32 0, %v6611
      %v6613 = vrot.slane %v5547, %v6612
      %v6614 = vlaneseq
      %v6615 = vshrl.u32 %v6614, 7
      %v6616 = vsub.s32 0, %v6615
      %v6617 = vrot.slane %v5563, %v6616
      %v6618 = vlaneseq
      %v6619 = vshrl.u32 %v6618, 7
      %v6620 = vsub.s32 0, %v6619
      %v6621 = vrot.slane %v5582, %v6620
      %v6622 = vlaneseq
      %v6623 = vshrl.u32 %v6622, 7
      %v6624 = vsub.s32 0, %v6623
      %v6625 = vrot.slane %v5607, %v6624
      %v6626 = vlaneseq
      %v6627 = vshrl.u32 %v6626, 7
      %v6628 = vsub.s32 0, %v6627
      %v6629 = vrot.slane %v5632, %v6628
      %v6630 = vsel %vm1247, %v6573, %v6569
      %v6631 = vsel %vm1249, %v6577, %v6630
      %v6632 = vsel %vm1287, %v6581, %v6631
      %v6633 = vsel %vm5709, %v6585, %v6632
      %v6634 = vsel %vm5711, %v6589, %v6633
      %v6635 = vsel %vm5713, %v6593, %v6634
      %v6636 = vsel %vm5715, %v6597, %v6635
      %v6637 = vsel %vm1247, %v6605, %v6601
      %v6638 = vsel %vm1249, %v6609, %v6637
      %v6639 = vsel %vm1287, %v6613, %v6638
      %v6640 = vsel %vm5709, %v6617, %v6639
      %v6641 = vsel %vm5711, %v6621, %v6640
      %v6642 = vsel %vm5713, %v6625, %v6641
      %v6643 = vsel %vm5715, %v6629, %v6642
      %6646 = vst.msk [vmem:[#allocation7 + $0x70] sm:$0xff] %vm5726, %v6636
      %6647 = vst.msk [vmem:[#allocation7 + $0x78] sm:$0xff] %vm5726, %v6643
      %6648 = vrot.lane.b32.xlu0 %v6554, 127
      %v6649 = vpop.permute.xlu0 %6648
      %6650 = vrot.lane.b32.xlu0 %v6561, 127
      %v6651 = vpop.permute.xlu0 %6650
      %6654 = vst.msk [vmem:[#allocation7 + $0x80] sm:$0xff] %vm5726, %v6649
      %6655 = vst.msk [vmem:[#allocation7 + $0x88] sm:$0xff] %vm5726, %v6651
      %v6656 = vld [vmem:[#allocation7] sm:$0xff]
      %v6657 = vld [vmem:[#allocation7 + $0x8] sm:$0xff]
      %v6658 = vld [vmem:[#allocation7 + $0x10] sm:$0xff]
      %v6659 = vld [vmem:[#allocation7 + $0x18] sm:$0xff]
      %v6660 = vld [vmem:[#allocation7 + $0x20] sm:$0xff]
      %v6661 = vld [vmem:[#allocation7 + $0x28] sm:$0xff]
      %v6662 = vld [vmem:[#allocation7 + $0x30] sm:$0xff]
      %v6663 = vld [vmem:[#allocation7 + $0x38] sm:$0xff]
      %v6664 = vld [vmem:[#allocation7 + $0x40] sm:$0xff]
      %v6665 = vld [vmem:[#allocation7 + $0x48] sm:$0xff]
      %v6666 = vld [vmem:[#allocation7 + $0x50] sm:$0xff]
      %v6667 = vld [vmem:[#allocation7 + $0x58] sm:$0xff]
      %v6668 = vld [vmem:[#allocation7 + $0x60] sm:$0xff]
      %v6669 = vld [vmem:[#allocation7 + $0x68] sm:$0xff]
      %v6670 = vld [vmem:[#allocation7 + $0x70] sm:$0xff]
      %v6671 = vld [vmem:[#allocation7 + $0x78] sm:$0xff]
      %v6672 = vld [vmem:[#allocation7 + $0x80] sm:$0xff]
      %v6673 = vld [vmem:[#allocation7 + $0x88] sm:$0xff]
      %v6674 = vpack.c.bf16 %v6657, %v6656
      %v6675 = vpack.c.bf16 %v6659, %v6658
      %v6676 = vpack.c.bf16 %v6661, %v6660
      %v6677 = vpack.c.bf16 %v6663, %v6662
      %v6678 = vpack.c.bf16 %v6665, %v6664
      %v6679 = vpack.c.bf16 %v6667, %v6666
      %v6680 = vpack.c.bf16 %v6669, %v6668
      %v6681 = vpack.c.bf16 %v6671, %v6670
      %v6682 = vpack.c.bf16 %v6673, %v6672
      %6683 = vmatprep.subr.bf16.mxu0 0
      %6684 = vmatpush1.bf16.msra.mxu0 %v6674
      %6685 = vmatprep.subr.bf16.mxu0 0
      %6686 = vmatpush1.bf16.msra.mxu0 %v6675
      %6687 = vmatprep.subr.bf16.mxu0 0
      %6688 = vmatpush1.bf16.msra.mxu0 %v6676
      %6689 = vmatprep.subr.bf16.mxu0 0
      %6690 = vmatpush1.bf16.msra.mxu0 %v6677
      %6691 = vmatprep.subr.bf16.mxu0 0
      %6692 = vmatpush1.bf16.msra.mxu0 %v6678
      %6693 = vmatprep.subr.bf16.mxu0 0
      %6694 = vmatpush1.bf16.msra.mxu0 %v6679
      %6695 = vmatprep.subr.bf16.mxu0 0
      %6696 = vmatpush1.bf16.msra.mxu0 %v6680
      %6697 = vmatprep.subr.bf16.mxu0 0
      %6698 = vmatpush1.bf16.msra.mxu0 %v6681
      %6699 = vmatprep.subr.bf16.mxu0 0
      %6700 = vmatpush1.bf16.msra.mxu0 %v6682
      %6701 = vmatprep.subr.bf16.mxu0 0
      %6702 = vmatpush1.bf16.msra.mxu0 0
      %6703 = vmatprep.subr.bf16.mxu0 0
      %6704 = vmatpush1.bf16.msra.mxu0 0
      %6705 = vmatprep.subr.bf16.mxu0 0
      %6706 = vmatpush1.bf16.msra.mxu0 0
      %6707 = vmatprep.subr.bf16.mxu0 0
      %6708 = vmatpush1.bf16.msra.mxu0 0
      %6709 = vmatprep.subr.bf16.mxu0 0
      %6710 = vmatpush1.bf16.msra.mxu0 0
      %6711 = vmatprep.subr.bf16.mxu0 0
      %6712 = vmatpush1.bf16.msra.mxu0 0
      %6713 = vmatprep.subr.bf16.mxu0 0
      %6714 = vmatpush1.bf16.msra.mxu0 0
      %6715 = vmatprep.mubr.bf16.mxu0 %v6238
      %6716 = vmatmul.mubr.bf16.gmra.mrb[0].mxu0 %v6230
      %v6717 = vpop.f32.mrb[0].mxu0
      %v6718 = vadd.f32 %v6201, %v6717
      %v6719 = vpop.f32.mrb[0].mxu0
      %v6720 = vpop.f32.mrb[0].mxu0
      %v6721 = vadd.f32 %v6206, %v6720
      %v6722 = vpop.f32.mrb[0].mxu0
      %6723 = vmatprep.mubr.bf16.mxu0 %v6241
      %6724 = vmatmul.mubr.bf16.gmra.mrb[0].mxu0 %v6232
      %v6725 = vpop.f32.mrb[0].mxu0
      %v6726 = vadd.f32 %v6211, %v6725
      %v6727 = vpop.f32.mrb[0].mxu0
      %v6728 = vpop.f32.mrb[0].mxu0
      %v6729 = vadd.f32 %v6216, %v6728
      %v6730 = vpop.f32.mrb[0].mxu0
      %6731 = vdwg.mxu0
      %v6732 = vmax.f32 %v6718, 0.0
      %v6733 = vmax.f32 %v6721, 0.0
      %v6734 = vmax.f32 %v6726, 0.0
      %v6735 = vmax.f32 %v6729, 0.0
      %6740 = vrot.lane.b32.xlu0 %v6732, 4
      %v6741 = vpop.permute.xlu0 %6740
      %6742 = vrot.lane.b32.xlu0 %v6733, 4
      %v6743 = vpop.permute.xlu0 %6742
      %6744 = vrot.lane.b32.xlu0 %v6734, 4
      %v6745 = vpop.permute.xlu0 %6744
      %6746 = vrot.lane.b32.xlu0 %v6735, 4
      %v6747 = vpop.permute.xlu0 %6746
      %vm6752 = vcmask 64544
      %6753 = vst.msk [vmem:[#allocation5] sm:$0xff] %vm6752, %v6741
      %6754 = vst.msk [vmem:[#allocation5 + $0x8] sm:$0xff] %vm6752, %v6743
      %6755 = vst.msk [vmem:[#allocation5 + $0x10] sm:$0xff] %vm6752, %v6745
      %6756 = vst.msk [vmem:[#allocation5 + $0x18] sm:$0xff] %vm6752, %v6747
      %6757 = vst.msk [vmem:[#allocation7] sm:$0xff] %vm5726, %v6554
      %6758 = vst.msk [vmem:[#allocation7 + $0x8] sm:$0xff] %vm5726, %v6561
      %6759 = vst.msk [vmem:[#allocation7 + $0x10] sm:$0xff] %vm5726, %v6636
      %6760 = vst.msk [vmem:[#allocation7 + $0x18] sm:$0xff] %vm5726, %v6643
      %6761 = vst.msk [vmem:[#allocation7 + $0x20] sm:$0xff] %vm5726, %v6649
      %6762 = vst.msk [vmem:[#allocation7 + $0x28] sm:$0xff] %vm5726, %v6651
      %v6763 = vlaneseq
      %v6764 = vshrl.u32 %v6763, 7
      %v6765 = vsub.s32 1, %v6764
      %v6766 = vrot.slane %v4777, %v6765
      %v6767 = vlaneseq
      %v6768 = vshrl.u32 %v6767, 7
      %v6769 = vsub.s32 1, %v6768
      %v6770 = vrot.slane %v4796, %v6769
      %v6771 = vlaneseq
      %v6772 = vshrl.u32 %v6771, 7
      %v6773 = vsub.s32 1, %v6772
      %v6774 = vrot.slane %v4821, %v6773
      %v6775 = vlaneseq
      %v6776 = vshrl.u32 %v6775, 7
      %v6777 = vsub.s32 1, %v6776
      %v6778 = vrot.slane %v4846, %v6777
      %v6779 = vlaneseq
      %v6780 = vshrl.u32 %v6779, 7
      %v6781 = vsub.s32 1, %v6780
      %v6782 = vrot.slane %v4862, %v6781
      %v6783 = vlaneseq
      %v6784 = vshrl.u32 %v6783, 7
      %v6785 = vsub.s32 1, %v6784
      %v6786 = vrot.slane %v4881, %v6785
      %v6787 = vlaneseq
      %v6788 = vshrl.u32 %v6787, 7
      %v6789 = vsub.s32 1, %v6788
      %v6790 = vrot.slane %v4906, %v6789
      %v6791 = vlaneseq
      %v6792 = vshrl.u32 %v6791, 7
      %v6793 = vsub.s32 1, %v6792
      %v6794 = vrot.slane %v4931, %v6793
      %v6795 = vlaneseq
      %v6796 = vshrl.u32 %v6795, 7
      %v6797 = vsub.s32 1, %v6796
      %v6798 = vrot.slane %v4947, %v6797
      %v6799 = vlaneseq
      %v6800 = vshrl.u32 %v6799, 7
      %v6801 = vsub.s32 1, %v6800
      %v6802 = vrot.slane %v4966, %v6801
      %v6803 = vlaneseq
      %v6804 = vshrl.u32 %v6803, 7
      %v6805 = vsub.s32 1, %v6804
      %v6806 = vrot.slane %v4991, %v6805
      %v6807 = vlaneseq
      %v6808 = vshrl.u32 %v6807, 7
      %v6809 = vsub.s32 1, %v6808
      %v6810 = vrot.slane %v5016, %v6809
      %v6811 = vlaneseq
      %v6812 = vshrl.u32 %v6811, 7
      %v6813 = vsub.s32 1, %v6812
      %v6814 = vrot.slane %v5032, %v6813
      %v6815 = vlaneseq
      %v6816 = vshrl.u32 %v6815, 7
      %v6817 = vsub.s32 1, %v6816
      %v6818 = vrot.slane %v5051, %v6817
      %v6819 = vlaneseq
      %v6820 = vshrl.u32 %v6819, 7
      %v6821 = vsub.s32 1, %v6820
      %v6822 = vrot.slane %v5076, %v6821
      %v6823 = vlaneseq
      %v6824 = vshrl.u32 %v6823, 7
      %v6825 = vsub.s32 1, %v6824
      %v6826 = vrot.slane %v5101, %v6825
      %v6827 = vsel %vm1249, %v6770, %v6766
      %v6828 = vsel %vm1287, %v6774, %v6827
      %v6829 = vsel %vm5709, %v6778, %v6828
      %v6830 = vsel %vm5711, %v6782, %v6829
      %v6831 = vsel %vm5713, %v6786, %v6830
      %v6832 = vsel %vm5715, %v6790, %v6831
      %v6833 = vsel %vm1247, %v6798, %v6794
      %v6834 = vsel %vm1249, %v6802, %v6833
      %v6835 = vsel %vm1287, %v6806, %v6834
      %v6836 = vsel %vm5709, %v6810, %v6835
      %v6837 = vsel %vm5711, %v6814, %v6836
      %v6838 = vsel %vm5713, %v6818, %v6837
      %v6839 = vsel %vm5715, %v6822, %v6838
      %6843 = vst.msk [vmem:[#allocation7 + $0x2f] sm:$0xfe] %vm5899, %v6832
      %6844 = vst.msk [vmem:[#allocation7 + $0x37] sm:$0xff] %vm5726, %v6839
      %6845 = vst.msk [vmem:[#allocation7 + $0x3f] sm:$0x1] %vm5902, %v6826
      %v6846 = vlaneseq
      %v6847 = vshrl.u32 %v6846, 7
      %v6848 = vsub.s32 1, %v6847
      %v6849 = vrot.slane %v5308, %v6848
      %v6850 = vlaneseq
      %v6851 = vshrl.u32 %v6850, 7
      %v6852 = vsub.s32 1, %v6851
      %v6853 = vrot.slane %v5327, %v6852
      %v6854 = vlaneseq
      %v6855 = vshrl.u32 %v6854, 7
      %v6856 = vsub.s32 1, %v6855
      %v6857 = vrot.slane %v5352, %v6856
      %v6858 = vlaneseq
      %v6859 = vshrl.u32 %v6858, 7
      %v6860 = vsub.s32 1, %v6859
      %v6861 = vrot.slane %v5377, %v6860
      %v6862 = vlaneseq
      %v6863 = vshrl.u32 %v6862, 7
      %v6864 = vsub.s32 1, %v6863
      %v6865 = vrot.slane %v5393, %v6864
      %v6866 = vlaneseq
      %v6867 = vshrl.u32 %v6866, 7
      %v6868 = vsub.s32 1, %v6867
      %v6869 = vrot.slane %v5412, %v6868
      %v6870 = vlaneseq
      %v6871 = vshrl.u32 %v6870, 7
      %v6872 = vsub.s32 1, %v6871
      %v6873 = vrot.slane %v5437, %v6872
      %v6874 = vlaneseq
      %v6875 = vshrl.u32 %v6874, 7
      %v6876 = vsub.s32 1, %v6875
      %v6877 = vrot.slane %v5462, %v6876
      %v6878 = vlaneseq
      %v6879 = vshrl.u32 %v6878, 7
      %v6880 = vsub.s32 1, %v6879
      %v6881 = vrot.slane %v5478, %v6880
      %v6882 = vlaneseq
      %v6883 = vshrl.u32 %v6882, 7
      %v6884 = vsub.s32 1, %v6883
      %v6885 = vrot.slane %v5497, %v6884
      %v6886 = vlaneseq
      %v6887 = vshrl.u32 %v6886, 7
      %v6888 = vsub.s32 1, %v6887
      %v6889 = vrot.slane %v5522, %v6888
      %v6890 = vlaneseq
      %v6891 = vshrl.u32 %v6890, 7
      %v6892 = vsub.s32 1, %v6891
      %v6893 = vrot.slane %v5547, %v6892
      %v6894 = vlaneseq
      %v6895 = vshrl.u32 %v6894, 7
      %v6896 = vsub.s32 1, %v6895
      %v6897 = vrot.slane %v5563, %v6896
      %v6898 = vlaneseq
      %v6899 = vshrl.u32 %v6898, 7
      %v6900 = vsub.s32 1, %v6899
      %v6901 = vrot.slane %v5582, %v6900
      %v6902 = vlaneseq
      %v6903 = vshrl.u32 %v6902, 7
      %v6904 = vsub.s32 1, %v6903
      %v6905 = vrot.slane %v5607, %v6904
      %v6906 = vlaneseq
      %v6907 = vshrl.u32 %v6906, 7
      %v6908 = vsub.s32 1, %v6907
      %v6909 = vrot.slane %v5632, %v6908
      %v6910 = vsel %vm1249, %v6853, %v6849
      %v6911 = vsel %vm1287, %v6857, %v6910
      %v6912 = vsel %vm5709, %v6861, %v6911
      %v6913 = vsel %vm5711, %v6865, %v6912
      %v6914 = vsel %vm5713, %v6869, %v6913
      %v6915 = vsel %vm5715, %v6873, %v6914
      %v6916 = vsel %vm1247, %v6881, %v6877
      %v6917 = vsel %vm1249, %v6885, %v6916
      %v6918 = vsel %vm1287, %v6889, %v6917
      %v6919 = vsel %vm5709, %v6893, %v6918
      %v6920 = vsel %vm5711, %v6897, %v6919
      %v6921 = vsel %vm5713, %v6901, %v6920
      %v6922 = vsel %vm5715, %v6905, %v6921
      %6926 = vst.msk [vmem:[#allocation7 + $0x3f] sm:$0xfe] %vm5899, %v6915
      %6927 = vst.msk [vmem:[#allocation7 + $0x47] sm:$0xff] %vm5726, %v6922
      %6928 = vst.msk [vmem:[#allocation7 + $0x4f] sm:$0x1] %vm5902, %v6909
      %6929 = vrot.lane.b32.xlu0 %v6832, 127
      %v6930 = vpop.permute.xlu0 %6929
      %6931 = vrot.lane.b32.xlu0 %v6839, 127
      %v6932 = vpop.permute.xlu0 %6931
      %6933 = vrot.lane.b32.xlu0 %v6826, 127
      %v6934 = vpop.permute.xlu0 %6933
      %6938 = vst.msk [vmem:[#allocation7 + $0x4f] sm:$0xfe] %vm5899, %v6930
      %6939 = vst.msk [vmem:[#allocation7 + $0x57] sm:$0xff] %vm5726, %v6932
      %6940 = vst.msk [vmem:[#allocation7 + $0x5f] sm:$0x1] %vm5902, %v6934
      %v6941 = vlaneseq
      %v6942 = vshrl.u32 %v6941, 7
      %v6943 = vsub.s32 0, %v6942
      %v6944 = vrot.slane %v4779, %v6943
      %v6945 = vlaneseq
      %v6946 = vshrl.u32 %v6945, 7
      %v6947 = vsub.s32 0, %v6946
      %v6948 = vrot.slane %v4804, %v6947
      %v6949 = vlaneseq
      %v6950 = vshrl.u32 %v6949, 7
      %v6951 = vsub.s32 0, %v6950
      %v6952 = vrot.slane %v4829, %v6951
      %v6953 = vlaneseq
      %v6954 = vshrl.u32 %v6953, 7
      %v6955 = vsub.s32 0, %v6954
      %v6956 = vrot.slane %v4845, %v6955
      %v6957 = vlaneseq
      %v6958 = vshrl.u32 %v6957, 7
      %v6959 = vsub.s32 0, %v6958
      %v6960 = vrot.slane %v4864, %v6959
      %v6961 = vlaneseq
      %v6962 = vshrl.u32 %v6961, 7
      %v6963 = vsub.s32 0, %v6962
      %v6964 = vrot.slane %v4889, %v6963
      %v6965 = vlaneseq
      %v6966 = vshrl.u32 %v6965, 7
      %v6967 = vsub.s32 0, %v6966
      %v6968 = vrot.slane %v4914, %v6967
      %v6969 = vlaneseq
      %v6970 = vshrl.u32 %v6969, 7
      %v6971 = vsub.s32 0, %v6970
      %v6972 = vrot.slane %v4930, %v6971
      %v6973 = vlaneseq
      %v6974 = vshrl.u32 %v6973, 7
      %v6975 = vsub.s32 0, %v6974
      %v6976 = vrot.slane %v4949, %v6975
      %v6977 = vlaneseq
      %v6978 = vshrl.u32 %v6977, 7
      %v6979 = vsub.s32 0, %v6978
      %v6980 = vrot.slane %v4974, %v6979
      %v6981 = vlaneseq
      %v6982 = vshrl.u32 %v6981, 7
      %v6983 = vsub.s32 0, %v6982
      %v6984 = vrot.slane %v4999, %v6983
      %v6985 = vlaneseq
      %v6986 = vshrl.u32 %v6985, 7
      %v6987 = vsub.s32 0, %v6986
      %v6988 = vrot.slane %v5015, %v6987
      %v6989 = vlaneseq
      %v6990 = vshrl.u32 %v6989, 7
      %v6991 = vsub.s32 0, %v6990
      %v6992 = vrot.slane %v5034, %v6991
      %v6993 = vlaneseq
      %v6994 = vshrl.u32 %v6993, 7
      %v6995 = vsub.s32 0, %v6994
      %v6996 = vrot.slane %v5059, %v6995
      %v6997 = vlaneseq
      %v6998 = vshrl.u32 %v6997, 7
      %v6999 = vsub.s32 0, %v6998
      %v7000 = vrot.slane %v5084, %v6999
      %v7001 = vlaneseq
      %v7002 = vshrl.u32 %v7001, 7
      %v7003 = vsub.s32 0, %v7002
      %v7004 = vrot.slane %v5100, %v7003
      %v7005 = vsel %vm1247, %v6948, %v6944
      %v7006 = vsel %vm1249, %v6952, %v7005
      %v7007 = vsel %vm1287, %v6956, %v7006
      %v7008 = vsel %vm5709, %v6960, %v7007
      %v7009 = vsel %vm5711, %v6964, %v7008
      %v7010 = vsel %vm5713, %v6968, %v7009
      %v7011 = vsel %vm5715, %v6972, %v7010
      %v7012 = vsel %vm1247, %v6980, %v6976
      %v7013 = vsel %vm1249, %v6984, %v7012
      %v7014 = vsel %vm1287, %v6988, %v7013
      %v7015 = vsel %vm5709, %v6992, %v7014
      %v7016 = vsel %vm5711, %v6996, %v7015
      %v7017 = vsel %vm5713, %v7000, %v7016
      %v7018 = vsel %vm5715, %v7004, %v7017
      %7021 = vst.msk [vmem:[#allocation7 + $0x60] sm:$0xff] %vm5726, %v7011
      %7022 = vst.msk [vmem:[#allocation7 + $0x68] sm:$0xff] %vm5726, %v7018
      %v7023 = vlaneseq
      %v7024 = vshrl.u32 %v7023, 7
      %v7025 = vsub.s32 0, %v7024
      %v7026 = vrot.slane %v5310, %v7025
      %v7027 = vlaneseq
      %v7028 = vshrl.u32 %v7027, 7
      %v7029 = vsub.s32 0, %v7028
      %v7030 = vrot.slane %v5335, %v7029
      %v7031 = vlaneseq
      %v7032 = vshrl.u32 %v7031, 7
      %v7033 = vsub.s32 0, %v7032
      %v7034 = vrot.slane %v5360, %v7033
      %v7035 = vlaneseq
      %v7036 = vshrl.u32 %v7035, 7
      %v7037 = vsub.s32 0, %v7036
      %v7038 = vrot.slane %v5376, %v7037
      %v7039 = vlaneseq
      %v7040 = vshrl.u32 %v7039, 7
      %v7041 = vsub.s32 0, %v7040
      %v7042 = vrot.slane %v5395, %v7041
      %v7043 = vlaneseq
      %v7044 = vshrl.u32 %v7043, 7
      %v7045 = vsub.s32 0, %v7044
      %v7046 = vrot.slane %v5420, %v7045
      %v7047 = vlaneseq
      %v7048 = vshrl.u32 %v7047, 7
      %v7049 = vsub.s32 0, %v7048
      %v7050 = vrot.slane %v5445, %v7049
      %v7051 = vlaneseq
      %v7052 = vshrl.u32 %v7051, 7
      %v7053 = vsub.s32 0, %v7052
      %v7054 = vrot.slane %v5461, %v7053
      %v7055 = vlaneseq
      %v7056 = vshrl.u32 %v7055, 7
      %v7057 = vsub.s32 0, %v7056
      %v7058 = vrot.slane %v5480, %v7057
      %v7059 = vlaneseq
      %v7060 = vshrl.u32 %v7059, 7
      %v7061 = vsub.s32 0, %v7060
      %v7062 = vrot.slane %v5505, %v7061
      %v7063 = vlaneseq
      %v7064 = vshrl.u32 %v7063, 7
      %v7065 = vsub.s32 0, %v7064
      %v7066 = vrot.slane %v5530, %v7065
      %v7067 = vlaneseq
      %v7068 = vshrl.u32 %v7067, 7
      %v7069 = vsub.s32 0, %v7068
      %v7070 = vrot.slane %v5546, %v7069
      %v7071 = vlaneseq
      %v7072 = vshrl.u32 %v7071, 7
      %v7073 = vsub.s32 0, %v7072
      %v7074 = vrot.slane %v5565, %v7073
      %v7075 = vlaneseq
      %v7076 = vshrl.u32 %v7075, 7
      %v7077 = vsub.s32 0, %v7076
      %v7078 = vrot.slane %v5590, %v7077
      %v7079 = vlaneseq
      %v7080 = vshrl.u32 %v7079, 7
      %v7081 = vsub.s32 0, %v7080
      %v7082 = vrot.slane %v5615, %v7081
      %v7083 = vlaneseq
      %v7084 = vshrl.u32 %v7083, 7
      %v7085 = vsub.s32 0, %v7084
      %v7086 = vrot.slane %v5631, %v7085
      %v7087 = vsel %vm1247, %v7030, %v7026
      %v7088 = vsel %vm1249, %v7034, %v7087
      %v7089 = vsel %vm1287, %v7038, %v7088
      %v7090 = vsel %vm5709, %v7042, %v7089
      %v7091 = vsel %vm5711, %v7046, %v7090
      %v7092 = vsel %vm5713, %v7050, %v7091
      %v7093 = vsel %vm5715, %v7054, %v7092
      %v7094 = vsel %vm1247, %v7062, %v7058
      %v7095 = vsel %vm1249, %v7066, %v7094
      %v7096 = vsel %vm1287, %v7070, %v7095
      %v7097 = vsel %vm5709, %v7074, %v7096
      %v7098 = vsel %vm5711, %v7078, %v7097
      %v7099 = vsel %vm5713, %v7082, %v7098
      %v7100 = vsel %vm5715, %v7086, %v7099
      %7103 = vst.msk [vmem:[#allocation7 + $0x70] sm:$0xff] %vm5726, %v7093
      %7104 = vst.msk [vmem:[#allocation7 + $0x78] sm:$0xff] %vm5726, %v7100
      %7105 = vrot.lane.b32.xlu0 %v7011, 127
      %v7106 = vpop.permute.xlu0 %7105
      %7107 = vrot.lane.b32.xlu0 %v7018, 127
      %v7108 = vpop.permute.xlu0 %7107
      %7111 = vst.msk [vmem:[#allocation7 + $0x80] sm:$0xff] %vm5726, %v7106
      %7112 = vst.msk [vmem:[#allocation7 + $0x88] sm:$0xff] %vm5726, %v7108
      %v7113 = vld [vmem:[#allocation7] sm:$0xff]
      %v7114 = vld [vmem:[#allocation7 + $0x8] sm:$0xff]
      %v7115 = vld [vmem:[#allocation7 + $0x10] sm:$0xff]
      %v7116 = vld [vmem:[#allocation7 + $0x18] sm:$0xff]
      %v7117 = vld [vmem:[#allocation7 + $0x20] sm:$0xff]
      %v7118 = vld [vmem:[#allocation7 + $0x28] sm:$0xff]
      %v7119 = vld [vmem:[#allocation7 + $0x30] sm:$0xff]
      %v7120 = vld [vmem:[#allocation7 + $0x38] sm:$0xff]
      %v7121 = vld [vmem:[#allocation7 + $0x40] sm:$0xff]
      %v7122 = vld [vmem:[#allocation7 + $0x48] sm:$0xff]
      %v7123 = vld [vmem:[#allocation7 + $0x50] sm:$0xff]
      %v7124 = vld [vmem:[#allocation7 + $0x58] sm:$0xff]
      %v7125 = vld [vmem:[#allocation7 + $0x60] sm:$0xff]
      %v7126 = vld [vmem:[#allocation7 + $0x68] sm:$0xff]
      %v7127 = vld [vmem:[#allocation7 + $0x70] sm:$0xff]
      %v7128 = vld [vmem:[#allocation7 + $0x78] sm:$0xff]
      %v7129 = vld [vmem:[#allocation7 + $0x80] sm:$0xff]
      %v7130 = vld [vmem:[#allocation7 + $0x88] sm:$0xff]
      %v7131 = vpack.c.bf16 %v7114, %v7113
      %v7132 = vpack.c.bf16 %v7116, %v7115
      %v7133 = vpack.c.bf16 %v7118, %v7117
      %v7134 = vpack.c.bf16 %v7120, %v7119
      %v7135 = vpack.c.bf16 %v7122, %v7121
      %v7136 = vpack.c.bf16 %v7124, %v7123
      %v7137 = vpack.c.bf16 %v7126, %v7125
      %v7138 = vpack.c.bf16 %v7128, %v7127
      %v7139 = vpack.c.bf16 %v7130, %v7129
      %7140 = vmatprep.subr.bf16.mxu0 0
      %7141 = vmatpush1.bf16.msra.mxu0 %v7131
      %7142 = vmatprep.subr.bf16.mxu0 0
      %7143 = vmatpush1.bf16.msra.mxu0 %v7132
      %7144 = vmatprep.subr.bf16.mxu0 0
      %7145 = vmatpush1.bf16.msra.mxu0 %v7133
      %7146 = vmatprep.subr.bf16.mxu0 0
      %7147 = vmatpush1.bf16.msra.mxu0 %v7134
      %7148 = vmatprep.subr.bf16.mxu0 0
      %7149 = vmatpush1.bf16.msra.mxu0 %v7135
      %7150 = vmatprep.subr.bf16.mxu0 0
      %7151 = vmatpush1.bf16.msra.mxu0 %v7136
      %7152 = vmatprep.subr.bf16.mxu0 0
      %7153 = vmatpush1.bf16.msra.mxu0 %v7137
      %7154 = vmatprep.subr.bf16.mxu0 0
      %7155 = vmatpush1.bf16.msra.mxu0 %v7138
      %7156 = vmatprep.subr.bf16.mxu0 0
      %7157 = vmatpush1.bf16.msra.mxu0 %v7139
      %7158 = vmatprep.subr.bf16.mxu0 0
      %7159 = vmatpush1.bf16.msra.mxu0 0
      %7160 = vmatprep.subr.bf16.mxu0 0
      %7161 = vmatpush1.bf16.msra.mxu0 0
      %7162 = vmatprep.subr.bf16.mxu0 0
      %7163 = vmatpush1.bf16.msra.mxu0 0
      %7164 = vmatprep.subr.bf16.mxu0 0
      %7165 = vmatpush1.bf16.msra.mxu0 0
      %7166 = vmatprep.subr.bf16.mxu0 0
      %7167 = vmatpush1.bf16.msra.mxu0 0
      %7168 = vmatprep.subr.bf16.mxu0 0
      %7169 = vmatpush1.bf16.msra.mxu0 0
      %7170 = vmatprep.subr.bf16.mxu0 0
      %7171 = vmatpush1.bf16.msra.mxu0 0
      %7172 = vmatprep.mubr.bf16.mxu0 %v6238
      %7173 = vmatmul.mubr.bf16.gmra.mrb[0].mxu0 %v6230
      %v7174 = vpop.f32.mrb[0].mxu0
      %v7175 = vadd.f32 %v6201, %v7174
      %v7176 = vpop.f32.mrb[0].mxu0
      %v7177 = vpop.f32.mrb[0].mxu0
      %v7178 = vadd.f32 %v6206, %v7177
      %v7179 = vpop.f32.mrb[0].mxu0
      %7180 = vmatprep.mubr.bf16.mxu0 %v6241
      %7181 = vmatmul.mubr.bf16.gmra.mrb[0].mxu0 %v6232
      %v7182 = vpop.f32.mrb[0].mxu0
      %v7183 = vadd.f32 %v6211, %v7182
      %v7184 = vpop.f32.mrb[0].mxu0
      %v7185 = vpop.f32.mrb[0].mxu0
      %v7186 = vadd.f32 %v6216, %v7185
      %v7187 = vpop.f32.mrb[0].mxu0
      %7188 = vdwg.mxu0
      %v7189 = vmax.f32 %v7175, 0.0
      %v7190 = vmax.f32 %v7178, 0.0
      %v7191 = vmax.f32 %v7183, 0.0
      %v7192 = vmax.f32 %v7186, 0.0
      %7197 = vrot.lane.b32.xlu0 %v7189, 8
      %v7198 = vpop.permute.xlu0 %7197
      %7199 = vrot.lane.b32.xlu0 %v7190, 8
      %v7200 = vpop.permute.xlu0 %7199
      %7201 = vrot.lane.b32.xlu0 %v7191, 8
      %v7202 = vpop.permute.xlu0 %7201
      %7203 = vrot.lane.b32.xlu0 %v7192, 8
      %v7204 = vpop.permute.xlu0 %7203
      %vm7209 = vcmask 97344
      %7210 = vst.msk [vmem:[#allocation5] sm:$0xff] %vm7209, %v7198
      %7211 = vst.msk [vmem:[#allocation5 + $0x8] sm:$0xff] %vm7209, %v7200
      %7212 = vst.msk [vmem:[#allocation5 + $0x10] sm:$0xff] %vm7209, %v7202
      %7213 = vst.msk [vmem:[#allocation5 + $0x18] sm:$0xff] %vm7209, %v7204
      %7214 = vst.msk [vmem:[#allocation7] sm:$0xff] %vm5726, %v7011
      %7215 = vst.msk [vmem:[#allocation7 + $0x8] sm:$0xff] %vm5726, %v7018
      %7216 = vst.msk [vmem:[#allocation7 + $0x10] sm:$0xff] %vm5726, %v7093
      %7217 = vst.msk [vmem:[#allocation7 + $0x18] sm:$0xff] %vm5726, %v7100
      %7218 = vst.msk [vmem:[#allocation7 + $0x20] sm:$0xff] %vm5726, %v7106
      %7219 = vst.msk [vmem:[#allocation7 + $0x28] sm:$0xff] %vm5726, %v7108
      %v7220 = vlaneseq
      %v7221 = vshrl.u32 %v7220, 7
      %v7222 = vsub.s32 1, %v7221
      %v7223 = vrot.slane %v4779, %v7222
      %v7224 = vlaneseq
      %v7225 = vshrl.u32 %v7224, 7
      %v7226 = vsub.s32 1, %v7225
      %v7227 = vrot.slane %v4804, %v7226
      %v7228 = vlaneseq
      %v7229 = vshrl.u32 %v7228, 7
      %v7230 = vsub.s32 1, %v7229
      %v7231 = vrot.slane %v4829, %v7230
      %v7232 = vlaneseq
      %v7233 = vshrl.u32 %v7232, 7
      %v7234 = vsub.s32 1, %v7233
      %v7235 = vrot.slane %v4845, %v7234
      %v7236 = vlaneseq
      %v7237 = vshrl.u32 %v7236, 7
      %v7238 = vsub.s32 1, %v7237
      %v7239 = vrot.slane %v4864, %v7238
      %v7240 = vlaneseq
      %v7241 = vshrl.u32 %v7240, 7
      %v7242 = vsub.s32 1, %v7241
      %v7243 = vrot.slane %v4889, %v7242
      %v7244 = vlaneseq
      %v7245 = vshrl.u32 %v7244, 7
      %v7246 = vsub.s32 1, %v7245
      %v7247 = vrot.slane %v4914, %v7246
      %v7248 = vlaneseq
      %v7249 = vshrl.u32 %v7248, 7
      %v7250 = vsub.s32 1, %v7249
      %v7251 = vrot.slane %v4930, %v7250
      %v7252 = vlaneseq
      %v7253 = vshrl.u32 %v7252, 7
      %v7254 = vsub.s32 1, %v7253
      %v7255 = vrot.slane %v4949, %v7254
      %v7256 = vlaneseq
      %v7257 = vshrl.u32 %v7256, 7
      %v7258 = vsub.s32 1, %v7257
      %v7259 = vrot.slane %v4974, %v7258
      %v7260 = vlaneseq
      %v7261 = vshrl.u32 %v7260, 7
      %v7262 = vsub.s32 1, %v7261
      %v7263 = vrot.slane %v4999, %v7262
      %v7264 = vlaneseq
      %v7265 = vshrl.u32 %v7264, 7
      %v7266 = vsub.s32 1, %v7265
      %v7267 = vrot.slane %v5015, %v7266
      %v7268 = vlaneseq
      %v7269 = vshrl.u32 %v7268, 7
      %v7270 = vsub.s32 1, %v7269
      %v7271 = vrot.slane %v5034, %v7270
      %v7272 = vlaneseq
      %v7273 = vshrl.u32 %v7272, 7
      %v7274 = vsub.s32 1, %v7273
      %v7275 = vrot.slane %v5059, %v7274
      %v7276 = vlaneseq
      %v7277 = vshrl.u32 %v7276, 7
      %v7278 = vsub.s32 1, %v7277
      %v7279 = vrot.slane %v5084, %v7278
      %v7280 = vlaneseq
      %v7281 = vshrl.u32 %v7280, 7
      %v7282 = vsub.s32 1, %v7281
      %v7283 = vrot.slane %v5100, %v7282
      %v7284 = vsel %vm1249, %v7227, %v7223
      %v7285 = vsel %vm1287, %v7231, %v7284
      %v7286 = vsel %vm5709, %v7235, %v7285
      %v7287 = vsel %vm5711, %v7239, %v7286
      %v7288 = vsel %vm5713, %v7243, %v7287
      %v7289 = vsel %vm5715, %v7247, %v7288
      %v7290 = vsel %vm1247, %v7255, %v7251
      %v7291 = vsel %vm1249, %v7259, %v7290
      %v7292 = vsel %vm1287, %v7263, %v7291
      %v7293 = vsel %vm5709, %v7267, %v7292
      %v7294 = vsel %vm5711, %v7271, %v7293
      %v7295 = vsel %vm5713, %v7275, %v7294
      %v7296 = vsel %vm5715, %v7279, %v7295
      %7300 = vst.msk [vmem:[#allocation7 + $0x2f] sm:$0xfe] %vm5899, %v7289
      %7301 = vst.msk [vmem:[#allocation7 + $0x37] sm:$0xff] %vm5726, %v7296
      %7302 = vst.msk [vmem:[#allocation7 + $0x3f] sm:$0x1] %vm5902, %v7283
      %v7303 = vlaneseq
      %v7304 = vshrl.u32 %v7303, 7
      %v7305 = vsub.s32 1, %v7304
      %v7306 = vrot.slane %v5310, %v7305
      %v7307 = vlaneseq
      %v7308 = vshrl.u32 %v7307, 7
      %v7309 = vsub.s32 1, %v7308
      %v7310 = vrot.slane %v5335, %v7309
      %v7311 = vlaneseq
      %v7312 = vshrl.u32 %v7311, 7
      %v7313 = vsub.s32 1, %v7312
      %v7314 = vrot.slane %v5360, %v7313
      %v7315 = vlaneseq
      %v7316 = vshrl.u32 %v7315, 7
      %v7317 = vsub.s32 1, %v7316
      %v7318 = vrot.slane %v5376, %v7317
      %v7319 = vlaneseq
      %v7320 = vshrl.u32 %v7319, 7
      %v7321 = vsub.s32 1, %v7320
      %v7322 = vrot.slane %v5395, %v7321
      %v7323 = vlaneseq
      %v7324 = vshrl.u32 %v7323, 7
      %v7325 = vsub.s32 1, %v7324
      %v7326 = vrot.slane %v5420, %v7325
      %v7327 = vlaneseq
      %v7328 = vshrl.u32 %v7327, 7
      %v7329 = vsub.s32 1, %v7328
      %v7330 = vrot.slane %v5445, %v7329
      %v7331 = vlaneseq
      %v7332 = vshrl.u32 %v7331, 7
      %v7333 = vsub.s32 1, %v7332
      %v7334 = vrot.slane %v5461, %v7333
      %v7335 = vlaneseq
      %v7336 = vshrl.u32 %v7335, 7
      %v7337 = vsub.s32 1, %v7336
      %v7338 = vrot.slane %v5480, %v7337
      %v7339 = vlaneseq
      %v7340 = vshrl.u32 %v7339, 7
      %v7341 = vsub.s32 1, %v7340
      %v7342 = vrot.slane %v5505, %v7341
      %v7343 = vlaneseq
      %v7344 = vshrl.u32 %v7343, 7
      %v7345 = vsub.s32 1, %v7344
      %v7346 = vrot.slane %v5530, %v7345
      %v7347 = vlaneseq
      %v7348 = vshrl.u32 %v7347, 7
      %v7349 = vsub.s32 1, %v7348
      %v7350 = vrot.slane %v5546, %v7349
      %v7351 = vlaneseq
      %v7352 = vshrl.u32 %v7351, 7
      %v7353 = vsub.s32 1, %v7352
      %v7354 = vrot.slane %v5565, %v7353
      %v7355 = vlaneseq
      %v7356 = vshrl.u32 %v7355, 7
      %v7357 = vsub.s32 1, %v7356
      %v7358 = vrot.slane %v5590, %v7357
      %v7359 = vlaneseq
      %v7360 = vshrl.u32 %v7359, 7
      %v7361 = vsub.s32 1, %v7360
      %v7362 = vrot.slane %v5615, %v7361
      %v7363 = vlaneseq
      %v7364 = vshrl.u32 %v7363, 7
      %v7365 = vsub.s32 1, %v7364
      %v7366 = vrot.slane %v5631, %v7365
      %v7367 = vsel %vm1249, %v7310, %v7306
      %v7368 = vsel %vm1287, %v7314, %v7367
      %v7369 = vsel %vm5709, %v7318, %v7368
      %v7370 = vsel %vm5711, %v7322, %v7369
      %v7371 = vsel %vm5713, %v7326, %v7370
      %v7372 = vsel %vm5715, %v7330, %v7371
      %v7373 = vsel %vm1247, %v7338, %v7334
      %v7374 = vsel %vm1249, %v7342, %v7373
      %v7375 = vsel %vm1287, %v7346, %v7374
      %v7376 = vsel %vm5709, %v7350, %v7375
      %v7377 = vsel %vm5711, %v7354, %v7376
      %v7378 = vsel %vm5713, %v7358, %v7377
      %v7379 = vsel %vm5715, %v7362, %v7378
      %7383 = vst.msk [vmem:[#allocation7 + $0x3f] sm:$0xfe] %vm5899, %v7372
      %7384 = vst.msk [vmem:[#allocation7 + $0x47] sm:$0xff] %vm5726, %v7379
      %7385 = vst.msk [vmem:[#allocation7 + $0x4f] sm:$0x1] %vm5902, %v7366
      %7386 = vrot.lane.b32.xlu0 %v7289, 127
      %v7387 = vpop.permute.xlu0 %7386
      %7388 = vrot.lane.b32.xlu0 %v7296, 127
      %v7389 = vpop.permute.xlu0 %7388
      %7390 = vrot.lane.b32.xlu0 %v7283, 127
      %v7391 = vpop.permute.xlu0 %7390
      %7395 = vst.msk [vmem:[#allocation7 + $0x4f] sm:$0xfe] %vm5899, %v7387
      %7396 = vst.msk [vmem:[#allocation7 + $0x57] sm:$0xff] %vm5726, %v7389
      %7397 = vst.msk [vmem:[#allocation7 + $0x5f] sm:$0x1] %vm5902, %v7391
      %v7398 = vlaneseq
      %v7399 = vshrl.u32 %v7398, 7
      %v7400 = vsub.s32 0, %v7399
      %v7401 = vrot.slane %v4787, %v7400
      %v7402 = vlaneseq
      %v7403 = vshrl.u32 %v7402, 7
      %v7404 = vsub.s32 0, %v7403
      %v7405 = vrot.slane %v4812, %v7404
      %v7406 = vlaneseq
      %v7407 = vshrl.u32 %v7406, 7
      %v7408 = vsub.s32 0, %v7407
      %v7409 = vrot.slane %v4828, %v7408
      %v7410 = vlaneseq
      %v7411 = vshrl.u32 %v7410, 7
      %v7412 = vsub.s32 0, %v7411
      %v7413 = vrot.slane %v4847, %v7412
      %v7414 = vlaneseq
      %v7415 = vshrl.u32 %v7414, 7
      %v7416 = vsub.s32 0, %v7415
      %v7417 = vrot.slane %v4872, %v7416
      %v7418 = vlaneseq
      %v7419 = vshrl.u32 %v7418, 7
      %v7420 = vsub.s32 0, %v7419
      %v7421 = vrot.slane %v4897, %v7420
      %v7422 = vlaneseq
      %v7423 = vshrl.u32 %v7422, 7
      %v7424 = vsub.s32 0, %v7423
      %v7425 = vrot.slane %v4913, %v7424
      %v7426 = vlaneseq
      %v7427 = vshrl.u32 %v7426, 7
      %v7428 = vsub.s32 0, %v7427
      %v7429 = vrot.slane %v4932, %v7428
      %v7430 = vlaneseq
      %v7431 = vshrl.u32 %v7430, 7
      %v7432 = vsub.s32 0, %v7431
      %v7433 = vrot.slane %v4957, %v7432
      %v7434 = vlaneseq
      %v7435 = vshrl.u32 %v7434, 7
      %v7436 = vsub.s32 0, %v7435
      %v7437 = vrot.slane %v4982, %v7436
      %v7438 = vlaneseq
      %v7439 = vshrl.u32 %v7438, 7
      %v7440 = vsub.s32 0, %v7439
      %v7441 = vrot.slane %v4998, %v7440
      %v7442 = vlaneseq
      %v7443 = vshrl.u32 %v7442, 7
      %v7444 = vsub.s32 0, %v7443
      %v7445 = vrot.slane %v5017, %v7444
      %v7446 = vlaneseq
      %v7447 = vshrl.u32 %v7446, 7
      %v7448 = vsub.s32 0, %v7447
      %v7449 = vrot.slane %v5042, %v7448
      %v7450 = vlaneseq
      %v7451 = vshrl.u32 %v7450, 7
      %v7452 = vsub.s32 0, %v7451
      %v7453 = vrot.slane %v5067, %v7452
      %v7454 = vlaneseq
      %v7455 = vshrl.u32 %v7454, 7
      %v7456 = vsub.s32 0, %v7455
      %v7457 = vrot.slane %v5083, %v7456
      %v7458 = vlaneseq
      %v7459 = vshrl.u32 %v7458, 7
      %v7460 = vsub.s32 0, %v7459
      %v7461 = vrot.slane %v5102, %v7460
      %v7462 = vsel %vm1247, %v7405, %v7401
      %v7463 = vsel %vm1249, %v7409, %v7462
      %v7464 = vsel %vm1287, %v7413, %v7463
      %v7465 = vsel %vm5709, %v7417, %v7464
      %v7466 = vsel %vm5711, %v7421, %v7465
      %v7467 = vsel %vm5713, %v7425, %v7466
      %v7468 = vsel %vm5715, %v7429, %v7467
      %v7469 = vsel %vm1247, %v7437, %v7433
      %v7470 = vsel %vm1249, %v7441, %v7469
      %v7471 = vsel %vm1287, %v7445, %v7470
      %v7472 = vsel %vm5709, %v7449, %v7471
      %v7473 = vsel %vm5711, %v7453, %v7472
      %v7474 = vsel %vm5713, %v7457, %v7473
      %v7475 = vsel %vm5715, %v7461, %v7474
      %7478 = vst.msk [vmem:[#allocation7 + $0x60] sm:$0xff] %vm5726, %v7468
      %7479 = vst.msk [vmem:[#allocation7 + $0x68] sm:$0xff] %vm5726, %v7475
      %v7480 = vlaneseq
      %v7481 = vshrl.u32 %v7480, 7
      %v7482 = vsub.s32 0, %v7481
      %v7483 = vrot.slane %v5318, %v7482
      %v7484 = vlaneseq
      %v7485 = vshrl.u32 %v7484, 7
      %v7486 = vsub.s32 0, %v7485
      %v7487 = vrot.slane %v5343, %v7486
      %v7488 = vlaneseq
      %v7489 = vshrl.u32 %v7488, 7
      %v7490 = vsub.s32 0, %v7489
      %v7491 = vrot.slane %v5359, %v7490
      %v7492 = vlaneseq
      %v7493 = vshrl.u32 %v7492, 7
      %v7494 = vsub.s32 0, %v7493
      %v7495 = vrot.slane %v5378, %v7494
      %v7496 = vlaneseq
      %v7497 = vshrl.u32 %v7496, 7
      %v7498 = vsub.s32 0, %v7497
      %v7499 = vrot.slane %v5403, %v7498
      %v7500 = vlaneseq
      %v7501 = vshrl.u32 %v7500, 7
      %v7502 = vsub.s32 0, %v7501
      %v7503 = vrot.slane %v5428, %v7502
      %v7504 = vlaneseq
      %v7505 = vshrl.u32 %v7504, 7
      %v7506 = vsub.s32 0, %v7505
      %v7507 = vrot.slane %v5444, %v7506
      %v7508 = vlaneseq
      %v7509 = vshrl.u32 %v7508, 7
      %v7510 = vsub.s32 0, %v7509
      %v7511 = vrot.slane %v5463, %v7510
      %v7512 = vlaneseq
      %v7513 = vshrl.u32 %v7512, 7
      %v7514 = vsub.s32 0, %v7513
      %v7515 = vrot.slane %v5488, %v7514
      %v7516 = vlaneseq
      %v7517 = vshrl.u32 %v7516, 7
      %v7518 = vsub.s32 0, %v7517
      %v7519 = vrot.slane %v5513, %v7518
      %v7520 = vlaneseq
      %v7521 = vshrl.u32 %v7520, 7
      %v7522 = vsub.s32 0, %v7521
      %v7523 = vrot.slane %v5529, %v7522
      %v7524 = vlaneseq
      %v7525 = vshrl.u32 %v7524, 7
      %v7526 = vsub.s32 0, %v7525
      %v7527 = vrot.slane %v5548, %v7526
      %v7528 = vlaneseq
      %v7529 = vshrl.u32 %v7528, 7
      %v7530 = vsub.s32 0, %v7529
      %v7531 = vrot.slane %v5573, %v7530
      %v7532 = vlaneseq
      %v7533 = vshrl.u32 %v7532, 7
      %v7534 = vsub.s32 0, %v7533
      %v7535 = vrot.slane %v5598, %v7534
      %v7536 = vlaneseq
      %v7537 = vshrl.u32 %v7536, 7
      %v7538 = vsub.s32 0, %v7537
      %v7539 = vrot.slane %v5614, %v7538
      %v7540 = vlaneseq
      %v7541 = vshrl.u32 %v7540, 7
      %v7542 = vsub.s32 0, %v7541
      %v7543 = vrot.slane %v5633, %v7542
      %v7544 = vsel %vm1247, %v7487, %v7483
      %v7545 = vsel %vm1249, %v7491, %v7544
      %v7546 = vsel %vm1287, %v7495, %v7545
      %v7547 = vsel %vm5709, %v7499, %v7546
      %v7548 = vsel %vm5711, %v7503, %v7547
      %v7549 = vsel %vm5713, %v7507, %v7548
      %v7550 = vsel %vm5715, %v7511, %v7549
      %v7551 = vsel %vm1247, %v7519, %v7515
      %v7552 = vsel %vm1249, %v7523, %v7551
      %v7553 = vsel %vm1287, %v7527, %v7552
      %v7554 = vsel %vm5709, %v7531, %v7553
      %v7555 = vsel %vm5711, %v7535, %v7554
      %v7556 = vsel %vm5713, %v7539, %v7555
      %v7557 = vsel %vm5715, %v7543, %v7556
      %7560 = vst.msk [vmem:[#allocation7 + $0x70] sm:$0xff] %vm5726, %v7550
      %7561 = vst.msk [vmem:[#allocation7 + $0x78] sm:$0xff] %vm5726, %v7557
      %7562 = vrot.lane.b32.xlu0 %v7468, 127
      %v7563 = vpop.permute.xlu0 %7562
      %7564 = vrot.lane.b32.xlu0 %v7475, 127
      %v7565 = vpop.permute.xlu0 %7564
      %7568 = vst.msk [vmem:[#allocation7 + $0x80] sm:$0xff] %vm5726, %v7563
      %7569 = vst.msk [vmem:[#allocation7 + $0x88] sm:$0xff] %vm5726, %v7565
      %v7570 = vld [vmem:[#allocation7] sm:$0xff]
      %v7571 = vld [vmem:[#allocation7 + $0x8] sm:$0xff]
      %v7572 = vld [vmem:[#allocation7 + $0x10] sm:$0xff]
      %v7573 = vld [vmem:[#allocation7 + $0x18] sm:$0xff]
      %v7574 = vld [vmem:[#allocation7 + $0x20] sm:$0xff]
      %v7575 = vld [vmem:[#allocation7 + $0x28] sm:$0xff]
      %v7576 = vld [vmem:[#allocation7 + $0x30] sm:$0xff]
      %v7577 = vld [vmem:[#allocation7 + $0x38] sm:$0xff]
      %v7578 = vld [vmem:[#allocation7 + $0x40] sm:$0xff]
      %v7579 = vld [vmem:[#allocation7 + $0x48] sm:$0xff]
      %v7580 = vld [vmem:[#allocation7 + $0x50] sm:$0xff]
      %v7581 = vld [vmem:[#allocation7 + $0x58] sm:$0xff]
      %v7582 = vld [vmem:[#allocation7 + $0x60] sm:$0xff]
      %v7583 = vld [vmem:[#allocation7 + $0x68] sm:$0xff]
      %v7584 = vld [vmem:[#allocation7 + $0x70] sm:$0xff]
      %v7585 = vld [vmem:[#allocation7 + $0x78] sm:$0xff]
      %v7586 = vld [vmem:[#allocation7 + $0x80] sm:$0xff]
      %v7587 = vld [vmem:[#allocation7 + $0x88] sm:$0xff]
      %v7588 = vpack.c.bf16 %v7571, %v7570
      %v7589 = vpack.c.bf16 %v7573, %v7572
      %v7590 = vpack.c.bf16 %v7575, %v7574
      %v7591 = vpack.c.bf16 %v7577, %v7576
      %v7592 = vpack.c.bf16 %v7579, %v7578
      %v7593 = vpack.c.bf16 %v7581, %v7580
      %v7594 = vpack.c.bf16 %v7583, %v7582
      %v7595 = vpack.c.bf16 %v7585, %v7584
      %v7596 = vpack.c.bf16 %v7587, %v7586
      %7597 = vmatprep.subr.bf16.mxu0 0
      %7598 = vmatpush1.bf16.msra.mxu0 %v7588
      %7599 = vmatprep.subr.bf16.mxu0 0
      %7600 = vmatpush1.bf16.msra.mxu0 %v7589
      %7601 = vmatprep.subr.bf16.mxu0 0
      %7602 = vmatpush1.bf16.msra.mxu0 %v7590
      %7603 = vmatprep.subr.bf16.mxu0 0
      %7604 = vmatpush1.bf16.msra.mxu0 %v7591
      %7605 = vmatprep.subr.bf16.mxu0 0
      %7606 = vmatpush1.bf16.msra.mxu0 %v7592
      %7607 = vmatprep.subr.bf16.mxu0 0
      %7608 = vmatpush1.bf16.msra.mxu0 %v7593
      %7609 = vmatprep.subr.bf16.mxu0 0
      %7610 = vmatpush1.bf16.msra.mxu0 %v7594
      %7611 = vmatprep.subr.bf16.mxu0 0
      %7612 = vmatpush1.bf16.msra.mxu0 %v7595
      %7613 = vmatprep.subr.bf16.mxu0 0
      %7614 = vmatpush1.bf16.msra.mxu0 %v7596
      %7615 = vmatprep.subr.bf16.mxu0 0
      %7616 = vmatpush1.bf16.msra.mxu0 0
      %7617 = vmatprep.subr.bf16.mxu0 0
      %7618 = vmatpush1.bf16.msra.mxu0 0
      %7619 = vmatprep.subr.bf16.mxu0 0
      %7620 = vmatpush1.bf16.msra.mxu0 0
      %7621 = vmatprep.subr.bf16.mxu0 0
      %7622 = vmatpush1.bf16.msra.mxu0 0
      %7623 = vmatprep.subr.bf16.mxu0 0
      %7624 = vmatpush1.bf16.msra.mxu0 0
      %7625 = vmatprep.subr.bf16.mxu0 0
      %7626 = vmatpush1.bf16.msra.mxu0 0
      %7627 = vmatprep.subr.bf16.mxu0 0
      %7628 = vmatpush1.bf16.msra.mxu0 0
      %7629 = vmatprep.mubr.bf16.mxu0 %v6238
      %7630 = vmatmul.mubr.bf16.gmra.mrb[0].mxu0 %v6230
      %v7631 = vpop.f32.mrb[0].mxu0
      %v7632 = vadd.f32 %v6201, %v7631
      %v7633 = vpop.f32.mrb[0].mxu0
      %v7634 = vpop.f32.mrb[0].mxu0
      %v7635 = vadd.f32 %v6206, %v7634
      %v7636 = vpop.f32.mrb[0].mxu0
      %7637 = vmatprep.mubr.bf16.mxu0 %v6241
      %7638 = vmatmul.mubr.bf16.gmra.mrb[0].mxu0 %v6232
      %v7639 = vpop.f32.mrb[0].mxu0
      %v7640 = vadd.f32 %v6211, %v7639
      %v7641 = vpop.f32.mrb[0].mxu0
      %v7642 = vpop.f32.mrb[0].mxu0
      %v7643 = vadd.f32 %v6216, %v7642
      %v7644 = vpop.f32.mrb[0].mxu0
      %7645 = vdwg.mxu0
      %v7646 = vmax.f32 %v7632, 0.0
      %v7647 = vmax.f32 %v7635, 0.0
      %v7648 = vmax.f32 %v7640, 0.0
      %v7649 = vmax.f32 %v7643, 0.0
      %7654 = vrot.lane.b32.xlu0 %v7646, 12
      %v7655 = vpop.permute.xlu0 %7654
      %7656 = vrot.lane.b32.xlu0 %v7647, 12
      %v7657 = vpop.permute.xlu0 %7656
      %7658 = vrot.lane.b32.xlu0 %v7648, 12
      %v7659 = vpop.permute.xlu0 %7658
      %7660 = vrot.lane.b32.xlu0 %v7649, 12
      %v7661 = vpop.permute.xlu0 %7660
      %vm7666 = vcmask 130144
      %7667 = vst.msk [vmem:[#allocation5] sm:$0xff] %vm7666, %v7655
      %7668 = vst.msk [vmem:[#allocation5 + $0x8] sm:$0xff] %vm7666, %v7657
      %7669 = vst.msk [vmem:[#allocation5 + $0x10] sm:$0xff] %vm7666, %v7659
      %7670 = vst.msk [vmem:[#allocation5 + $0x18] sm:$0xff] %vm7666, %v7661
      %v7671 = vld [vmem:[%s10] sm:$0xf]
      %v7672 = vld [vmem:[%s10 + $0x4] sm:$0xf]
      %v7673 = vld [vmem:[%s10 + $0x8] sm:$0xf]
      %v7674 = vld [vmem:[%s10 + $0xc] sm:$0xf]
      %v7675 = vpack.c.bf16 %v2963, %v2962
      %v7676 = vpack.c.bf16 %v2965, %v2964
      %v7677 = vld [vmem:[%s11] sm:$0xf]
      %v7678 = vld [vmem:[%s11 + $0x4] sm:$0xf]
      %v7679 = vld [vmem:[%s11 + $0x8] sm:$0xf]
      %v7680 = vld [vmem:[%s11 + $0xc] sm:$0xf]
      %v7681 = vld [vmem:[#allocation5] sm:$0xff]
      %v7682 = vld [vmem:[#allocation5 + $0x8] sm:$0xff]
      %v7683 = vld [vmem:[#allocation5 + $0x10] sm:$0xff]
      %v7684 = vld [vmem:[#allocation5 + $0x18] sm:$0xff]
      %v7685 = vpack.c.bf16 %v7682, %v7681
      %v7686 = vpack.c.bf16 %v7684, %v7683
      %v7691 = vunpack.c.l.b16 %v7677
      %v7692 = vunpack.c.l.b16 %v7678
      %v7693 = vunpack.c.l.b16 %v7679
      %v7694 = vunpack.c.l.b16 %v7680
      %v7695 = vpack.c.b16 %v7692, %v7691
      %v7696 = vpack.c.b16 %v7694, %v7693
      %v7698 = vsel %vm2987, %v7695, 0
      %v7701 = vsel %vm2987, %v7696, 0
      %7703 = vmatprep.subr.bf16.mxu0 0
      %7704 = vmatpush1.bf16.msra.mxu0 %v7685
      %7705 = vmatprep.subr.bf16.mxu0 0
      %7706 = vmatpush1.bf16.msra.mxu0 %v7686
      %7707 = vmatprep.subr.bf16.mxu0 0
      %7708 = vmatpush1.bf16.msra.mxu0 0
      %7709 = vmatprep.subr.bf16.mxu0 0
      %7710 = vmatpush1.bf16.msra.mxu0 0
      %7711 = vmatprep.subr.bf16.mxu0 0
      %7712 = vmatpush1.bf16.msra.mxu0 0
      %7713 = vmatprep.subr.bf16.mxu0 0
      %7714 = vmatpush1.bf16.msra.mxu0 0
      %7715 = vmatprep.subr.bf16.mxu0 0
      %7716 = vmatpush1.bf16.msra.mxu0 0
      %7717 = vmatprep.subr.bf16.mxu0 0
      %7718 = vmatpush1.bf16.msra.mxu0 0
      %7719 = vmatprep.subr.bf16.mxu0 0
      %7720 = vmatpush1.bf16.msra.mxu0 0
      %7721 = vmatprep.subr.bf16.mxu0 0
      %7722 = vmatpush1.bf16.msra.mxu0 0
      %7723 = vmatprep.subr.bf16.mxu0 0
      %7724 = vmatpush1.bf16.msra.mxu0 0
      %7725 = vmatprep.subr.bf16.mxu0 0
      %7726 = vmatpush1.bf16.msra.mxu0 0
      %7727 = vmatprep.subr.bf16.mxu0 0
      %7728 = vmatpush1.bf16.msra.mxu0 0
      %7729 = vmatprep.subr.bf16.mxu0 0
      %7730 = vmatpush1.bf16.msra.mxu0 0
      %7731 = vmatprep.subr.bf16.mxu0 0
      %7732 = vmatpush1.bf16.msra.mxu0 0
      %7733 = vmatprep.subr.bf16.mxu0 0
      %7734 = vmatpush1.bf16.msra.mxu0 0
      %7735 = vmatprep.mubr.bf16.mxu0 0
      %7736 = vmatmul.mubr.bf16.gmra.mrb[0].mxu0 %v7698
      %v7737 = vpop.f32.mrb[0].mxu0
      %v7738 = vadd.f32 0.0, %v7737
      %v7739 = vpop.f32.mrb[0].mxu0
      %v7740 = vpop.f32.mrb[0].mxu0
      %v7741 = vadd.f32 0.0, %v7740
      %v7742 = vpop.f32.mrb[0].mxu0
      %7743 = vmatprep.mubr.bf16.mxu0 0
      %7744 = vmatmul.mubr.bf16.gmra.mrb[0].mxu0 %v7701
      %v7745 = vpop.f32.mrb[0].mxu0
      %v7746 = vadd.f32 0.0, %v7745
      %v7747 = vpop.f32.mrb[0].mxu0
      %v7748 = vpop.f32.mrb[0].mxu0
      %v7749 = vadd.f32 0.0, %v7748
      %v7750 = vpop.f32.mrb[0].mxu0
      %7751 = vdwg.mxu0
      %v7756 = vunpack.c.l.b16 %v7671
      %v7757 = vunpack.c.l.b16 %v7672
      %v7758 = vunpack.c.l.b16 %v7673
      %v7759 = vunpack.c.l.b16 %v7674
      %v7760 = vpack.c.b16 %v7757, %v7756
      %v7761 = vpack.c.b16 %v7759, %v7758
      %v7763 = vsel %vm2987, %v7760, 0
      %v7766 = vsel %vm2987, %v7761, 0
      %7768 = vmatprep.subr.bf16.mxu0 0
      %7769 = vmatpush1.bf16.msra.mxu0 %v7675
      %7770 = vmatprep.subr.bf16.mxu0 0
      %7771 = vmatpush1.bf16.msra.mxu0 %v7676
      %7772 = vmatprep.subr.bf16.mxu0 0
      %7773 = vmatpush1.bf16.msra.mxu0 0
      %7774 = vmatprep.subr.bf16.mxu0 0
      %7775 = vmatpush1.bf16.msra.mxu0 0
      %7776 = vmatprep.subr.bf16.mxu0 0
      %7777 = vmatpush1.bf16.msra.mxu0 0
      %7778 = vmatprep.subr.bf16.mxu0 0
      %7779 = vmatpush1.bf16.msra.mxu0 0
      %7780 = vmatprep.subr.bf16.mxu0 0
      %7781 = vmatpush1.bf16.msra.mxu0 0
      %7782 = vmatprep.subr.bf16.mxu0 0
      %7783 = vmatpush1.bf16.msra.mxu0 0
      %7784 = vmatprep.subr.bf16.mxu0 0
      %7785 = vmatpush1.bf16.msra.mxu0 0
      %7786 = vmatprep.subr.bf16.mxu0 0
      %7787 = vmatpush1.bf16.msra.mxu0 0
      %7788 = vmatprep.subr.bf16.mxu0 0
      %7789 = vmatpush1.bf16.msra.mxu0 0
      %7790 = vmatprep.subr.bf16.mxu0 0
      %7791 = vmatpush1.bf16.msra.mxu0 0
      %7792 = vmatprep.subr.bf16.mxu0 0
      %7793 = vmatpush1.bf16.msra.mxu0 0
      %7794 = vmatprep.subr.bf16.mxu0 0
      %7795 = vmatpush1.bf16.msra.mxu0 0
      %7796 = vmatprep.subr.bf16.mxu0 0
      %7797 = vmatpush1.bf16.msra.mxu0 0
      %7798 = vmatprep.subr.bf16.mxu0 0
      %7799 = vmatpush1.bf16.msra.mxu0 0
      %7800 = vmatprep.mubr.bf16.mxu0 0
      %7801 = vmatmul.mubr.bf16.gmra.mrb[0].mxu0 %v7763
      %v7802 = vpop.f32.mrb[0].mxu0
      %v7803 = vadd.f32 %v7738, %v7802
      %v7804 = vpop.f32.mrb[0].mxu0
      %v7805 = vpop.f32.mrb[0].mxu0
      %v7806 = vadd.f32 %v7741, %v7805
      %v7807 = vpop.f32.mrb[0].mxu0
      %7808 = vmatprep.mubr.bf16.mxu0 0
      %7809 = vmatmul.mubr.bf16.gmra.mrb[0].mxu0 %v7766
      %v7810 = vpop.f32.mrb[0].mxu0
      %v7811 = vadd.f32 %v7746, %v7810
      %v7812 = vpop.f32.mrb[0].mxu0
      %v7813 = vpop.f32.mrb[0].mxu0
      %v7814 = vadd.f32 %v7749, %v7813
      %v7815 = vpop.f32.mrb[0].mxu0
      %7816 = vdwg.mxu0
      %v7817 = vld [vmem:[%s12] sm:$0xff]
      %v7818 = vld [vmem:[%s12 + $0x8] sm:$0xff]
      %v7819 = vld [vmem:[%s12 + $0x10] sm:$0xff]
      %v7820 = vld [vmem:[%s12 + $0x18] sm:$0xff]
      %7822 = vset.pattern.permute.xlu0 0
      %7823 = vperm.xlu0 %7822, %v7817
      %v7824 = vpop.permute.xlu0 %7823
      %7827 = vset.pattern.permute.xlu0 0
      %7828 = vperm.xlu0 %7827, %v7818
      %v7829 = vpop.permute.xlu0 %7828
      %7832 = vset.pattern.permute.xlu0 0
      %7833 = vperm.xlu0 %7832, %v7819
      %v7834 = vpop.permute.xlu0 %7833
      %7837 = vset.pattern.permute.xlu0 0
      %7838 = vperm.xlu0 %7837, %v7820
      %v7839 = vpop.permute.xlu0 %7838
      %v7841 = vadd.f32 %v7803, %v7824
      %v7842 = vadd.f32 %v7806, %v7829
      %v7843 = vadd.f32 %v7811, %v7834
      %v7844 = vadd.f32 %v7814, %v7839
      %v7845 = vmax.f32 %v7841, 0.0
      %v7846 = vmax.f32 %v7842, 0.0
      %v7847 = vmax.f32 %v7843, 0.0
      %v7848 = vmax.f32 %v7844, 0.0
      %7849 = vst.msk [vmem:[%s440] sm:$0xff] %vm6236, %v7845
      %7850 = vst.msk [vmem:[%s440 + $0x8] sm:$0xff] %vm6236, %v7846
      %7851 = vst.msk [vmem:[%s440 + $0x10] sm:$0xff] %vm6236, %v7847
      %7852 = vst.msk [vmem:[%s440 + $0x18] sm:$0xff] %vm6236, %v7848
      %p7853 = scmp.lt.s32.totalorder %s24, 1
      %s7854 = scalar_select %p7853, %s24, 1
      %s7855 = smul.addr %s7854, 4
      %s7856 = smul.addr %s7855, 8
      %s7857 = scalar_lea.vmem %s13, %s7856
      // Predicated region
      $region73: #{tpu_custom_call.1} parent=71 // pred_check
        %p7858 = pneg %p320
      $region74: #{tpu_custom_call.1} parent=71 // pred_check_branch
        %7860 = sbr.rel (%p7858) target = $region76
      $region75: #{tpu_custom_call.1} parent=71 // pred_region
        _
      $region76: #{tpu_custom_call.1} parent=71 // pred_fallthru
        _
    $region72: #{tpu_custom_call.1} parent=5 // pred_fallthru
      _
    %p7861 = scmp.le.s32.totalorder 2, %s19
    // Predicated region
    $region77: #{tpu_custom_call.1} parent=5 // pred_check
      %p7862 = pneg %p7861
    $region78: #{tpu_custom_call.1} parent=5 // pred_check_branch
      %7864 = sbr.rel (%p7862) target = $region80
    $region79: #{tpu_custom_call.1} parent=5 // pred_region
      %s7865 = ssub.s32 %s19, 2
      // Predicated region
      $region81: #{tpu_custom_call.1} parent=79 // pred_check
        %p7866 = pneg %p326
      $region82: #{tpu_custom_call.1} parent=79 // pred_check_branch
        %7868 = sbr.rel (%p7866) target = $region84
      $region83: #{tpu_custom_call.1} parent=79 // pred_region
        %p7869 = scmp.lt.s32.totalorder %s25, 1
        %s7870 = scalar_select %p7869, %s25, 1
        %s7871 = smul.addr %s7870, 4
        %s7872 = smul.addr %s7871, 8
        %s7873 = scalar_lea.vmem %s13, %s7872
      $region84: #{tpu_custom_call.1} parent=79 // pred_fallthru
        _
    $region80: #{tpu_custom_call.1} parent=5 // pred_fallthru
      _
  $region6: #{tpu_custom_call.1} parent=0 // loop_footer
    %s23 = sadd.s32 1, %s19
  $region7: #{tpu_custom_call.1} parent=0 // loop_footer_branch
    %18 = sbr.rel target = $region3
  $region8: #{tpu_custom_call.1} parent=0 // loop_exit
    _

</llo_original>
